<compile_context>
chip_gen: v7x
topology: tpu7x:2x2x1
jax: 0.10.0
libtpu: 0.0.40
codegen_flags: <defaults>
</compile_context>

<pallas_src>
import functools

import jax
import jax.numpy as jnp
from jax.experimental import pallas as pl
from jax.experimental.pallas import tpu as pltpu


# ----------------------------------------------------------------------------
# Kernel: one grid step == one batch element; all T and heads handled inside.
# ----------------------------------------------------------------------------
def _mha_kernel(x_ref, *args, H, d, T, N, has_bias):
    if has_bias:
        (bias_ref, wqkv_ref, bqkv_ref, wo_ref, bo_ref,
         o_ref, s_scr, o_scr) = args
    else:
        (wqkv_ref, bqkv_ref, wo_ref, bo_ref,
         o_ref, s_scr, o_scr) = args
        bias_ref = None

    f32 = jnp.float32
    C = H * d

    # ---- Fused Q/K/V projection: one MXU push, (3C,3C) @ (3C, T*N). --------
    # Weights are block-diagonal [Wq*scale; Wk; Wv] in PyTorch (out,in) layout,
    # the input slab is [xq; xk; xv] stacked on sublanes:  y^T = W x^T + b.
    proj = jnp.dot(wqkv_ref[...], x_ref[0], preferred_element_type=f32)
    proj = proj + bqkv_ref[...]
    qf = proj[0:C]                      # (C, T*N), scale already folded in
    kf = proj[C:2 * C]                  # (C, T*N)
    vf = proj[2 * C:3 * C]              # (C, T*N)

    # ---- Raw attention scores for every (t, h) block -> lane-dense slab. ---
    # Slab layout: rows = query node nq, columns = (t, h, nk).
    for t in range(T):
        q_t = qf[:, t * N:(t + 1) * N]          # (C, N)   one lane slice per t
        k_t = kf[:, t * N:(t + 1) * N]          # (C, N)
        for h in range(H):
            qt = q_t[h * d:(h + 1) * d]         # (d, N)   aligned sublane slice
            kt = k_t[h * d:(h + 1) * d]         # (d, N)
            s = jnp.dot(qt.T, kt, preferred_element_type=f32)   # (Nq, Nk)
            c0 = (t * H + h) * N
            s_scr[:, c0:c0 + N] = s

    scores = s_scr[...]                         # (Nq, T*H*Nk)
    if has_bias:
        scores = scores + bias_ref[0]           # single dense VPU add

    # ---- Batched softmax over the QUERY axis (torch.softmax(x, dim=3)). ----
    # Columns of the slab are independent, so one sublane-axis softmax covers
    # all T*H blocks at full 128-lane occupancy.
    m = jnp.max(scores, axis=0, keepdims=True)
    p = jnp.exp(scores - m)
    denom = jnp.sum(p, axis=0, keepdims=True)
    p = p * pl.reciprocal(denom, approx=True)   # divide -> EUP reciprocal

    # ---- P @ V per (t, h), assembled into the (H*d, T*N) O^T slab. ---------
    for t in range(T):
        v_t = vf[:, t * N:(t + 1) * N]          # (C, N)
        for h in range(H):
            c0 = (t * H + h) * N
            p_th = p[:, c0:c0 + N]              # (Nq, Nk)
            vt = v_t[h * d:(h + 1) * d]         # (d, Nk)
            o_scr[h * d:(h + 1) * d, t * N:(t + 1) * N] = jnp.dot(
                vt, p_th.T, preferred_element_type=f32)         # (d, Nq)

    # ---- Single output projection + bias, ONE unmasked (C, T*N) store. -----
    out = jnp.dot(wo_ref[...], o_scr[...], preferred_element_type=f32)
    o_ref[0, :, :] = out + bo_ref[...]


# ----------------------------------------------------------------------------
# Wrapper: layout plumbing + pallas_call.
# ----------------------------------------------------------------------------
def multi_head_attention(params, q, k, v, attn_bias=None):
    """q, k, v: (B, C, N, T);  attn_bias: (B, in_len, N, N, H) or None.
    Returns (B, T, N, C), matching the PyTorch module's output."""
    B, C, N, T = q.shape
    H = params['num_heads']
    d = C // H
    scale = d ** (-0.5)
    TN = T * N
    has_bias = attn_bias is not None
    hp = jax.lax.Precision.HIGHEST

    # Tokens (t, n) flattened onto the lane axis, channels on sublanes; q/k/v
    # stacked on sublanes so the kernel does ONE fused projection matmul.
    to_slab = lambda z: jnp.transpose(z, (0, 1, 3, 2)).reshape(B, C, TN).astype(jnp.float32)
    x_all = jnp.concatenate([to_slab(q), to_slab(k), to_slab(v)], axis=1)   # (B, 3C, TN)

    # Block-diagonal fused QKV weights (PyTorch (out, in) layout); the
    # attention scale is folded into Wq / bq (constant fold, no per-step mul).
    wq_s = (params['wq'] * scale).astype(jnp.float32)
    wk_f = params['wk'].astype(jnp.float32)
    wv_f = params['wv'].astype(jnp.float32)
    Z = jnp.zeros((C, C), jnp.float32)
    wqkv = jnp.concatenate([
        jnp.concatenate([wq_s, Z, Z], axis=1),
        jnp.concatenate([Z, wk_f, Z], axis=1),
        jnp.concatenate([Z, Z, wv_f], axis=1),
    ], axis=0)                                                               # (3C, 3C)
    bqkv = jnp.concatenate([params['bq'] * scale, params['bk'],
                            params['bv']]).reshape(3 * C, 1).astype(jnp.float32)

    inputs = [x_all]
    in_specs = [pl.BlockSpec((1, 3 * C, TN), lambda b: (b, 0, 0))]

    if has_bias:
        # Per-seq-len Dimension{1..6} linear (static dispatch on T, like the
        # torch if/elif chain), delivered lane-dense in the exact slab layout
        # the kernel's batched softmax consumes: (B, Nq, T*H*Nk).
        wdim, bdim = params['dims'][T]            # (T, L), (T,)
        bias = jnp.einsum('blqkh,tl->bqthk', attn_bias.astype(jnp.float32),
                          wdim.astype(jnp.float32), precision=hp)
        bias = bias + bdim.astype(jnp.float32)[None, None, :, None, None]
        inputs.append(bias.reshape(B, N, T * H * N))
        in_specs.append(pl.BlockSpec((1, N, T * H * N), lambda b: (b, 0, 0)))
    # else: no bias tensor is DMA'd at all (matches torch's `attn_bias is None`).

    full = lambda shp: pl.BlockSpec(shp, lambda b, _n=len(shp): (0,) * _n)
    inputs += [wqkv, bqkv, params['wo'].astype(jnp.float32),
               params['bo'].reshape(C, 1).astype(jnp.float32)]
    in_specs += [full((3 * C, 3 * C)), full((3 * C, 1)),
                 full((C, C)), full((C, 1))]

    kernel = functools.partial(_mha_kernel, H=H, d=d, T=T, N=N,
                               has_bias=has_bias)

    out = pl.pallas_call(
        kernel,
        out_shape=jax.ShapeDtypeStruct((B, C, TN), jnp.float32),
        grid=(B,),
        in_specs=in_specs,
        out_specs=pl.BlockSpec((1, C, TN), lambda b: (b, 0, 0)),
        scratch_shapes=[pltpu.VMEM((N, T * H * N), jnp.float32),   # score slab
                        pltpu.VMEM((C, TN), jnp.float32)],         # O^T slab
        compiler_params=pltpu.CompilerParams(dimension_semantics=("parallel",)),
    )(*inputs)

    # TODO(synk): attention dropout (training mode) skipped -> eval identity.
    return jnp.transpose(out.reshape(B, C, T, N), (0, 2, 3, 1))    # (B, T, N, C)


# ----------------------------------------------------------------------------
# Pure-JAX reference (mirrors the PyTorch forward, eval mode) for validation.
# ----------------------------------------------------------------------------
def mha_reference(params, q, k, v, attn_bias):
    hp = jax.lax.Precision.HIGHEST
    B, C, N, T = q.shape
    H = params['num_heads']
    d = C // H
    scale = d ** -0.5

    qt = jnp.transpose(q, (0, 3, 2, 1))   # (B, T, N, C)
    kt = jnp.transpose(k, (0, 3, 2, 1))
    vt = jnp.transpose(v, (0, 3, 2, 1))

    def lin(x, w, b):                      # nn.Linear: x @ w.T + b
        return jnp.einsum('btnc,oc->btno', x, w, precision=hp) + b

    qh = lin(qt, params['wq'], params['bq']).reshape(B, T, N, H, d)
    kh = lin(kt, params['wk'], params['bk']).reshape(B, T, N, H, d)
    vh = lin(vt, params['wv'], params['bv']).reshape(B, T, N, H, d)
    qh = jnp.transpose(qh, (0, 1, 3, 2, 4)) * scale    # (B, T, H, N, d)
    kh = jnp.transpose(kh, (0, 1, 3, 2, 4))
    vh = jnp.transpose(vh, (0, 1, 3, 2, 4))

    s = jnp.einsum('bthqd,bthkd->bthqk', qh, kh, precision=hp)
    wdim, bdim = params['dims'][T]
    bias = jnp.einsum('blqkh,tl->bthqk', attn_bias, wdim, precision=hp)
    bias = bias + bdim[None, :, None, None, None]
    s = s + bias
    p = jax.nn.softmax(s, axis=3)          # dim=3 == query axis
    o = jnp.einsum('bthqk,bthkd->bthqd', p, vh, precision=hp)
    o = jnp.transpose(o, (0, 1, 3, 2, 4)).reshape(B, T, N, H * d)
    return jnp.einsum('btnj,oj->btno', o, params['wo'], precision=hp) + params['bo']


# ----------------------------------------------------------------------------
if __name__ == "__main__":
    B, C, N, T = 2, 32, 16, 8      # hidden_size=32, nodes=16, seq_len=8 (Dimension3)
    H = 4                          # att_size d = 8
    L = 14                         # in_len

    key = jax.random.PRNGKey(0)
    ks = jax.random.split(key, 16)
    nrm = lambda k_, shp, s=0.1: s * jax.random.normal(k_, shp, dtype=jnp.float32)

    dims = {o: (nrm(jax.random.fold_in(ks[0], o), (o, L)),
                nrm(jax.random.fold_in(ks[1], o), (o,)))
            for o in (14, 12, 8, 7, 5, 1)}   # Dimension1..6 (weight in (out, in))

    params = dict(
        num_heads=H, in_len=L, attention_dropout_rate=0.1,
        wq=nrm(ks[2], (C, C)), bq=nrm(ks[3], (C,)),
        wk=nrm(ks[4], (C, C)), bk=nrm(ks[5], (C,)),
        wv=nrm(ks[6], (C, C)), bv=nrm(ks[7], (C,)),
        wo=nrm(ks[8], (C, C)), bo=nrm(ks[9], (C,)),
        dims=dims,
    )

    q = jax.random.normal(ks[10], (B, C, N, T), dtype=jnp.float32)
    k = jax.random.normal(ks[11], (B, C, N, T), dtype=jnp.float32)
    v = jax.random.normal(ks[12], (B, C, N, T), dtype=jnp.float32)
    attn_bias = 0.1 * jax.random.normal(ks[13], (B, L, N, N, H), dtype=jnp.float32)

    fwd = jax.jit(functools.partial(multi_head_attention, params))
    out = jax.block_until_ready(fwd(q, k, v, attn_bias))
    assert out.shape == (B, T, N, C)

    ref = mha_reference(params, q, k, v, attn_bias)
    max_err = float(jnp.max(jnp.abs(out - ref)))
    assert jnp.allclose(out, ref, rtol=2e-3, atol=2e-3), f"max abs err {max_err}"

    print("KERNEL_OK")
</pallas_src>

<mosaic_0001>
module attributes {stable_mosaic.version = 11 : i64} {
  func.func @_mha_kernel(%arg0: i32, %arg1: memref<1x96x128xf32, #tpu.memory_space<vmem>>, %arg2: memref<1x16x512xf32, #tpu.memory_space<vmem>>, %arg3: memref<96x96xf32, #tpu.memory_space<vmem>>, %arg4: memref<96x1xf32, #tpu.memory_space<vmem>>, %arg5: memref<32x32xf32, #tpu.memory_space<vmem>>, %arg6: memref<32x1xf32, #tpu.memory_space<vmem>>, %arg7: memref<1x32x128xf32, #tpu.memory_space<vmem>>, %arg8: memref<16x512xf32, #tpu.memory_space<vmem>>, %arg9: memref<32x128xf32, #tpu.memory_space<vmem>>) attributes {dimension_semantics = [#tpu.dimension_semantics<parallel>], iteration_bounds = array<i64: 2>, scalar_prefetch = 0 : i64, scratch_operands = 2 : i64, tpu.core_type = #tpu.core_type<tc>, window_params = [{transform_indices = @transform_0, window_bounds = array<i64: 1, 96, 128>}, {transform_indices = @transform_1, window_bounds = array<i64: 1, 16, 512>}, {pipeline_mode = #tpu.pipeline_mode<synchronous>, transform_indices = @transform_2, window_bounds = array<i64: 96, 96>}, {pipeline_mode = #tpu.pipeline_mode<synchronous>, transform_indices = @transform_3, window_bounds = array<i64: 96, 1>}, {pipeline_mode = #tpu.pipeline_mode<synchronous>, transform_indices = @transform_4, window_bounds = array<i64: 32, 32>}, {pipeline_mode = #tpu.pipeline_mode<synchronous>, transform_indices = @transform_5, window_bounds = array<i64: 32, 1>}, {transform_indices = @transform_6, window_bounds = array<i64: 1, 32, 128>}]} {
    %c0 = arith.constant 0 : index
    %c0_0 = arith.constant 0 : index
    %0 = vector.load %arg3[%c0, %c0_0] : memref<96x96xf32, #tpu.memory_space<vmem>>, vector<96x96xf32>
    %c0_1 = arith.constant 0 : index
    %c0_2 = arith.constant 0 : index
    %c0_3 = arith.constant 0 : index
    %1 = vector.load %arg1[%c0_1, %c0_2, %c0_3] : memref<1x96x128xf32, #tpu.memory_space<vmem>>, vector<1x96x128xf32>
    %2 = vector.shape_cast %1 : vector<1x96x128xf32> to vector<96x128xf32>
    %cst = arith.constant dense<0.000000e+00> : vector<96x128xf32>
    %3 = tpu.matmul %0, %2, %cst {dimension_numbers = #tpu.dot_dimension_numbers<[1], [0], [0], [1], [0, 0, 1, 1], [], []>} : vector<96x96xf32>, vector<96x128xf32>, vector<96x128xf32> -> vector<96x128xf32>
    %c0_4 = arith.constant 0 : index
    %c0_5 = arith.constant 0 : index
    %4 = vector.load %arg4[%c0_4, %c0_5] : memref<96x1xf32, #tpu.memory_space<vmem>>, vector<96x1xf32>
    %5 = vector.broadcast %4 : vector<96x1xf32> to vector<96x128xf32>
    %6 = arith.addf %3, %5 : vector<96x128xf32>
    %7 = vector.extract_strided_slice %6 {offsets = [0, 0], sizes = [32, 128], strides = [1, 1]} : vector<96x128xf32> to vector<32x128xf32>
    %8 = vector.extract_strided_slice %6 {offsets = [32, 0], sizes = [32, 128], strides = [1, 1]} : vector<96x128xf32> to vector<32x128xf32>
    %9 = vector.extract_strided_slice %6 {offsets = [64, 0], sizes = [32, 128], strides = [1, 1]} : vector<96x128xf32> to vector<32x128xf32>
    %10 = vector.extract_strided_slice %7 {offsets = [0, 0], sizes = [32, 16], strides = [1, 1]} : vector<32x128xf32> to vector<32x16xf32>
    %11 = vector.extract_strided_slice %8 {offsets = [0, 0], sizes = [32, 16], strides = [1, 1]} : vector<32x128xf32> to vector<32x16xf32>
    %12 = vector.extract_strided_slice %10 {offsets = [0, 0], sizes = [8, 16], strides = [1, 1]} : vector<32x16xf32> to vector<8x16xf32>
    %13 = vector.extract_strided_slice %11 {offsets = [0, 0], sizes = [8, 16], strides = [1, 1]} : vector<32x16xf32> to vector<8x16xf32>
    %14 = tpu.transpose %12, [1, 0] : vector<8x16xf32> -> vector<16x8xf32>
    %cst_6 = arith.constant dense<0.000000e+00> : vector<16x16xf32>
    %15 = tpu.matmul %14, %13, %cst_6 {dimension_numbers = #tpu.dot_dimension_numbers<[1], [0], [0], [1], [0, 0, 1, 1], [], []>} : vector<16x8xf32>, vector<8x16xf32>, vector<16x16xf32> -> vector<16x16xf32>
    %c0_7 = arith.constant 0 : index
    %c0_8 = arith.constant 0 : index
    %16 = vector.load %arg8[%c0_7, %c0_8] : memref<16x512xf32, #tpu.memory_space<vmem>>, vector<16x16xf32>
    tpu.vector_store %arg8[%c0_7, %c0_8], %15 {strides = array<i32>} : memref<16x512xf32, #tpu.memory_space<vmem>>, vector<16x16xf32>,
    %17 = vector.extract_strided_slice %10 {offsets = [8, 0], sizes = [8, 16], strides = [1, 1]} : vector<32x16xf32> to vector<8x16xf32>
    %18 = vector.extract_strided_slice %11 {offsets = [8, 0], sizes = [8, 16], strides = [1, 1]} : vector<32x16xf32> to vector<8x16xf32>
    %19 = tpu.transpose %17, [1, 0] : vector<8x16xf32> -> vector<16x8xf32>
    %cst_9 = arith.constant dense<0.000000e+00> : vector<16x16xf32>
    %20 = tpu.matmul %19, %18, %cst_9 {dimension_numbers = #tpu.dot_dimension_numbers<[1], [0], [0], [1], [0, 0, 1, 1], [], []>} : vector<16x8xf32>, vector<8x16xf32>, vector<16x16xf32> -> vector<16x16xf32>
    %c0_10 = arith.constant 0 : index
    %c16 = arith.constant 16 : index
    %21 = vector.load %arg8[%c0_10, %c16] : memref<16x512xf32, #tpu.memory_space<vmem>>, vector<16x16xf32>
    tpu.vector_store %arg8[%c0_10, %c16], %20 {strides = array<i32>} : memref<16x512xf32, #tpu.memory_space<vmem>>, vector<16x16xf32>,
    %22 = vector.extract_strided_slice %10 {offsets = [16, 0], sizes = [8, 16], strides = [1, 1]} : vector<32x16xf32> to vector<8x16xf32>
    %23 = vector.extract_strided_slice %11 {offsets = [16, 0], sizes = [8, 16], strides = [1, 1]} : vector<32x16xf32> to vector<8x16xf32>
    %24 = tpu.transpose %22, [1, 0] : vector<8x16xf32> -> vector<16x8xf32>
    %cst_11 = arith.constant dense<0.000000e+00> : vector<16x16xf32>
    %25 = tpu.matmul %24, %23, %cst_11 {dimension_numbers = #tpu.dot_dimension_numbers<[1], [0], [0], [1], [0, 0, 1, 1], [], []>} : vector<16x8xf32>, vector<8x16xf32>, vector<16x16xf32> -> vector<16x16xf32>
    %c0_12 = arith.constant 0 : index
    %c32 = arith.constant 32 : index
    %26 = vector.load %arg8[%c0_12, %c32] : memref<16x512xf32, #tpu.memory_space<vmem>>, vector<16x16xf32>
    tpu.vector_store %arg8[%c0_12, %c32], %25 {strides = array<i32>} : memref<16x512xf32, #tpu.memory_space<vmem>>, vector<16x16xf32>,
    %27 = vector.extract_strided_slice %10 {offsets = [24, 0], sizes = [8, 16], strides = [1, 1]} : vector<32x16xf32> to vector<8x16xf32>
    %28 = vector.extract_strided_slice %11 {offsets = [24, 0], sizes = [8, 16], strides = [1, 1]} : vector<32x16xf32> to vector<8x16xf32>
    %29 = tpu.transpose %27, [1, 0] : vector<8x16xf32> -> vector<16x8xf32>
    %cst_13 = arith.constant dense<0.000000e+00> : vector<16x16xf32>
    %30 = tpu.matmul %29, %28, %cst_13 {dimension_numbers = #tpu.dot_dimension_numbers<[1], [0], [0], [1], [0, 0, 1, 1], [], []>} : vector<16x8xf32>, vector<8x16xf32>, vector<16x16xf32> -> vector<16x16xf32>
    %c0_14 = arith.constant 0 : index
    %c48 = arith.constant 48 : index
    %31 = vector.load %arg8[%c0_14, %c48] : memref<16x512xf32, #tpu.memory_space<vmem>>, vector<16x16xf32>
    tpu.vector_store %arg8[%c0_14, %c48], %30 {strides = array<i32>} : memref<16x512xf32, #tpu.memory_space<vmem>>, vector<16x16xf32>,
    %32 = vector.extract_strided_slice %7 {offsets = [0, 16], sizes = [32, 16], strides = [1, 1]} : vector<32x128xf32> to vector<32x16xf32>
    %33 = vector.extract_strided_slice %8 {offsets = [0, 16], sizes = [32, 16], strides = [1, 1]} : vector<32x128xf32> to vector<32x16xf32>
    %34 = vector.extract_strided_slice %32 {offsets = [0, 0], sizes = [8, 16], strides = [1, 1]} : vector<32x16xf32> to vector<8x16xf32>
    %35 = vector.extract_strided_slice %33 {offsets = [0, 0], sizes = [8, 16], strides = [1, 1]} : vector<32x16xf32> to vector<8x16xf32>
    %36 = tpu.transpose %34, [1, 0] : vector<8x16xf32> -> vector<16x8xf32>
    %cst_15 = arith.constant dense<0.000000e+00> : vector<16x16xf32>
    %37 = tpu.matmul %36, %35, %cst_15 {dimension_numbers = #tpu.dot_dimension_numbers<[1], [0], [0], [1], [0, 0, 1, 1], [], []>} : vector<16x8xf32>, vector<8x16xf32>, vector<16x16xf32> -> vector<16x16xf32>
    %c0_16 = arith.constant 0 : index
    %c64 = arith.constant 64 : index
    %38 = vector.load %arg8[%c0_16, %c64] : memref<16x512xf32, #tpu.memory_space<vmem>>, vector<16x16xf32>
    tpu.vector_store %arg8[%c0_16, %c64], %37 {strides = array<i32>} : memref<16x512xf32, #tpu.memory_space<vmem>>, vector<16x16xf32>,
    %39 = vector.extract_strided_slice %32 {offsets = [8, 0], sizes = [8, 16], strides = [1, 1]} : vector<32x16xf32> to vector<8x16xf32>
    %40 = vector.extract_strided_slice %33 {offsets = [8, 0], sizes = [8, 16], strides = [1, 1]} : vector<32x16xf32> to vector<8x16xf32>
    %41 = tpu.transpose %39, [1, 0] : vector<8x16xf32> -> vector<16x8xf32>
    %cst_17 = arith.constant dense<0.000000e+00> : vector<16x16xf32>
    %42 = tpu.matmul %41, %40, %cst_17 {dimension_numbers = #tpu.dot_dimension_numbers<[1], [0], [0], [1], [0, 0, 1, 1], [], []>} : vector<16x8xf32>, vector<8x16xf32>, vector<16x16xf32> -> vector<16x16xf32>
    %c0_18 = arith.constant 0 : index
    %c80 = arith.constant 80 : index
    %43 = vector.load %arg8[%c0_18, %c80] : memref<16x512xf32, #tpu.memory_space<vmem>>, vector<16x16xf32>
    tpu.vector_store %arg8[%c0_18, %c80], %42 {strides = array<i32>} : memref<16x512xf32, #tpu.memory_space<vmem>>, vector<16x16xf32>,
    %44 = vector.extract_strided_slice %32 {offsets = [16, 0], sizes = [8, 16], strides = [1, 1]} : vector<32x16xf32> to vector<8x16xf32>
    %45 = vector.extract_strided_slice %33 {offsets = [16, 0], sizes = [8, 16], strides = [1, 1]} : vector<32x16xf32> to vector<8x16xf32>
    %46 = tpu.transpose %44, [1, 0] : vector<8x16xf32> -> vector<16x8xf32>
    %cst_19 = arith.constant dense<0.000000e+00> : vector<16x16xf32>
    %47 = tpu.matmul %46, %45, %cst_19 {dimension_numbers = #tpu.dot_dimension_numbers<[1], [0], [0], [1], [0, 0, 1, 1], [], []>} : vector<16x8xf32>, vector<8x16xf32>, vector<16x16xf32> -> vector<16x16xf32>
    %c0_20 = arith.constant 0 : index
    %c96 = arith.constant 96 : index
    %48 = vector.load %arg8[%c0_20, %c96] : memref<16x512xf32, #tpu.memory_space<vmem>>, vector<16x16xf32>
    tpu.vector_store %arg8[%c0_20, %c96], %47 {strides = array<i32>} : memref<16x512xf32, #tpu.memory_space<vmem>>, vector<16x16xf32>,
    %49 = vector.extract_strided_slice %32 {offsets = [24, 0], sizes = [8, 16], strides = [1, 1]} : vector<32x16xf32> to vector<8x16xf32>
    %50 = vector.extract_strided_slice %33 {offsets = [24, 0], sizes = [8, 16], strides = [1, 1]} : vector<32x16xf32> to vector<8x16xf32>
    %51 = tpu.transpose %49, [1, 0] : vector<8x16xf32> -> vector<16x8xf32>
    %cst_21 = arith.constant dense<0.000000e+00> : vector<16x16xf32>
    %52 = tpu.matmul %51, %50, %cst_21 {dimension_numbers = #tpu.dot_dimension_numbers<[1], [0], [0], [1], [0, 0, 1, 1], [], []>} : vector<16x8xf32>, vector<8x16xf32>, vector<16x16xf32> -> vector<16x16xf32>
    %c0_22 = arith.constant 0 : index
    %c112 = arith.constant 112 : index
    %53 = vector.load %arg8[%c0_22, %c112] : memref<16x512xf32, #tpu.memory_space<vmem>>, vector<16x16xf32>
    tpu.vector_store %arg8[%c0_22, %c112], %52 {strides = array<i32>} : memref<16x512xf32, #tpu.memory_space<vmem>>, vector<16x16xf32>,
    %54 = vector.extract_strided_slice %7 {offsets = [0, 32], sizes = [32, 16], strides = [1, 1]} : vector<32x128xf32> to vector<32x16xf32>
    %55 = vector.extract_strided_slice %8 {offsets = [0, 32], sizes = [32, 16], strides = [1, 1]} : vector<32x128xf32> to vector<32x16xf32>
    %56 = vector.extract_strided_slice %54 {offsets = [0, 0], sizes = [8, 16], strides = [1, 1]} : vector<32x16xf32> to vector<8x16xf32>
    %57 = vector.extract_strided_slice %55 {offsets = [0, 0], sizes = [8, 16], strides = [1, 1]} : vector<32x16xf32> to vector<8x16xf32>
    %58 = tpu.transpose %56, [1, 0] : vector<8x16xf32> -> vector<16x8xf32>
    %cst_23 = arith.constant dense<0.000000e+00> : vector<16x16xf32>
    %59 = tpu.matmul %58, %57, %cst_23 {dimension_numbers = #tpu.dot_dimension_numbers<[1], [0], [0], [1], [0, 0, 1, 1], [], []>} : vector<16x8xf32>, vector<8x16xf32>, vector<16x16xf32> -> vector<16x16xf32>
    %c0_24 = arith.constant 0 : index
    %c128 = arith.constant 128 : index
    %60 = vector.load %arg8[%c0_24, %c128] : memref<16x512xf32, #tpu.memory_space<vmem>>, vector<16x16xf32>
    tpu.vector_store %arg8[%c0_24, %c128], %59 {strides = array<i32>} : memref<16x512xf32, #tpu.memory_space<vmem>>, vector<16x16xf32>,
    %61 = vector.extract_strided_slice %54 {offsets = [8, 0], sizes = [8, 16], strides = [1, 1]} : vector<32x16xf32> to vector<8x16xf32>
    %62 = vector.extract_strided_slice %55 {offsets = [8, 0], sizes = [8, 16], strides = [1, 1]} : vector<32x16xf32> to vector<8x16xf32>
    %63 = tpu.transpose %61, [1, 0] : vector<8x16xf32> -> vector<16x8xf32>
    %cst_25 = arith.constant dense<0.000000e+00> : vector<16x16xf32>
    %64 = tpu.matmul %63, %62, %cst_25 {dimension_numbers = #tpu.dot_dimension_numbers<[1], [0], [0], [1], [0, 0, 1, 1], [], []>} : vector<16x8xf32>, vector<8x16xf32>, vector<16x16xf32> -> vector<16x16xf32>
    %c0_26 = arith.constant 0 : index
    %c144 = arith.constant 144 : index
    %65 = vector.load %arg8[%c0_26, %c144] : memref<16x512xf32, #tpu.memory_space<vmem>>, vector<16x16xf32>
    tpu.vector_store %arg8[%c0_26, %c144], %64 {strides = array<i32>} : memref<16x512xf32, #tpu.memory_space<vmem>>, vector<16x16xf32>,
    %66 = vector.extract_strided_slice %54 {offsets = [16, 0], sizes = [8, 16], strides = [1, 1]} : vector<32x16xf32> to vector<8x16xf32>
    %67 = vector.extract_strided_slice %55 {offsets = [16, 0], sizes = [8, 16], strides = [1, 1]} : vector<32x16xf32> to vector<8x16xf32>
    %68 = tpu.transpose %66, [1, 0] : vector<8x16xf32> -> vector<16x8xf32>
    %cst_27 = arith.constant dense<0.000000e+00> : vector<16x16xf32>
    %69 = tpu.matmul %68, %67, %cst_27 {dimension_numbers = #tpu.dot_dimension_numbers<[1], [0], [0], [1], [0, 0, 1, 1], [], []>} : vector<16x8xf32>, vector<8x16xf32>, vector<16x16xf32> -> vector<16x16xf32>
    %c0_28 = arith.constant 0 : index
    %c160 = arith.constant 160 : index
    %70 = vector.load %arg8[%c0_28, %c160] : memref<16x512xf32, #tpu.memory_space<vmem>>, vector<16x16xf32>
    tpu.vector_store %arg8[%c0_28, %c160], %69 {strides = array<i32>} : memref<16x512xf32, #tpu.memory_space<vmem>>, vector<16x16xf32>,
    %71 = vector.extract_strided_slice %54 {offsets = [24, 0], sizes = [8, 16], strides = [1, 1]} : vector<32x16xf32> to vector<8x16xf32>
    %72 = vector.extract_strided_slice %55 {offsets = [24, 0], sizes = [8, 16], strides = [1, 1]} : vector<32x16xf32> to vector<8x16xf32>
    %73 = tpu.transpose %71, [1, 0] : vector<8x16xf32> -> vector<16x8xf32>
    %cst_29 = arith.constant dense<0.000000e+00> : vector<16x16xf32>
    %74 = tpu.matmul %73, %72, %cst_29 {dimension_numbers = #tpu.dot_dimension_numbers<[1], [0], [0], [1], [0, 0, 1, 1], [], []>} : vector<16x8xf32>, vector<8x16xf32>, vector<16x16xf32> -> vector<16x16xf32>
    %c0_30 = arith.constant 0 : index
    %c176 = arith.constant 176 : index
    %75 = vector.load %arg8[%c0_30, %c176] : memref<16x512xf32, #tpu.memory_space<vmem>>, vector<16x16xf32>
    tpu.vector_store %arg8[%c0_30, %c176], %74 {strides = array<i32>} : memref<16x512xf32, #tpu.memory_space<vmem>>, vector<16x16xf32>,
    %76 = vector.extract_strided_slice %7 {offsets = [0, 48], sizes = [32, 16], strides = [1, 1]} : vector<32x128xf32> to vector<32x16xf32>
    %77 = vector.extract_strided_slice %8 {offsets = [0, 48], sizes = [32, 16], strides = [1, 1]} : vector<32x128xf32> to vector<32x16xf32>
    %78 = vector.extract_strided_slice %76 {offsets = [0, 0], sizes = [8, 16], strides = [1, 1]} : vector<32x16xf32> to vector<8x16xf32>
    %79 = vector.extract_strided_slice %77 {offsets = [0, 0], sizes = [8, 16], strides = [1, 1]} : vector<32x16xf32> to vector<8x16xf32>
    %80 = tpu.transpose %78, [1, 0] : vector<8x16xf32> -> vector<16x8xf32>
    %cst_31 = arith.constant dense<0.000000e+00> : vector<16x16xf32>
    %81 = tpu.matmul %80, %79, %cst_31 {dimension_numbers = #tpu.dot_dimension_numbers<[1], [0], [0], [1], [0, 0, 1, 1], [], []>} : vector<16x8xf32>, vector<8x16xf32>, vector<16x16xf32> -> vector<16x16xf32>
    %c0_32 = arith.constant 0 : index
    %c192 = arith.constant 192 : index
    %82 = vector.load %arg8[%c0_32, %c192] : memref<16x512xf32, #tpu.memory_space<vmem>>, vector<16x16xf32>
    tpu.vector_store %arg8[%c0_32, %c192], %81 {strides = array<i32>} : memref<16x512xf32, #tpu.memory_space<vmem>>, vector<16x16xf32>,
    %83 = vector.extract_strided_slice %76 {offsets = [8, 0], sizes = [8, 16], strides = [1, 1]} : vector<32x16xf32> to vector<8x16xf32>
    %84 = vector.extract_strided_slice %77 {offsets = [8, 0], sizes = [8, 16], strides = [1, 1]} : vector<32x16xf32> to vector<8x16xf32>
    %85 = tpu.transpose %83, [1, 0] : vector<8x16xf32> -> vector<16x8xf32>
    %cst_33 = arith.constant dense<0.000000e+00> : vector<16x16xf32>
    %86 = tpu.matmul %85, %84, %cst_33 {dimension_numbers = #tpu.dot_dimension_numbers<[1], [0], [0], [1], [0, 0, 1, 1], [], []>} : vector<16x8xf32>, vector<8x16xf32>, vector<16x16xf32> -> vector<16x16xf32>
    %c0_34 = arith.constant 0 : index
    %c208 = arith.constant 208 : index
    %87 = vector.load %arg8[%c0_34, %c208] : memref<16x512xf32, #tpu.memory_space<vmem>>, vector<16x16xf32>
    tpu.vector_store %arg8[%c0_34, %c208], %86 {strides = array<i32>} : memref<16x512xf32, #tpu.memory_space<vmem>>, vector<16x16xf32>,
    %88 = vector.extract_strided_slice %76 {offsets = [16, 0], sizes = [8, 16], strides = [1, 1]} : vector<32x16xf32> to vector<8x16xf32>
    %89 = vector.extract_strided_slice %77 {offsets = [16, 0], sizes = [8, 16], strides = [1, 1]} : vector<32x16xf32> to vector<8x16xf32>
    %90 = tpu.transpose %88, [1, 0] : vector<8x16xf32> -> vector<16x8xf32>
    %cst_35 = arith.constant dense<0.000000e+00> : vector<16x16xf32>
    %91 = tpu.matmul %90, %89, %cst_35 {dimension_numbers = #tpu.dot_dimension_numbers<[1], [0], [0], [1], [0, 0, 1, 1], [], []>} : vector<16x8xf32>, vector<8x16xf32>, vector<16x16xf32> -> vector<16x16xf32>
    %c0_36 = arith.constant 0 : index
    %c224 = arith.constant 224 : index
    %92 = vector.load %arg8[%c0_36, %c224] : memref<16x512xf32, #tpu.memory_space<vmem>>, vector<16x16xf32>
    tpu.vector_store %arg8[%c0_36, %c224], %91 {strides = array<i32>} : memref<16x512xf32, #tpu.memory_space<vmem>>, vector<16x16xf32>,
    %93 = vector.extract_strided_slice %76 {offsets = [24, 0], sizes = [8, 16], strides = [1, 1]} : vector<32x16xf32> to vector<8x16xf32>
    %94 = vector.extract_strided_slice %77 {offsets = [24, 0], sizes = [8, 16], strides = [1, 1]} : vector<32x16xf32> to vector<8x16xf32>
    %95 = tpu.transpose %93, [1, 0] : vector<8x16xf32> -> vector<16x8xf32>
    %cst_37 = arith.constant dense<0.000000e+00> : vector<16x16xf32>
    %96 = tpu.matmul %95, %94, %cst_37 {dimension_numbers = #tpu.dot_dimension_numbers<[1], [0], [0], [1], [0, 0, 1, 1], [], []>} : vector<16x8xf32>, vector<8x16xf32>, vector<16x16xf32> -> vector<16x16xf32>
    %c0_38 = arith.constant 0 : index
    %c240 = arith.constant 240 : index
    %97 = vector.load %arg8[%c0_38, %c240] : memref<16x512xf32, #tpu.memory_space<vmem>>, vector<16x16xf32>
    tpu.vector_store %arg8[%c0_38, %c240], %96 {strides = array<i32>} : memref<16x512xf32, #tpu.memory_space<vmem>>, vector<16x16xf32>,
    %98 = vector.extract_strided_slice %7 {offsets = [0, 64], sizes = [32, 16], strides = [1, 1]} : vector<32x128xf32> to vector<32x16xf32>
    %99 = vector.extract_strided_slice %8 {offsets = [0, 64], sizes = [32, 16], strides = [1, 1]} : vector<32x128xf32> to vector<32x16xf32>
    %100 = vector.extract_strided_slice %98 {offsets = [0, 0], sizes = [8, 16], strides = [1, 1]} : vector<32x16xf32> to vector<8x16xf32>
    %101 = vector.extract_strided_slice %99 {offsets = [0, 0], sizes = [8, 16], strides = [1, 1]} : vector<32x16xf32> to vector<8x16xf32>
    %102 = tpu.transpose %100, [1, 0] : vector<8x16xf32> -> vector<16x8xf32>
    %cst_39 = arith.constant dense<0.000000e+00> : vector<16x16xf32>
    %103 = tpu.matmul %102, %101, %cst_39 {dimension_numbers = #tpu.dot_dimension_numbers<[1], [0], [0], [1], [0, 0, 1, 1], [], []>} : vector<16x8xf32>, vector<8x16xf32>, vector<16x16xf32> -> vector<16x16xf32>
    %c0_40 = arith.constant 0 : index
    %c256 = arith.constant 256 : index
    %104 = vector.load %arg8[%c0_40, %c256] : memref<16x512xf32, #tpu.memory_space<vmem>>, vector<16x16xf32>
    tpu.vector_store %arg8[%c0_40, %c256], %103 {strides = array<i32>} : memref<16x512xf32, #tpu.memory_space<vmem>>, vector<16x16xf32>,
    %105 = vector.extract_strided_slice %98 {offsets = [8, 0], sizes = [8, 16], strides = [1, 1]} : vector<32x16xf32> to vector<8x16xf32>
    %106 = vector.extract_strided_slice %99 {offsets = [8, 0], sizes = [8, 16], strides = [1, 1]} : vector<32x16xf32> to vector<8x16xf32>
    %107 = tpu.transpose %105, [1, 0] : vector<8x16xf32> -> vector<16x8xf32>
    %cst_41 = arith.constant dense<0.000000e+00> : vector<16x16xf32>
    %108 = tpu.matmul %107, %106, %cst_41 {dimension_numbers = #tpu.dot_dimension_numbers<[1], [0], [0], [1], [0, 0, 1, 1], [], []>} : vector<16x8xf32>, vector<8x16xf32>, vector<16x16xf32> -> vector<16x16xf32>
    %c0_42 = arith.constant 0 : index
    %c272 = arith.constant 272 : index
    %109 = vector.load %arg8[%c0_42, %c272] : memref<16x512xf32, #tpu.memory_space<vmem>>, vector<16x16xf32>
    tpu.vector_store %arg8[%c0_42, %c272], %108 {strides = array<i32>} : memref<16x512xf32, #tpu.memory_space<vmem>>, vector<16x16xf32>,
    %110 = vector.extract_strided_slice %98 {offsets = [16, 0], sizes = [8, 16], strides = [1, 1]} : vector<32x16xf32> to vector<8x16xf32>
    %111 = vector.extract_strided_slice %99 {offsets = [16, 0], sizes = [8, 16], strides = [1, 1]} : vector<32x16xf32> to vector<8x16xf32>
    %112 = tpu.transpose %110, [1, 0] : vector<8x16xf32> -> vector<16x8xf32>
    %cst_43 = arith.constant dense<0.000000e+00> : vector<16x16xf32>
    %113 = tpu.matmul %112, %111, %cst_43 {dimension_numbers = #tpu.dot_dimension_numbers<[1], [0], [0], [1], [0, 0, 1, 1], [], []>} : vector<16x8xf32>, vector<8x16xf32>, vector<16x16xf32> -> vector<16x16xf32>
    %c0_44 = arith.constant 0 : index
    %c288 = arith.constant 288 : index
    %114 = vector.load %arg8[%c0_44, %c288] : memref<16x512xf32, #tpu.memory_space<vmem>>, vector<16x16xf32>
    tpu.vector_store %arg8[%c0_44, %c288], %113 {strides = array<i32>} : memref<16x512xf32, #tpu.memory_space<vmem>>, vector<16x16xf32>,
    %115 = vector.extract_strided_slice %98 {offsets = [24, 0], sizes = [8, 16], strides = [1, 1]} : vector<32x16xf32> to vector<8x16xf32>
    %116 = vector.extract_strided_slice %99 {offsets = [24, 0], sizes = [8, 16], strides = [1, 1]} : vector<32x16xf32> to vector<8x16xf32>
    %117 = tpu.transpose %115, [1, 0] : vector<8x16xf32> -> vector<16x8xf32>
    %cst_45 = arith.constant dense<0.000000e+00> : vector<16x16xf32>
    %118 = tpu.matmul %117, %116, %cst_45 {dimension_numbers = #tpu.dot_dimension_numbers<[1], [0], [0], [1], [0, 0, 1, 1], [], []>} : vector<16x8xf32>, vector<8x16xf32>, vector<16x16xf32> -> vector<16x16xf32>
    %c0_46 = arith.constant 0 : index
    %c304 = arith.constant 304 : index
    %119 = vector.load %arg8[%c0_46, %c304] : memref<16x512xf32, #tpu.memory_space<vmem>>, vector<16x16xf32>
    tpu.vector_store %arg8[%c0_46, %c304], %118 {strides = array<i32>} : memref<16x512xf32, #tpu.memory_space<vmem>>, vector<16x16xf32>,
    %120 = vector.extract_strided_slice %7 {offsets = [0, 80], sizes = [32, 16], strides = [1, 1]} : vector<32x128xf32> to vector<32x16xf32>
    %121 = vector.extract_strided_slice %8 {offsets = [0, 80], sizes = [32, 16], strides = [1, 1]} : vector<32x128xf32> to vector<32x16xf32>
    %122 = vector.extract_strided_slice %120 {offsets = [0, 0], sizes = [8, 16], strides = [1, 1]} : vector<32x16xf32> to vector<8x16xf32>
    %123 = vector.extract_strided_slice %121 {offsets = [0, 0], sizes = [8, 16], strides = [1, 1]} : vector<32x16xf32> to vector<8x16xf32>
    %124 = tpu.transpose %122, [1, 0] : vector<8x16xf32> -> vector<16x8xf32>
    %cst_47 = arith.constant dense<0.000000e+00> : vector<16x16xf32>
    %125 = tpu.matmul %124, %123, %cst_47 {dimension_numbers = #tpu.dot_dimension_numbers<[1], [0], [0], [1], [0, 0, 1, 1], [], []>} : vector<16x8xf32>, vector<8x16xf32>, vector<16x16xf32> -> vector<16x16xf32>
    %c0_48 = arith.constant 0 : index
    %c320 = arith.constant 320 : index
    %126 = vector.load %arg8[%c0_48, %c320] : memref<16x512xf32, #tpu.memory_space<vmem>>, vector<16x16xf32>
    tpu.vector_store %arg8[%c0_48, %c320], %125 {strides = array<i32>} : memref<16x512xf32, #tpu.memory_space<vmem>>, vector<16x16xf32>,
    %127 = vector.extract_strided_slice %120 {offsets = [8, 0], sizes = [8, 16], strides = [1, 1]} : vector<32x16xf32> to vector<8x16xf32>
    %128 = vector.extract_strided_slice %121 {offsets = [8, 0], sizes = [8, 16], strides = [1, 1]} : vector<32x16xf32> to vector<8x16xf32>
    %129 = tpu.transpose %127, [1, 0] : vector<8x16xf32> -> vector<16x8xf32>
    %cst_49 = arith.constant dense<0.000000e+00> : vector<16x16xf32>
    %130 = tpu.matmul %129, %128, %cst_49 {dimension_numbers = #tpu.dot_dimension_numbers<[1], [0], [0], [1], [0, 0, 1, 1], [], []>} : vector<16x8xf32>, vector<8x16xf32>, vector<16x16xf32> -> vector<16x16xf32>
    %c0_50 = arith.constant 0 : index
    %c336 = arith.constant 336 : index
    %131 = vector.load %arg8[%c0_50, %c336] : memref<16x512xf32, #tpu.memory_space<vmem>>, vector<16x16xf32>
    tpu.vector_store %arg8[%c0_50, %c336], %130 {strides = array<i32>} : memref<16x512xf32, #tpu.memory_space<vmem>>, vector<16x16xf32>,
    %132 = vector.extract_strided_slice %120 {offsets = [16, 0], sizes = [8, 16], strides = [1, 1]} : vector<32x16xf32> to vector<8x16xf32>
    %133 = vector.extract_strided_slice %121 {offsets = [16, 0], sizes = [8, 16], strides = [1, 1]} : vector<32x16xf32> to vector<8x16xf32>
    %134 = tpu.transpose %132, [1, 0] : vector<8x16xf32> -> vector<16x8xf32>
    %cst_51 = arith.constant dense<0.000000e+00> : vector<16x16xf32>
    %135 = tpu.matmul %134, %133, %cst_51 {dimension_numbers = #tpu.dot_dimension_numbers<[1], [0], [0], [1], [0, 0, 1, 1], [], []>} : vector<16x8xf32>, vector<8x16xf32>, vector<16x16xf32> -> vector<16x16xf32>
    %c0_52 = arith.constant 0 : index
    %c352 = arith.constant 352 : index
    %136 = vector.load %arg8[%c0_52, %c352] : memref<16x512xf32, #tpu.memory_space<vmem>>, vector<16x16xf32>
    tpu.vector_store %arg8[%c0_52, %c352], %135 {strides = array<i32>} : memref<16x512xf32, #tpu.memory_space<vmem>>, vector<16x16xf32>,
    %137 = vector.extract_strided_slice %120 {offsets = [24, 0], sizes = [8, 16], strides = [1, 1]} : vector<32x16xf32> to vector<8x16xf32>
    %138 = vector.extract_strided_slice %121 {offsets = [24, 0], sizes = [8, 16], strides = [1, 1]} : vector<32x16xf32> to vector<8x16xf32>
    %139 = tpu.transpose %137, [1, 0] : vector<8x16xf32> -> vector<16x8xf32>
    %cst_53 = arith.constant dense<0.000000e+00> : vector<16x16xf32>
    %140 = tpu.matmul %139, %138, %cst_53 {dimension_numbers = #tpu.dot_dimension_numbers<[1], [0], [0], [1], [0, 0, 1, 1], [], []>} : vector<16x8xf32>, vector<8x16xf32>, vector<16x16xf32> -> vector<16x16xf32>
    %c0_54 = arith.constant 0 : index
    %c368 = arith.constant 368 : index
    %141 = vector.load %arg8[%c0_54, %c368] : memref<16x512xf32, #tpu.memory_space<vmem>>, vector<16x16xf32>
    tpu.vector_store %arg8[%c0_54, %c368], %140 {strides = array<i32>} : memref<16x512xf32, #tpu.memory_space<vmem>>, vector<16x16xf32>,
    %142 = vector.extract_strided_slice %7 {offsets = [0, 96], sizes = [32, 16], strides = [1, 1]} : vector<32x128xf32> to vector<32x16xf32>
    %143 = vector.extract_strided_slice %8 {offsets = [0, 96], sizes = [32, 16], strides = [1, 1]} : vector<32x128xf32> to vector<32x16xf32>
    %144 = vector.extract_strided_slice %142 {offsets = [0, 0], sizes = [8, 16], strides = [1, 1]} : vector<32x16xf32> to vector<8x16xf32>
    %145 = vector.extract_strided_slice %143 {offsets = [0, 0], sizes = [8, 16], strides = [1, 1]} : vector<32x16xf32> to vector<8x16xf32>
    %146 = tpu.transpose %144, [1, 0] : vector<8x16xf32> -> vector<16x8xf32>
    %cst_55 = arith.constant dense<0.000000e+00> : vector<16x16xf32>
    %147 = tpu.matmul %146, %145, %cst_55 {dimension_numbers = #tpu.dot_dimension_numbers<[1], [0], [0], [1], [0, 0, 1, 1], [], []>} : vector<16x8xf32>, vector<8x16xf32>, vector<16x16xf32> -> vector<16x16xf32>
    %c0_56 = arith.constant 0 : index
    %c384 = arith.constant 384 : index
    %148 = vector.load %arg8[%c0_56, %c384] : memref<16x512xf32, #tpu.memory_space<vmem>>, vector<16x16xf32>
    tpu.vector_store %arg8[%c0_56, %c384], %147 {strides = array<i32>} : memref<16x512xf32, #tpu.memory_space<vmem>>, vector<16x16xf32>,
    %149 = vector.extract_strided_slice %142 {offsets = [8, 0], sizes = [8, 16], strides = [1, 1]} : vector<32x16xf32> to vector<8x16xf32>
    %150 = vector.extract_strided_slice %143 {offsets = [8, 0], sizes = [8, 16], strides = [1, 1]} : vector<32x16xf32> to vector<8x16xf32>
    %151 = tpu.transpose %149, [1, 0] : vector<8x16xf32> -> vector<16x8xf32>
    %cst_57 = arith.constant dense<0.000000e+00> : vector<16x16xf32>
    %152 = tpu.matmul %151, %150, %cst_57 {dimension_numbers = #tpu.dot_dimension_numbers<[1], [0], [0], [1], [0, 0, 1, 1], [], []>} : vector<16x8xf32>, vector<8x16xf32>, vector<16x16xf32> -> vector<16x16xf32>
    %c0_58 = arith.constant 0 : index
    %c400 = arith.constant 400 : index
    %153 = vector.load %arg8[%c0_58, %c400] : memref<16x512xf32, #tpu.memory_space<vmem>>, vector<16x16xf32>
    tpu.vector_store %arg8[%c0_58, %c400], %152 {strides = array<i32>} : memref<16x512xf32, #tpu.memory_space<vmem>>, vector<16x16xf32>,
    %154 = vector.extract_strided_slice %142 {offsets = [16, 0], sizes = [8, 16], strides = [1, 1]} : vector<32x16xf32> to vector<8x16xf32>
    %155 = vector.extract_strided_slice %143 {offsets = [16, 0], sizes = [8, 16], strides = [1, 1]} : vector<32x16xf32> to vector<8x16xf32>
    %156 = tpu.transpose %154, [1, 0] : vector<8x16xf32> -> vector<16x8xf32>
    %cst_59 = arith.constant dense<0.000000e+00> : vector<16x16xf32>
    %157 = tpu.matmul %156, %155, %cst_59 {dimension_numbers = #tpu.dot_dimension_numbers<[1], [0], [0], [1], [0, 0, 1, 1], [], []>} : vector<16x8xf32>, vector<8x16xf32>, vector<16x16xf32> -> vector<16x16xf32>
    %c0_60 = arith.constant 0 : index
    %c416 = arith.constant 416 : index
    %158 = vector.load %arg8[%c0_60, %c416] : memref<16x512xf32, #tpu.memory_space<vmem>>, vector<16x16xf32>
    tpu.vector_store %arg8[%c0_60, %c416], %157 {strides = array<i32>} : memref<16x512xf32, #tpu.memory_space<vmem>>, vector<16x16xf32>,
    %159 = vector.extract_strided_slice %142 {offsets = [24, 0], sizes = [8, 16], strides = [1, 1]} : vector<32x16xf32> to vector<8x16xf32>
    %160 = vector.extract_strided_slice %143 {offsets = [24, 0], sizes = [8, 16], strides = [1, 1]} : vector<32x16xf32> to vector<8x16xf32>
    %161 = tpu.transpose %159, [1, 0] : vector<8x16xf32> -> vector<16x8xf32>
    %cst_61 = arith.constant dense<0.000000e+00> : vector<16x16xf32>
    %162 = tpu.matmul %161, %160, %cst_61 {dimension_numbers = #tpu.dot_dimension_numbers<[1], [0], [0], [1], [0, 0, 1, 1], [], []>} : vector<16x8xf32>, vector<8x16xf32>, vector<16x16xf32> -> vector<16x16xf32>
    %c0_62 = arith.constant 0 : index
    %c432 = arith.constant 432 : index
    %163 = vector.load %arg8[%c0_62, %c432] : memref<16x512xf32, #tpu.memory_space<vmem>>, vector<16x16xf32>
    tpu.vector_store %arg8[%c0_62, %c432], %162 {strides = array<i32>} : memref<16x512xf32, #tpu.memory_space<vmem>>, vector<16x16xf32>,
    %164 = vector.extract_strided_slice %7 {offsets = [0, 112], sizes = [32, 16], strides = [1, 1]} : vector<32x128xf32> to vector<32x16xf32>
    %165 = vector.extract_strided_slice %8 {offsets = [0, 112], sizes = [32, 16], strides = [1, 1]} : vector<32x128xf32> to vector<32x16xf32>
    %166 = vector.extract_strided_slice %164 {offsets = [0, 0], sizes = [8, 16], strides = [1, 1]} : vector<32x16xf32> to vector<8x16xf32>
    %167 = vector.extract_strided_slice %165 {offsets = [0, 0], sizes = [8, 16], strides = [1, 1]} : vector<32x16xf32> to vector<8x16xf32>
    %168 = tpu.transpose %166, [1, 0] : vector<8x16xf32> -> vector<16x8xf32>
    %cst_63 = arith.constant dense<0.000000e+00> : vector<16x16xf32>
    %169 = tpu.matmul %168, %167, %cst_63 {dimension_numbers = #tpu.dot_dimension_numbers<[1], [0], [0], [1], [0, 0, 1, 1], [], []>} : vector<16x8xf32>, vector<8x16xf32>, vector<16x16xf32> -> vector<16x16xf32>
    %c0_64 = arith.constant 0 : index
    %c448 = arith.constant 448 : index
    %170 = vector.load %arg8[%c0_64, %c448] : memref<16x512xf32, #tpu.memory_space<vmem>>, vector<16x16xf32>
    tpu.vector_store %arg8[%c0_64, %c448], %169 {strides = array<i32>} : memref<16x512xf32, #tpu.memory_space<vmem>>, vector<16x16xf32>,
    %171 = vector.extract_strided_slice %164 {offsets = [8, 0], sizes = [8, 16], strides = [1, 1]} : vector<32x16xf32> to vector<8x16xf32>
    %172 = vector.extract_strided_slice %165 {offsets = [8, 0], sizes = [8, 16], strides = [1, 1]} : vector<32x16xf32> to vector<8x16xf32>
    %173 = tpu.transpose %171, [1, 0] : vector<8x16xf32> -> vector<16x8xf32>
    %cst_65 = arith.constant dense<0.000000e+00> : vector<16x16xf32>
    %174 = tpu.matmul %173, %172, %cst_65 {dimension_numbers = #tpu.dot_dimension_numbers<[1], [0], [0], [1], [0, 0, 1, 1], [], []>} : vector<16x8xf32>, vector<8x16xf32>, vector<16x16xf32> -> vector<16x16xf32>
    %c0_66 = arith.constant 0 : index
    %c464 = arith.constant 464 : index
    %175 = vector.load %arg8[%c0_66, %c464] : memref<16x512xf32, #tpu.memory_space<vmem>>, vector<16x16xf32>
    tpu.vector_store %arg8[%c0_66, %c464], %174 {strides = array<i32>} : memref<16x512xf32, #tpu.memory_space<vmem>>, vector<16x16xf32>,
    %176 = vector.extract_strided_slice %164 {offsets = [16, 0], sizes = [8, 16], strides = [1, 1]} : vector<32x16xf32> to vector<8x16xf32>
    %177 = vector.extract_strided_slice %165 {offsets = [16, 0], sizes = [8, 16], strides = [1, 1]} : vector<32x16xf32> to vector<8x16xf32>
    %178 = tpu.transpose %176, [1, 0] : vector<8x16xf32> -> vector<16x8xf32>
    %cst_67 = arith.constant dense<0.000000e+00> : vector<16x16xf32>
    %179 = tpu.matmul %178, %177, %cst_67 {dimension_numbers = #tpu.dot_dimension_numbers<[1], [0], [0], [1], [0, 0, 1, 1], [], []>} : vector<16x8xf32>, vector<8x16xf32>, vector<16x16xf32> -> vector<16x16xf32>
    %c0_68 = arith.constant 0 : index
    %c480 = arith.constant 480 : index
    %180 = vector.load %arg8[%c0_68, %c480] : memref<16x512xf32, #tpu.memory_space<vmem>>, vector<16x16xf32>
    tpu.vector_store %arg8[%c0_68, %c480], %179 {strides = array<i32>} : memref<16x512xf32, #tpu.memory_space<vmem>>, vector<16x16xf32>,
    %181 = vector.extract_strided_slice %164 {offsets = [24, 0], sizes = [8, 16], strides = [1, 1]} : vector<32x16xf32> to vector<8x16xf32>
    %182 = vector.extract_strided_slice %165 {offsets = [24, 0], sizes = [8, 16], strides = [1, 1]} : vector<32x16xf32> to vector<8x16xf32>
    %183 = tpu.transpose %181, [1, 0] : vector<8x16xf32> -> vector<16x8xf32>
    %cst_69 = arith.constant dense<0.000000e+00> : vector<16x16xf32>
    %184 = tpu.matmul %183, %182, %cst_69 {dimension_numbers = #tpu.dot_dimension_numbers<[1], [0], [0], [1], [0, 0, 1, 1], [], []>} : vector<16x8xf32>, vector<8x16xf32>, vector<16x16xf32> -> vector<16x16xf32>
    %c0_70 = arith.constant 0 : index
    %c496 = arith.constant 496 : index
    %185 = vector.load %arg8[%c0_70, %c496] : memref<16x512xf32, #tpu.memory_space<vmem>>, vector<16x16xf32>
    tpu.vector_store %arg8[%c0_70, %c496], %184 {strides = array<i32>} : memref<16x512xf32, #tpu.memory_space<vmem>>, vector<16x16xf32>,
    %c0_71 = arith.constant 0 : index
    %c0_72 = arith.constant 0 : index
    %186 = vector.load %arg8[%c0_71, %c0_72] : memref<16x512xf32, #tpu.memory_space<vmem>>, vector<16x512xf32>
    %c0_73 = arith.constant 0 : index
    %c0_74 = arith.constant 0 : index
    %c0_75 = arith.constant 0 : index
    %187 = vector.load %arg2[%c0_73, %c0_74, %c0_75] : memref<1x16x512xf32, #tpu.memory_space<vmem>>, vector<1x16x512xf32>
    %188 = vector.shape_cast %187 : vector<1x16x512xf32> to vector<16x512xf32>
    %189 = arith.addf %186, %188 : vector<16x512xf32>
    %cst_76 = arith.constant dense<0xFF800000> : vector<512xf32>
    %190 = vector.multi_reduction <maximumf>, %189, %cst_76 [0] : vector<16x512xf32> to vector<512xf32>
    %191 = vector.shape_cast %190 : vector<512xf32> to vector<1x512xf32>
    %192 = vector.broadcast %191 : vector<1x512xf32> to vector<16x512xf32>
    %193 = arith.subf %189, %192 : vector<16x512xf32>
    %194 = math.exp %193 : vector<16x512xf32>
    %cst_77 = arith.constant dense<0.000000e+00> : vector<512xf32>
    %195 = vector.multi_reduction <add>, %194, %cst_77 [0] : vector<16x512xf32> to vector<512xf32>
    %196 = vector.shape_cast %195 : vector<512xf32> to vector<1x512xf32>
    %197 = tpu.reciprocal %196 {approx = true} : vector<1x512xf32> -> vector<1x512xf32>
    %198 = vector.broadcast %197 : vector<1x512xf32> to vector<16x512xf32>
    %199 = arith.mulf %194, %198 : vector<16x512xf32>
    %200 = vector.extract_strided_slice %9 {offsets = [0, 0], sizes = [32, 16], strides = [1, 1]} : vector<32x128xf32> to vector<32x16xf32>
    %201 = vector.extract_strided_slice %199 {offsets = [0, 0], sizes = [16, 16], strides = [1, 1]} : vector<16x512xf32> to vector<16x16xf32>
    %202 = vector.extract_strided_slice %200 {offsets = [0, 0], sizes = [8, 16], strides = [1, 1]} : vector<32x16xf32> to vector<8x16xf32>
    %203 = tpu.transpose %201, [1, 0] : vector<16x16xf32> -> vector<16x16xf32>
    %cst_78 = arith.constant dense<0.000000e+00> : vector<8x16xf32>
    %204 = tpu.matmul %202, %203, %cst_78 {dimension_numbers = #tpu.dot_dimension_numbers<[1], [0], [0], [1], [0, 0, 1, 1], [], []>} : vector<8x16xf32>, vector<16x16xf32>, vector<8x16xf32> -> vector<8x16xf32>
    %c0_79 = arith.constant 0 : index
    %c0_80 = arith.constant 0 : index
    %205 = vector.load %arg9[%c0_79, %c0_80] : memref<32x128xf32, #tpu.memory_space<vmem>>, vector<8x16xf32>
    tpu.vector_store %arg9[%c0_79, %c0_80], %204 {strides = array<i32>} : memref<32x128xf32, #tpu.memory_space<vmem>>, vector<8x16xf32>,
    %206 = vector.extract_strided_slice %199 {offsets = [0, 16], sizes = [16, 16], strides = [1, 1]} : vector<16x512xf32> to vector<16x16xf32>
    %207 = vector.extract_strided_slice %200 {offsets = [8, 0], sizes = [8, 16], strides = [1, 1]} : vector<32x16xf32> to vector<8x16xf32>
    %208 = tpu.transpose %206, [1, 0] : vector<16x16xf32> -> vector<16x16xf32>
    %cst_81 = arith.constant dense<0.000000e+00> : vector<8x16xf32>
    %209 = tpu.matmul %207, %208, %cst_81 {dimension_numbers = #tpu.dot_dimension_numbers<[1], [0], [0], [1], [0, 0, 1, 1], [], []>} : vector<8x16xf32>, vector<16x16xf32>, vector<8x16xf32> -> vector<8x16xf32>
    %c8 = arith.constant 8 : index
    %c0_82 = arith.constant 0 : index
    %210 = vector.load %arg9[%c8, %c0_82] : memref<32x128xf32, #tpu.memory_space<vmem>>, vector<8x16xf32>
    tpu.vector_store %arg9[%c8, %c0_82], %209 {strides = array<i32>} : memref<32x128xf32, #tpu.memory_space<vmem>>, vector<8x16xf32>,
    %211 = vector.extract_strided_slice %199 {offsets = [0, 32], sizes = [16, 16], strides = [1, 1]} : vector<16x512xf32> to vector<16x16xf32>
    %212 = vector.extract_strided_slice %200 {offsets = [16, 0], sizes = [8, 16], strides = [1, 1]} : vector<32x16xf32> to vector<8x16xf32>
    %213 = tpu.transpose %211, [1, 0] : vector<16x16xf32> -> vector<16x16xf32>
    %cst_83 = arith.constant dense<0.000000e+00> : vector<8x16xf32>
    %214 = tpu.matmul %212, %213, %cst_83 {dimension_numbers = #tpu.dot_dimension_numbers<[1], [0], [0], [1], [0, 0, 1, 1], [], []>} : vector<8x16xf32>, vector<16x16xf32>, vector<8x16xf32> -> vector<8x16xf32>
    %c16_84 = arith.constant 16 : index
    %c0_85 = arith.constant 0 : index
    %215 = vector.load %arg9[%c16_84, %c0_85] : memref<32x128xf32, #tpu.memory_space<vmem>>, vector<8x16xf32>
    tpu.vector_store %arg9[%c16_84, %c0_85], %214 {strides = array<i32>} : memref<32x128xf32, #tpu.memory_space<vmem>>, vector<8x16xf32>,
    %216 = vector.extract_strided_slice %199 {offsets = [0, 48], sizes = [16, 16], strides = [1, 1]} : vector<16x512xf32> to vector<16x16xf32>
    %217 = vector.extract_strided_slice %200 {offsets = [24, 0], sizes = [8, 16], strides = [1, 1]} : vector<32x16xf32> to vector<8x16xf32>
    %218 = tpu.transpose %216, [1, 0] : vector<16x16xf32> -> vector<16x16xf32>
    %cst_86 = arith.constant dense<0.000000e+00> : vector<8x16xf32>
    %219 = tpu.matmul %217, %218, %cst_86 {dimension_numbers = #tpu.dot_dimension_numbers<[1], [0], [0], [1], [0, 0, 1, 1], [], []>} : vector<8x16xf32>, vector<16x16xf32>, vector<8x16xf32> -> vector<8x16xf32>
    %c24 = arith.constant 24 : index
    %c0_87 = arith.constant 0 : index
    %220 = vector.load %arg9[%c24, %c0_87] : memref<32x128xf32, #tpu.memory_space<vmem>>, vector<8x16xf32>
    tpu.vector_store %arg9[%c24, %c0_87], %219 {strides = array<i32>} : memref<32x128xf32, #tpu.memory_space<vmem>>, vector<8x16xf32>,
    %221 = vector.extract_strided_slice %9 {offsets = [0, 16], sizes = [32, 16], strides = [1, 1]} : vector<32x128xf32> to vector<32x16xf32>
    %222 = vector.extract_strided_slice %199 {offsets = [0, 64], sizes = [16, 16], strides = [1, 1]} : vector<16x512xf32> to vector<16x16xf32>
    %223 = vector.extract_strided_slice %221 {offsets = [0, 0], sizes = [8, 16], strides = [1, 1]} : vector<32x16xf32> to vector<8x16xf32>
    %224 = tpu.transpose %222, [1, 0] : vector<16x16xf32> -> vector<16x16xf32>
    %cst_88 = arith.constant dense<0.000000e+00> : vector<8x16xf32>
    %225 = tpu.matmul %223, %224, %cst_88 {dimension_numbers = #tpu.dot_dimension_numbers<[1], [0], [0], [1], [0, 0, 1, 1], [], []>} : vector<8x16xf32>, vector<16x16xf32>, vector<8x16xf32> -> vector<8x16xf32>
    %c0_89 = arith.constant 0 : index
    %c16_90 = arith.constant 16 : index
    %226 = vector.load %arg9[%c0_89, %c16_90] : memref<32x128xf32, #tpu.memory_space<vmem>>, vector<8x16xf32>
    tpu.vector_store %arg9[%c0_89, %c16_90], %225 {strides = array<i32>} : memref<32x128xf32, #tpu.memory_space<vmem>>, vector<8x16xf32>,
    %227 = vector.extract_strided_slice %199 {offsets = [0, 80], sizes = [16, 16], strides = [1, 1]} : vector<16x512xf32> to vector<16x16xf32>
    %228 = vector.extract_strided_slice %221 {offsets = [8, 0], sizes = [8, 16], strides = [1, 1]} : vector<32x16xf32> to vector<8x16xf32>
    %229 = tpu.transpose %227, [1, 0] : vector<16x16xf32> -> vector<16x16xf32>
    %cst_91 = arith.constant dense<0.000000e+00> : vector<8x16xf32>
    %230 = tpu.matmul %228, %229, %cst_91 {dimension_numbers = #tpu.dot_dimension_numbers<[1], [0], [0], [1], [0, 0, 1, 1], [], []>} : vector<8x16xf32>, vector<16x16xf32>, vector<8x16xf32> -> vector<8x16xf32>
    %c8_92 = arith.constant 8 : index
    %c16_93 = arith.constant 16 : index
    %231 = vector.load %arg9[%c8_92, %c16_93] : memref<32x128xf32, #tpu.memory_space<vmem>>, vector<8x16xf32>
    tpu.vector_store %arg9[%c8_92, %c16_93], %230 {strides = array<i32>} : memref<32x128xf32, #tpu.memory_space<vmem>>, vector<8x16xf32>,
    %232 = vector.extract_strided_slice %199 {offsets = [0, 96], sizes = [16, 16], strides = [1, 1]} : vector<16x512xf32> to vector<16x16xf32>
    %233 = vector.extract_strided_slice %221 {offsets = [16, 0], sizes = [8, 16], strides = [1, 1]} : vector<32x16xf32> to vector<8x16xf32>
    %234 = tpu.transpose %232, [1, 0] : vector<16x16xf32> -> vector<16x16xf32>
    %cst_94 = arith.constant dense<0.000000e+00> : vector<8x16xf32>
    %235 = tpu.matmul %233, %234, %cst_94 {dimension_numbers = #tpu.dot_dimension_numbers<[1], [0], [0], [1], [0, 0, 1, 1], [], []>} : vector<8x16xf32>, vector<16x16xf32>, vector<8x16xf32> -> vector<8x16xf32>
    %c16_95 = arith.constant 16 : index
    %c16_96 = arith.constant 16 : index
    %236 = vector.load %arg9[%c16_95, %c16_96] : memref<32x128xf32, #tpu.memory_space<vmem>>, vector<8x16xf32>
    tpu.vector_store %arg9[%c16_95, %c16_96], %235 {strides = array<i32>} : memref<32x128xf32, #tpu.memory_space<vmem>>, vector<8x16xf32>,
    %237 = vector.extract_strided_slice %199 {offsets = [0, 112], sizes = [16, 16], strides = [1, 1]} : vector<16x512xf32> to vector<16x16xf32>
    %238 = vector.extract_strided_slice %221 {offsets = [24, 0], sizes = [8, 16], strides = [1, 1]} : vector<32x16xf32> to vector<8x16xf32>
    %239 = tpu.transpose %237, [1, 0] : vector<16x16xf32> -> vector<16x16xf32>
    %cst_97 = arith.constant dense<0.000000e+00> : vector<8x16xf32>
    %240 = tpu.matmul %238, %239, %cst_97 {dimension_numbers = #tpu.dot_dimension_numbers<[1], [0], [0], [1], [0, 0, 1, 1], [], []>} : vector<8x16xf32>, vector<16x16xf32>, vector<8x16xf32> -> vector<8x16xf32>
    %c24_98 = arith.constant 24 : index
    %c16_99 = arith.constant 16 : index
    %241 = vector.load %arg9[%c24_98, %c16_99] : memref<32x128xf32, #tpu.memory_space<vmem>>, vector<8x16xf32>
    tpu.vector_store %arg9[%c24_98, %c16_99], %240 {strides = array<i32>} : memref<32x128xf32, #tpu.memory_space<vmem>>, vector<8x16xf32>,
    %242 = vector.extract_strided_slice %9 {offsets = [0, 32], sizes = [32, 16], strides = [1, 1]} : vector<32x128xf32> to vector<32x16xf32>
    %243 = vector.extract_strided_slice %199 {offsets = [0, 128], sizes = [16, 16], strides = [1, 1]} : vector<16x512xf32> to vector<16x16xf32>
    %244 = vector.extract_strided_slice %242 {offsets = [0, 0], sizes = [8, 16], strides = [1, 1]} : vector<32x16xf32> to vector<8x16xf32>
    %245 = tpu.transpose %243, [1, 0] : vector<16x16xf32> -> vector<16x16xf32>
    %cst_100 = arith.constant dense<0.000000e+00> : vector<8x16xf32>
    %246 = tpu.matmul %244, %245, %cst_100 {dimension_numbers = #tpu.dot_dimension_numbers<[1], [0], [0], [1], [0, 0, 1, 1], [], []>} : vector<8x16xf32>, vector<16x16xf32>, vector<8x16xf32> -> vector<8x16xf32>
    %c0_101 = arith.constant 0 : index
    %c32_102 = arith.constant 32 : index
    %247 = vector.load %arg9[%c0_101, %c32_102] : memref<32x128xf32, #tpu.memory_space<vmem>>, vector<8x16xf32>
    tpu.vector_store %arg9[%c0_101, %c32_102], %246 {strides = array<i32>} : memref<32x128xf32, #tpu.memory_space<vmem>>, vector<8x16xf32>,
    %248 = vector.extract_strided_slice %199 {offsets = [0, 144], sizes = [16, 16], strides = [1, 1]} : vector<16x512xf32> to vector<16x16xf32>
    %249 = vector.extract_strided_slice %242 {offsets = [8, 0], sizes = [8, 16], strides = [1, 1]} : vector<32x16xf32> to vector<8x16xf32>
    %250 = tpu.transpose %248, [1, 0] : vector<16x16xf32> -> vector<16x16xf32>
    %cst_103 = arith.constant dense<0.000000e+00> : vector<8x16xf32>
    %251 = tpu.matmul %249, %250, %cst_103 {dimension_numbers = #tpu.dot_dimension_numbers<[1], [0], [0], [1], [0, 0, 1, 1], [], []>} : vector<8x16xf32>, vector<16x16xf32>, vector<8x16xf32> -> vector<8x16xf32>
    %c8_104 = arith.constant 8 : index
    %c32_105 = arith.constant 32 : index
    %252 = vector.load %arg9[%c8_104, %c32_105] : memref<32x128xf32, #tpu.memory_space<vmem>>, vector<8x16xf32>
    tpu.vector_store %arg9[%c8_104, %c32_105], %251 {strides = array<i32>} : memref<32x128xf32, #tpu.memory_space<vmem>>, vector<8x16xf32>,
    %253 = vector.extract_strided_slice %199 {offsets = [0, 160], sizes = [16, 16], strides = [1, 1]} : vector<16x512xf32> to vector<16x16xf32>
    %254 = vector.extract_strided_slice %242 {offsets = [16, 0], sizes = [8, 16], strides = [1, 1]} : vector<32x16xf32> to vector<8x16xf32>
    %255 = tpu.transpose %253, [1, 0] : vector<16x16xf32> -> vector<16x16xf32>
    %cst_106 = arith.constant dense<0.000000e+00> : vector<8x16xf32>
    %256 = tpu.matmul %254, %255, %cst_106 {dimension_numbers = #tpu.dot_dimension_numbers<[1], [0], [0], [1], [0, 0, 1, 1], [], []>} : vector<8x16xf32>, vector<16x16xf32>, vector<8x16xf32> -> vector<8x16xf32>
    %c16_107 = arith.constant 16 : index
    %c32_108 = arith.constant 32 : index
    %257 = vector.load %arg9[%c16_107, %c32_108] : memref<32x128xf32, #tpu.memory_space<vmem>>, vector<8x16xf32>
    tpu.vector_store %arg9[%c16_107, %c32_108], %256 {strides = array<i32>} : memref<32x128xf32, #tpu.memory_space<vmem>>, vector<8x16xf32>,
    %258 = vector.extract_strided_slice %199 {offsets = [0, 176], sizes = [16, 16], strides = [1, 1]} : vector<16x512xf32> to vector<16x16xf32>
    %259 = vector.extract_strided_slice %242 {offsets = [24, 0], sizes = [8, 16], strides = [1, 1]} : vector<32x16xf32> to vector<8x16xf32>
    %260 = tpu.transpose %258, [1, 0] : vector<16x16xf32> -> vector<16x16xf32>
    %cst_109 = arith.constant dense<0.000000e+00> : vector<8x16xf32>
    %261 = tpu.matmul %259, %260, %cst_109 {dimension_numbers = #tpu.dot_dimension_numbers<[1], [0], [0], [1], [0, 0, 1, 1], [], []>} : vector<8x16xf32>, vector<16x16xf32>, vector<8x16xf32> -> vector<8x16xf32>
    %c24_110 = arith.constant 24 : index
    %c32_111 = arith.constant 32 : index
    %262 = vector.load %arg9[%c24_110, %c32_111] : memref<32x128xf32, #tpu.memory_space<vmem>>, vector<8x16xf32>
    tpu.vector_store %arg9[%c24_110, %c32_111], %261 {strides = array<i32>} : memref<32x128xf32, #tpu.memory_space<vmem>>, vector<8x16xf32>,
    %263 = vector.extract_strided_slice %9 {offsets = [0, 48], sizes = [32, 16], strides = [1, 1]} : vector<32x128xf32> to vector<32x16xf32>
    %264 = vector.extract_strided_slice %199 {offsets = [0, 192], sizes = [16, 16], strides = [1, 1]} : vector<16x512xf32> to vector<16x16xf32>
    %265 = vector.extract_strided_slice %263 {offsets = [0, 0], sizes = [8, 16], strides = [1, 1]} : vector<32x16xf32> to vector<8x16xf32>
    %266 = tpu.transpose %264, [1, 0] : vector<16x16xf32> -> vector<16x16xf32>
    %cst_112 = arith.constant dense<0.000000e+00> : vector<8x16xf32>
    %267 = tpu.matmul %265, %266, %cst_112 {dimension_numbers = #tpu.dot_dimension_numbers<[1], [0], [0], [1], [0, 0, 1, 1], [], []>} : vector<8x16xf32>, vector<16x16xf32>, vector<8x16xf32> -> vector<8x16xf32>
    %c0_113 = arith.constant 0 : index
    %c48_114 = arith.constant 48 : index
    %268 = vector.load %arg9[%c0_113, %c48_114] : memref<32x128xf32, #tpu.memory_space<vmem>>, vector<8x16xf32>
    tpu.vector_store %arg9[%c0_113, %c48_114], %267 {strides = array<i32>} : memref<32x128xf32, #tpu.memory_space<vmem>>, vector<8x16xf32>,
    %269 = vector.extract_strided_slice %199 {offsets = [0, 208], sizes = [16, 16], strides = [1, 1]} : vector<16x512xf32> to vector<16x16xf32>
    %270 = vector.extract_strided_slice %263 {offsets = [8, 0], sizes = [8, 16], strides = [1, 1]} : vector<32x16xf32> to vector<8x16xf32>
    %271 = tpu.transpose %269, [1, 0] : vector<16x16xf32> -> vector<16x16xf32>
    %cst_115 = arith.constant dense<0.000000e+00> : vector<8x16xf32>
    %272 = tpu.matmul %270, %271, %cst_115 {dimension_numbers = #tpu.dot_dimension_numbers<[1], [0], [0], [1], [0, 0, 1, 1], [], []>} : vector<8x16xf32>, vector<16x16xf32>, vector<8x16xf32> -> vector<8x16xf32>
    %c8_116 = arith.constant 8 : index
    %c48_117 = arith.constant 48 : index
    %273 = vector.load %arg9[%c8_116, %c48_117] : memref<32x128xf32, #tpu.memory_space<vmem>>, vector<8x16xf32>
    tpu.vector_store %arg9[%c8_116, %c48_117], %272 {strides = array<i32>} : memref<32x128xf32, #tpu.memory_space<vmem>>, vector<8x16xf32>,
    %274 = vector.extract_strided_slice %199 {offsets = [0, 224], sizes = [16, 16], strides = [1, 1]} : vector<16x512xf32> to vector<16x16xf32>
    %275 = vector.extract_strided_slice %263 {offsets = [16, 0], sizes = [8, 16], strides = [1, 1]} : vector<32x16xf32> to vector<8x16xf32>
    %276 = tpu.transpose %274, [1, 0] : vector<16x16xf32> -> vector<16x16xf32>
    %cst_118 = arith.constant dense<0.000000e+00> : vector<8x16xf32>
    %277 = tpu.matmul %275, %276, %cst_118 {dimension_numbers = #tpu.dot_dimension_numbers<[1], [0], [0], [1], [0, 0, 1, 1], [], []>} : vector<8x16xf32>, vector<16x16xf32>, vector<8x16xf32> -> vector<8x16xf32>
    %c16_119 = arith.constant 16 : index
    %c48_120 = arith.constant 48 : index
    %278 = vector.load %arg9[%c16_119, %c48_120] : memref<32x128xf32, #tpu.memory_space<vmem>>, vector<8x16xf32>
    tpu.vector_store %arg9[%c16_119, %c48_120], %277 {strides = array<i32>} : memref<32x128xf32, #tpu.memory_space<vmem>>, vector<8x16xf32>,
    %279 = vector.extract_strided_slice %199 {offsets = [0, 240], sizes = [16, 16], strides = [1, 1]} : vector<16x512xf32> to vector<16x16xf32>
    %280 = vector.extract_strided_slice %263 {offsets = [24, 0], sizes = [8, 16], strides = [1, 1]} : vector<32x16xf32> to vector<8x16xf32>
    %281 = tpu.transpose %279, [1, 0] : vector<16x16xf32> -> vector<16x16xf32>
    %cst_121 = arith.constant dense<0.000000e+00> : vector<8x16xf32>
    %282 = tpu.matmul %280, %281, %cst_121 {dimension_numbers = #tpu.dot_dimension_numbers<[1], [0], [0], [1], [0, 0, 1, 1], [], []>} : vector<8x16xf32>, vector<16x16xf32>, vector<8x16xf32> -> vector<8x16xf32>
    %c24_122 = arith.constant 24 : index
    %c48_123 = arith.constant 48 : index
    %283 = vector.load %arg9[%c24_122, %c48_123] : memref<32x128xf32, #tpu.memory_space<vmem>>, vector<8x16xf32>
    tpu.vector_store %arg9[%c24_122, %c48_123], %282 {strides = array<i32>} : memref<32x128xf32, #tpu.memory_space<vmem>>, vector<8x16xf32>,
    %284 = vector.extract_strided_slice %9 {offsets = [0, 64], sizes = [32, 16], strides = [1, 1]} : vector<32x128xf32> to vector<32x16xf32>
    %285 = vector.extract_strided_slice %199 {offsets = [0, 256], sizes = [16, 16], strides = [1, 1]} : vector<16x512xf32> to vector<16x16xf32>
    %286 = vector.extract_strided_slice %284 {offsets = [0, 0], sizes = [8, 16], strides = [1, 1]} : vector<32x16xf32> to vector<8x16xf32>
    %287 = tpu.transpose %285, [1, 0] : vector<16x16xf32> -> vector<16x16xf32>
    %cst_124 = arith.constant dense<0.000000e+00> : vector<8x16xf32>
    %288 = tpu.matmul %286, %287, %cst_124 {dimension_numbers = #tpu.dot_dimension_numbers<[1], [0], [0], [1], [0, 0, 1, 1], [], []>} : vector<8x16xf32>, vector<16x16xf32>, vector<8x16xf32> -> vector<8x16xf32>
    %c0_125 = arith.constant 0 : index
    %c64_126 = arith.constant 64 : index
    %289 = vector.load %arg9[%c0_125, %c64_126] : memref<32x128xf32, #tpu.memory_space<vmem>>, vector<8x16xf32>
    tpu.vector_store %arg9[%c0_125, %c64_126], %288 {strides = array<i32>} : memref<32x128xf32, #tpu.memory_space<vmem>>, vector<8x16xf32>,
    %290 = vector.extract_strided_slice %199 {offsets = [0, 272], sizes = [16, 16], strides = [1, 1]} : vector<16x512xf32> to vector<16x16xf32>
    %291 = vector.extract_strided_slice %284 {offsets = [8, 0], sizes = [8, 16], strides = [1, 1]} : vector<32x16xf32> to vector<8x16xf32>
    %292 = tpu.transpose %290, [1, 0] : vector<16x16xf32> -> vector<16x16xf32>
    %cst_127 = arith.constant dense<0.000000e+00> : vector<8x16xf32>
    %293 = tpu.matmul %291, %292, %cst_127 {dimension_numbers = #tpu.dot_dimension_numbers<[1], [0], [0], [1], [0, 0, 1, 1], [], []>} : vector<8x16xf32>, vector<16x16xf32>, vector<8x16xf32> -> vector<8x16xf32>
    %c8_128 = arith.constant 8 : index
    %c64_129 = arith.constant 64 : index
    %294 = vector.load %arg9[%c8_128, %c64_129] : memref<32x128xf32, #tpu.memory_space<vmem>>, vector<8x16xf32>
    tpu.vector_store %arg9[%c8_128, %c64_129], %293 {strides = array<i32>} : memref<32x128xf32, #tpu.memory_space<vmem>>, vector<8x16xf32>,
    %295 = vector.extract_strided_slice %199 {offsets = [0, 288], sizes = [16, 16], strides = [1, 1]} : vector<16x512xf32> to vector<16x16xf32>
    %296 = vector.extract_strided_slice %284 {offsets = [16, 0], sizes = [8, 16], strides = [1, 1]} : vector<32x16xf32> to vector<8x16xf32>
    %297 = tpu.transpose %295, [1, 0] : vector<16x16xf32> -> vector<16x16xf32>
    %cst_130 = arith.constant dense<0.000000e+00> : vector<8x16xf32>
    %298 = tpu.matmul %296, %297, %cst_130 {dimension_numbers = #tpu.dot_dimension_numbers<[1], [0], [0], [1], [0, 0, 1, 1], [], []>} : vector<8x16xf32>, vector<16x16xf32>, vector<8x16xf32> -> vector<8x16xf32>
    %c16_131 = arith.constant 16 : index
    %c64_132 = arith.constant 64 : index
    %299 = vector.load %arg9[%c16_131, %c64_132] : memref<32x128xf32, #tpu.memory_space<vmem>>, vector<8x16xf32>
    tpu.vector_store %arg9[%c16_131, %c64_132], %298 {strides = array<i32>} : memref<32x128xf32, #tpu.memory_space<vmem>>, vector<8x16xf32>,
    %300 = vector.extract_strided_slice %199 {offsets = [0, 304], sizes = [16, 16], strides = [1, 1]} : vector<16x512xf32> to vector<16x16xf32>
    %301 = vector.extract_strided_slice %284 {offsets = [24, 0], sizes = [8, 16], strides = [1, 1]} : vector<32x16xf32> to vector<8x16xf32>
    %302 = tpu.transpose %300, [1, 0] : vector<16x16xf32> -> vector<16x16xf32>
    %cst_133 = arith.constant dense<0.000000e+00> : vector<8x16xf32>
    %303 = tpu.matmul %301, %302, %cst_133 {dimension_numbers = #tpu.dot_dimension_numbers<[1], [0], [0], [1], [0, 0, 1, 1], [], []>} : vector<8x16xf32>, vector<16x16xf32>, vector<8x16xf32> -> vector<8x16xf32>
    %c24_134 = arith.constant 24 : index
    %c64_135 = arith.constant 64 : index
    %304 = vector.load %arg9[%c24_134, %c64_135] : memref<32x128xf32, #tpu.memory_space<vmem>>, vector<8x16xf32>
    tpu.vector_store %arg9[%c24_134, %c64_135], %303 {strides = array<i32>} : memref<32x128xf32, #tpu.memory_space<vmem>>, vector<8x16xf32>,
    %305 = vector.extract_strided_slice %9 {offsets = [0, 80], sizes = [32, 16], strides = [1, 1]} : vector<32x128xf32> to vector<32x16xf32>
    %306 = vector.extract_strided_slice %199 {offsets = [0, 320], sizes = [16, 16], strides = [1, 1]} : vector<16x512xf32> to vector<16x16xf32>
    %307 = vector.extract_strided_slice %305 {offsets = [0, 0], sizes = [8, 16], strides = [1, 1]} : vector<32x16xf32> to vector<8x16xf32>
    %308 = tpu.transpose %306, [1, 0] : vector<16x16xf32> -> vector<16x16xf32>
    %cst_136 = arith.constant dense<0.000000e+00> : vector<8x16xf32>
    %309 = tpu.matmul %307, %308, %cst_136 {dimension_numbers = #tpu.dot_dimension_numbers<[1], [0], [0], [1], [0, 0, 1, 1], [], []>} : vector<8x16xf32>, vector<16x16xf32>, vector<8x16xf32> -> vector<8x16xf32>
    %c0_137 = arith.constant 0 : index
    %c80_138 = arith.constant 80 : index
    %310 = vector.load %arg9[%c0_137, %c80_138] : memref<32x128xf32, #tpu.memory_space<vmem>>, vector<8x16xf32>
    tpu.vector_store %arg9[%c0_137, %c80_138], %309 {strides = array<i32>} : memref<32x128xf32, #tpu.memory_space<vmem>>, vector<8x16xf32>,
    %311 = vector.extract_strided_slice %199 {offsets = [0, 336], sizes = [16, 16], strides = [1, 1]} : vector<16x512xf32> to vector<16x16xf32>
    %312 = vector.extract_strided_slice %305 {offsets = [8, 0], sizes = [8, 16], strides = [1, 1]} : vector<32x16xf32> to vector<8x16xf32>
    %313 = tpu.transpose %311, [1, 0] : vector<16x16xf32> -> vector<16x16xf32>
    %cst_139 = arith.constant dense<0.000000e+00> : vector<8x16xf32>
    %314 = tpu.matmul %312, %313, %cst_139 {dimension_numbers = #tpu.dot_dimension_numbers<[1], [0], [0], [1], [0, 0, 1, 1], [], []>} : vector<8x16xf32>, vector<16x16xf32>, vector<8x16xf32> -> vector<8x16xf32>
    %c8_140 = arith.constant 8 : index
    %c80_141 = arith.constant 80 : index
    %315 = vector.load %arg9[%c8_140, %c80_141] : memref<32x128xf32, #tpu.memory_space<vmem>>, vector<8x16xf32>
    tpu.vector_store %arg9[%c8_140, %c80_141], %314 {strides = array<i32>} : memref<32x128xf32, #tpu.memory_space<vmem>>, vector<8x16xf32>,
    %316 = vector.extract_strided_slice %199 {offsets = [0, 352], sizes = [16, 16], strides = [1, 1]} : vector<16x512xf32> to vector<16x16xf32>
    %317 = vector.extract_strided_slice %305 {offsets = [16, 0], sizes = [8, 16], strides = [1, 1]} : vector<32x16xf32> to vector<8x16xf32>
    %318 = tpu.transpose %316, [1, 0] : vector<16x16xf32> -> vector<16x16xf32>
    %cst_142 = arith.constant dense<0.000000e+00> : vector<8x16xf32>
    %319 = tpu.matmul %317, %318, %cst_142 {dimension_numbers = #tpu.dot_dimension_numbers<[1], [0], [0], [1], [0, 0, 1, 1], [], []>} : vector<8x16xf32>, vector<16x16xf32>, vector<8x16xf32> -> vector<8x16xf32>
    %c16_143 = arith.constant 16 : index
    %c80_144 = arith.constant 80 : index
    %320 = vector.load %arg9[%c16_143, %c80_144] : memref<32x128xf32, #tpu.memory_space<vmem>>, vector<8x16xf32>
    tpu.vector_store %arg9[%c16_143, %c80_144], %319 {strides = array<i32>} : memref<32x128xf32, #tpu.memory_space<vmem>>, vector<8x16xf32>,
    %321 = vector.extract_strided_slice %199 {offsets = [0, 368], sizes = [16, 16], strides = [1, 1]} : vector<16x512xf32> to vector<16x16xf32>
    %322 = vector.extract_strided_slice %305 {offsets = [24, 0], sizes = [8, 16], strides = [1, 1]} : vector<32x16xf32> to vector<8x16xf32>
    %323 = tpu.transpose %321, [1, 0] : vector<16x16xf32> -> vector<16x16xf32>
    %cst_145 = arith.constant dense<0.000000e+00> : vector<8x16xf32>
    %324 = tpu.matmul %322, %323, %cst_145 {dimension_numbers = #tpu.dot_dimension_numbers<[1], [0], [0], [1], [0, 0, 1, 1], [], []>} : vector<8x16xf32>, vector<16x16xf32>, vector<8x16xf32> -> vector<8x16xf32>
    %c24_146 = arith.constant 24 : index
    %c80_147 = arith.constant 80 : index
    %325 = vector.load %arg9[%c24_146, %c80_147] : memref<32x128xf32, #tpu.memory_space<vmem>>, vector<8x16xf32>
    tpu.vector_store %arg9[%c24_146, %c80_147], %324 {strides = array<i32>} : memref<32x128xf32, #tpu.memory_space<vmem>>, vector<8x16xf32>,
    %326 = vector.extract_strided_slice %9 {offsets = [0, 96], sizes = [32, 16], strides = [1, 1]} : vector<32x128xf32> to vector<32x16xf32>
    %327 = vector.extract_strided_slice %199 {offsets = [0, 384], sizes = [16, 16], strides = [1, 1]} : vector<16x512xf32> to vector<16x16xf32>
    %328 = vector.extract_strided_slice %326 {offsets = [0, 0], sizes = [8, 16], strides = [1, 1]} : vector<32x16xf32> to vector<8x16xf32>
    %329 = tpu.transpose %327, [1, 0] : vector<16x16xf32> -> vector<16x16xf32>
    %cst_148 = arith.constant dense<0.000000e+00> : vector<8x16xf32>
    %330 = tpu.matmul %328, %329, %cst_148 {dimension_numbers = #tpu.dot_dimension_numbers<[1], [0], [0], [1], [0, 0, 1, 1], [], []>} : vector<8x16xf32>, vector<16x16xf32>, vector<8x16xf32> -> vector<8x16xf32>
    %c0_149 = arith.constant 0 : index
    %c96_150 = arith.constant 96 : index
    %331 = vector.load %arg9[%c0_149, %c96_150] : memref<32x128xf32, #tpu.memory_space<vmem>>, vector<8x16xf32>
    tpu.vector_store %arg9[%c0_149, %c96_150], %330 {strides = array<i32>} : memref<32x128xf32, #tpu.memory_space<vmem>>, vector<8x16xf32>,
    %332 = vector.extract_strided_slice %199 {offsets = [0, 400], sizes = [16, 16], strides = [1, 1]} : vector<16x512xf32> to vector<16x16xf32>
    %333 = vector.extract_strided_slice %326 {offsets = [8, 0], sizes = [8, 16], strides = [1, 1]} : vector<32x16xf32> to vector<8x16xf32>
    %334 = tpu.transpose %332, [1, 0] : vector<16x16xf32> -> vector<16x16xf32>
    %cst_151 = arith.constant dense<0.000000e+00> : vector<8x16xf32>
    %335 = tpu.matmul %333, %334, %cst_151 {dimension_numbers = #tpu.dot_dimension_numbers<[1], [0], [0], [1], [0, 0, 1, 1], [], []>} : vector<8x16xf32>, vector<16x16xf32>, vector<8x16xf32> -> vector<8x16xf32>
    %c8_152 = arith.constant 8 : index
    %c96_153 = arith.constant 96 : index
    %336 = vector.load %arg9[%c8_152, %c96_153] : memref<32x128xf32, #tpu.memory_space<vmem>>, vector<8x16xf32>
    tpu.vector_store %arg9[%c8_152, %c96_153], %335 {strides = array<i32>} : memref<32x128xf32, #tpu.memory_space<vmem>>, vector<8x16xf32>,
    %337 = vector.extract_strided_slice %199 {offsets = [0, 416], sizes = [16, 16], strides = [1, 1]} : vector<16x512xf32> to vector<16x16xf32>
    %338 = vector.extract_strided_slice %326 {offsets = [16, 0], sizes = [8, 16], strides = [1, 1]} : vector<32x16xf32> to vector<8x16xf32>
    %339 = tpu.transpose %337, [1, 0] : vector<16x16xf32> -> vector<16x16xf32>
    %cst_154 = arith.constant dense<0.000000e+00> : vector<8x16xf32>
    %340 = tpu.matmul %338, %339, %cst_154 {dimension_numbers = #tpu.dot_dimension_numbers<[1], [0], [0], [1], [0, 0, 1, 1], [], []>} : vector<8x16xf32>, vector<16x16xf32>, vector<8x16xf32> -> vector<8x16xf32>
    %c16_155 = arith.constant 16 : index
    %c96_156 = arith.constant 96 : index
    %341 = vector.load %arg9[%c16_155, %c96_156] : memref<32x128xf32, #tpu.memory_space<vmem>>, vector<8x16xf32>
    tpu.vector_store %arg9[%c16_155, %c96_156], %340 {strides = array<i32>} : memref<32x128xf32, #tpu.memory_space<vmem>>, vector<8x16xf32>,
    %342 = vector.extract_strided_slice %199 {offsets = [0, 432], sizes = [16, 16], strides = [1, 1]} : vector<16x512xf32> to vector<16x16xf32>
    %343 = vector.extract_strided_slice %326 {offsets = [24, 0], sizes = [8, 16], strides = [1, 1]} : vector<32x16xf32> to vector<8x16xf32>
    %344 = tpu.transpose %342, [1, 0] : vector<16x16xf32> -> vector<16x16xf32>
    %cst_157 = arith.constant dense<0.000000e+00> : vector<8x16xf32>
    %345 = tpu.matmul %343, %344, %cst_157 {dimension_numbers = #tpu.dot_dimension_numbers<[1], [0], [0], [1], [0, 0, 1, 1], [], []>} : vector<8x16xf32>, vector<16x16xf32>, vector<8x16xf32> -> vector<8x16xf32>
    %c24_158 = arith.constant 24 : index
    %c96_159 = arith.constant 96 : index
    %346 = vector.load %arg9[%c24_158, %c96_159] : memref<32x128xf32, #tpu.memory_space<vmem>>, vector<8x16xf32>
    tpu.vector_store %arg9[%c24_158, %c96_159], %345 {strides = array<i32>} : memref<32x128xf32, #tpu.memory_space<vmem>>, vector<8x16xf32>,
    %347 = vector.extract_strided_slice %9 {offsets = [0, 112], sizes = [32, 16], strides = [1, 1]} : vector<32x128xf32> to vector<32x16xf32>
    %348 = vector.extract_strided_slice %199 {offsets = [0, 448], sizes = [16, 16], strides = [1, 1]} : vector<16x512xf32> to vector<16x16xf32>
    %349 = vector.extract_strided_slice %347 {offsets = [0, 0], sizes = [8, 16], strides = [1, 1]} : vector<32x16xf32> to vector<8x16xf32>
    %350 = tpu.transpose %348, [1, 0] : vector<16x16xf32> -> vector<16x16xf32>
    %cst_160 = arith.constant dense<0.000000e+00> : vector<8x16xf32>
    %351 = tpu.matmul %349, %350, %cst_160 {dimension_numbers = #tpu.dot_dimension_numbers<[1], [0], [0], [1], [0, 0, 1, 1], [], []>} : vector<8x16xf32>, vector<16x16xf32>, vector<8x16xf32> -> vector<8x16xf32>
    %c0_161 = arith.constant 0 : index
    %c112_162 = arith.constant 112 : index
    %352 = vector.load %arg9[%c0_161, %c112_162] : memref<32x128xf32, #tpu.memory_space<vmem>>, vector<8x16xf32>
    tpu.vector_store %arg9[%c0_161, %c112_162], %351 {strides = array<i32>} : memref<32x128xf32, #tpu.memory_space<vmem>>, vector<8x16xf32>,
    %353 = vector.extract_strided_slice %199 {offsets = [0, 464], sizes = [16, 16], strides = [1, 1]} : vector<16x512xf32> to vector<16x16xf32>
    %354 = vector.extract_strided_slice %347 {offsets = [8, 0], sizes = [8, 16], strides = [1, 1]} : vector<32x16xf32> to vector<8x16xf32>
    %355 = tpu.transpose %353, [1, 0] : vector<16x16xf32> -> vector<16x16xf32>
    %cst_163 = arith.constant dense<0.000000e+00> : vector<8x16xf32>
    %356 = tpu.matmul %354, %355, %cst_163 {dimension_numbers = #tpu.dot_dimension_numbers<[1], [0], [0], [1], [0, 0, 1, 1], [], []>} : vector<8x16xf32>, vector<16x16xf32>, vector<8x16xf32> -> vector<8x16xf32>
    %c8_164 = arith.constant 8 : index
    %c112_165 = arith.constant 112 : index
    %357 = vector.load %arg9[%c8_164, %c112_165] : memref<32x128xf32, #tpu.memory_space<vmem>>, vector<8x16xf32>
    tpu.vector_store %arg9[%c8_164, %c112_165], %356 {strides = array<i32>} : memref<32x128xf32, #tpu.memory_space<vmem>>, vector<8x16xf32>,
    %358 = vector.extract_strided_slice %199 {offsets = [0, 480], sizes = [16, 16], strides = [1, 1]} : vector<16x512xf32> to vector<16x16xf32>
    %359 = vector.extract_strided_slice %347 {offsets = [16, 0], sizes = [8, 16], strides = [1, 1]} : vector<32x16xf32> to vector<8x16xf32>
    %360 = tpu.transpose %358, [1, 0] : vector<16x16xf32> -> vector<16x16xf32>
    %cst_166 = arith.constant dense<0.000000e+00> : vector<8x16xf32>
    %361 = tpu.matmul %359, %360, %cst_166 {dimension_numbers = #tpu.dot_dimension_numbers<[1], [0], [0], [1], [0, 0, 1, 1], [], []>} : vector<8x16xf32>, vector<16x16xf32>, vector<8x16xf32> -> vector<8x16xf32>
    %c16_167 = arith.constant 16 : index
    %c112_168 = arith.constant 112 : index
    %362 = vector.load %arg9[%c16_167, %c112_168] : memref<32x128xf32, #tpu.memory_space<vmem>>, vector<8x16xf32>
    tpu.vector_store %arg9[%c16_167, %c112_168], %361 {strides = array<i32>} : memref<32x128xf32, #tpu.memory_space<vmem>>, vector<8x16xf32>,
    %363 = vector.extract_strided_slice %199 {offsets = [0, 496], sizes = [16, 16], strides = [1, 1]} : vector<16x512xf32> to vector<16x16xf32>
    %364 = vector.extract_strided_slice %347 {offsets = [24, 0], sizes = [8, 16], strides = [1, 1]} : vector<32x16xf32> to vector<8x16xf32>
    %365 = tpu.transpose %363, [1, 0] : vector<16x16xf32> -> vector<16x16xf32>
    %cst_169 = arith.constant dense<0.000000e+00> : vector<8x16xf32>
    %366 = tpu.matmul %364, %365, %cst_169 {dimension_numbers = #tpu.dot_dimension_numbers<[1], [0], [0], [1], [0, 0, 1, 1], [], []>} : vector<8x16xf32>, vector<16x16xf32>, vector<8x16xf32> -> vector<8x16xf32>
    %c24_170 = arith.constant 24 : index
    %c112_171 = arith.constant 112 : index
    %367 = vector.load %arg9[%c24_170, %c112_171] : memref<32x128xf32, #tpu.memory_space<vmem>>, vector<8x16xf32>
    tpu.vector_store %arg9[%c24_170, %c112_171], %366 {strides = array<i32>} : memref<32x128xf32, #tpu.memory_space<vmem>>, vector<8x16xf32>,
    %c0_172 = arith.constant 0 : index
    %c0_173 = arith.constant 0 : index
    %368 = vector.load %arg5[%c0_172, %c0_173] : memref<32x32xf32, #tpu.memory_space<vmem>>, vector<32x32xf32>
    %c0_174 = arith.constant 0 : index
    %c0_175 = arith.constant 0 : index
    %369 = vector.load %arg9[%c0_174, %c0_175] : memref<32x128xf32, #tpu.memory_space<vmem>>, vector<32x128xf32>
    %cst_176 = arith.constant dense<0.000000e+00> : vector<32x128xf32>
    %370 = tpu.matmul %368, %369, %cst_176 {dimension_numbers = #tpu.dot_dimension_numbers<[1], [0], [0], [1], [0, 0, 1, 1], [], []>} : vector<32x32xf32>, vector<32x128xf32>, vector<32x128xf32> -> vector<32x128xf32>
    %c0_177 = arith.constant 0 : index
    %c0_178 = arith.constant 0 : index
    %371 = vector.load %arg6[%c0_177, %c0_178] : memref<32x1xf32, #tpu.memory_space<vmem>>, vector<32x1xf32>
    %372 = vector.broadcast %371 : vector<32x1xf32> to vector<32x128xf32>
    %373 = arith.addf %370, %372 : vector<32x128xf32>
    %c0_179 = arith.constant 0 : index
    %c0_180 = arith.constant 0 : index
    %c0_181 = arith.constant 0 : index
    %374 = vector.load %arg7[%c0_179, %c0_180, %c0_181] : memref<1x32x128xf32, #tpu.memory_space<vmem>>, vector<1x32x128xf32>
    %375 = vector.shape_cast %374 : vector<1x32x128xf32> to vector<32x128xf32>
    %376 = vector.shape_cast %373 : vector<32x128xf32> to vector<1x32x128xf32>
    tpu.vector_store %arg7[%c0_179, %c0_180, %c0_181], %376 {strides = array<i32>} : memref<1x32x128xf32, #tpu.memory_space<vmem>>, vector<1x32x128xf32>,
    return
  }
  func.func @transform_0(%arg0: i32) -> (i32, i32, i32) {
    %c0_i32 = arith.constant 0 : i32
    %c0_i32_0 = arith.constant 0 : i32
    %c0_i32_1 = arith.constant 0 : i32
    return %arg0, %c0_i32, %c0_i32_0 : i32, i32, i32
  }
  func.func @transform_1(%arg0: i32) -> (i32, i32, i32) {
    %c0_i32 = arith.constant 0 : i32
    %c0_i32_0 = arith.constant 0 : i32
    %c0_i32_1 = arith.constant 0 : i32
    return %arg0, %c0_i32, %c0_i32_0 : i32, i32, i32
  }
  func.func @transform_2(%arg0: i32) -> (i32, i32) {
    %c0_i32 = arith.constant 0 : i32
    %c0_i32_0 = arith.constant 0 : i32
    %c0_i32_1 = arith.constant 0 : i32
    return %c0_i32, %c0_i32_0 : i32, i32
  }
  func.func @transform_3(%arg0: i32) -> (i32, i32) {
    %c0_i32 = arith.constant 0 : i32
    %c0_i32_0 = arith.constant 0 : i32
    %c0_i32_1 = arith.constant 0 : i32
    return %c0_i32, %c0_i32_0 : i32, i32
  }
  func.func @transform_4(%arg0: i32) -> (i32, i32) {
    %c0_i32 = arith.constant 0 : i32
    %c0_i32_0 = arith.constant 0 : i32
    %c0_i32_1 = arith.constant 0 : i32
    return %c0_i32, %c0_i32_0 : i32, i32
  }
  func.func @transform_5(%arg0: i32) -> (i32, i32) {
    %c0_i32 = arith.constant 0 : i32
    %c0_i32_0 = arith.constant 0 : i32
    %c0_i32_1 = arith.constant 0 : i32
    return %c0_i32, %c0_i32_0 : i32, i32
  }
  func.func @transform_6(%arg0: i32) -> (i32, i32, i32) {
    %c0_i32 = arith.constant 0 : i32
    %c0_i32_0 = arith.constant 0 : i32
    %c0_i32_1 = arith.constant 0 : i32
    return %arg0, %c0_i32, %c0_i32_0 : i32, i32, i32
  }
}

</mosaic_0001>

<llo_original>
// kernel: multi_head_attention.1
$region0: #{multi_head_attention.1}
  #allocation0 [shape = 'u32[]', space=smem, size = 0x4, offset = 0x4, fixed_abs, tag = 'smem constant byte address 0x4 - core index']
  #allocation1 [shape = 'u32[144,128]{1,0:T(1,128)}', space=vmem, size = 0x12000, scoped, tag = 'internal scratch']
  #allocation2 [shape = 'f32[16,512]{1,0:T(8,128)}', space=vmem, size = 0x8000, scoped, tag = 'scratch operand']
  #allocation3 [shape = 'f32[32,128]{1,0:T(8,128)}', space=vmem, size = 0x4000, scoped, tag = 'scratch operand']
  %s0 = inlined_call_operand.vmem [shape: f32[2,96,128], index: 0, kind: input, shape index: {}]
  %s1 = inlined_call_operand.vmem [shape: f32[2,16,512], index: 1, kind: input, shape index: {}]
  %s2 = inlined_call_operand.vmem [shape: f32[96,96], index: 2, kind: input, shape index: {}]
  %s3 = inlined_call_operand.vmem [shape: f32[96,1], index: 3, kind: input, shape index: {}]
  %s4 = inlined_call_operand.vmem [shape: f32[32,32], index: 4, kind: input, shape index: {}]
  %s5 = inlined_call_operand.vmem [shape: f32[32,1], index: 5, kind: input, shape index: {}]
  %s6 = inlined_call_operand.vmem [shape: f32[2,32,128], index: 6, kind: output, shape index: {}]
  %s7 = sld [smem:[#allocation0]]
  $region57: #{multi_head_attention.1} parent=0
    _
  %s9 = ssub.s32 1, %s7
  %s10 = scalar_select 0, %s9, %s7
  loop: start=0, step=1, limit=4
  $region2: #{multi_head_attention.1} parent=0 // loop_pre_header
    _
  $region3: #{multi_head_attention.1} parent=0 // loop_header
    %s12 = sphi 0, %s16
    %p13 = scmp.ge.s32.totalorder %s12, 4
    %s22 = sphi 0, %s24
    %s25 = sphi 0, %s22
    %s26 = sphi 0, %s25
    %s42 = sphi 0, %s26
    %s48 = sphi 0, %s50
    %s51 = sphi 0, %s48
    %s52 = sphi 0, %s51
    %s68 = sphi 0, %s52
    %s72 = sphi 0, %s72
    %s74 = sphi 0, %s72
    %s75 = sphi 0, %s74
    %s89 = sphi 0, %s75
    %s93 = sphi 0, %s93
    %s95 = sphi 0, %s93
    %s96 = sphi 0, %s95
    %s110 = sphi 0, %s96
    %s114 = sphi 0, %s114
    %s116 = sphi 0, %s114
    %s117 = sphi 0, %s116
    %s131 = sphi 0, %s117
    %s135 = sphi 0, %s135
    %s137 = sphi 0, %s135
    %s138 = sphi 0, %s137
    %s152 = sphi 0, %s138
    %s158 = sphi 0, %s160
    %s161 = sphi 0, %s158
    %s162 = sphi 0, %s161
    %s178 = sphi 0, %s162
  $region4: #{multi_head_attention.1} parent=0 // loop_header_branch
    %15 = sbr.rel (%p13) target = $region8
  $region5: #{multi_head_attention.1} parent=0 // loop_body
    %s17 = ssub.s32 %s12, 1
    %s18 = ssub.s32 %s12, 2
    %s19 = sadd.s32 %s12, 1
    %s20 = ssub.s32 %s12, %s19
    %p21 = scmp.eq.s32.totalorder %s20, 0
    %s23 = sadd.s32 %s22, 1
    %s24 = scalar_select %p21, %s22, %s23
    %p27 = pneg %p21
    %p28 = scmp.eq.s32.totalorder %s12, 1
    %p29 = por %p27, %p28
    %p30 = scmp.ne.s32.totalorder %s22, %s25
    %p31 = scmp.eq.s32.totalorder %s12, 0
    %p32 = por %p30, %p31
    %p33 = scmp.ne.s32.totalorder %s22, %s25
    %p34 = scmp.eq.s32.totalorder %s17, 1
    %p35 = por %p33, %p34
    %p36 = scmp.ne.s32.totalorder %s25, %s26
    %p37 = scmp.eq.s32.totalorder %s17, 0
    %p38 = por %p36, %p37
    %p39 = scmp.ne.s32.totalorder %s25, %s26
    %p40 = scmp.eq.s32.totalorder %s18, 1
    %p41 = por %p39, %p40
    %p43 = scmp.ne.s32.totalorder %s26, %s42
    %p44 = scmp.eq.s32.totalorder %s18, 0
    %p45 = por %p43, %p44
    %s46 = ssub.s32 %s12, %s19
    %p47 = scmp.eq.s32.totalorder %s46, 0
    %s49 = sadd.s32 %s48, 1
    %s50 = scalar_select %p47, %s48, %s49
    %p53 = pneg %p47
    %p54 = scmp.eq.s32.totalorder %s12, 1
    %p55 = por %p53, %p54
    %p56 = scmp.ne.s32.totalorder %s48, %s51
    %p57 = scmp.eq.s32.totalorder %s12, 0
    %p58 = por %p56, %p57
    %p59 = scmp.ne.s32.totalorder %s48, %s51
    %p60 = scmp.eq.s32.totalorder %s17, 1
    %p61 = por %p59, %p60
    %p62 = scmp.ne.s32.totalorder %s51, %s52
    %p63 = scmp.eq.s32.totalorder %s17, 0
    %p64 = por %p62, %p63
    %p65 = scmp.ne.s32.totalorder %s51, %s52
    %p66 = scmp.eq.s32.totalorder %s18, 1
    %p67 = por %p65, %p66
    %p69 = scmp.ne.s32.totalorder %s52, %s68
    %p70 = scmp.eq.s32.totalorder %s18, 0
    %p71 = por %p69, %p70
    %s73 = sadd.s32 %s72, 1
    %p76 = scmp.eq.s32.totalorder %s12, 1
    %p77 = scmp.ne.s32.totalorder %s72, %s74
    %p78 = scmp.eq.s32.totalorder %s12, 0
    %p79 = por %p77, %p78
    %p80 = scmp.ne.s32.totalorder %s72, %s74
    %p81 = scmp.eq.s32.totalorder %s17, 1
    %p82 = por %p80, %p81
    %p83 = scmp.ne.s32.totalorder %s74, %s75
    %p84 = scmp.eq.s32.totalorder %s17, 0
    %p85 = por %p83, %p84
    %p86 = scmp.ne.s32.totalorder %s74, %s75
    %p87 = scmp.eq.s32.totalorder %s18, 1
    %p88 = por %p86, %p87
    %p90 = scmp.ne.s32.totalorder %s75, %s89
    %p91 = scmp.eq.s32.totalorder %s18, 0
    %p92 = por %p90, %p91
    %s94 = sadd.s32 %s93, 1
    %p97 = scmp.eq.s32.totalorder %s12, 1
    %p98 = scmp.ne.s32.totalorder %s93, %s95
    %p99 = scmp.eq.s32.totalorder %s12, 0
    %p100 = por %p98, %p99
    %p101 = scmp.ne.s32.totalorder %s93, %s95
    %p102 = scmp.eq.s32.totalorder %s17, 1
    %p103 = por %p101, %p102
    %p104 = scmp.ne.s32.totalorder %s95, %s96
    %p105 = scmp.eq.s32.totalorder %s17, 0
    %p106 = por %p104, %p105
    %p107 = scmp.ne.s32.totalorder %s95, %s96
    %p108 = scmp.eq.s32.totalorder %s18, 1
    %p109 = por %p107, %p108
    %p111 = scmp.ne.s32.totalorder %s96, %s110
    %p112 = scmp.eq.s32.totalorder %s18, 0
    %p113 = por %p111, %p112
    %s115 = sadd.s32 %s114, 1
    %p118 = scmp.eq.s32.totalorder %s12, 1
    %p119 = scmp.ne.s32.totalorder %s114, %s116
    %p120 = scmp.eq.s32.totalorder %s12, 0
    %p121 = por %p119, %p120
    %p122 = scmp.ne.s32.totalorder %s114, %s116
    %p123 = scmp.eq.s32.totalorder %s17, 1
    %p124 = por %p122, %p123
    %p125 = scmp.ne.s32.totalorder %s116, %s117
    %p126 = scmp.eq.s32.totalorder %s17, 0
    %p127 = por %p125, %p126
    %p128 = scmp.ne.s32.totalorder %s116, %s117
    %p129 = scmp.eq.s32.totalorder %s18, 1
    %p130 = por %p128, %p129
    %p132 = scmp.ne.s32.totalorder %s117, %s131
    %p133 = scmp.eq.s32.totalorder %s18, 0
    %p134 = por %p132, %p133
    %s136 = sadd.s32 %s135, 1
    %p139 = scmp.eq.s32.totalorder %s12, 1
    %p140 = scmp.ne.s32.totalorder %s135, %s137
    %p141 = scmp.eq.s32.totalorder %s12, 0
    %p142 = por %p140, %p141
    %p143 = scmp.ne.s32.totalorder %s135, %s137
    %p144 = scmp.eq.s32.totalorder %s17, 1
    %p145 = por %p143, %p144
    %p146 = scmp.ne.s32.totalorder %s137, %s138
    %p147 = scmp.eq.s32.totalorder %s17, 0
    %p148 = por %p146, %p147
    %p149 = scmp.ne.s32.totalorder %s137, %s138
    %p150 = scmp.eq.s32.totalorder %s18, 1
    %p151 = por %p149, %p150
    %p153 = scmp.ne.s32.totalorder %s138, %s152
    %p154 = scmp.eq.s32.totalorder %s18, 0
    %p155 = por %p153, %p154
    %s156 = ssub.s32 %s12, %s19
    %p157 = scmp.eq.s32.totalorder %s156, 0
    %s159 = sadd.s32 %s158, 1
    %s160 = scalar_select %p157, %s158, %s159
    %p163 = pneg %p157
    %p164 = scmp.eq.s32.totalorder %s12, 1
    %p165 = por %p163, %p164
    %p166 = scmp.ne.s32.totalorder %s158, %s161
    %p167 = scmp.eq.s32.totalorder %s12, 0
    %p168 = por %p166, %p167
    %p169 = scmp.ne.s32.totalorder %s158, %s161
    %p170 = scmp.eq.s32.totalorder %s17, 1
    %p171 = por %p169, %p170
    %p172 = scmp.ne.s32.totalorder %s161, %s162
    %p173 = scmp.eq.s32.totalorder %s17, 0
    %p174 = por %p172, %p173
    %p175 = scmp.ne.s32.totalorder %s161, %s162
    %p176 = scmp.eq.s32.totalorder %s18, 1
    %p177 = por %p175, %p176
    %p179 = scmp.ne.s32.totalorder %s162, %s178
    %p180 = scmp.eq.s32.totalorder %s18, 0
    %p181 = por %p179, %p180
    %p182 = scmp.le.s32.totalorder 1, %s12
    %p183 = scmp.lt.s32.totalorder %s12, 3
    %p184 = pnand %p182, %p183
    %p185 = pneg %p184
    // Predicated region
    $region9: #{multi_head_attention.1} parent=5 // pred_check
      _
    $region10: #{multi_head_attention.1} parent=5 // pred_check_branch
      %187 = sbr.rel (%p184) target = $region12
    $region11: #{multi_head_attention.1} parent=5 // pred_region
      %s188 = ssub.s32 %s12, 1
      // Predicated region
      $region13: #{multi_head_attention.1} parent=11 // pred_check
        %p189 = pneg %p85
      $region14: #{multi_head_attention.1} parent=11 // pred_check_branch
        %191 = sbr.rel (%p189) target = $region16
      $region15: #{multi_head_attention.1} parent=11 // pred_region
        _
      $region16: #{multi_head_attention.1} parent=11 // pred_fallthru
        _
      // Predicated region
      $region17: #{multi_head_attention.1} parent=11 // pred_check
        %p192 = pneg %p106
      $region18: #{multi_head_attention.1} parent=11 // pred_check_branch
        %194 = sbr.rel (%p192) target = $region20
      $region19: #{multi_head_attention.1} parent=11 // pred_region
        _
      $region20: #{multi_head_attention.1} parent=11 // pred_fallthru
        _
      // Predicated region
      $region21: #{multi_head_attention.1} parent=11 // pred_check
        %p195 = pneg %p127
      $region22: #{multi_head_attention.1} parent=11 // pred_check_branch
        %197 = sbr.rel (%p195) target = $region24
      $region23: #{multi_head_attention.1} parent=11 // pred_region
        _
      $region24: #{multi_head_attention.1} parent=11 // pred_fallthru
        _
      // Predicated region
      $region25: #{multi_head_attention.1} parent=11 // pred_check
        %p198 = pneg %p148
      $region26: #{multi_head_attention.1} parent=11 // pred_check_branch
        %200 = sbr.rel (%p198) target = $region28
      $region27: #{multi_head_attention.1} parent=11 // pred_region
        _
      $region28: #{multi_head_attention.1} parent=11 // pred_fallthru
        _
    $region12: #{multi_head_attention.1} parent=5 // pred_fallthru
      _
    %p201 = scmp.lt.s32.totalorder %s12, 2
    // Predicated region
    $region29: #{multi_head_attention.1} parent=5 // pred_check
      %p202 = pneg %p201
    $region30: #{multi_head_attention.1} parent=5 // pred_check_branch
      %204 = sbr.rel (%p202) target = $region32
    $region31: #{multi_head_attention.1} parent=5 // pred_region
      // Predicated region
      $region33: #{multi_head_attention.1} parent=31 // pred_check
        %p205 = pneg %p32
      $region34: #{multi_head_attention.1} parent=31 // pred_check_branch
        %207 = sbr.rel (%p205) target = $region36
      $region35: #{multi_head_attention.1} parent=31 // pred_region
        %p208 = scmp.lt.s32.totalorder %s12, 1
        %s209 = scalar_select %p208, %s12, 1
        %s210 = smul.addr %s209, 12
        %s211 = smul.addr %s210, 8
        %s212 = scalar_lea.vmem %s0, %s211
      $region36: #{multi_head_attention.1} parent=31 // pred_fallthru
        _
      // Predicated region
      $region37: #{multi_head_attention.1} parent=31 // pred_check
        %p213 = pneg %p58
      $region38: #{multi_head_attention.1} parent=31 // pred_check_branch
        %215 = sbr.rel (%p213) target = $region40
      $region39: #{multi_head_attention.1} parent=31 // pred_region
        %p216 = scmp.lt.s32.totalorder %s12, 1
        %s217 = scalar_select %p216, %s12, 1
        %s218 = smul.addr %s217, 8
        %s219 = smul.addr %s218, 8
        %s220 = scalar_lea.vmem %s1, %s219
      $region40: #{multi_head_attention.1} parent=31 // pred_fallthru
        _
    $region32: #{multi_head_attention.1} parent=5 // pred_fallthru
      _
    %p221 = scmp.le.s32.totalorder 1, %s12
    %p222 = scmp.lt.s32.totalorder %s12, 3
    %p223 = pnand %p221, %p222
    %p224 = pneg %p223
    // Predicated region
    $region41: #{multi_head_attention.1} parent=5 // pred_check
      _
    $region42: #{multi_head_attention.1} parent=5 // pred_check_branch
      %226 = sbr.rel (%p223) target = $region44
    $region43: #{multi_head_attention.1} parent=5 // pred_region
      %s227 = ssub.s32 %s12, 1
      %p228 = scmp.lt.s32.totalorder %s17, 1
      %s229 = scalar_select %p228, %s17, 1
      %s230 = smul.addr %s229, 12
      %s231 = smul.addr %s230, 8
      %s232 = scalar_lea.vmem %s0, %s231
      %p233 = pneg %p38
      %p234 = pneg %p35
      %p235 = scmp.lt.s32.totalorder %s17, 1
      %s236 = scalar_select %p235, %s17, 1
      %s237 = smul.addr %s236, 8
      %s238 = smul.addr %s237, 8
      %s239 = scalar_lea.vmem %s1, %s238
      %p240 = pneg %p64
      %p241 = pneg %p61
      %p242 = pneg %p85
      %p243 = pneg %p82
      %p244 = pneg %p106
      %p245 = pneg %p103
      %p246 = pneg %p127
      %p247 = pneg %p124
      %p248 = pneg %p148
      %p249 = pneg %p145
      %p250 = pneg %p174
      %p251 = pneg %p171
      %p252 = scmp.lt.s32.totalorder %s17, 1
      %s253 = scalar_select %p252, %s17, 1
      %s254 = smul.addr %s253, 4
      %s255 = smul.addr %s254, 8
      %s256 = scalar_lea.vmem %s6, %s255
      %p257 = scmp.lt.s32.totalorder %s17, 1
      %s258 = scalar_select %p257, %s17, 1
      %s259 = smul.addr %s258, 12
      %s260 = smul.addr %s259, 8
      %s261 = scalar_lea.vmem %s0, %s260
      %p262 = scmp.lt.s32.totalorder %s17, 1
      %s263 = scalar_select %p262, %s17, 1
      %s264 = smul.addr %s263, 8
      %s265 = smul.addr %s264, 8
      %s266 = scalar_lea.vmem %s1, %s265
      %p267 = scmp.lt.s32.totalorder %s17, 1
      %s268 = scalar_select %p267, %s17, 1
      %s269 = smul.addr %s268, 4
      %s270 = smul.addr %s269, 8
      %s271 = scalar_lea.vmem %s6, %s270
      %v272 = vld [vmem:[%s2] sm:$0xff]
      %v273 = vld [vmem:[%s2 + $0x8] sm:$0xff]
      %v274 = vld [vmem:[%s2 + $0x10] sm:$0xff]
      %v275 = vld [vmem:[%s2 + $0x18] sm:$0xff]
      %v276 = vld [vmem:[%s2 + $0x20] sm:$0xff]
      %v277 = vld [vmem:[%s2 + $0x28] sm:$0xff]
      %v278 = vld [vmem:[%s2 + $0x30] sm:$0xff]
      %v279 = vld [vmem:[%s2 + $0x38] sm:$0xff]
      %v280 = vld [vmem:[%s2 + $0x40] sm:$0xff]
      %v281 = vld [vmem:[%s2 + $0x48] sm:$0xff]
      %v282 = vld [vmem:[%s2 + $0x50] sm:$0xff]
      %v283 = vld [vmem:[%s2 + $0x58] sm:$0xff]
      %v284 = vld [vmem:[%s261] sm:$0xff]
      %v285 = vld [vmem:[%s261 + $0x8] sm:$0xff]
      %v286 = vld [vmem:[%s261 + $0x10] sm:$0xff]
      %v287 = vld [vmem:[%s261 + $0x18] sm:$0xff]
      %v288 = vld [vmem:[%s261 + $0x20] sm:$0xff]
      %v289 = vld [vmem:[%s261 + $0x28] sm:$0xff]
      %v290 = vld [vmem:[%s261 + $0x30] sm:$0xff]
      %v291 = vld [vmem:[%s261 + $0x38] sm:$0xff]
      %v292 = vld [vmem:[%s261 + $0x40] sm:$0xff]
      %v293 = vld [vmem:[%s261 + $0x48] sm:$0xff]
      %v294 = vld [vmem:[%s261 + $0x50] sm:$0xff]
      %v295 = vld [vmem:[%s261 + $0x58] sm:$0xff]
      %v296 = vld [vmem:[%s3] sm:$0xff]
      %v297 = vld [vmem:[%s3 + $0x8] sm:$0xff]
      %v298 = vld [vmem:[%s3 + $0x10] sm:$0xff]
      %v299 = vld [vmem:[%s3 + $0x18] sm:$0xff]
      %v300 = vld [vmem:[%s3 + $0x20] sm:$0xff]
      %v301 = vld [vmem:[%s3 + $0x28] sm:$0xff]
      %v302 = vld [vmem:[%s3 + $0x30] sm:$0xff]
      %v303 = vld [vmem:[%s3 + $0x38] sm:$0xff]
      %v304 = vld [vmem:[%s3 + $0x40] sm:$0xff]
      %v305 = vld [vmem:[%s3 + $0x48] sm:$0xff]
      %v306 = vld [vmem:[%s3 + $0x50] sm:$0xff]
      %v307 = vld [vmem:[%s3 + $0x58] sm:$0xff]
      %309 = vset.pattern.permute.xlu0 0
      %310 = vperm.xlu0 %309, %v296
      %v311 = vpop.permute.xlu0 %310
      %314 = vset.pattern.permute.xlu0 0
      %315 = vperm.xlu0 %314, %v297
      %v316 = vpop.permute.xlu0 %315
      %319 = vset.pattern.permute.xlu0 0
      %320 = vperm.xlu0 %319, %v298
      %v321 = vpop.permute.xlu0 %320
      %324 = vset.pattern.permute.xlu0 0
      %325 = vperm.xlu0 %324, %v299
      %v326 = vpop.permute.xlu0 %325
      %329 = vset.pattern.permute.xlu0 0
      %330 = vperm.xlu0 %329, %v300
      %v331 = vpop.permute.xlu0 %330
      %334 = vset.pattern.permute.xlu0 0
      %335 = vperm.xlu0 %334, %v301
      %v336 = vpop.permute.xlu0 %335
      %339 = vset.pattern.permute.xlu0 0
      %340 = vperm.xlu0 %339, %v302
      %v341 = vpop.permute.xlu0 %340
      %344 = vset.pattern.permute.xlu0 0
      %345 = vperm.xlu0 %344, %v303
      %v346 = vpop.permute.xlu0 %345
      %349 = vset.pattern.permute.xlu0 0
      %350 = vperm.xlu0 %349, %v304
      %v351 = vpop.permute.xlu0 %350
      %354 = vset.pattern.permute.xlu0 0
      %355 = vperm.xlu0 %354, %v305
      %v356 = vpop.permute.xlu0 %355
      %359 = vset.pattern.permute.xlu0 0
      %360 = vperm.xlu0 %359, %v306
      %v361 = vpop.permute.xlu0 %360
      %364 = vset.pattern.permute.xlu0 0
      %365 = vperm.xlu0 %364, %v307
      %v366 = vpop.permute.xlu0 %365
      %vm368 = vcmask 785408
      %v370 = vsel %vm368, %v272, 0
      %v373 = vsel %vm368, %v273, 0
      %v376 = vsel %vm368, %v274, 0
      %v379 = vsel %vm368, %v275, 0
      %v382 = vsel %vm368, %v276, 0
      %v385 = vsel %vm368, %v277, 0
      %v388 = vsel %vm368, %v278, 0
      %v391 = vsel %vm368, %v279, 0
      %v394 = vsel %vm368, %v280, 0
      %v397 = vsel %vm368, %v281, 0
      %v400 = vsel %vm368, %v282, 0
      %v403 = vsel %vm368, %v283, 0
      %405 = vmatprep.subr.mxu0 0.0
      %406 = vmatpush1.msra.mxu0 %v284
      %407 = vmatprep.subr.mxu0 0.0
      %408 = vmatpush1.msra.mxu0 %v285
      %409 = vmatprep.subr.mxu0 0.0
      %410 = vmatpush1.msra.mxu0 %v286
      %411 = vmatprep.subr.mxu0 0.0
      %412 = vmatpush1.msra.mxu0 %v287
      %413 = vmatprep.subr.mxu0 0.0
      %414 = vmatpush1.msra.mxu0 %v288
      %415 = vmatprep.subr.mxu0 0.0
      %416 = vmatpush1.msra.mxu0 %v289
      %417 = vmatprep.subr.mxu0 0.0
      %418 = vmatpush1.msra.mxu0 %v290
      %419 = vmatprep.subr.mxu0 0.0
      %420 = vmatpush1.msra.mxu0 %v291
      %421 = vmatprep.subr.mxu0 0.0
      %422 = vmatpush1.msra.mxu0 %v292
      %423 = vmatprep.subr.mxu0 0.0
      %424 = vmatpush1.msra.mxu0 %v293
      %425 = vmatprep.subr.mxu0 0.0
      %426 = vmatpush1.msra.mxu0 %v294
      %427 = vmatprep.subr.mxu0 0.0
      %428 = vmatpush1.msra.mxu0 %v295
      %429 = vmatprep.subr.mxu0 0.0
      %430 = vmatpush1.msra.mxu0 0.0
      %431 = vmatprep.subr.mxu0 0.0
      %432 = vmatpush1.msra.mxu0 0.0
      %433 = vmatprep.subr.mxu0 0.0
      %434 = vmatpush1.msra.mxu0 0.0
      %435 = vmatprep.subr.mxu0 0.0
      %436 = vmatpush1.msra.mxu0 0.0
      %437 = vmatprep.subr.mxu0 0.0
      %438 = vmatpush1.msra.mxu0 0.0
      %439 = vmatprep.subr.mxu0 0.0
      %440 = vmatpush1.msra.mxu0 0.0
      %441 = vmatprep.subr.mxu0 0.0
      %442 = vmatpush1.msra.mxu0 0.0
      %443 = vmatprep.subr.mxu0 0.0
      %444 = vmatpush1.msra.mxu0 0.0
      %445 = vmatprep.subr.mxu0 0.0
      %446 = vmatpush1.msra.mxu0 0.0
      %447 = vmatprep.subr.mxu0 0.0
      %448 = vmatpush1.msra.mxu0 0.0
      %449 = vmatprep.subr.mxu0 0.0
      %450 = vmatpush1.msra.mxu0 0.0
      %451 = vmatprep.subr.mxu0 0.0
      %452 = vmatpush1.msra.mxu0 0.0
      %453 = vmatprep.subr.mxu0 0.0
      %454 = vmatpush1.msra.mxu0 0.0
      %455 = vmatprep.subr.mxu0 0.0
      %456 = vmatpush1.msra.mxu0 0.0
      %457 = vmatprep.subr.mxu0 0.0
      %458 = vmatpush1.msra.mxu0 0.0
      %459 = vmatprep.subr.mxu0 0.0
      %460 = vmatpush1.msra.mxu0 0.0
      %461 = vmatprep.subr.mxu0 0.0
      %462 = vmatpush1.msra.mxu0 0.0
      %463 = vmatprep.subr.mxu0 0.0
      %464 = vmatpush1.msra.mxu0 0.0
      %465 = vmatprep.subr.mxu0 0.0
      %466 = vmatpush1.msra.mxu0 0.0
      %467 = vmatprep.subr.mxu0 0.0
      %468 = vmatpush1.msra.mxu0 0.0
      %469 = vmatprep.mubr.f32.mxu0 0.0
      %470 = vmatmul.mubr.f32.gmra.mrb[0].mxu0 %v370
      %v471 = vpop.f32.mrb[0].mxu0
      %v472 = vadd.f32 %v311, %v471
      %v473 = vpop.f32.mrb[0].mxu0
      %474 = vmatprep.mubr.f32.mxu0 0.0
      %475 = vmatmul.mubr.f32.gmra.mrb[0].mxu0 %v373
      %v476 = vpop.f32.mrb[0].mxu0
      %v477 = vadd.f32 %v316, %v476
      %v478 = vpop.f32.mrb[0].mxu0
      %479 = vmatprep.mubr.f32.mxu0 0.0
      %480 = vmatmul.mubr.f32.gmra.mrb[0].mxu0 %v376
      %v481 = vpop.f32.mrb[0].mxu0
      %v482 = vadd.f32 %v321, %v481
      %v483 = vpop.f32.mrb[0].mxu0
      %484 = vmatprep.mubr.f32.mxu0 0.0
      %485 = vmatmul.mubr.f32.gmra.mrb[0].mxu0 %v379
      %v486 = vpop.f32.mrb[0].mxu0
      %v487 = vadd.f32 %v326, %v486
      %v488 = vpop.f32.mrb[0].mxu0
      %489 = vmatprep.mubr.f32.mxu0 0.0
      %490 = vmatmul.mubr.f32.gmra.mrb[0].mxu0 %v382
      %v491 = vpop.f32.mrb[0].mxu0
      %v492 = vadd.f32 %v331, %v491
      %v493 = vpop.f32.mrb[0].mxu0
      %494 = vmatprep.mubr.f32.mxu0 0.0
      %495 = vmatmul.mubr.f32.gmra.mrb[0].mxu0 %v385
      %v496 = vpop.f32.mrb[0].mxu0
      %v497 = vadd.f32 %v336, %v496
      %v498 = vpop.f32.mrb[0].mxu0
      %499 = vmatprep.mubr.f32.mxu0 0.0
      %500 = vmatmul.mubr.f32.gmra.mrb[0].mxu0 %v388
      %v501 = vpop.f32.mrb[0].mxu0
      %v502 = vadd.f32 %v341, %v501
      %v503 = vpop.f32.mrb[0].mxu0
      %504 = vmatprep.mubr.f32.mxu0 0.0
      %505 = vmatmul.mubr.f32.gmra.mrb[0].mxu0 %v391
      %v506 = vpop.f32.mrb[0].mxu0
      %v507 = vadd.f32 %v346, %v506
      %v508 = vpop.f32.mrb[0].mxu0
      %509 = vmatprep.mubr.f32.mxu0 0.0
      %510 = vmatmul.mubr.f32.gmra.mrb[0].mxu0 %v394
      %v511 = vpop.f32.mrb[0].mxu0
      %v512 = vadd.f32 %v351, %v511
      %v513 = vpop.f32.mrb[0].mxu0
      %514 = vmatprep.mubr.f32.mxu0 0.0
      %515 = vmatmul.mubr.f32.gmra.mrb[0].mxu0 %v397
      %v516 = vpop.f32.mrb[0].mxu0
      %v517 = vadd.f32 %v356, %v516
      %v518 = vpop.f32.mrb[0].mxu0
      %519 = vmatprep.mubr.f32.mxu0 0.0
      %520 = vmatmul.mubr.f32.gmra.mrb[0].mxu0 %v400
      %v521 = vpop.f32.mrb[0].mxu0
      %v522 = vadd.f32 %v361, %v521
      %v523 = vpop.f32.mrb[0].mxu0
      %524 = vmatprep.mubr.f32.mxu0 0.0
      %525 = vmatmul.mubr.f32.gmra.mrb[0].mxu0 %v403
      %v526 = vpop.f32.mrb[0].mxu0
      %v527 = vadd.f32 %v366, %v526
      %v528 = vpop.f32.mrb[0].mxu0
      %529 = vdwg.mxu0
      %530 = vxpose.xlu0.b32.start [1/16] %v472, 128
      %531 = vxpose.xlu0.b32.cont [2/16] 0.0, 128
      %532 = vxpose.xlu0.b32.cont [3/16] 0.0, 128
      %533 = vxpose.xlu0.b32.cont [4/16] 0.0, 128
      %534 = vxpose.xlu0.b32.cont [5/16] 0.0, 128
      %535 = vxpose.xlu0.b32.cont [6/16] 0.0, 128
      %536 = vxpose.xlu0.b32.cont [7/16] 0.0, 128
      %537 = vxpose.xlu0.b32.cont [8/16] 0.0, 128
      %538 = vxpose.xlu0.b32.cont [9/16] 0.0, 128
      %539 = vxpose.xlu0.b32.cont [10/16] 0.0, 128
      %540 = vxpose.xlu0.b32.cont [11/16] 0.0, 128
      %541 = vxpose.xlu0.b32.cont [12/16] 0.0, 128
      %542 = vxpose.xlu0.b32.cont [13/16] 0.0, 128
      %543 = vxpose.xlu0.b32.cont [14/16] 0.0, 128
      %544 = vxpose.xlu0.b32.cont [15/16] 0.0, 128
      %545 = vxpose.xlu0.b32.end [16/16] 0.0, 128
      %v546 = vpop.trf.xlu0
      %v547 = vpop.trf.xlu0
      %v548 = vpop.trf.xlu0
      %v549 = vpop.trf.xlu0
      %v550 = vpop.trf.xlu0
      %v551 = vpop.trf.xlu0
      %v552 = vpop.trf.xlu0
      %v553 = vpop.trf.xlu0
      %v554 = vpop.trf.xlu0
      %v555 = vpop.trf.xlu0
      %v556 = vpop.trf.xlu0
      %v557 = vpop.trf.xlu0
      %v558 = vpop.trf.xlu0
      %v559 = vpop.trf.xlu0
      %v560 = vpop.trf.xlu0
      %v561 = vpop.trf.xlu0
      %vm562 = vcmask 64512
      %v564 = vsel %vm562, %v546, 0
      %v567 = vsel %vm562, %v547, 0
      %569 = vmatprep.subr.mxu0 0.0
      %570 = vmatpush1.msra.mxu0 %v492
      %571 = vmatprep.subr.mxu0 0.0
      %572 = vmatpush1.msra.mxu0 0.0
      %573 = vmatprep.subr.mxu0 0.0
      %574 = vmatpush1.msra.mxu0 0.0
      %575 = vmatprep.subr.mxu0 0.0
      %576 = vmatpush1.msra.mxu0 0.0
      %577 = vmatprep.subr.mxu0 0.0
      %578 = vmatpush1.msra.mxu0 0.0
      %579 = vmatprep.subr.mxu0 0.0
      %580 = vmatpush1.msra.mxu0 0.0
      %581 = vmatprep.subr.mxu0 0.0
      %582 = vmatpush1.msra.mxu0 0.0
      %583 = vmatprep.subr.mxu0 0.0
      %584 = vmatpush1.msra.mxu0 0.0
      %585 = vmatprep.subr.mxu0 0.0
      %586 = vmatpush1.msra.mxu0 0.0
      %587 = vmatprep.subr.mxu0 0.0
      %588 = vmatpush1.msra.mxu0 0.0
      %589 = vmatprep.subr.mxu0 0.0
      %590 = vmatpush1.msra.mxu0 0.0
      %591 = vmatprep.subr.mxu0 0.0
      %592 = vmatpush1.msra.mxu0 0.0
      %593 = vmatprep.subr.mxu0 0.0
      %594 = vmatpush1.msra.mxu0 0.0
      %595 = vmatprep.subr.mxu0 0.0
      %596 = vmatpush1.msra.mxu0 0.0
      %597 = vmatprep.subr.mxu0 0.0
      %598 = vmatpush1.msra.mxu0 0.0
      %599 = vmatprep.subr.mxu0 0.0
      %600 = vmatpush1.msra.mxu0 0.0
      %601 = vmatprep.subr.mxu0 0.0
      %602 = vmatpush1.msra.mxu0 0.0
      %603 = vmatprep.subr.mxu0 0.0
      %604 = vmatpush1.msra.mxu0 0.0
      %605 = vmatprep.subr.mxu0 0.0
      %606 = vmatpush1.msra.mxu0 0.0
      %607 = vmatprep.subr.mxu0 0.0
      %608 = vmatpush1.msra.mxu0 0.0
      %609 = vmatprep.subr.mxu0 0.0
      %610 = vmatpush1.msra.mxu0 0.0
      %611 = vmatprep.subr.mxu0 0.0
      %612 = vmatpush1.msra.mxu0 0.0
      %613 = vmatprep.subr.mxu0 0.0
      %614 = vmatpush1.msra.mxu0 0.0
      %615 = vmatprep.subr.mxu0 0.0
      %616 = vmatpush1.msra.mxu0 0.0
      %617 = vmatprep.subr.mxu0 0.0
      %618 = vmatpush1.msra.mxu0 0.0
      %619 = vmatprep.subr.mxu0 0.0
      %620 = vmatpush1.msra.mxu0 0.0
      %621 = vmatprep.subr.mxu0 0.0
      %622 = vmatpush1.msra.mxu0 0.0
      %623 = vmatprep.subr.mxu0 0.0
      %624 = vmatpush1.msra.mxu0 0.0
      %625 = vmatprep.subr.mxu0 0.0
      %626 = vmatpush1.msra.mxu0 0.0
      %627 = vmatprep.subr.mxu0 0.0
      %628 = vmatpush1.msra.mxu0 0.0
      %629 = vmatprep.subr.mxu0 0.0
      %630 = vmatpush1.msra.mxu0 0.0
      %631 = vmatprep.subr.mxu0 0.0
      %632 = vmatpush1.msra.mxu0 0.0
      %633 = vmatprep.mubr.f32.mxu0 0.0
      %634 = vmatmul.mubr.f32.gmra.mrb[0].mxu0 %v564
      %v635 = vpop.f32.mrb[0].mxu0
      %v636 = vadd.f32 0.0, %v635
      %v637 = vpop.f32.mrb[0].mxu0
      %638 = vmatprep.mubr.f32.mxu0 0.0
      %639 = vmatmul.mubr.f32.gmra.mrb[0].mxu0 %v567
      %v640 = vpop.f32.mrb[0].mxu0
      %v641 = vadd.f32 0.0, %v640
      %v642 = vpop.f32.mrb[0].mxu0
      %643 = vdwg.mxu0
      %vm644 = vcmask 130048
      %645 = vst.msk [vmem:[#allocation2] sm:$0xff] %vm644, %v636
      %646 = vst.msk [vmem:[#allocation2 + $0x20] sm:$0xff] %vm644, %v641
      %647 = vxpose.xlu0.b32.start [1/16] %v477, 128
      %648 = vxpose.xlu0.b32.cont [2/16] 0.0, 128
      %649 = vxpose.xlu0.b32.cont [3/16] 0.0, 128
      %650 = vxpose.xlu0.b32.cont [4/16] 0.0, 128
      %651 = vxpose.xlu0.b32.cont [5/16] 0.0, 128
      %652 = vxpose.xlu0.b32.cont [6/16] 0.0, 128
      %653 = vxpose.xlu0.b32.cont [7/16] 0.0, 128
      %654 = vxpose.xlu0.b32.cont [8/16] 0.0, 128
      %655 = vxpose.xlu0.b32.cont [9/16] 0.0, 128
      %656 = vxpose.xlu0.b32.cont [10/16] 0.0, 128
      %657 = vxpose.xlu0.b32.cont [11/16] 0.0, 128
      %658 = vxpose.xlu0.b32.cont [12/16] 0.0, 128
      %659 = vxpose.xlu0.b32.cont [13/16] 0.0, 128
      %660 = vxpose.xlu0.b32.cont [14/16] 0.0, 128
      %661 = vxpose.xlu0.b32.cont [15/16] 0.0, 128
      %662 = vxpose.xlu0.b32.end [16/16] 0.0, 128
      %v663 = vpop.trf.xlu0
      %v664 = vpop.trf.xlu0
      %v665 = vpop.trf.xlu0
      %v666 = vpop.trf.xlu0
      %v667 = vpop.trf.xlu0
      %v668 = vpop.trf.xlu0
      %v669 = vpop.trf.xlu0
      %v670 = vpop.trf.xlu0
      %v671 = vpop.trf.xlu0
      %v672 = vpop.trf.xlu0
      %v673 = vpop.trf.xlu0
      %v674 = vpop.trf.xlu0
      %v675 = vpop.trf.xlu0
      %v676 = vpop.trf.xlu0
      %v677 = vpop.trf.xlu0
      %v678 = vpop.trf.xlu0
      %v680 = vsel %vm562, %v663, 0
      %v683 = vsel %vm562, %v664, 0
      %685 = vmatprep.subr.mxu0 0.0
      %686 = vmatpush1.msra.mxu0 %v497
      %687 = vmatprep.subr.mxu0 0.0
      %688 = vmatpush1.msra.mxu0 0.0
      %689 = vmatprep.subr.mxu0 0.0
      %690 = vmatpush1.msra.mxu0 0.0
      %691 = vmatprep.subr.mxu0 0.0
      %692 = vmatpush1.msra.mxu0 0.0
      %693 = vmatprep.subr.mxu0 0.0
      %694 = vmatpush1.msra.mxu0 0.0
      %695 = vmatprep.subr.mxu0 0.0
      %696 = vmatpush1.msra.mxu0 0.0
      %697 = vmatprep.subr.mxu0 0.0
      %698 = vmatpush1.msra.mxu0 0.0
      %699 = vmatprep.subr.mxu0 0.0
      %700 = vmatpush1.msra.mxu0 0.0
      %701 = vmatprep.subr.mxu0 0.0
      %702 = vmatpush1.msra.mxu0 0.0
      %703 = vmatprep.subr.mxu0 0.0
      %704 = vmatpush1.msra.mxu0 0.0
      %705 = vmatprep.subr.mxu0 0.0
      %706 = vmatpush1.msra.mxu0 0.0
      %707 = vmatprep.subr.mxu0 0.0
      %708 = vmatpush1.msra.mxu0 0.0
      %709 = vmatprep.subr.mxu0 0.0
      %710 = vmatpush1.msra.mxu0 0.0
      %711 = vmatprep.subr.mxu0 0.0
      %712 = vmatpush1.msra.mxu0 0.0
      %713 = vmatprep.subr.mxu0 0.0
      %714 = vmatpush1.msra.mxu0 0.0
      %715 = vmatprep.subr.mxu0 0.0
      %716 = vmatpush1.msra.mxu0 0.0
      %717 = vmatprep.subr.mxu0 0.0
      %718 = vmatpush1.msra.mxu0 0.0
      %719 = vmatprep.subr.mxu0 0.0
      %720 = vmatpush1.msra.mxu0 0.0
      %721 = vmatprep.subr.mxu0 0.0
      %722 = vmatpush1.msra.mxu0 0.0
      %723 = vmatprep.subr.mxu0 0.0
      %724 = vmatpush1.msra.mxu0 0.0
      %725 = vmatprep.subr.mxu0 0.0
      %726 = vmatpush1.msra.mxu0 0.0
      %727 = vmatprep.subr.mxu0 0.0
      %728 = vmatpush1.msra.mxu0 0.0
      %729 = vmatprep.subr.mxu0 0.0
      %730 = vmatpush1.msra.mxu0 0.0
      %731 = vmatprep.subr.mxu0 0.0
      %732 = vmatpush1.msra.mxu0 0.0
      %733 = vmatprep.subr.mxu0 0.0
      %734 = vmatpush1.msra.mxu0 0.0
      %735 = vmatprep.subr.mxu0 0.0
      %736 = vmatpush1.msra.mxu0 0.0
      %737 = vmatprep.subr.mxu0 0.0
      %738 = vmatpush1.msra.mxu0 0.0
      %739 = vmatprep.subr.mxu0 0.0
      %740 = vmatpush1.msra.mxu0 0.0
      %741 = vmatprep.subr.mxu0 0.0
      %742 = vmatpush1.msra.mxu0 0.0
      %743 = vmatprep.subr.mxu0 0.0
      %744 = vmatpush1.msra.mxu0 0.0
      %745 = vmatprep.subr.mxu0 0.0
      %746 = vmatpush1.msra.mxu0 0.0
      %747 = vmatprep.subr.mxu0 0.0
      %748 = vmatpush1.msra.mxu0 0.0
      %749 = vmatprep.mubr.f32.mxu0 0.0
      %750 = vmatmul.mubr.f32.gmra.mrb[0].mxu0 %v680
      %v751 = vpop.f32.mrb[0].mxu0
      %v752 = vadd.f32 0.0, %v751
      %v753 = vpop.f32.mrb[0].mxu0
      %754 = vmatprep.mubr.f32.mxu0 0.0
      %755 = vmatmul.mubr.f32.gmra.mrb[0].mxu0 %v683
      %v756 = vpop.f32.mrb[0].mxu0
      %v757 = vadd.f32 0.0, %v756
      %v758 = vpop.f32.mrb[0].mxu0
      %759 = vdwg.mxu0
      %762 = vrot.lane.b32.xlu0 %v752, 16
      %v763 = vpop.permute.xlu0 %762
      %764 = vrot.lane.b32.xlu0 %v757, 16
      %v765 = vpop.permute.xlu0 %764
      %vm768 = vcmask 261248
      %769 = vst.msk [vmem:[#allocation2] sm:$0xff] %vm768, %v763
      %770 = vst.msk [vmem:[#allocation2 + $0x20] sm:$0xff] %vm768, %v765
      %771 = vxpose.xlu0.b32.start [1/16] %v482, 128
      %772 = vxpose.xlu0.b32.cont [2/16] 0.0, 128
      %773 = vxpose.xlu0.b32.cont [3/16] 0.0, 128
      %774 = vxpose.xlu0.b32.cont [4/16] 0.0, 128
      %775 = vxpose.xlu0.b32.cont [5/16] 0.0, 128
      %776 = vxpose.xlu0.b32.cont [6/16] 0.0, 128
      %777 = vxpose.xlu0.b32.cont [7/16] 0.0, 128
      %778 = vxpose.xlu0.b32.cont [8/16] 0.0, 128
      %779 = vxpose.xlu0.b32.cont [9/16] 0.0, 128
      %780 = vxpose.xlu0.b32.cont [10/16] 0.0, 128
      %781 = vxpose.xlu0.b32.cont [11/16] 0.0, 128
      %782 = vxpose.xlu0.b32.cont [12/16] 0.0, 128
      %783 = vxpose.xlu0.b32.cont [13/16] 0.0, 128
      %784 = vxpose.xlu0.b32.cont [14/16] 0.0, 128
      %785 = vxpose.xlu0.b32.cont [15/16] 0.0, 128
      %786 = vxpose.xlu0.b32.end [16/16] 0.0, 128
      %v787 = vpop.trf.xlu0
      %v788 = vpop.trf.xlu0
      %v789 = vpop.trf.xlu0
      %v790 = vpop.trf.xlu0
      %v791 = vpop.trf.xlu0
      %v792 = vpop.trf.xlu0
      %v793 = vpop.trf.xlu0
      %v794 = vpop.trf.xlu0
      %v795 = vpop.trf.xlu0
      %v796 = vpop.trf.xlu0
      %v797 = vpop.trf.xlu0
      %v798 = vpop.trf.xlu0
      %v799 = vpop.trf.xlu0
      %v800 = vpop.trf.xlu0
      %v801 = vpop.trf.xlu0
      %v802 = vpop.trf.xlu0
      %v804 = vsel %vm562, %v787, 0
      %v807 = vsel %vm562, %v788, 0
      %809 = vmatprep.subr.mxu0 0.0
      %810 = vmatpush1.msra.mxu0 %v502
      %811 = vmatprep.subr.mxu0 0.0
      %812 = vmatpush1.msra.mxu0 0.0
      %813 = vmatprep.subr.mxu0 0.0
      %814 = vmatpush1.msra.mxu0 0.0
      %815 = vmatprep.subr.mxu0 0.0
      %816 = vmatpush1.msra.mxu0 0.0
      %817 = vmatprep.subr.mxu0 0.0
      %818 = vmatpush1.msra.mxu0 0.0
      %819 = vmatprep.subr.mxu0 0.0
      %820 = vmatpush1.msra.mxu0 0.0
      %821 = vmatprep.subr.mxu0 0.0
      %822 = vmatpush1.msra.mxu0 0.0
      %823 = vmatprep.subr.mxu0 0.0
      %824 = vmatpush1.msra.mxu0 0.0
      %825 = vmatprep.subr.mxu0 0.0
      %826 = vmatpush1.msra.mxu0 0.0
      %827 = vmatprep.subr.mxu0 0.0
      %828 = vmatpush1.msra.mxu0 0.0
      %829 = vmatprep.subr.mxu0 0.0
      %830 = vmatpush1.msra.mxu0 0.0
      %831 = vmatprep.subr.mxu0 0.0
      %832 = vmatpush1.msra.mxu0 0.0
      %833 = vmatprep.subr.mxu0 0.0
      %834 = vmatpush1.msra.mxu0 0.0
      %835 = vmatprep.subr.mxu0 0.0
      %836 = vmatpush1.msra.mxu0 0.0
      %837 = vmatprep.subr.mxu0 0.0
      %838 = vmatpush1.msra.mxu0 0.0
      %839 = vmatprep.subr.mxu0 0.0
      %840 = vmatpush1.msra.mxu0 0.0
      %841 = vmatprep.subr.mxu0 0.0
      %842 = vmatpush1.msra.mxu0 0.0
      %843 = vmatprep.subr.mxu0 0.0
      %844 = vmatpush1.msra.mxu0 0.0
      %845 = vmatprep.subr.mxu0 0.0
      %846 = vmatpush1.msra.mxu0 0.0
      %847 = vmatprep.subr.mxu0 0.0
      %848 = vmatpush1.msra.mxu0 0.0
      %849 = vmatprep.subr.mxu0 0.0
      %850 = vmatpush1.msra.mxu0 0.0
      %851 = vmatprep.subr.mxu0 0.0
      %852 = vmatpush1.msra.mxu0 0.0
      %853 = vmatprep.subr.mxu0 0.0
      %854 = vmatpush1.msra.mxu0 0.0
      %855 = vmatprep.subr.mxu0 0.0
      %856 = vmatpush1.msra.mxu0 0.0
      %857 = vmatprep.subr.mxu0 0.0
      %858 = vmatpush1.msra.mxu0 0.0
      %859 = vmatprep.subr.mxu0 0.0
      %860 = vmatpush1.msra.mxu0 0.0
      %861 = vmatprep.subr.mxu0 0.0
      %862 = vmatpush1.msra.mxu0 0.0
      %863 = vmatprep.subr.mxu0 0.0
      %864 = vmatpush1.msra.mxu0 0.0
      %865 = vmatprep.subr.mxu0 0.0
      %866 = vmatpush1.msra.mxu0 0.0
      %867 = vmatprep.subr.mxu0 0.0
      %868 = vmatpush1.msra.mxu0 0.0
      %869 = vmatprep.subr.mxu0 0.0
      %870 = vmatpush1.msra.mxu0 0.0
      %871 = vmatprep.subr.mxu0 0.0
      %872 = vmatpush1.msra.mxu0 0.0
      %873 = vmatprep.mubr.f32.mxu0 0.0
      %874 = vmatmul.mubr.f32.gmra.mrb[0].mxu0 %v804
      %v875 = vpop.f32.mrb[0].mxu0
      %v876 = vadd.f32 0.0, %v875
      %v877 = vpop.f32.mrb[0].mxu0
      %878 = vmatprep.mubr.f32.mxu0 0.0
      %879 = vmatmul.mubr.f32.gmra.mrb[0].mxu0 %v807
      %v880 = vpop.f32.mrb[0].mxu0
      %v881 = vadd.f32 0.0, %v880
      %v882 = vpop.f32.mrb[0].mxu0
      %883 = vdwg.mxu0
      %886 = vrot.lane.b32.xlu0 %v876, 32
      %v887 = vpop.permute.xlu0 %886
      %888 = vrot.lane.b32.xlu0 %v881, 32
      %v889 = vpop.permute.xlu0 %888
      %vm892 = vcmask 392448
      %893 = vst.msk [vmem:[#allocation2] sm:$0xff] %vm892, %v887
      %894 = vst.msk [vmem:[#allocation2 + $0x20] sm:$0xff] %vm892, %v889
      %895 = vxpose.xlu0.b32.start [1/16] %v487, 128
      %896 = vxpose.xlu0.b32.cont [2/16] 0.0, 128
      %897 = vxpose.xlu0.b32.cont [3/16] 0.0, 128
      %898 = vxpose.xlu0.b32.cont [4/16] 0.0, 128
      %899 = vxpose.xlu0.b32.cont [5/16] 0.0, 128
      %900 = vxpose.xlu0.b32.cont [6/16] 0.0, 128
      %901 = vxpose.xlu0.b32.cont [7/16] 0.0, 128
      %902 = vxpose.xlu0.b32.cont [8/16] 0.0, 128
      %903 = vxpose.xlu0.b32.cont [9/16] 0.0, 128
      %904 = vxpose.xlu0.b32.cont [10/16] 0.0, 128
      %905 = vxpose.xlu0.b32.cont [11/16] 0.0, 128
      %906 = vxpose.xlu0.b32.cont [12/16] 0.0, 128
      %907 = vxpose.xlu0.b32.cont [13/16] 0.0, 128
      %908 = vxpose.xlu0.b32.cont [14/16] 0.0, 128
      %909 = vxpose.xlu0.b32.cont [15/16] 0.0, 128
      %910 = vxpose.xlu0.b32.end [16/16] 0.0, 128
      %v911 = vpop.trf.xlu0
      %v912 = vpop.trf.xlu0
      %v913 = vpop.trf.xlu0
      %v914 = vpop.trf.xlu0
      %v915 = vpop.trf.xlu0
      %v916 = vpop.trf.xlu0
      %v917 = vpop.trf.xlu0
      %v918 = vpop.trf.xlu0
      %v919 = vpop.trf.xlu0
      %v920 = vpop.trf.xlu0
      %v921 = vpop.trf.xlu0
      %v922 = vpop.trf.xlu0
      %v923 = vpop.trf.xlu0
      %v924 = vpop.trf.xlu0
      %v925 = vpop.trf.xlu0
      %v926 = vpop.trf.xlu0
      %v928 = vsel %vm562, %v911, 0
      %v931 = vsel %vm562, %v912, 0
      %933 = vmatprep.subr.mxu0 0.0
      %934 = vmatpush1.msra.mxu0 %v507
      %935 = vmatprep.subr.mxu0 0.0
      %936 = vmatpush1.msra.mxu0 0.0
      %937 = vmatprep.subr.mxu0 0.0
      %938 = vmatpush1.msra.mxu0 0.0
      %939 = vmatprep.subr.mxu0 0.0
      %940 = vmatpush1.msra.mxu0 0.0
      %941 = vmatprep.subr.mxu0 0.0
      %942 = vmatpush1.msra.mxu0 0.0
      %943 = vmatprep.subr.mxu0 0.0
      %944 = vmatpush1.msra.mxu0 0.0
      %945 = vmatprep.subr.mxu0 0.0
      %946 = vmatpush1.msra.mxu0 0.0
      %947 = vmatprep.subr.mxu0 0.0
      %948 = vmatpush1.msra.mxu0 0.0
      %949 = vmatprep.subr.mxu0 0.0
      %950 = vmatpush1.msra.mxu0 0.0
      %951 = vmatprep.subr.mxu0 0.0
      %952 = vmatpush1.msra.mxu0 0.0
      %953 = vmatprep.subr.mxu0 0.0
      %954 = vmatpush1.msra.mxu0 0.0
      %955 = vmatprep.subr.mxu0 0.0
      %956 = vmatpush1.msra.mxu0 0.0
      %957 = vmatprep.subr.mxu0 0.0
      %958 = vmatpush1.msra.mxu0 0.0
      %959 = vmatprep.subr.mxu0 0.0
      %960 = vmatpush1.msra.mxu0 0.0
      %961 = vmatprep.subr.mxu0 0.0
      %962 = vmatpush1.msra.mxu0 0.0
      %963 = vmatprep.subr.mxu0 0.0
      %964 = vmatpush1.msra.mxu0 0.0
      %965 = vmatprep.subr.mxu0 0.0
      %966 = vmatpush1.msra.mxu0 0.0
      %967 = vmatprep.subr.mxu0 0.0
      %968 = vmatpush1.msra.mxu0 0.0
      %969 = vmatprep.subr.mxu0 0.0
      %970 = vmatpush1.msra.mxu0 0.0
      %971 = vmatprep.subr.mxu0 0.0
      %972 = vmatpush1.msra.mxu0 0.0
      %973 = vmatprep.subr.mxu0 0.0
      %974 = vmatpush1.msra.mxu0 0.0
      %975 = vmatprep.subr.mxu0 0.0
      %976 = vmatpush1.msra.mxu0 0.0
      %977 = vmatprep.subr.mxu0 0.0
      %978 = vmatpush1.msra.mxu0 0.0
      %979 = vmatprep.subr.mxu0 0.0
      %980 = vmatpush1.msra.mxu0 0.0
      %981 = vmatprep.subr.mxu0 0.0
      %982 = vmatpush1.msra.mxu0 0.0
      %983 = vmatprep.subr.mxu0 0.0
      %984 = vmatpush1.msra.mxu0 0.0
      %985 = vmatprep.subr.mxu0 0.0
      %986 = vmatpush1.msra.mxu0 0.0
      %987 = vmatprep.subr.mxu0 0.0
      %988 = vmatpush1.msra.mxu0 0.0
      %989 = vmatprep.subr.mxu0 0.0
      %990 = vmatpush1.msra.mxu0 0.0
      %991 = vmatprep.subr.mxu0 0.0
      %992 = vmatpush1.msra.mxu0 0.0
      %993 = vmatprep.subr.mxu0 0.0
      %994 = vmatpush1.msra.mxu0 0.0
      %995 = vmatprep.subr.mxu0 0.0
      %996 = vmatpush1.msra.mxu0 0.0
      %997 = vmatprep.mubr.f32.mxu0 0.0
      %998 = vmatmul.mubr.f32.gmra.mrb[0].mxu0 %v928
      %v999 = vpop.f32.mrb[0].mxu0
      %v1000 = vadd.f32 0.0, %v999
      %v1001 = vpop.f32.mrb[0].mxu0
      %1002 = vmatprep.mubr.f32.mxu0 0.0
      %1003 = vmatmul.mubr.f32.gmra.mrb[0].mxu0 %v931
      %v1004 = vpop.f32.mrb[0].mxu0
      %v1005 = vadd.f32 0.0, %v1004
      %v1006 = vpop.f32.mrb[0].mxu0
      %1007 = vdwg.mxu0
      %1010 = vrot.lane.b32.xlu0 %v1000, 48
      %v1011 = vpop.permute.xlu0 %1010
      %1012 = vrot.lane.b32.xlu0 %v1005, 48
      %v1013 = vpop.permute.xlu0 %1012
      %vm1016 = vcmask 523648
      %1017 = vst.msk [vmem:[#allocation2] sm:$0xff] %vm1016, %v1011
      %1018 = vst.msk [vmem:[#allocation2 + $0x20] sm:$0xff] %vm1016, %v1013
      %1020 = vrot.lane.b32.xlu0 %v472, 112
      %v1021 = vpop.permute.xlu0 %1020
      %1023 = vxpose.xlu0.b32.start [1/16] %v1021, 128
      %1024 = vxpose.xlu0.b32.cont [2/16] 0.0, 128
      %1025 = vxpose.xlu0.b32.cont [3/16] 0.0, 128
      %1026 = vxpose.xlu0.b32.cont [4/16] 0.0, 128
      %1027 = vxpose.xlu0.b32.cont [5/16] 0.0, 128
      %1028 = vxpose.xlu0.b32.cont [6/16] 0.0, 128
      %1029 = vxpose.xlu0.b32.cont [7/16] 0.0, 128
      %1030 = vxpose.xlu0.b32.cont [8/16] 0.0, 128
      %1031 = vxpose.xlu0.b32.cont [9/16] 0.0, 128
      %1032 = vxpose.xlu0.b32.cont [10/16] 0.0, 128
      %1033 = vxpose.xlu0.b32.cont [11/16] 0.0, 128
      %1034 = vxpose.xlu0.b32.cont [12/16] 0.0, 128
      %1035 = vxpose.xlu0.b32.cont [13/16] 0.0, 128
      %1036 = vxpose.xlu0.b32.cont [14/16] 0.0, 128
      %1037 = vxpose.xlu0.b32.cont [15/16] 0.0, 128
      %1038 = vxpose.xlu0.b32.end [16/16] 0.0, 128
      %v1039 = vpop.trf.xlu0
      %v1040 = vpop.trf.xlu0
      %v1041 = vpop.trf.xlu0
      %v1042 = vpop.trf.xlu0
      %v1043 = vpop.trf.xlu0
      %v1044 = vpop.trf.xlu0
      %v1045 = vpop.trf.xlu0
      %v1046 = vpop.trf.xlu0
      %v1047 = vpop.trf.xlu0
      %v1048 = vpop.trf.xlu0
      %v1049 = vpop.trf.xlu0
      %v1050 = vpop.trf.xlu0
      %v1051 = vpop.trf.xlu0
      %v1052 = vpop.trf.xlu0
      %v1053 = vpop.trf.xlu0
      %v1054 = vpop.trf.xlu0
      %1056 = vrot.lane.b32.xlu0 %v492, 112
      %v1057 = vpop.permute.xlu0 %1056
      %v1060 = vsel %vm562, %v1039, 0
      %v1063 = vsel %vm562, %v1040, 0
      %1065 = vmatprep.subr.mxu0 0.0
      %1066 = vmatpush1.msra.mxu0 %v1057
      %1067 = vmatprep.subr.mxu0 0.0
      %1068 = vmatpush1.msra.mxu0 0.0
      %1069 = vmatprep.subr.mxu0 0.0
      %1070 = vmatpush1.msra.mxu0 0.0
      %1071 = vmatprep.subr.mxu0 0.0
      %1072 = vmatpush1.msra.mxu0 0.0
      %1073 = vmatprep.subr.mxu0 0.0
      %1074 = vmatpush1.msra.mxu0 0.0
      %1075 = vmatprep.subr.mxu0 0.0
      %1076 = vmatpush1.msra.mxu0 0.0
      %1077 = vmatprep.subr.mxu0 0.0
      %1078 = vmatpush1.msra.mxu0 0.0
      %1079 = vmatprep.subr.mxu0 0.0
      %1080 = vmatpush1.msra.mxu0 0.0
      %1081 = vmatprep.subr.mxu0 0.0
      %1082 = vmatpush1.msra.mxu0 0.0
      %1083 = vmatprep.subr.mxu0 0.0
      %1084 = vmatpush1.msra.mxu0 0.0
      %1085 = vmatprep.subr.mxu0 0.0
      %1086 = vmatpush1.msra.mxu0 0.0
      %1087 = vmatprep.subr.mxu0 0.0
      %1088 = vmatpush1.msra.mxu0 0.0
      %1089 = vmatprep.subr.mxu0 0.0
      %1090 = vmatpush1.msra.mxu0 0.0
      %1091 = vmatprep.subr.mxu0 0.0
      %1092 = vmatpush1.msra.mxu0 0.0
      %1093 = vmatprep.subr.mxu0 0.0
      %1094 = vmatpush1.msra.mxu0 0.0
      %1095 = vmatprep.subr.mxu0 0.0
      %1096 = vmatpush1.msra.mxu0 0.0
      %1097 = vmatprep.subr.mxu0 0.0
      %1098 = vmatpush1.msra.mxu0 0.0
      %1099 = vmatprep.subr.mxu0 0.0
      %1100 = vmatpush1.msra.mxu0 0.0
      %1101 = vmatprep.subr.mxu0 0.0
      %1102 = vmatpush1.msra.mxu0 0.0
      %1103 = vmatprep.subr.mxu0 0.0
      %1104 = vmatpush1.msra.mxu0 0.0
      %1105 = vmatprep.subr.mxu0 0.0
      %1106 = vmatpush1.msra.mxu0 0.0
      %1107 = vmatprep.subr.mxu0 0.0
      %1108 = vmatpush1.msra.mxu0 0.0
      %1109 = vmatprep.subr.mxu0 0.0
      %1110 = vmatpush1.msra.mxu0 0.0
      %1111 = vmatprep.subr.mxu0 0.0
      %1112 = vmatpush1.msra.mxu0 0.0
      %1113 = vmatprep.subr.mxu0 0.0
      %1114 = vmatpush1.msra.mxu0 0.0
      %1115 = vmatprep.subr.mxu0 0.0
      %1116 = vmatpush1.msra.mxu0 0.0
      %1117 = vmatprep.subr.mxu0 0.0
      %1118 = vmatpush1.msra.mxu0 0.0
      %1119 = vmatprep.subr.mxu0 0.0
      %1120 = vmatpush1.msra.mxu0 0.0
      %1121 = vmatprep.subr.mxu0 0.0
      %1122 = vmatpush1.msra.mxu0 0.0
      %1123 = vmatprep.subr.mxu0 0.0
      %1124 = vmatpush1.msra.mxu0 0.0
      %1125 = vmatprep.subr.mxu0 0.0
      %1126 = vmatpush1.msra.mxu0 0.0
      %1127 = vmatprep.subr.mxu0 0.0
      %1128 = vmatpush1.msra.mxu0 0.0
      %1129 = vmatprep.mubr.f32.mxu0 0.0
      %1130 = vmatmul.mubr.f32.gmra.mrb[0].mxu0 %v1060
      %v1131 = vpop.f32.mrb[0].mxu0
      %v1132 = vadd.f32 0.0, %v1131
      %v1133 = vpop.f32.mrb[0].mxu0
      %1134 = vmatprep.mubr.f32.mxu0 0.0
      %1135 = vmatmul.mubr.f32.gmra.mrb[0].mxu0 %v1063
      %v1136 = vpop.f32.mrb[0].mxu0
      %v1137 = vadd.f32 0.0, %v1136
      %v1138 = vpop.f32.mrb[0].mxu0
      %1139 = vdwg.mxu0
      %1142 = vrot.lane.b32.xlu0 %v1132, 64
      %v1143 = vpop.permute.xlu0 %1142
      %1144 = vrot.lane.b32.xlu0 %v1137, 64
      %v1145 = vpop.permute.xlu0 %1144
      %vm1148 = vcmask 654848
      %1149 = vst.msk [vmem:[#allocation2] sm:$0xff] %vm1148, %v1143
      %1150 = vst.msk [vmem:[#allocation2 + $0x20] sm:$0xff] %vm1148, %v1145
      %1152 = vrot.lane.b32.xlu0 %v477, 112
      %v1153 = vpop.permute.xlu0 %1152
      %1155 = vxpose.xlu0.b32.start [1/16] %v1153, 128
      %1156 = vxpose.xlu0.b32.cont [2/16] 0.0, 128
      %1157 = vxpose.xlu0.b32.cont [3/16] 0.0, 128
      %1158 = vxpose.xlu0.b32.cont [4/16] 0.0, 128
      %1159 = vxpose.xlu0.b32.cont [5/16] 0.0, 128
      %1160 = vxpose.xlu0.b32.cont [6/16] 0.0, 128
      %1161 = vxpose.xlu0.b32.cont [7/16] 0.0, 128
      %1162 = vxpose.xlu0.b32.cont [8/16] 0.0, 128
      %1163 = vxpose.xlu0.b32.cont [9/16] 0.0, 128
      %1164 = vxpose.xlu0.b32.cont [10/16] 0.0, 128
      %1165 = vxpose.xlu0.b32.cont [11/16] 0.0, 128
      %1166 = vxpose.xlu0.b32.cont [12/16] 0.0, 128
      %1167 = vxpose.xlu0.b32.cont [13/16] 0.0, 128
      %1168 = vxpose.xlu0.b32.cont [14/16] 0.0, 128
      %1169 = vxpose.xlu0.b32.cont [15/16] 0.0, 128
      %1170 = vxpose.xlu0.b32.end [16/16] 0.0, 128
      %v1171 = vpop.trf.xlu0
      %v1172 = vpop.trf.xlu0
      %v1173 = vpop.trf.xlu0
      %v1174 = vpop.trf.xlu0
      %v1175 = vpop.trf.xlu0
      %v1176 = vpop.trf.xlu0
      %v1177 = vpop.trf.xlu0
      %v1178 = vpop.trf.xlu0
      %v1179 = vpop.trf.xlu0
      %v1180 = vpop.trf.xlu0
      %v1181 = vpop.trf.xlu0
      %v1182 = vpop.trf.xlu0
      %v1183 = vpop.trf.xlu0
      %v1184 = vpop.trf.xlu0
      %v1185 = vpop.trf.xlu0
      %v1186 = vpop.trf.xlu0
      %1188 = vrot.lane.b32.xlu0 %v497, 112
      %v1189 = vpop.permute.xlu0 %1188
      %v1192 = vsel %vm562, %v1171, 0
      %v1195 = vsel %vm562, %v1172, 0
      %1197 = vmatprep.subr.mxu0 0.0
      %1198 = vmatpush1.msra.mxu0 %v1189
      %1199 = vmatprep.subr.mxu0 0.0
      %1200 = vmatpush1.msra.mxu0 0.0
      %1201 = vmatprep.subr.mxu0 0.0
      %1202 = vmatpush1.msra.mxu0 0.0
      %1203 = vmatprep.subr.mxu0 0.0
      %1204 = vmatpush1.msra.mxu0 0.0
      %1205 = vmatprep.subr.mxu0 0.0
      %1206 = vmatpush1.msra.mxu0 0.0
      %1207 = vmatprep.subr.mxu0 0.0
      %1208 = vmatpush1.msra.mxu0 0.0
      %1209 = vmatprep.subr.mxu0 0.0
      %1210 = vmatpush1.msra.mxu0 0.0
      %1211 = vmatprep.subr.mxu0 0.0
      %1212 = vmatpush1.msra.mxu0 0.0
      %1213 = vmatprep.subr.mxu0 0.0
      %1214 = vmatpush1.msra.mxu0 0.0
      %1215 = vmatprep.subr.mxu0 0.0
      %1216 = vmatpush1.msra.mxu0 0.0
      %1217 = vmatprep.subr.mxu0 0.0
      %1218 = vmatpush1.msra.mxu0 0.0
      %1219 = vmatprep.subr.mxu0 0.0
      %1220 = vmatpush1.msra.mxu0 0.0
      %1221 = vmatprep.subr.mxu0 0.0
      %1222 = vmatpush1.msra.mxu0 0.0
      %1223 = vmatprep.subr.mxu0 0.0
      %1224 = vmatpush1.msra.mxu0 0.0
      %1225 = vmatprep.subr.mxu0 0.0
      %1226 = vmatpush1.msra.mxu0 0.0
      %1227 = vmatprep.subr.mxu0 0.0
      %1228 = vmatpush1.msra.mxu0 0.0
      %1229 = vmatprep.subr.mxu0 0.0
      %1230 = vmatpush1.msra.mxu0 0.0
      %1231 = vmatprep.subr.mxu0 0.0
      %1232 = vmatpush1.msra.mxu0 0.0
      %1233 = vmatprep.subr.mxu0 0.0
      %1234 = vmatpush1.msra.mxu0 0.0
      %1235 = vmatprep.subr.mxu0 0.0
      %1236 = vmatpush1.msra.mxu0 0.0
      %1237 = vmatprep.subr.mxu0 0.0
      %1238 = vmatpush1.msra.mxu0 0.0
      %1239 = vmatprep.subr.mxu0 0.0
      %1240 = vmatpush1.msra.mxu0 0.0
      %1241 = vmatprep.subr.mxu0 0.0
      %1242 = vmatpush1.msra.mxu0 0.0
      %1243 = vmatprep.subr.mxu0 0.0
      %1244 = vmatpush1.msra.mxu0 0.0
      %1245 = vmatprep.subr.mxu0 0.0
      %1246 = vmatpush1.msra.mxu0 0.0
      %1247 = vmatprep.subr.mxu0 0.0
      %1248 = vmatpush1.msra.mxu0 0.0
      %1249 = vmatprep.subr.mxu0 0.0
      %1250 = vmatpush1.msra.mxu0 0.0
      %1251 = vmatprep.subr.mxu0 0.0
      %1252 = vmatpush1.msra.mxu0 0.0
      %1253 = vmatprep.subr.mxu0 0.0
      %1254 = vmatpush1.msra.mxu0 0.0
      %1255 = vmatprep.subr.mxu0 0.0
      %1256 = vmatpush1.msra.mxu0 0.0
      %1257 = vmatprep.subr.mxu0 0.0
      %1258 = vmatpush1.msra.mxu0 0.0
      %1259 = vmatprep.subr.mxu0 0.0
      %1260 = vmatpush1.msra.mxu0 0.0
      %1261 = vmatprep.mubr.f32.mxu0 0.0
      %1262 = vmatmul.mubr.f32.gmra.mrb[0].mxu0 %v1192
      %v1263 = vpop.f32.mrb[0].mxu0
      %v1264 = vadd.f32 0.0, %v1263
      %v1265 = vpop.f32.mrb[0].mxu0
      %1266 = vmatprep.mubr.f32.mxu0 0.0
      %1267 = vmatmul.mubr.f32.gmra.mrb[0].mxu0 %v1195
      %v1268 = vpop.f32.mrb[0].mxu0
      %v1269 = vadd.f32 0.0, %v1268
      %v1270 = vpop.f32.mrb[0].mxu0
      %1271 = vdwg.mxu0
      %1274 = vrot.lane.b32.xlu0 %v1264, 80
      %v1275 = vpop.permute.xlu0 %1274
      %1276 = vrot.lane.b32.xlu0 %v1269, 80
      %v1277 = vpop.permute.xlu0 %1276
      %vm1280 = vcmask 786048
      %1281 = vst.msk [vmem:[#allocation2] sm:$0xff] %vm1280, %v1275
      %1282 = vst.msk [vmem:[#allocation2 + $0x20] sm:$0xff] %vm1280, %v1277
      %1284 = vrot.lane.b32.xlu0 %v482, 112
      %v1285 = vpop.permute.xlu0 %1284
      %1287 = vxpose.xlu0.b32.start [1/16] %v1285, 128
      %1288 = vxpose.xlu0.b32.cont [2/16] 0.0, 128
      %1289 = vxpose.xlu0.b32.cont [3/16] 0.0, 128
      %1290 = vxpose.xlu0.b32.cont [4/16] 0.0, 128
      %1291 = vxpose.xlu0.b32.cont [5/16] 0.0, 128
      %1292 = vxpose.xlu0.b32.cont [6/16] 0.0, 128
      %1293 = vxpose.xlu0.b32.cont [7/16] 0.0, 128
      %1294 = vxpose.xlu0.b32.cont [8/16] 0.0, 128
      %1295 = vxpose.xlu0.b32.cont [9/16] 0.0, 128
      %1296 = vxpose.xlu0.b32.cont [10/16] 0.0, 128
      %1297 = vxpose.xlu0.b32.cont [11/16] 0.0, 128
      %1298 = vxpose.xlu0.b32.cont [12/16] 0.0, 128
      %1299 = vxpose.xlu0.b32.cont [13/16] 0.0, 128
      %1300 = vxpose.xlu0.b32.cont [14/16] 0.0, 128
      %1301 = vxpose.xlu0.b32.cont [15/16] 0.0, 128
      %1302 = vxpose.xlu0.b32.end [16/16] 0.0, 128
      %v1303 = vpop.trf.xlu0
      %v1304 = vpop.trf.xlu0
      %v1305 = vpop.trf.xlu0
      %v1306 = vpop.trf.xlu0
      %v1307 = vpop.trf.xlu0
      %v1308 = vpop.trf.xlu0
      %v1309 = vpop.trf.xlu0
      %v1310 = vpop.trf.xlu0
      %v1311 = vpop.trf.xlu0
      %v1312 = vpop.trf.xlu0
      %v1313 = vpop.trf.xlu0
      %v1314 = vpop.trf.xlu0
      %v1315 = vpop.trf.xlu0
      %v1316 = vpop.trf.xlu0
      %v1317 = vpop.trf.xlu0
      %v1318 = vpop.trf.xlu0
      %1320 = vrot.lane.b32.xlu0 %v502, 112
      %v1321 = vpop.permute.xlu0 %1320
      %v1324 = vsel %vm562, %v1303, 0
      %v1327 = vsel %vm562, %v1304, 0
      %1329 = vmatprep.subr.mxu0 0.0
      %1330 = vmatpush1.msra.mxu0 %v1321
      %1331 = vmatprep.subr.mxu0 0.0
      %1332 = vmatpush1.msra.mxu0 0.0
      %1333 = vmatprep.subr.mxu0 0.0
      %1334 = vmatpush1.msra.mxu0 0.0
      %1335 = vmatprep.subr.mxu0 0.0
      %1336 = vmatpush1.msra.mxu0 0.0
      %1337 = vmatprep.subr.mxu0 0.0
      %1338 = vmatpush1.msra.mxu0 0.0
      %1339 = vmatprep.subr.mxu0 0.0
      %1340 = vmatpush1.msra.mxu0 0.0
      %1341 = vmatprep.subr.mxu0 0.0
      %1342 = vmatpush1.msra.mxu0 0.0
      %1343 = vmatprep.subr.mxu0 0.0
      %1344 = vmatpush1.msra.mxu0 0.0
      %1345 = vmatprep.subr.mxu0 0.0
      %1346 = vmatpush1.msra.mxu0 0.0
      %1347 = vmatprep.subr.mxu0 0.0
      %1348 = vmatpush1.msra.mxu0 0.0
      %1349 = vmatprep.subr.mxu0 0.0
      %1350 = vmatpush1.msra.mxu0 0.0
      %1351 = vmatprep.subr.mxu0 0.0
      %1352 = vmatpush1.msra.mxu0 0.0
      %1353 = vmatprep.subr.mxu0 0.0
      %1354 = vmatpush1.msra.mxu0 0.0
      %1355 = vmatprep.subr.mxu0 0.0
      %1356 = vmatpush1.msra.mxu0 0.0
      %1357 = vmatprep.subr.mxu0 0.0
      %1358 = vmatpush1.msra.mxu0 0.0
      %1359 = vmatprep.subr.mxu0 0.0
      %1360 = vmatpush1.msra.mxu0 0.0
      %1361 = vmatprep.subr.mxu0 0.0
      %1362 = vmatpush1.msra.mxu0 0.0
      %1363 = vmatprep.subr.mxu0 0.0
      %1364 = vmatpush1.msra.mxu0 0.0
      %1365 = vmatprep.subr.mxu0 0.0
      %1366 = vmatpush1.msra.mxu0 0.0
      %1367 = vmatprep.subr.mxu0 0.0
      %1368 = vmatpush1.msra.mxu0 0.0
      %1369 = vmatprep.subr.mxu0 0.0
      %1370 = vmatpush1.msra.mxu0 0.0
      %1371 = vmatprep.subr.mxu0 0.0
      %1372 = vmatpush1.msra.mxu0 0.0
      %1373 = vmatprep.subr.mxu0 0.0
      %1374 = vmatpush1.msra.mxu0 0.0
      %1375 = vmatprep.subr.mxu0 0.0
      %1376 = vmatpush1.msra.mxu0 0.0
      %1377 = vmatprep.subr.mxu0 0.0
      %1378 = vmatpush1.msra.mxu0 0.0
      %1379 = vmatprep.subr.mxu0 0.0
      %1380 = vmatpush1.msra.mxu0 0.0
      %1381 = vmatprep.subr.mxu0 0.0
      %1382 = vmatpush1.msra.mxu0 0.0
      %1383 = vmatprep.subr.mxu0 0.0
      %1384 = vmatpush1.msra.mxu0 0.0
      %1385 = vmatprep.subr.mxu0 0.0
      %1386 = vmatpush1.msra.mxu0 0.0
      %1387 = vmatprep.subr.mxu0 0.0
      %1388 = vmatpush1.msra.mxu0 0.0
      %1389 = vmatprep.subr.mxu0 0.0
      %1390 = vmatpush1.msra.mxu0 0.0
      %1391 = vmatprep.subr.mxu0 0.0
      %1392 = vmatpush1.msra.mxu0 0.0
      %1393 = vmatprep.mubr.f32.mxu0 0.0
      %1394 = vmatmul.mubr.f32.gmra.mrb[0].mxu0 %v1324
      %v1395 = vpop.f32.mrb[0].mxu0
      %v1396 = vadd.f32 0.0, %v1395
      %v1397 = vpop.f32.mrb[0].mxu0
      %1398 = vmatprep.mubr.f32.mxu0 0.0
      %1399 = vmatmul.mubr.f32.gmra.mrb[0].mxu0 %v1327
      %v1400 = vpop.f32.mrb[0].mxu0
      %v1401 = vadd.f32 0.0, %v1400
      %v1402 = vpop.f32.mrb[0].mxu0
      %1403 = vdwg.mxu0
      %1406 = vrot.lane.b32.xlu0 %v1396, 96
      %v1407 = vpop.permute.xlu0 %1406
      %1408 = vrot.lane.b32.xlu0 %v1401, 96
      %v1409 = vpop.permute.xlu0 %1408
      %vm1412 = vcmask 917248
      %1413 = vst.msk [vmem:[#allocation2] sm:$0xff] %vm1412, %v1407
      %1414 = vst.msk [vmem:[#allocation2 + $0x20] sm:$0xff] %vm1412, %v1409
      %1416 = vrot.lane.b32.xlu0 %v487, 112
      %v1417 = vpop.permute.xlu0 %1416
      %1419 = vxpose.xlu0.b32.start [1/16] %v1417, 128
      %1420 = vxpose.xlu0.b32.cont [2/16] 0.0, 128
      %1421 = vxpose.xlu0.b32.cont [3/16] 0.0, 128
      %1422 = vxpose.xlu0.b32.cont [4/16] 0.0, 128
      %1423 = vxpose.xlu0.b32.cont [5/16] 0.0, 128
      %1424 = vxpose.xlu0.b32.cont [6/16] 0.0, 128
      %1425 = vxpose.xlu0.b32.cont [7/16] 0.0, 128
      %1426 = vxpose.xlu0.b32.cont [8/16] 0.0, 128
      %1427 = vxpose.xlu0.b32.cont [9/16] 0.0, 128
      %1428 = vxpose.xlu0.b32.cont [10/16] 0.0, 128
      %1429 = vxpose.xlu0.b32.cont [11/16] 0.0, 128
      %1430 = vxpose.xlu0.b32.cont [12/16] 0.0, 128
      %1431 = vxpose.xlu0.b32.cont [13/16] 0.0, 128
      %1432 = vxpose.xlu0.b32.cont [14/16] 0.0, 128
      %1433 = vxpose.xlu0.b32.cont [15/16] 0.0, 128
      %1434 = vxpose.xlu0.b32.end [16/16] 0.0, 128
      %v1435 = vpop.trf.xlu0
      %v1436 = vpop.trf.xlu0
      %v1437 = vpop.trf.xlu0
      %v1438 = vpop.trf.xlu0
      %v1439 = vpop.trf.xlu0
      %v1440 = vpop.trf.xlu0
      %v1441 = vpop.trf.xlu0
      %v1442 = vpop.trf.xlu0
      %v1443 = vpop.trf.xlu0
      %v1444 = vpop.trf.xlu0
      %v1445 = vpop.trf.xlu0
      %v1446 = vpop.trf.xlu0
      %v1447 = vpop.trf.xlu0
      %v1448 = vpop.trf.xlu0
      %v1449 = vpop.trf.xlu0
      %v1450 = vpop.trf.xlu0
      %1452 = vrot.lane.b32.xlu0 %v507, 112
      %v1453 = vpop.permute.xlu0 %1452
      %v1456 = vsel %vm562, %v1435, 0
      %v1459 = vsel %vm562, %v1436, 0
      %1461 = vmatprep.subr.mxu0 0.0
      %1462 = vmatpush1.msra.mxu0 %v1453
      %1463 = vmatprep.subr.mxu0 0.0
      %1464 = vmatpush1.msra.mxu0 0.0
      %1465 = vmatprep.subr.mxu0 0.0
      %1466 = vmatpush1.msra.mxu0 0.0
      %1467 = vmatprep.subr.mxu0 0.0
      %1468 = vmatpush1.msra.mxu0 0.0
      %1469 = vmatprep.subr.mxu0 0.0
      %1470 = vmatpush1.msra.mxu0 0.0
      %1471 = vmatprep.subr.mxu0 0.0
      %1472 = vmatpush1.msra.mxu0 0.0
      %1473 = vmatprep.subr.mxu0 0.0
      %1474 = vmatpush1.msra.mxu0 0.0
      %1475 = vmatprep.subr.mxu0 0.0
      %1476 = vmatpush1.msra.mxu0 0.0
      %1477 = vmatprep.subr.mxu0 0.0
      %1478 = vmatpush1.msra.mxu0 0.0
      %1479 = vmatprep.subr.mxu0 0.0
      %1480 = vmatpush1.msra.mxu0 0.0
      %1481 = vmatprep.subr.mxu0 0.0
      %1482 = vmatpush1.msra.mxu0 0.0
      %1483 = vmatprep.subr.mxu0 0.0
      %1484 = vmatpush1.msra.mxu0 0.0
      %1485 = vmatprep.subr.mxu0 0.0
      %1486 = vmatpush1.msra.mxu0 0.0
      %1487 = vmatprep.subr.mxu0 0.0
      %1488 = vmatpush1.msra.mxu0 0.0
      %1489 = vmatprep.subr.mxu0 0.0
      %1490 = vmatpush1.msra.mxu0 0.0
      %1491 = vmatprep.subr.mxu0 0.0
      %1492 = vmatpush1.msra.mxu0 0.0
      %1493 = vmatprep.subr.mxu0 0.0
      %1494 = vmatpush1.msra.mxu0 0.0
      %1495 = vmatprep.subr.mxu0 0.0
      %1496 = vmatpush1.msra.mxu0 0.0
      %1497 = vmatprep.subr.mxu0 0.0
      %1498 = vmatpush1.msra.mxu0 0.0
      %1499 = vmatprep.subr.mxu0 0.0
      %1500 = vmatpush1.msra.mxu0 0.0
      %1501 = vmatprep.subr.mxu0 0.0
      %1502 = vmatpush1.msra.mxu0 0.0
      %1503 = vmatprep.subr.mxu0 0.0
      %1504 = vmatpush1.msra.mxu0 0.0
      %1505 = vmatprep.subr.mxu0 0.0
      %1506 = vmatpush1.msra.mxu0 0.0
      %1507 = vmatprep.subr.mxu0 0.0
      %1508 = vmatpush1.msra.mxu0 0.0
      %1509 = vmatprep.subr.mxu0 0.0
      %1510 = vmatpush1.msra.mxu0 0.0
      %1511 = vmatprep.subr.mxu0 0.0
      %1512 = vmatpush1.msra.mxu0 0.0
      %1513 = vmatprep.subr.mxu0 0.0
      %1514 = vmatpush1.msra.mxu0 0.0
      %1515 = vmatprep.subr.mxu0 0.0
      %1516 = vmatpush1.msra.mxu0 0.0
      %1517 = vmatprep.subr.mxu0 0.0
      %1518 = vmatpush1.msra.mxu0 0.0
      %1519 = vmatprep.subr.mxu0 0.0
      %1520 = vmatpush1.msra.mxu0 0.0
      %1521 = vmatprep.subr.mxu0 0.0
      %1522 = vmatpush1.msra.mxu0 0.0
      %1523 = vmatprep.subr.mxu0 0.0
      %1524 = vmatpush1.msra.mxu0 0.0
      %1525 = vmatprep.mubr.f32.mxu0 0.0
      %1526 = vmatmul.mubr.f32.gmra.mrb[0].mxu0 %v1456
      %v1527 = vpop.f32.mrb[0].mxu0
      %v1528 = vadd.f32 0.0, %v1527
      %v1529 = vpop.f32.mrb[0].mxu0
      %1530 = vmatprep.mubr.f32.mxu0 0.0
      %1531 = vmatmul.mubr.f32.gmra.mrb[0].mxu0 %v1459
      %v1532 = vpop.f32.mrb[0].mxu0
      %v1533 = vadd.f32 0.0, %v1532
      %v1534 = vpop.f32.mrb[0].mxu0
      %1535 = vdwg.mxu0
      %1538 = vrot.lane.b32.xlu0 %v1528, 112
      %v1539 = vpop.permute.xlu0 %1538
      %1540 = vrot.lane.b32.xlu0 %v1533, 112
      %v1541 = vpop.permute.xlu0 %1540
      %vm1544 = vcmask 1048448
      %1545 = vst.msk [vmem:[#allocation2] sm:$0xff] %vm1544, %v1539
      %1546 = vst.msk [vmem:[#allocation2 + $0x20] sm:$0xff] %vm1544, %v1541
      %1547 = vrot.lane.b32.xlu0 %v472, 96
      %v1548 = vpop.permute.xlu0 %1547
      %1550 = vxpose.xlu0.b32.start [1/16] %v1548, 128
      %1551 = vxpose.xlu0.b32.cont [2/16] 0.0, 128
      %1552 = vxpose.xlu0.b32.cont [3/16] 0.0, 128
      %1553 = vxpose.xlu0.b32.cont [4/16] 0.0, 128
      %1554 = vxpose.xlu0.b32.cont [5/16] 0.0, 128
      %1555 = vxpose.xlu0.b32.cont [6/16] 0.0, 128
      %1556 = vxpose.xlu0.b32.cont [7/16] 0.0, 128
      %1557 = vxpose.xlu0.b32.cont [8/16] 0.0, 128
      %1558 = vxpose.xlu0.b32.cont [9/16] 0.0, 128
      %1559 = vxpose.xlu0.b32.cont [10/16] 0.0, 128
      %1560 = vxpose.xlu0.b32.cont [11/16] 0.0, 128
      %1561 = vxpose.xlu0.b32.cont [12/16] 0.0, 128
      %1562 = vxpose.xlu0.b32.cont [13/16] 0.0, 128
      %1563 = vxpose.xlu0.b32.cont [14/16] 0.0, 128
      %1564 = vxpose.xlu0.b32.cont [15/16] 0.0, 128
      %1565 = vxpose.xlu0.b32.end [16/16] 0.0, 128
      %v1566 = vpop.trf.xlu0
      %v1567 = vpop.trf.xlu0
      %v1568 = vpop.trf.xlu0
      %v1569 = vpop.trf.xlu0
      %v1570 = vpop.trf.xlu0
      %v1571 = vpop.trf.xlu0
      %v1572 = vpop.trf.xlu0
      %v1573 = vpop.trf.xlu0
      %v1574 = vpop.trf.xlu0
      %v1575 = vpop.trf.xlu0
      %v1576 = vpop.trf.xlu0
      %v1577 = vpop.trf.xlu0
      %v1578 = vpop.trf.xlu0
      %v1579 = vpop.trf.xlu0
      %v1580 = vpop.trf.xlu0
      %v1581 = vpop.trf.xlu0
      %1582 = vrot.lane.b32.xlu0 %v492, 96
      %v1583 = vpop.permute.xlu0 %1582
      %v1586 = vsel %vm562, %v1566, 0
      %v1589 = vsel %vm562, %v1567, 0
      %1591 = vmatprep.subr.mxu0 0.0
      %1592 = vmatpush1.msra.mxu0 %v1583
      %1593 = vmatprep.subr.mxu0 0.0
      %1594 = vmatpush1.msra.mxu0 0.0
      %1595 = vmatprep.subr.mxu0 0.0
      %1596 = vmatpush1.msra.mxu0 0.0
      %1597 = vmatprep.subr.mxu0 0.0
      %1598 = vmatpush1.msra.mxu0 0.0
      %1599 = vmatprep.subr.mxu0 0.0
      %1600 = vmatpush1.msra.mxu0 0.0
      %1601 = vmatprep.subr.mxu0 0.0
      %1602 = vmatpush1.msra.mxu0 0.0
      %1603 = vmatprep.subr.mxu0 0.0
      %1604 = vmatpush1.msra.mxu0 0.0
      %1605 = vmatprep.subr.mxu0 0.0
      %1606 = vmatpush1.msra.mxu0 0.0
      %1607 = vmatprep.subr.mxu0 0.0
      %1608 = vmatpush1.msra.mxu0 0.0
      %1609 = vmatprep.subr.mxu0 0.0
      %1610 = vmatpush1.msra.mxu0 0.0
      %1611 = vmatprep.subr.mxu0 0.0
      %1612 = vmatpush1.msra.mxu0 0.0
      %1613 = vmatprep.subr.mxu0 0.0
      %1614 = vmatpush1.msra.mxu0 0.0
      %1615 = vmatprep.subr.mxu0 0.0
      %1616 = vmatpush1.msra.mxu0 0.0
      %1617 = vmatprep.subr.mxu0 0.0
      %1618 = vmatpush1.msra.mxu0 0.0
      %1619 = vmatprep.subr.mxu0 0.0
      %1620 = vmatpush1.msra.mxu0 0.0
      %1621 = vmatprep.subr.mxu0 0.0
      %1622 = vmatpush1.msra.mxu0 0.0
      %1623 = vmatprep.subr.mxu0 0.0
      %1624 = vmatpush1.msra.mxu0 0.0
      %1625 = vmatprep.subr.mxu0 0.0
      %1626 = vmatpush1.msra.mxu0 0.0
      %1627 = vmatprep.subr.mxu0 0.0
      %1628 = vmatpush1.msra.mxu0 0.0
      %1629 = vmatprep.subr.mxu0 0.0
      %1630 = vmatpush1.msra.mxu0 0.0
      %1631 = vmatprep.subr.mxu0 0.0
      %1632 = vmatpush1.msra.mxu0 0.0
      %1633 = vmatprep.subr.mxu0 0.0
      %1634 = vmatpush1.msra.mxu0 0.0
      %1635 = vmatprep.subr.mxu0 0.0
      %1636 = vmatpush1.msra.mxu0 0.0
      %1637 = vmatprep.subr.mxu0 0.0
      %1638 = vmatpush1.msra.mxu0 0.0
      %1639 = vmatprep.subr.mxu0 0.0
      %1640 = vmatpush1.msra.mxu0 0.0
      %1641 = vmatprep.subr.mxu0 0.0
      %1642 = vmatpush1.msra.mxu0 0.0
      %1643 = vmatprep.subr.mxu0 0.0
      %1644 = vmatpush1.msra.mxu0 0.0
      %1645 = vmatprep.subr.mxu0 0.0
      %1646 = vmatpush1.msra.mxu0 0.0
      %1647 = vmatprep.subr.mxu0 0.0
      %1648 = vmatpush1.msra.mxu0 0.0
      %1649 = vmatprep.subr.mxu0 0.0
      %1650 = vmatpush1.msra.mxu0 0.0
      %1651 = vmatprep.subr.mxu0 0.0
      %1652 = vmatpush1.msra.mxu0 0.0
      %1653 = vmatprep.subr.mxu0 0.0
      %1654 = vmatpush1.msra.mxu0 0.0
      %1655 = vmatprep.mubr.f32.mxu0 0.0
      %1656 = vmatmul.mubr.f32.gmra.mrb[0].mxu0 %v1586
      %v1657 = vpop.f32.mrb[0].mxu0
      %v1658 = vadd.f32 0.0, %v1657
      %v1659 = vpop.f32.mrb[0].mxu0
      %1660 = vmatprep.mubr.f32.mxu0 0.0
      %1661 = vmatmul.mubr.f32.gmra.mrb[0].mxu0 %v1589
      %v1662 = vpop.f32.mrb[0].mxu0
      %v1663 = vadd.f32 0.0, %v1662
      %v1664 = vpop.f32.mrb[0].mxu0
      %1665 = vdwg.mxu0
      %1666 = vst.msk [vmem:[#allocation2 + $0x8] sm:$0xff] %vm644, %v1658
      %1667 = vst.msk [vmem:[#allocation2 + $0x28] sm:$0xff] %vm644, %v1663
      %1668 = vrot.lane.b32.xlu0 %v477, 96
      %v1669 = vpop.permute.xlu0 %1668
      %1671 = vxpose.xlu0.b32.start [1/16] %v1669, 128
      %1672 = vxpose.xlu0.b32.cont [2/16] 0.0, 128
      %1673 = vxpose.xlu0.b32.cont [3/16] 0.0, 128
      %1674 = vxpose.xlu0.b32.cont [4/16] 0.0, 128
      %1675 = vxpose.xlu0.b32.cont [5/16] 0.0, 128
      %1676 = vxpose.xlu0.b32.cont [6/16] 0.0, 128
      %1677 = vxpose.xlu0.b32.cont [7/16] 0.0, 128
      %1678 = vxpose.xlu0.b32.cont [8/16] 0.0, 128
      %1679 = vxpose.xlu0.b32.cont [9/16] 0.0, 128
      %1680 = vxpose.xlu0.b32.cont [10/16] 0.0, 128
      %1681 = vxpose.xlu0.b32.cont [11/16] 0.0, 128
      %1682 = vxpose.xlu0.b32.cont [12/16] 0.0, 128
      %1683 = vxpose.xlu0.b32.cont [13/16] 0.0, 128
      %1684 = vxpose.xlu0.b32.cont [14/16] 0.0, 128
      %1685 = vxpose.xlu0.b32.cont [15/16] 0.0, 128
      %1686 = vxpose.xlu0.b32.end [16/16] 0.0, 128
      %v1687 = vpop.trf.xlu0
      %v1688 = vpop.trf.xlu0
      %v1689 = vpop.trf.xlu0
      %v1690 = vpop.trf.xlu0
      %v1691 = vpop.trf.xlu0
      %v1692 = vpop.trf.xlu0
      %v1693 = vpop.trf.xlu0
      %v1694 = vpop.trf.xlu0
      %v1695 = vpop.trf.xlu0
      %v1696 = vpop.trf.xlu0
      %v1697 = vpop.trf.xlu0
      %v1698 = vpop.trf.xlu0
      %v1699 = vpop.trf.xlu0
      %v1700 = vpop.trf.xlu0
      %v1701 = vpop.trf.xlu0
      %v1702 = vpop.trf.xlu0
      %1703 = vrot.lane.b32.xlu0 %v497, 96
      %v1704 = vpop.permute.xlu0 %1703
      %v1707 = vsel %vm562, %v1687, 0
      %v1710 = vsel %vm562, %v1688, 0
      %1712 = vmatprep.subr.mxu0 0.0
      %1713 = vmatpush1.msra.mxu0 %v1704
      %1714 = vmatprep.subr.mxu0 0.0
      %1715 = vmatpush1.msra.mxu0 0.0
      %1716 = vmatprep.subr.mxu0 0.0
      %1717 = vmatpush1.msra.mxu0 0.0
      %1718 = vmatprep.subr.mxu0 0.0
      %1719 = vmatpush1.msra.mxu0 0.0
      %1720 = vmatprep.subr.mxu0 0.0
      %1721 = vmatpush1.msra.mxu0 0.0
      %1722 = vmatprep.subr.mxu0 0.0
      %1723 = vmatpush1.msra.mxu0 0.0
      %1724 = vmatprep.subr.mxu0 0.0
      %1725 = vmatpush1.msra.mxu0 0.0
      %1726 = vmatprep.subr.mxu0 0.0
      %1727 = vmatpush1.msra.mxu0 0.0
      %1728 = vmatprep.subr.mxu0 0.0
      %1729 = vmatpush1.msra.mxu0 0.0
      %1730 = vmatprep.subr.mxu0 0.0
      %1731 = vmatpush1.msra.mxu0 0.0
      %1732 = vmatprep.subr.mxu0 0.0
      %1733 = vmatpush1.msra.mxu0 0.0
      %1734 = vmatprep.subr.mxu0 0.0
      %1735 = vmatpush1.msra.mxu0 0.0
      %1736 = vmatprep.subr.mxu0 0.0
      %1737 = vmatpush1.msra.mxu0 0.0
      %1738 = vmatprep.subr.mxu0 0.0
      %1739 = vmatpush1.msra.mxu0 0.0
      %1740 = vmatprep.subr.mxu0 0.0
      %1741 = vmatpush1.msra.mxu0 0.0
      %1742 = vmatprep.subr.mxu0 0.0
      %1743 = vmatpush1.msra.mxu0 0.0
      %1744 = vmatprep.subr.mxu0 0.0
      %1745 = vmatpush1.msra.mxu0 0.0
      %1746 = vmatprep.subr.mxu0 0.0
      %1747 = vmatpush1.msra.mxu0 0.0
      %1748 = vmatprep.subr.mxu0 0.0
      %1749 = vmatpush1.msra.mxu0 0.0
      %1750 = vmatprep.subr.mxu0 0.0
      %1751 = vmatpush1.msra.mxu0 0.0
      %1752 = vmatprep.subr.mxu0 0.0
      %1753 = vmatpush1.msra.mxu0 0.0
      %1754 = vmatprep.subr.mxu0 0.0
      %1755 = vmatpush1.msra.mxu0 0.0
      %1756 = vmatprep.subr.mxu0 0.0
      %1757 = vmatpush1.msra.mxu0 0.0
      %1758 = vmatprep.subr.mxu0 0.0
      %1759 = vmatpush1.msra.mxu0 0.0
      %1760 = vmatprep.subr.mxu0 0.0
      %1761 = vmatpush1.msra.mxu0 0.0
      %1762 = vmatprep.subr.mxu0 0.0
      %1763 = vmatpush1.msra.mxu0 0.0
      %1764 = vmatprep.subr.mxu0 0.0
      %1765 = vmatpush1.msra.mxu0 0.0
      %1766 = vmatprep.subr.mxu0 0.0
      %1767 = vmatpush1.msra.mxu0 0.0
      %1768 = vmatprep.subr.mxu0 0.0
      %1769 = vmatpush1.msra.mxu0 0.0
      %1770 = vmatprep.subr.mxu0 0.0
      %1771 = vmatpush1.msra.mxu0 0.0
      %1772 = vmatprep.subr.mxu0 0.0
      %1773 = vmatpush1.msra.mxu0 0.0
      %1774 = vmatprep.subr.mxu0 0.0
      %1775 = vmatpush1.msra.mxu0 0.0
      %1776 = vmatprep.mubr.f32.mxu0 0.0
      %1777 = vmatmul.mubr.f32.gmra.mrb[0].mxu0 %v1707
      %v1778 = vpop.f32.mrb[0].mxu0
      %v1779 = vadd.f32 0.0, %v1778
      %v1780 = vpop.f32.mrb[0].mxu0
      %1781 = vmatprep.mubr.f32.mxu0 0.0
      %1782 = vmatmul.mubr.f32.gmra.mrb[0].mxu0 %v1710
      %v1783 = vpop.f32.mrb[0].mxu0
      %v1784 = vadd.f32 0.0, %v1783
      %v1785 = vpop.f32.mrb[0].mxu0
      %1786 = vdwg.mxu0
      %1789 = vrot.lane.b32.xlu0 %v1779, 16
      %v1790 = vpop.permute.xlu0 %1789
      %1791 = vrot.lane.b32.xlu0 %v1784, 16
      %v1792 = vpop.permute.xlu0 %1791
      %1795 = vst.msk [vmem:[#allocation2 + $0x8] sm:$0xff] %vm768, %v1790
      %1796 = vst.msk [vmem:[#allocation2 + $0x28] sm:$0xff] %vm768, %v1792
      %1797 = vrot.lane.b32.xlu0 %v482, 96
      %v1798 = vpop.permute.xlu0 %1797
      %1800 = vxpose.xlu0.b32.start [1/16] %v1798, 128
      %1801 = vxpose.xlu0.b32.cont [2/16] 0.0, 128
      %1802 = vxpose.xlu0.b32.cont [3/16] 0.0, 128
      %1803 = vxpose.xlu0.b32.cont [4/16] 0.0, 128
      %1804 = vxpose.xlu0.b32.cont [5/16] 0.0, 128
      %1805 = vxpose.xlu0.b32.cont [6/16] 0.0, 128
      %1806 = vxpose.xlu0.b32.cont [7/16] 0.0, 128
      %1807 = vxpose.xlu0.b32.cont [8/16] 0.0, 128
      %1808 = vxpose.xlu0.b32.cont [9/16] 0.0, 128
      %1809 = vxpose.xlu0.b32.cont [10/16] 0.0, 128
      %1810 = vxpose.xlu0.b32.cont [11/16] 0.0, 128
      %1811 = vxpose.xlu0.b32.cont [12/16] 0.0, 128
      %1812 = vxpose.xlu0.b32.cont [13/16] 0.0, 128
      %1813 = vxpose.xlu0.b32.cont [14/16] 0.0, 128
      %1814 = vxpose.xlu0.b32.cont [15/16] 0.0, 128
      %1815 = vxpose.xlu0.b32.end [16/16] 0.0, 128
      %v1816 = vpop.trf.xlu0
      %v1817 = vpop.trf.xlu0
      %v1818 = vpop.trf.xlu0
      %v1819 = vpop.trf.xlu0
      %v1820 = vpop.trf.xlu0
      %v1821 = vpop.trf.xlu0
      %v1822 = vpop.trf.xlu0
      %v1823 = vpop.trf.xlu0
      %v1824 = vpop.trf.xlu0
      %v1825 = vpop.trf.xlu0
      %v1826 = vpop.trf.xlu0
      %v1827 = vpop.trf.xlu0
      %v1828 = vpop.trf.xlu0
      %v1829 = vpop.trf.xlu0
      %v1830 = vpop.trf.xlu0
      %v1831 = vpop.trf.xlu0
      %1832 = vrot.lane.b32.xlu0 %v502, 96
      %v1833 = vpop.permute.xlu0 %1832
      %v1836 = vsel %vm562, %v1816, 0
      %v1839 = vsel %vm562, %v1817, 0
      %1841 = vmatprep.subr.mxu0 0.0
      %1842 = vmatpush1.msra.mxu0 %v1833
      %1843 = vmatprep.subr.mxu0 0.0
      %1844 = vmatpush1.msra.mxu0 0.0
      %1845 = vmatprep.subr.mxu0 0.0
      %1846 = vmatpush1.msra.mxu0 0.0
      %1847 = vmatprep.subr.mxu0 0.0
      %1848 = vmatpush1.msra.mxu0 0.0
      %1849 = vmatprep.subr.mxu0 0.0
      %1850 = vmatpush1.msra.mxu0 0.0
      %1851 = vmatprep.subr.mxu0 0.0
      %1852 = vmatpush1.msra.mxu0 0.0
      %1853 = vmatprep.subr.mxu0 0.0
      %1854 = vmatpush1.msra.mxu0 0.0
      %1855 = vmatprep.subr.mxu0 0.0
      %1856 = vmatpush1.msra.mxu0 0.0
      %1857 = vmatprep.subr.mxu0 0.0
      %1858 = vmatpush1.msra.mxu0 0.0
      %1859 = vmatprep.subr.mxu0 0.0
      %1860 = vmatpush1.msra.mxu0 0.0
      %1861 = vmatprep.subr.mxu0 0.0
      %1862 = vmatpush1.msra.mxu0 0.0
      %1863 = vmatprep.subr.mxu0 0.0
      %1864 = vmatpush1.msra.mxu0 0.0
      %1865 = vmatprep.subr.mxu0 0.0
      %1866 = vmatpush1.msra.mxu0 0.0
      %1867 = vmatprep.subr.mxu0 0.0
      %1868 = vmatpush1.msra.mxu0 0.0
      %1869 = vmatprep.subr.mxu0 0.0
      %1870 = vmatpush1.msra.mxu0 0.0
      %1871 = vmatprep.subr.mxu0 0.0
      %1872 = vmatpush1.msra.mxu0 0.0
      %1873 = vmatprep.subr.mxu0 0.0
      %1874 = vmatpush1.msra.mxu0 0.0
      %1875 = vmatprep.subr.mxu0 0.0
      %1876 = vmatpush1.msra.mxu0 0.0
      %1877 = vmatprep.subr.mxu0 0.0
      %1878 = vmatpush1.msra.mxu0 0.0
      %1879 = vmatprep.subr.mxu0 0.0
      %1880 = vmatpush1.msra.mxu0 0.0
      %1881 = vmatprep.subr.mxu0 0.0
      %1882 = vmatpush1.msra.mxu0 0.0
      %1883 = vmatprep.subr.mxu0 0.0
      %1884 = vmatpush1.msra.mxu0 0.0
      %1885 = vmatprep.subr.mxu0 0.0
      %1886 = vmatpush1.msra.mxu0 0.0
      %1887 = vmatprep.subr.mxu0 0.0
      %1888 = vmatpush1.msra.mxu0 0.0
      %1889 = vmatprep.subr.mxu0 0.0
      %1890 = vmatpush1.msra.mxu0 0.0
      %1891 = vmatprep.subr.mxu0 0.0
      %1892 = vmatpush1.msra.mxu0 0.0
      %1893 = vmatprep.subr.mxu0 0.0
      %1894 = vmatpush1.msra.mxu0 0.0
      %1895 = vmatprep.subr.mxu0 0.0
      %1896 = vmatpush1.msra.mxu0 0.0
      %1897 = vmatprep.subr.mxu0 0.0
      %1898 = vmatpush1.msra.mxu0 0.0
      %1899 = vmatprep.subr.mxu0 0.0
      %1900 = vmatpush1.msra.mxu0 0.0
      %1901 = vmatprep.subr.mxu0 0.0
      %1902 = vmatpush1.msra.mxu0 0.0
      %1903 = vmatprep.subr.mxu0 0.0
      %1904 = vmatpush1.msra.mxu0 0.0
      %1905 = vmatprep.mubr.f32.mxu0 0.0
      %1906 = vmatmul.mubr.f32.gmra.mrb[0].mxu0 %v1836
      %v1907 = vpop.f32.mrb[0].mxu0
      %v1908 = vadd.f32 0.0, %v1907
      %v1909 = vpop.f32.mrb[0].mxu0
      %1910 = vmatprep.mubr.f32.mxu0 0.0
      %1911 = vmatmul.mubr.f32.gmra.mrb[0].mxu0 %v1839
      %v1912 = vpop.f32.mrb[0].mxu0
      %v1913 = vadd.f32 0.0, %v1912
      %v1914 = vpop.f32.mrb[0].mxu0
      %1915 = vdwg.mxu0
      %1918 = vrot.lane.b32.xlu0 %v1908, 32
      %v1919 = vpop.permute.xlu0 %1918
      %1920 = vrot.lane.b32.xlu0 %v1913, 32
      %v1921 = vpop.permute.xlu0 %1920
      %1924 = vst.msk [vmem:[#allocation2 + $0x8] sm:$0xff] %vm892, %v1919
      %1925 = vst.msk [vmem:[#allocation2 + $0x28] sm:$0xff] %vm892, %v1921
      %1926 = vrot.lane.b32.xlu0 %v487, 96
      %v1927 = vpop.permute.xlu0 %1926
      %1929 = vxpose.xlu0.b32.start [1/16] %v1927, 128
      %1930 = vxpose.xlu0.b32.cont [2/16] 0.0, 128
      %1931 = vxpose.xlu0.b32.cont [3/16] 0.0, 128
      %1932 = vxpose.xlu0.b32.cont [4/16] 0.0, 128
      %1933 = vxpose.xlu0.b32.cont [5/16] 0.0, 128
      %1934 = vxpose.xlu0.b32.cont [6/16] 0.0, 128
      %1935 = vxpose.xlu0.b32.cont [7/16] 0.0, 128
      %1936 = vxpose.xlu0.b32.cont [8/16] 0.0, 128
      %1937 = vxpose.xlu0.b32.cont [9/16] 0.0, 128
      %1938 = vxpose.xlu0.b32.cont [10/16] 0.0, 128
      %1939 = vxpose.xlu0.b32.cont [11/16] 0.0, 128
      %1940 = vxpose.xlu0.b32.cont [12/16] 0.0, 128
      %1941 = vxpose.xlu0.b32.cont [13/16] 0.0, 128
      %1942 = vxpose.xlu0.b32.cont [14/16] 0.0, 128
      %1943 = vxpose.xlu0.b32.cont [15/16] 0.0, 128
      %1944 = vxpose.xlu0.b32.end [16/16] 0.0, 128
      %v1945 = vpop.trf.xlu0
      %v1946 = vpop.trf.xlu0
      %v1947 = vpop.trf.xlu0
      %v1948 = vpop.trf.xlu0
      %v1949 = vpop.trf.xlu0
      %v1950 = vpop.trf.xlu0
      %v1951 = vpop.trf.xlu0
      %v1952 = vpop.trf.xlu0
      %v1953 = vpop.trf.xlu0
      %v1954 = vpop.trf.xlu0
      %v1955 = vpop.trf.xlu0
      %v1956 = vpop.trf.xlu0
      %v1957 = vpop.trf.xlu0
      %v1958 = vpop.trf.xlu0
      %v1959 = vpop.trf.xlu0
      %v1960 = vpop.trf.xlu0
      %1961 = vrot.lane.b32.xlu0 %v507, 96
      %v1962 = vpop.permute.xlu0 %1961
      %v1965 = vsel %vm562, %v1945, 0
      %v1968 = vsel %vm562, %v1946, 0
      %1970 = vmatprep.subr.mxu0 0.0
      %1971 = vmatpush1.msra.mxu0 %v1962
      %1972 = vmatprep.subr.mxu0 0.0
      %1973 = vmatpush1.msra.mxu0 0.0
      %1974 = vmatprep.subr.mxu0 0.0
      %1975 = vmatpush1.msra.mxu0 0.0
      %1976 = vmatprep.subr.mxu0 0.0
      %1977 = vmatpush1.msra.mxu0 0.0
      %1978 = vmatprep.subr.mxu0 0.0
      %1979 = vmatpush1.msra.mxu0 0.0
      %1980 = vmatprep.subr.mxu0 0.0
      %1981 = vmatpush1.msra.mxu0 0.0
      %1982 = vmatprep.subr.mxu0 0.0
      %1983 = vmatpush1.msra.mxu0 0.0
      %1984 = vmatprep.subr.mxu0 0.0
      %1985 = vmatpush1.msra.mxu0 0.0
      %1986 = vmatprep.subr.mxu0 0.0
      %1987 = vmatpush1.msra.mxu0 0.0
      %1988 = vmatprep.subr.mxu0 0.0
      %1989 = vmatpush1.msra.mxu0 0.0
      %1990 = vmatprep.subr.mxu0 0.0
      %1991 = vmatpush1.msra.mxu0 0.0
      %1992 = vmatprep.subr.mxu0 0.0
      %1993 = vmatpush1.msra.mxu0 0.0
      %1994 = vmatprep.subr.mxu0 0.0
      %1995 = vmatpush1.msra.mxu0 0.0
      %1996 = vmatprep.subr.mxu0 0.0
      %1997 = vmatpush1.msra.mxu0 0.0
      %1998 = vmatprep.subr.mxu0 0.0
      %1999 = vmatpush1.msra.mxu0 0.0
      %2000 = vmatprep.subr.mxu0 0.0
      %2001 = vmatpush1.msra.mxu0 0.0
      %2002 = vmatprep.subr.mxu0 0.0
      %2003 = vmatpush1.msra.mxu0 0.0
      %2004 = vmatprep.subr.mxu0 0.0
      %2005 = vmatpush1.msra.mxu0 0.0
      %2006 = vmatprep.subr.mxu0 0.0
      %2007 = vmatpush1.msra.mxu0 0.0
      %2008 = vmatprep.subr.mxu0 0.0
      %2009 = vmatpush1.msra.mxu0 0.0
      %2010 = vmatprep.subr.mxu0 0.0
      %2011 = vmatpush1.msra.mxu0 0.0
      %2012 = vmatprep.subr.mxu0 0.0
      %2013 = vmatpush1.msra.mxu0 0.0
      %2014 = vmatprep.subr.mxu0 0.0
      %2015 = vmatpush1.msra.mxu0 0.0
      %2016 = vmatprep.subr.mxu0 0.0
      %2017 = vmatpush1.msra.mxu0 0.0
      %2018 = vmatprep.subr.mxu0 0.0
      %2019 = vmatpush1.msra.mxu0 0.0
      %2020 = vmatprep.subr.mxu0 0.0
      %2021 = vmatpush1.msra.mxu0 0.0
      %2022 = vmatprep.subr.mxu0 0.0
      %2023 = vmatpush1.msra.mxu0 0.0
      %2024 = vmatprep.subr.mxu0 0.0
      %2025 = vmatpush1.msra.mxu0 0.0
      %2026 = vmatprep.subr.mxu0 0.0
      %2027 = vmatpush1.msra.mxu0 0.0
      %2028 = vmatprep.subr.mxu0 0.0
      %2029 = vmatpush1.msra.mxu0 0.0
      %2030 = vmatprep.subr.mxu0 0.0
      %2031 = vmatpush1.msra.mxu0 0.0
      %2032 = vmatprep.subr.mxu0 0.0
      %2033 = vmatpush1.msra.mxu0 0.0
      %2034 = vmatprep.mubr.f32.mxu0 0.0
      %2035 = vmatmul.mubr.f32.gmra.mrb[0].mxu0 %v1965
      %v2036 = vpop.f32.mrb[0].mxu0
      %v2037 = vadd.f32 0.0, %v2036
      %v2038 = vpop.f32.mrb[0].mxu0
      %2039 = vmatprep.mubr.f32.mxu0 0.0
      %2040 = vmatmul.mubr.f32.gmra.mrb[0].mxu0 %v1968
      %v2041 = vpop.f32.mrb[0].mxu0
      %v2042 = vadd.f32 0.0, %v2041
      %v2043 = vpop.f32.mrb[0].mxu0
      %2044 = vdwg.mxu0
      %2047 = vrot.lane.b32.xlu0 %v2037, 48
      %v2048 = vpop.permute.xlu0 %2047
      %2049 = vrot.lane.b32.xlu0 %v2042, 48
      %v2050 = vpop.permute.xlu0 %2049
      %2053 = vst.msk [vmem:[#allocation2 + $0x8] sm:$0xff] %vm1016, %v2048
      %2054 = vst.msk [vmem:[#allocation2 + $0x28] sm:$0xff] %vm1016, %v2050
      %2055 = vrot.lane.b32.xlu0 %v472, 80
      %v2056 = vpop.permute.xlu0 %2055
      %2058 = vxpose.xlu0.b32.start [1/16] %v2056, 128
      %2059 = vxpose.xlu0.b32.cont [2/16] 0.0, 128
      %2060 = vxpose.xlu0.b32.cont [3/16] 0.0, 128
      %2061 = vxpose.xlu0.b32.cont [4/16] 0.0, 128
      %2062 = vxpose.xlu0.b32.cont [5/16] 0.0, 128
      %2063 = vxpose.xlu0.b32.cont [6/16] 0.0, 128
      %2064 = vxpose.xlu0.b32.cont [7/16] 0.0, 128
      %2065 = vxpose.xlu0.b32.cont [8/16] 0.0, 128
      %2066 = vxpose.xlu0.b32.cont [9/16] 0.0, 128
      %2067 = vxpose.xlu0.b32.cont [10/16] 0.0, 128
      %2068 = vxpose.xlu0.b32.cont [11/16] 0.0, 128
      %2069 = vxpose.xlu0.b32.cont [12/16] 0.0, 128
      %2070 = vxpose.xlu0.b32.cont [13/16] 0.0, 128
      %2071 = vxpose.xlu0.b32.cont [14/16] 0.0, 128
      %2072 = vxpose.xlu0.b32.cont [15/16] 0.0, 128
      %2073 = vxpose.xlu0.b32.end [16/16] 0.0, 128
      %v2074 = vpop.trf.xlu0
      %v2075 = vpop.trf.xlu0
      %v2076 = vpop.trf.xlu0
      %v2077 = vpop.trf.xlu0
      %v2078 = vpop.trf.xlu0
      %v2079 = vpop.trf.xlu0
      %v2080 = vpop.trf.xlu0
      %v2081 = vpop.trf.xlu0
      %v2082 = vpop.trf.xlu0
      %v2083 = vpop.trf.xlu0
      %v2084 = vpop.trf.xlu0
      %v2085 = vpop.trf.xlu0
      %v2086 = vpop.trf.xlu0
      %v2087 = vpop.trf.xlu0
      %v2088 = vpop.trf.xlu0
      %v2089 = vpop.trf.xlu0
      %2090 = vrot.lane.b32.xlu0 %v492, 80
      %v2091 = vpop.permute.xlu0 %2090
      %v2094 = vsel %vm562, %v2074, 0
      %v2097 = vsel %vm562, %v2075, 0
      %2099 = vmatprep.subr.mxu0 0.0
      %2100 = vmatpush1.msra.mxu0 %v2091
      %2101 = vmatprep.subr.mxu0 0.0
      %2102 = vmatpush1.msra.mxu0 0.0
      %2103 = vmatprep.subr.mxu0 0.0
      %2104 = vmatpush1.msra.mxu0 0.0
      %2105 = vmatprep.subr.mxu0 0.0
      %2106 = vmatpush1.msra.mxu0 0.0
      %2107 = vmatprep.subr.mxu0 0.0
      %2108 = vmatpush1.msra.mxu0 0.0
      %2109 = vmatprep.subr.mxu0 0.0
      %2110 = vmatpush1.msra.mxu0 0.0
      %2111 = vmatprep.subr.mxu0 0.0
      %2112 = vmatpush1.msra.mxu0 0.0
      %2113 = vmatprep.subr.mxu0 0.0
      %2114 = vmatpush1.msra.mxu0 0.0
      %2115 = vmatprep.subr.mxu0 0.0
      %2116 = vmatpush1.msra.mxu0 0.0
      %2117 = vmatprep.subr.mxu0 0.0
      %2118 = vmatpush1.msra.mxu0 0.0
      %2119 = vmatprep.subr.mxu0 0.0
      %2120 = vmatpush1.msra.mxu0 0.0
      %2121 = vmatprep.subr.mxu0 0.0
      %2122 = vmatpush1.msra.mxu0 0.0
      %2123 = vmatprep.subr.mxu0 0.0
      %2124 = vmatpush1.msra.mxu0 0.0
      %2125 = vmatprep.subr.mxu0 0.0
      %2126 = vmatpush1.msra.mxu0 0.0
      %2127 = vmatprep.subr.mxu0 0.0
      %2128 = vmatpush1.msra.mxu0 0.0
      %2129 = vmatprep.subr.mxu0 0.0
      %2130 = vmatpush1.msra.mxu0 0.0
      %2131 = vmatprep.subr.mxu0 0.0
      %2132 = vmatpush1.msra.mxu0 0.0
      %2133 = vmatprep.subr.mxu0 0.0
      %2134 = vmatpush1.msra.mxu0 0.0
      %2135 = vmatprep.subr.mxu0 0.0
      %2136 = vmatpush1.msra.mxu0 0.0
      %2137 = vmatprep.subr.mxu0 0.0
      %2138 = vmatpush1.msra.mxu0 0.0
      %2139 = vmatprep.subr.mxu0 0.0
      %2140 = vmatpush1.msra.mxu0 0.0
      %2141 = vmatprep.subr.mxu0 0.0
      %2142 = vmatpush1.msra.mxu0 0.0
      %2143 = vmatprep.subr.mxu0 0.0
      %2144 = vmatpush1.msra.mxu0 0.0
      %2145 = vmatprep.subr.mxu0 0.0
      %2146 = vmatpush1.msra.mxu0 0.0
      %2147 = vmatprep.subr.mxu0 0.0
      %2148 = vmatpush1.msra.mxu0 0.0
      %2149 = vmatprep.subr.mxu0 0.0
      %2150 = vmatpush1.msra.mxu0 0.0
      %2151 = vmatprep.subr.mxu0 0.0
      %2152 = vmatpush1.msra.mxu0 0.0
      %2153 = vmatprep.subr.mxu0 0.0
      %2154 = vmatpush1.msra.mxu0 0.0
      %2155 = vmatprep.subr.mxu0 0.0
      %2156 = vmatpush1.msra.mxu0 0.0
      %2157 = vmatprep.subr.mxu0 0.0
      %2158 = vmatpush1.msra.mxu0 0.0
      %2159 = vmatprep.subr.mxu0 0.0
      %2160 = vmatpush1.msra.mxu0 0.0
      %2161 = vmatprep.subr.mxu0 0.0
      %2162 = vmatpush1.msra.mxu0 0.0
      %2163 = vmatprep.mubr.f32.mxu0 0.0
      %2164 = vmatmul.mubr.f32.gmra.mrb[0].mxu0 %v2094
      %v2165 = vpop.f32.mrb[0].mxu0
      %v2166 = vadd.f32 0.0, %v2165
      %v2167 = vpop.f32.mrb[0].mxu0
      %2168 = vmatprep.mubr.f32.mxu0 0.0
      %2169 = vmatmul.mubr.f32.gmra.mrb[0].mxu0 %v2097
      %v2170 = vpop.f32.mrb[0].mxu0
      %v2171 = vadd.f32 0.0, %v2170
      %v2172 = vpop.f32.mrb[0].mxu0
      %2173 = vdwg.mxu0
      %2176 = vrot.lane.b32.xlu0 %v2166, 64
      %v2177 = vpop.permute.xlu0 %2176
      %2178 = vrot.lane.b32.xlu0 %v2171, 64
      %v2179 = vpop.permute.xlu0 %2178
      %2182 = vst.msk [vmem:[#allocation2 + $0x8] sm:$0xff] %vm1148, %v2177
      %2183 = vst.msk [vmem:[#allocation2 + $0x28] sm:$0xff] %vm1148, %v2179
      %2184 = vrot.lane.b32.xlu0 %v477, 80
      %v2185 = vpop.permute.xlu0 %2184
      %2187 = vxpose.xlu0.b32.start [1/16] %v2185, 128
      %2188 = vxpose.xlu0.b32.cont [2/16] 0.0, 128
      %2189 = vxpose.xlu0.b32.cont [3/16] 0.0, 128
      %2190 = vxpose.xlu0.b32.cont [4/16] 0.0, 128
      %2191 = vxpose.xlu0.b32.cont [5/16] 0.0, 128
      %2192 = vxpose.xlu0.b32.cont [6/16] 0.0, 128
      %2193 = vxpose.xlu0.b32.cont [7/16] 0.0, 128
      %2194 = vxpose.xlu0.b32.cont [8/16] 0.0, 128
      %2195 = vxpose.xlu0.b32.cont [9/16] 0.0, 128
      %2196 = vxpose.xlu0.b32.cont [10/16] 0.0, 128
      %2197 = vxpose.xlu0.b32.cont [11/16] 0.0, 128
      %2198 = vxpose.xlu0.b32.cont [12/16] 0.0, 128
      %2199 = vxpose.xlu0.b32.cont [13/16] 0.0, 128
      %2200 = vxpose.xlu0.b32.cont [14/16] 0.0, 128
      %2201 = vxpose.xlu0.b32.cont [15/16] 0.0, 128
      %2202 = vxpose.xlu0.b32.end [16/16] 0.0, 128
      %v2203 = vpop.trf.xlu0
      %v2204 = vpop.trf.xlu0
      %v2205 = vpop.trf.xlu0
      %v2206 = vpop.trf.xlu0
      %v2207 = vpop.trf.xlu0
      %v2208 = vpop.trf.xlu0
      %v2209 = vpop.trf.xlu0
      %v2210 = vpop.trf.xlu0
      %v2211 = vpop.trf.xlu0
      %v2212 = vpop.trf.xlu0
      %v2213 = vpop.trf.xlu0
      %v2214 = vpop.trf.xlu0
      %v2215 = vpop.trf.xlu0
      %v2216 = vpop.trf.xlu0
      %v2217 = vpop.trf.xlu0
      %v2218 = vpop.trf.xlu0
      %2219 = vrot.lane.b32.xlu0 %v497, 80
      %v2220 = vpop.permute.xlu0 %2219
      %v2223 = vsel %vm562, %v2203, 0
      %v2226 = vsel %vm562, %v2204, 0
      %2228 = vmatprep.subr.mxu0 0.0
      %2229 = vmatpush1.msra.mxu0 %v2220
      %2230 = vmatprep.subr.mxu0 0.0
      %2231 = vmatpush1.msra.mxu0 0.0
      %2232 = vmatprep.subr.mxu0 0.0
      %2233 = vmatpush1.msra.mxu0 0.0
      %2234 = vmatprep.subr.mxu0 0.0
      %2235 = vmatpush1.msra.mxu0 0.0
      %2236 = vmatprep.subr.mxu0 0.0
      %2237 = vmatpush1.msra.mxu0 0.0
      %2238 = vmatprep.subr.mxu0 0.0
      %2239 = vmatpush1.msra.mxu0 0.0
      %2240 = vmatprep.subr.mxu0 0.0
      %2241 = vmatpush1.msra.mxu0 0.0
      %2242 = vmatprep.subr.mxu0 0.0
      %2243 = vmatpush1.msra.mxu0 0.0
      %2244 = vmatprep.subr.mxu0 0.0
      %2245 = vmatpush1.msra.mxu0 0.0
      %2246 = vmatprep.subr.mxu0 0.0
      %2247 = vmatpush1.msra.mxu0 0.0
      %2248 = vmatprep.subr.mxu0 0.0
      %2249 = vmatpush1.msra.mxu0 0.0
      %2250 = vmatprep.subr.mxu0 0.0
      %2251 = vmatpush1.msra.mxu0 0.0
      %2252 = vmatprep.subr.mxu0 0.0
      %2253 = vmatpush1.msra.mxu0 0.0
      %2254 = vmatprep.subr.mxu0 0.0
      %2255 = vmatpush1.msra.mxu0 0.0
      %2256 = vmatprep.subr.mxu0 0.0
      %2257 = vmatpush1.msra.mxu0 0.0
      %2258 = vmatprep.subr.mxu0 0.0
      %2259 = vmatpush1.msra.mxu0 0.0
      %2260 = vmatprep.subr.mxu0 0.0
      %2261 = vmatpush1.msra.mxu0 0.0
      %2262 = vmatprep.subr.mxu0 0.0
      %2263 = vmatpush1.msra.mxu0 0.0
      %2264 = vmatprep.subr.mxu0 0.0
      %2265 = vmatpush1.msra.mxu0 0.0
      %2266 = vmatprep.subr.mxu0 0.0
      %2267 = vmatpush1.msra.mxu0 0.0
      %2268 = vmatprep.subr.mxu0 0.0
      %2269 = vmatpush1.msra.mxu0 0.0
      %2270 = vmatprep.subr.mxu0 0.0
      %2271 = vmatpush1.msra.mxu0 0.0
      %2272 = vmatprep.subr.mxu0 0.0
      %2273 = vmatpush1.msra.mxu0 0.0
      %2274 = vmatprep.subr.mxu0 0.0
      %2275 = vmatpush1.msra.mxu0 0.0
      %2276 = vmatprep.subr.mxu0 0.0
      %2277 = vmatpush1.msra.mxu0 0.0
      %2278 = vmatprep.subr.mxu0 0.0
      %2279 = vmatpush1.msra.mxu0 0.0
      %2280 = vmatprep.subr.mxu0 0.0
      %2281 = vmatpush1.msra.mxu0 0.0
      %2282 = vmatprep.subr.mxu0 0.0
      %2283 = vmatpush1.msra.mxu0 0.0
      %2284 = vmatprep.subr.mxu0 0.0
      %2285 = vmatpush1.msra.mxu0 0.0
      %2286 = vmatprep.subr.mxu0 0.0
      %2287 = vmatpush1.msra.mxu0 0.0
      %2288 = vmatprep.subr.mxu0 0.0
      %2289 = vmatpush1.msra.mxu0 0.0
      %2290 = vmatprep.subr.mxu0 0.0
      %2291 = vmatpush1.msra.mxu0 0.0
      %2292 = vmatprep.mubr.f32.mxu0 0.0
      %2293 = vmatmul.mubr.f32.gmra.mrb[0].mxu0 %v2223
      %v2294 = vpop.f32.mrb[0].mxu0
      %v2295 = vadd.f32 0.0, %v2294
      %v2296 = vpop.f32.mrb[0].mxu0
      %2297 = vmatprep.mubr.f32.mxu0 0.0
      %2298 = vmatmul.mubr.f32.gmra.mrb[0].mxu0 %v2226
      %v2299 = vpop.f32.mrb[0].mxu0
      %v2300 = vadd.f32 0.0, %v2299
      %v2301 = vpop.f32.mrb[0].mxu0
      %2302 = vdwg.mxu0
      %2305 = vrot.lane.b32.xlu0 %v2295, 80
      %v2306 = vpop.permute.xlu0 %2305
      %2307 = vrot.lane.b32.xlu0 %v2300, 80
      %v2308 = vpop.permute.xlu0 %2307
      %2311 = vst.msk [vmem:[#allocation2 + $0x8] sm:$0xff] %vm1280, %v2306
      %2312 = vst.msk [vmem:[#allocation2 + $0x28] sm:$0xff] %vm1280, %v2308
      %2313 = vrot.lane.b32.xlu0 %v482, 80
      %v2314 = vpop.permute.xlu0 %2313
      %2316 = vxpose.xlu0.b32.start [1/16] %v2314, 128
      %2317 = vxpose.xlu0.b32.cont [2/16] 0.0, 128
      %2318 = vxpose.xlu0.b32.cont [3/16] 0.0, 128
      %2319 = vxpose.xlu0.b32.cont [4/16] 0.0, 128
      %2320 = vxpose.xlu0.b32.cont [5/16] 0.0, 128
      %2321 = vxpose.xlu0.b32.cont [6/16] 0.0, 128
      %2322 = vxpose.xlu0.b32.cont [7/16] 0.0, 128
      %2323 = vxpose.xlu0.b32.cont [8/16] 0.0, 128
      %2324 = vxpose.xlu0.b32.cont [9/16] 0.0, 128
      %2325 = vxpose.xlu0.b32.cont [10/16] 0.0, 128
      %2326 = vxpose.xlu0.b32.cont [11/16] 0.0, 128
      %2327 = vxpose.xlu0.b32.cont [12/16] 0.0, 128
      %2328 = vxpose.xlu0.b32.cont [13/16] 0.0, 128
      %2329 = vxpose.xlu0.b32.cont [14/16] 0.0, 128
      %2330 = vxpose.xlu0.b32.cont [15/16] 0.0, 128
      %2331 = vxpose.xlu0.b32.end [16/16] 0.0, 128
      %v2332 = vpop.trf.xlu0
      %v2333 = vpop.trf.xlu0
      %v2334 = vpop.trf.xlu0
      %v2335 = vpop.trf.xlu0
      %v2336 = vpop.trf.xlu0
      %v2337 = vpop.trf.xlu0
      %v2338 = vpop.trf.xlu0
      %v2339 = vpop.trf.xlu0
      %v2340 = vpop.trf.xlu0
      %v2341 = vpop.trf.xlu0
      %v2342 = vpop.trf.xlu0
      %v2343 = vpop.trf.xlu0
      %v2344 = vpop.trf.xlu0
      %v2345 = vpop.trf.xlu0
      %v2346 = vpop.trf.xlu0
      %v2347 = vpop.trf.xlu0
      %2348 = vrot.lane.b32.xlu0 %v502, 80
      %v2349 = vpop.permute.xlu0 %2348
      %v2352 = vsel %vm562, %v2332, 0
      %v2355 = vsel %vm562, %v2333, 0
      %2357 = vmatprep.subr.mxu0 0.0
      %2358 = vmatpush1.msra.mxu0 %v2349
      %2359 = vmatprep.subr.mxu0 0.0
      %2360 = vmatpush1.msra.mxu0 0.0
      %2361 = vmatprep.subr.mxu0 0.0
      %2362 = vmatpush1.msra.mxu0 0.0
      %2363 = vmatprep.subr.mxu0 0.0
      %2364 = vmatpush1.msra.mxu0 0.0
      %2365 = vmatprep.subr.mxu0 0.0
      %2366 = vmatpush1.msra.mxu0 0.0
      %2367 = vmatprep.subr.mxu0 0.0
      %2368 = vmatpush1.msra.mxu0 0.0
      %2369 = vmatprep.subr.mxu0 0.0
      %2370 = vmatpush1.msra.mxu0 0.0
      %2371 = vmatprep.subr.mxu0 0.0
      %2372 = vmatpush1.msra.mxu0 0.0
      %2373 = vmatprep.subr.mxu0 0.0
      %2374 = vmatpush1.msra.mxu0 0.0
      %2375 = vmatprep.subr.mxu0 0.0
      %2376 = vmatpush1.msra.mxu0 0.0
      %2377 = vmatprep.subr.mxu0 0.0
      %2378 = vmatpush1.msra.mxu0 0.0
      %2379 = vmatprep.subr.mxu0 0.0
      %2380 = vmatpush1.msra.mxu0 0.0
      %2381 = vmatprep.subr.mxu0 0.0
      %2382 = vmatpush1.msra.mxu0 0.0
      %2383 = vmatprep.subr.mxu0 0.0
      %2384 = vmatpush1.msra.mxu0 0.0
      %2385 = vmatprep.subr.mxu0 0.0
      %2386 = vmatpush1.msra.mxu0 0.0
      %2387 = vmatprep.subr.mxu0 0.0
      %2388 = vmatpush1.msra.mxu0 0.0
      %2389 = vmatprep.subr.mxu0 0.0
      %2390 = vmatpush1.msra.mxu0 0.0
      %2391 = vmatprep.subr.mxu0 0.0
      %2392 = vmatpush1.msra.mxu0 0.0
      %2393 = vmatprep.subr.mxu0 0.0
      %2394 = vmatpush1.msra.mxu0 0.0
      %2395 = vmatprep.subr.mxu0 0.0
      %2396 = vmatpush1.msra.mxu0 0.0
      %2397 = vmatprep.subr.mxu0 0.0
      %2398 = vmatpush1.msra.mxu0 0.0
      %2399 = vmatprep.subr.mxu0 0.0
      %2400 = vmatpush1.msra.mxu0 0.0
      %2401 = vmatprep.subr.mxu0 0.0
      %2402 = vmatpush1.msra.mxu0 0.0
      %2403 = vmatprep.subr.mxu0 0.0
      %2404 = vmatpush1.msra.mxu0 0.0
      %2405 = vmatprep.subr.mxu0 0.0
      %2406 = vmatpush1.msra.mxu0 0.0
      %2407 = vmatprep.subr.mxu0 0.0
      %2408 = vmatpush1.msra.mxu0 0.0
      %2409 = vmatprep.subr.mxu0 0.0
      %2410 = vmatpush1.msra.mxu0 0.0
      %2411 = vmatprep.subr.mxu0 0.0
      %2412 = vmatpush1.msra.mxu0 0.0
      %2413 = vmatprep.subr.mxu0 0.0
      %2414 = vmatpush1.msra.mxu0 0.0
      %2415 = vmatprep.subr.mxu0 0.0
      %2416 = vmatpush1.msra.mxu0 0.0
      %2417 = vmatprep.subr.mxu0 0.0
      %2418 = vmatpush1.msra.mxu0 0.0
      %2419 = vmatprep.subr.mxu0 0.0
      %2420 = vmatpush1.msra.mxu0 0.0
      %2421 = vmatprep.mubr.f32.mxu0 0.0
      %2422 = vmatmul.mubr.f32.gmra.mrb[0].mxu0 %v2352
      %v2423 = vpop.f32.mrb[0].mxu0
      %v2424 = vadd.f32 0.0, %v2423
      %v2425 = vpop.f32.mrb[0].mxu0
      %2426 = vmatprep.mubr.f32.mxu0 0.0
      %2427 = vmatmul.mubr.f32.gmra.mrb[0].mxu0 %v2355
      %v2428 = vpop.f32.mrb[0].mxu0
      %v2429 = vadd.f32 0.0, %v2428
      %v2430 = vpop.f32.mrb[0].mxu0
      %2431 = vdwg.mxu0
      %2434 = vrot.lane.b32.xlu0 %v2424, 96
      %v2435 = vpop.permute.xlu0 %2434
      %2436 = vrot.lane.b32.xlu0 %v2429, 96
      %v2437 = vpop.permute.xlu0 %2436
      %2440 = vst.msk [vmem:[#allocation2 + $0x8] sm:$0xff] %vm1412, %v2435
      %2441 = vst.msk [vmem:[#allocation2 + $0x28] sm:$0xff] %vm1412, %v2437
      %2442 = vrot.lane.b32.xlu0 %v487, 80
      %v2443 = vpop.permute.xlu0 %2442
      %2445 = vxpose.xlu0.b32.start [1/16] %v2443, 128
      %2446 = vxpose.xlu0.b32.cont [2/16] 0.0, 128
      %2447 = vxpose.xlu0.b32.cont [3/16] 0.0, 128
      %2448 = vxpose.xlu0.b32.cont [4/16] 0.0, 128
      %2449 = vxpose.xlu0.b32.cont [5/16] 0.0, 128
      %2450 = vxpose.xlu0.b32.cont [6/16] 0.0, 128
      %2451 = vxpose.xlu0.b32.cont [7/16] 0.0, 128
      %2452 = vxpose.xlu0.b32.cont [8/16] 0.0, 128
      %2453 = vxpose.xlu0.b32.cont [9/16] 0.0, 128
      %2454 = vxpose.xlu0.b32.cont [10/16] 0.0, 128
      %2455 = vxpose.xlu0.b32.cont [11/16] 0.0, 128
      %2456 = vxpose.xlu0.b32.cont [12/16] 0.0, 128
      %2457 = vxpose.xlu0.b32.cont [13/16] 0.0, 128
      %2458 = vxpose.xlu0.b32.cont [14/16] 0.0, 128
      %2459 = vxpose.xlu0.b32.cont [15/16] 0.0, 128
      %2460 = vxpose.xlu0.b32.end [16/16] 0.0, 128
      %v2461 = vpop.trf.xlu0
      %v2462 = vpop.trf.xlu0
      %v2463 = vpop.trf.xlu0
      %v2464 = vpop.trf.xlu0
      %v2465 = vpop.trf.xlu0
      %v2466 = vpop.trf.xlu0
      %v2467 = vpop.trf.xlu0
      %v2468 = vpop.trf.xlu0
      %v2469 = vpop.trf.xlu0
      %v2470 = vpop.trf.xlu0
      %v2471 = vpop.trf.xlu0
      %v2472 = vpop.trf.xlu0
      %v2473 = vpop.trf.xlu0
      %v2474 = vpop.trf.xlu0
      %v2475 = vpop.trf.xlu0
      %v2476 = vpop.trf.xlu0
      %2477 = vrot.lane.b32.xlu0 %v507, 80
      %v2478 = vpop.permute.xlu0 %2477
      %v2481 = vsel %vm562, %v2461, 0
      %v2484 = vsel %vm562, %v2462, 0
      %2486 = vmatprep.subr.mxu0 0.0
      %2487 = vmatpush1.msra.mxu0 %v2478
      %2488 = vmatprep.subr.mxu0 0.0
      %2489 = vmatpush1.msra.mxu0 0.0
      %2490 = vmatprep.subr.mxu0 0.0
      %2491 = vmatpush1.msra.mxu0 0.0
      %2492 = vmatprep.subr.mxu0 0.0
      %2493 = vmatpush1.msra.mxu0 0.0
      %2494 = vmatprep.subr.mxu0 0.0
      %2495 = vmatpush1.msra.mxu0 0.0
      %2496 = vmatprep.subr.mxu0 0.0
      %2497 = vmatpush1.msra.mxu0 0.0
      %2498 = vmatprep.subr.mxu0 0.0
      %2499 = vmatpush1.msra.mxu0 0.0
      %2500 = vmatprep.subr.mxu0 0.0
      %2501 = vmatpush1.msra.mxu0 0.0
      %2502 = vmatprep.subr.mxu0 0.0
      %2503 = vmatpush1.msra.mxu0 0.0
      %2504 = vmatprep.subr.mxu0 0.0
      %2505 = vmatpush1.msra.mxu0 0.0
      %2506 = vmatprep.subr.mxu0 0.0
      %2507 = vmatpush1.msra.mxu0 0.0
      %2508 = vmatprep.subr.mxu0 0.0
      %2509 = vmatpush1.msra.mxu0 0.0
      %2510 = vmatprep.subr.mxu0 0.0
      %2511 = vmatpush1.msra.mxu0 0.0
      %2512 = vmatprep.subr.mxu0 0.0
      %2513 = vmatpush1.msra.mxu0 0.0
      %2514 = vmatprep.subr.mxu0 0.0
      %2515 = vmatpush1.msra.mxu0 0.0
      %2516 = vmatprep.subr.mxu0 0.0
      %2517 = vmatpush1.msra.mxu0 0.0
      %2518 = vmatprep.subr.mxu0 0.0
      %2519 = vmatpush1.msra.mxu0 0.0
      %2520 = vmatprep.subr.mxu0 0.0
      %2521 = vmatpush1.msra.mxu0 0.0
      %2522 = vmatprep.subr.mxu0 0.0
      %2523 = vmatpush1.msra.mxu0 0.0
      %2524 = vmatprep.subr.mxu0 0.0
      %2525 = vmatpush1.msra.mxu0 0.0
      %2526 = vmatprep.subr.mxu0 0.0
      %2527 = vmatpush1.msra.mxu0 0.0
      %2528 = vmatprep.subr.mxu0 0.0
      %2529 = vmatpush1.msra.mxu0 0.0
      %2530 = vmatprep.subr.mxu0 0.0
      %2531 = vmatpush1.msra.mxu0 0.0
      %2532 = vmatprep.subr.mxu0 0.0
      %2533 = vmatpush1.msra.mxu0 0.0
      %2534 = vmatprep.subr.mxu0 0.0
      %2535 = vmatpush1.msra.mxu0 0.0
      %2536 = vmatprep.subr.mxu0 0.0
      %2537 = vmatpush1.msra.mxu0 0.0
      %2538 = vmatprep.subr.mxu0 0.0
      %2539 = vmatpush1.msra.mxu0 0.0
      %2540 = vmatprep.subr.mxu0 0.0
      %2541 = vmatpush1.msra.mxu0 0.0
      %2542 = vmatprep.subr.mxu0 0.0
      %2543 = vmatpush1.msra.mxu0 0.0
      %2544 = vmatprep.subr.mxu0 0.0
      %2545 = vmatpush1.msra.mxu0 0.0
      %2546 = vmatprep.subr.mxu0 0.0
      %2547 = vmatpush1.msra.mxu0 0.0
      %2548 = vmatprep.subr.mxu0 0.0
      %2549 = vmatpush1.msra.mxu0 0.0
      %2550 = vmatprep.mubr.f32.mxu0 0.0
      %2551 = vmatmul.mubr.f32.gmra.mrb[0].mxu0 %v2481
      %v2552 = vpop.f32.mrb[0].mxu0
      %v2553 = vadd.f32 0.0, %v2552
      %v2554 = vpop.f32.mrb[0].mxu0
      %2555 = vmatprep.mubr.f32.mxu0 0.0
      %2556 = vmatmul.mubr.f32.gmra.mrb[0].mxu0 %v2484
      %v2557 = vpop.f32.mrb[0].mxu0
      %v2558 = vadd.f32 0.0, %v2557
      %v2559 = vpop.f32.mrb[0].mxu0
      %2560 = vdwg.mxu0
      %2563 = vrot.lane.b32.xlu0 %v2553, 112
      %v2564 = vpop.permute.xlu0 %2563
      %2565 = vrot.lane.b32.xlu0 %v2558, 112
      %v2566 = vpop.permute.xlu0 %2565
      %2569 = vst.msk [vmem:[#allocation2 + $0x8] sm:$0xff] %vm1544, %v2564
      %2570 = vst.msk [vmem:[#allocation2 + $0x28] sm:$0xff] %vm1544, %v2566
      %2571 = vrot.lane.b32.xlu0 %v472, 64
      %v2572 = vpop.permute.xlu0 %2571
      %2574 = vxpose.xlu0.b32.start [1/16] %v2572, 128
      %2575 = vxpose.xlu0.b32.cont [2/16] 0.0, 128
      %2576 = vxpose.xlu0.b32.cont [3/16] 0.0, 128
      %2577 = vxpose.xlu0.b32.cont [4/16] 0.0, 128
      %2578 = vxpose.xlu0.b32.cont [5/16] 0.0, 128
      %2579 = vxpose.xlu0.b32.cont [6/16] 0.0, 128
      %2580 = vxpose.xlu0.b32.cont [7/16] 0.0, 128
      %2581 = vxpose.xlu0.b32.cont [8/16] 0.0, 128
      %2582 = vxpose.xlu0.b32.cont [9/16] 0.0, 128
      %2583 = vxpose.xlu0.b32.cont [10/16] 0.0, 128
      %2584 = vxpose.xlu0.b32.cont [11/16] 0.0, 128
      %2585 = vxpose.xlu0.b32.cont [12/16] 0.0, 128
      %2586 = vxpose.xlu0.b32.cont [13/16] 0.0, 128
      %2587 = vxpose.xlu0.b32.cont [14/16] 0.0, 128
      %2588 = vxpose.xlu0.b32.cont [15/16] 0.0, 128
      %2589 = vxpose.xlu0.b32.end [16/16] 0.0, 128
      %v2590 = vpop.trf.xlu0
      %v2591 = vpop.trf.xlu0
      %v2592 = vpop.trf.xlu0
      %v2593 = vpop.trf.xlu0
      %v2594 = vpop.trf.xlu0
      %v2595 = vpop.trf.xlu0
      %v2596 = vpop.trf.xlu0
      %v2597 = vpop.trf.xlu0
      %v2598 = vpop.trf.xlu0
      %v2599 = vpop.trf.xlu0
      %v2600 = vpop.trf.xlu0
      %v2601 = vpop.trf.xlu0
      %v2602 = vpop.trf.xlu0
      %v2603 = vpop.trf.xlu0
      %v2604 = vpop.trf.xlu0
      %v2605 = vpop.trf.xlu0
      %2606 = vrot.lane.b32.xlu0 %v492, 64
      %v2607 = vpop.permute.xlu0 %2606
      %v2610 = vsel %vm562, %v2590, 0
      %v2613 = vsel %vm562, %v2591, 0
      %2615 = vmatprep.subr.mxu0 0.0
      %2616 = vmatpush1.msra.mxu0 %v2607
      %2617 = vmatprep.subr.mxu0 0.0
      %2618 = vmatpush1.msra.mxu0 0.0
      %2619 = vmatprep.subr.mxu0 0.0
      %2620 = vmatpush1.msra.mxu0 0.0
      %2621 = vmatprep.subr.mxu0 0.0
      %2622 = vmatpush1.msra.mxu0 0.0
      %2623 = vmatprep.subr.mxu0 0.0
      %2624 = vmatpush1.msra.mxu0 0.0
      %2625 = vmatprep.subr.mxu0 0.0
      %2626 = vmatpush1.msra.mxu0 0.0
      %2627 = vmatprep.subr.mxu0 0.0
      %2628 = vmatpush1.msra.mxu0 0.0
      %2629 = vmatprep.subr.mxu0 0.0
      %2630 = vmatpush1.msra.mxu0 0.0
      %2631 = vmatprep.subr.mxu0 0.0
      %2632 = vmatpush1.msra.mxu0 0.0
      %2633 = vmatprep.subr.mxu0 0.0
      %2634 = vmatpush1.msra.mxu0 0.0
      %2635 = vmatprep.subr.mxu0 0.0
      %2636 = vmatpush1.msra.mxu0 0.0
      %2637 = vmatprep.subr.mxu0 0.0
      %2638 = vmatpush1.msra.mxu0 0.0
      %2639 = vmatprep.subr.mxu0 0.0
      %2640 = vmatpush1.msra.mxu0 0.0
      %2641 = vmatprep.subr.mxu0 0.0
      %2642 = vmatpush1.msra.mxu0 0.0
      %2643 = vmatprep.subr.mxu0 0.0
      %2644 = vmatpush1.msra.mxu0 0.0
      %2645 = vmatprep.subr.mxu0 0.0
      %2646 = vmatpush1.msra.mxu0 0.0
      %2647 = vmatprep.subr.mxu0 0.0
      %2648 = vmatpush1.msra.mxu0 0.0
      %2649 = vmatprep.subr.mxu0 0.0
      %2650 = vmatpush1.msra.mxu0 0.0
      %2651 = vmatprep.subr.mxu0 0.0
      %2652 = vmatpush1.msra.mxu0 0.0
      %2653 = vmatprep.subr.mxu0 0.0
      %2654 = vmatpush1.msra.mxu0 0.0
      %2655 = vmatprep.subr.mxu0 0.0
      %2656 = vmatpush1.msra.mxu0 0.0
      %2657 = vmatprep.subr.mxu0 0.0
      %2658 = vmatpush1.msra.mxu0 0.0
      %2659 = vmatprep.subr.mxu0 0.0
      %2660 = vmatpush1.msra.mxu0 0.0
      %2661 = vmatprep.subr.mxu0 0.0
      %2662 = vmatpush1.msra.mxu0 0.0
      %2663 = vmatprep.subr.mxu0 0.0
      %2664 = vmatpush1.msra.mxu0 0.0
      %2665 = vmatprep.subr.mxu0 0.0
      %2666 = vmatpush1.msra.mxu0 0.0
      %2667 = vmatprep.subr.mxu0 0.0
      %2668 = vmatpush1.msra.mxu0 0.0
      %2669 = vmatprep.subr.mxu0 0.0
      %2670 = vmatpush1.msra.mxu0 0.0
      %2671 = vmatprep.subr.mxu0 0.0
      %2672 = vmatpush1.msra.mxu0 0.0
      %2673 = vmatprep.subr.mxu0 0.0
      %2674 = vmatpush1.msra.mxu0 0.0
      %2675 = vmatprep.subr.mxu0 0.0
      %2676 = vmatpush1.msra.mxu0 0.0
      %2677 = vmatprep.subr.mxu0 0.0
      %2678 = vmatpush1.msra.mxu0 0.0
      %2679 = vmatprep.mubr.f32.mxu0 0.0
      %2680 = vmatmul.mubr.f32.gmra.mrb[0].mxu0 %v2610
      %v2681 = vpop.f32.mrb[0].mxu0
      %v2682 = vadd.f32 0.0, %v2681
      %v2683 = vpop.f32.mrb[0].mxu0
      %2684 = vmatprep.mubr.f32.mxu0 0.0
      %2685 = vmatmul.mubr.f32.gmra.mrb[0].mxu0 %v2613
      %v2686 = vpop.f32.mrb[0].mxu0
      %v2687 = vadd.f32 0.0, %v2686
      %v2688 = vpop.f32.mrb[0].mxu0
      %2689 = vdwg.mxu0
      %2690 = vst.msk [vmem:[#allocation2 + $0x10] sm:$0xff] %vm644, %v2682
      %2691 = vst.msk [vmem:[#allocation2 + $0x30] sm:$0xff] %vm644, %v2687
      %2692 = vrot.lane.b32.xlu0 %v477, 64
      %v2693 = vpop.permute.xlu0 %2692
      %2695 = vxpose.xlu0.b32.start [1/16] %v2693, 128
      %2696 = vxpose.xlu0.b32.cont [2/16] 0.0, 128
      %2697 = vxpose.xlu0.b32.cont [3/16] 0.0, 128
      %2698 = vxpose.xlu0.b32.cont [4/16] 0.0, 128
      %2699 = vxpose.xlu0.b32.cont [5/16] 0.0, 128
      %2700 = vxpose.xlu0.b32.cont [6/16] 0.0, 128
      %2701 = vxpose.xlu0.b32.cont [7/16] 0.0, 128
      %2702 = vxpose.xlu0.b32.cont [8/16] 0.0, 128
      %2703 = vxpose.xlu0.b32.cont [9/16] 0.0, 128
      %2704 = vxpose.xlu0.b32.cont [10/16] 0.0, 128
      %2705 = vxpose.xlu0.b32.cont [11/16] 0.0, 128
      %2706 = vxpose.xlu0.b32.cont [12/16] 0.0, 128
      %2707 = vxpose.xlu0.b32.cont [13/16] 0.0, 128
      %2708 = vxpose.xlu0.b32.cont [14/16] 0.0, 128
      %2709 = vxpose.xlu0.b32.cont [15/16] 0.0, 128
      %2710 = vxpose.xlu0.b32.end [16/16] 0.0, 128
      %v2711 = vpop.trf.xlu0
      %v2712 = vpop.trf.xlu0
      %v2713 = vpop.trf.xlu0
      %v2714 = vpop.trf.xlu0
      %v2715 = vpop.trf.xlu0
      %v2716 = vpop.trf.xlu0
      %v2717 = vpop.trf.xlu0
      %v2718 = vpop.trf.xlu0
      %v2719 = vpop.trf.xlu0
      %v2720 = vpop.trf.xlu0
      %v2721 = vpop.trf.xlu0
      %v2722 = vpop.trf.xlu0
      %v2723 = vpop.trf.xlu0
      %v2724 = vpop.trf.xlu0
      %v2725 = vpop.trf.xlu0
      %v2726 = vpop.trf.xlu0
      %2727 = vrot.lane.b32.xlu0 %v497, 64
      %v2728 = vpop.permute.xlu0 %2727
      %v2731 = vsel %vm562, %v2711, 0
      %v2734 = vsel %vm562, %v2712, 0
      %2736 = vmatprep.subr.mxu0 0.0
      %2737 = vmatpush1.msra.mxu0 %v2728
      %2738 = vmatprep.subr.mxu0 0.0
      %2739 = vmatpush1.msra.mxu0 0.0
      %2740 = vmatprep.subr.mxu0 0.0
      %2741 = vmatpush1.msra.mxu0 0.0
      %2742 = vmatprep.subr.mxu0 0.0
      %2743 = vmatpush1.msra.mxu0 0.0
      %2744 = vmatprep.subr.mxu0 0.0
      %2745 = vmatpush1.msra.mxu0 0.0
      %2746 = vmatprep.subr.mxu0 0.0
      %2747 = vmatpush1.msra.mxu0 0.0
      %2748 = vmatprep.subr.mxu0 0.0
      %2749 = vmatpush1.msra.mxu0 0.0
      %2750 = vmatprep.subr.mxu0 0.0
      %2751 = vmatpush1.msra.mxu0 0.0
      %2752 = vmatprep.subr.mxu0 0.0
      %2753 = vmatpush1.msra.mxu0 0.0
      %2754 = vmatprep.subr.mxu0 0.0
      %2755 = vmatpush1.msra.mxu0 0.0
      %2756 = vmatprep.subr.mxu0 0.0
      %2757 = vmatpush1.msra.mxu0 0.0
      %2758 = vmatprep.subr.mxu0 0.0
      %2759 = vmatpush1.msra.mxu0 0.0
      %2760 = vmatprep.subr.mxu0 0.0
      %2761 = vmatpush1.msra.mxu0 0.0
      %2762 = vmatprep.subr.mxu0 0.0
      %2763 = vmatpush1.msra.mxu0 0.0
      %2764 = vmatprep.subr.mxu0 0.0
      %2765 = vmatpush1.msra.mxu0 0.0
      %2766 = vmatprep.subr.mxu0 0.0
      %2767 = vmatpush1.msra.mxu0 0.0
      %2768 = vmatprep.subr.mxu0 0.0
      %2769 = vmatpush1.msra.mxu0 0.0
      %2770 = vmatprep.subr.mxu0 0.0
      %2771 = vmatpush1.msra.mxu0 0.0
      %2772 = vmatprep.subr.mxu0 0.0
      %2773 = vmatpush1.msra.mxu0 0.0
      %2774 = vmatprep.subr.mxu0 0.0
      %2775 = vmatpush1.msra.mxu0 0.0
      %2776 = vmatprep.subr.mxu0 0.0
      %2777 = vmatpush1.msra.mxu0 0.0
      %2778 = vmatprep.subr.mxu0 0.0
      %2779 = vmatpush1.msra.mxu0 0.0
      %2780 = vmatprep.subr.mxu0 0.0
      %2781 = vmatpush1.msra.mxu0 0.0
      %2782 = vmatprep.subr.mxu0 0.0
      %2783 = vmatpush1.msra.mxu0 0.0
      %2784 = vmatprep.subr.mxu0 0.0
      %2785 = vmatpush1.msra.mxu0 0.0
      %2786 = vmatprep.subr.mxu0 0.0
      %2787 = vmatpush1.msra.mxu0 0.0
      %2788 = vmatprep.subr.mxu0 0.0
      %2789 = vmatpush1.msra.mxu0 0.0
      %2790 = vmatprep.subr.mxu0 0.0
      %2791 = vmatpush1.msra.mxu0 0.0
      %2792 = vmatprep.subr.mxu0 0.0
      %2793 = vmatpush1.msra.mxu0 0.0
      %2794 = vmatprep.subr.mxu0 0.0
      %2795 = vmatpush1.msra.mxu0 0.0
      %2796 = vmatprep.subr.mxu0 0.0
      %2797 = vmatpush1.msra.mxu0 0.0
      %2798 = vmatprep.subr.mxu0 0.0
      %2799 = vmatpush1.msra.mxu0 0.0
      %2800 = vmatprep.mubr.f32.mxu0 0.0
      %2801 = vmatmul.mubr.f32.gmra.mrb[0].mxu0 %v2731
      %v2802 = vpop.f32.mrb[0].mxu0
      %v2803 = vadd.f32 0.0, %v2802
      %v2804 = vpop.f32.mrb[0].mxu0
      %2805 = vmatprep.mubr.f32.mxu0 0.0
      %2806 = vmatmul.mubr.f32.gmra.mrb[0].mxu0 %v2734
      %v2807 = vpop.f32.mrb[0].mxu0
      %v2808 = vadd.f32 0.0, %v2807
      %v2809 = vpop.f32.mrb[0].mxu0
      %2810 = vdwg.mxu0
      %2813 = vrot.lane.b32.xlu0 %v2803, 16
      %v2814 = vpop.permute.xlu0 %2813
      %2815 = vrot.lane.b32.xlu0 %v2808, 16
      %v2816 = vpop.permute.xlu0 %2815
      %2819 = vst.msk [vmem:[#allocation2 + $0x10] sm:$0xff] %vm768, %v2814
      %2820 = vst.msk [vmem:[#allocation2 + $0x30] sm:$0xff] %vm768, %v2816
      %2821 = vrot.lane.b32.xlu0 %v482, 64
      %v2822 = vpop.permute.xlu0 %2821
      %2824 = vxpose.xlu0.b32.start [1/16] %v2822, 128
      %2825 = vxpose.xlu0.b32.cont [2/16] 0.0, 128
      %2826 = vxpose.xlu0.b32.cont [3/16] 0.0, 128
      %2827 = vxpose.xlu0.b32.cont [4/16] 0.0, 128
      %2828 = vxpose.xlu0.b32.cont [5/16] 0.0, 128
      %2829 = vxpose.xlu0.b32.cont [6/16] 0.0, 128
      %2830 = vxpose.xlu0.b32.cont [7/16] 0.0, 128
      %2831 = vxpose.xlu0.b32.cont [8/16] 0.0, 128
      %2832 = vxpose.xlu0.b32.cont [9/16] 0.0, 128
      %2833 = vxpose.xlu0.b32.cont [10/16] 0.0, 128
      %2834 = vxpose.xlu0.b32.cont [11/16] 0.0, 128
      %2835 = vxpose.xlu0.b32.cont [12/16] 0.0, 128
      %2836 = vxpose.xlu0.b32.cont [13/16] 0.0, 128
      %2837 = vxpose.xlu0.b32.cont [14/16] 0.0, 128
      %2838 = vxpose.xlu0.b32.cont [15/16] 0.0, 128
      %2839 = vxpose.xlu0.b32.end [16/16] 0.0, 128
      %v2840 = vpop.trf.xlu0
      %v2841 = vpop.trf.xlu0
      %v2842 = vpop.trf.xlu0
      %v2843 = vpop.trf.xlu0
      %v2844 = vpop.trf.xlu0
      %v2845 = vpop.trf.xlu0
      %v2846 = vpop.trf.xlu0
      %v2847 = vpop.trf.xlu0
      %v2848 = vpop.trf.xlu0
      %v2849 = vpop.trf.xlu0
      %v2850 = vpop.trf.xlu0
      %v2851 = vpop.trf.xlu0
      %v2852 = vpop.trf.xlu0
      %v2853 = vpop.trf.xlu0
      %v2854 = vpop.trf.xlu0
      %v2855 = vpop.trf.xlu0
      %2856 = vrot.lane.b32.xlu0 %v502, 64
      %v2857 = vpop.permute.xlu0 %2856
      %v2860 = vsel %vm562, %v2840, 0
      %v2863 = vsel %vm562, %v2841, 0
      %2865 = vmatprep.subr.mxu0 0.0
      %2866 = vmatpush1.msra.mxu0 %v2857
      %2867 = vmatprep.subr.mxu0 0.0
      %2868 = vmatpush1.msra.mxu0 0.0
      %2869 = vmatprep.subr.mxu0 0.0
      %2870 = vmatpush1.msra.mxu0 0.0
      %2871 = vmatprep.subr.mxu0 0.0
      %2872 = vmatpush1.msra.mxu0 0.0
      %2873 = vmatprep.subr.mxu0 0.0
      %2874 = vmatpush1.msra.mxu0 0.0
      %2875 = vmatprep.subr.mxu0 0.0
      %2876 = vmatpush1.msra.mxu0 0.0
      %2877 = vmatprep.subr.mxu0 0.0
      %2878 = vmatpush1.msra.mxu0 0.0
      %2879 = vmatprep.subr.mxu0 0.0
      %2880 = vmatpush1.msra.mxu0 0.0
      %2881 = vmatprep.subr.mxu0 0.0
      %2882 = vmatpush1.msra.mxu0 0.0
      %2883 = vmatprep.subr.mxu0 0.0
      %2884 = vmatpush1.msra.mxu0 0.0
      %2885 = vmatprep.subr.mxu0 0.0
      %2886 = vmatpush1.msra.mxu0 0.0
      %2887 = vmatprep.subr.mxu0 0.0
      %2888 = vmatpush1.msra.mxu0 0.0
      %2889 = vmatprep.subr.mxu0 0.0
      %2890 = vmatpush1.msra.mxu0 0.0
      %2891 = vmatprep.subr.mxu0 0.0
      %2892 = vmatpush1.msra.mxu0 0.0
      %2893 = vmatprep.subr.mxu0 0.0
      %2894 = vmatpush1.msra.mxu0 0.0
      %2895 = vmatprep.subr.mxu0 0.0
      %2896 = vmatpush1.msra.mxu0 0.0
      %2897 = vmatprep.subr.mxu0 0.0
      %2898 = vmatpush1.msra.mxu0 0.0
      %2899 = vmatprep.subr.mxu0 0.0
      %2900 = vmatpush1.msra.mxu0 0.0
      %2901 = vmatprep.subr.mxu0 0.0
      %2902 = vmatpush1.msra.mxu0 0.0
      %2903 = vmatprep.subr.mxu0 0.0
      %2904 = vmatpush1.msra.mxu0 0.0
      %2905 = vmatprep.subr.mxu0 0.0
      %2906 = vmatpush1.msra.mxu0 0.0
      %2907 = vmatprep.subr.mxu0 0.0
      %2908 = vmatpush1.msra.mxu0 0.0
      %2909 = vmatprep.subr.mxu0 0.0
      %2910 = vmatpush1.msra.mxu0 0.0
      %2911 = vmatprep.subr.mxu0 0.0
      %2912 = vmatpush1.msra.mxu0 0.0
      %2913 = vmatprep.subr.mxu0 0.0
      %2914 = vmatpush1.msra.mxu0 0.0
      %2915 = vmatprep.subr.mxu0 0.0
      %2916 = vmatpush1.msra.mxu0 0.0
      %2917 = vmatprep.subr.mxu0 0.0
      %2918 = vmatpush1.msra.mxu0 0.0
      %2919 = vmatprep.subr.mxu0 0.0
      %2920 = vmatpush1.msra.mxu0 0.0
      %2921 = vmatprep.subr.mxu0 0.0
      %2922 = vmatpush1.msra.mxu0 0.0
      %2923 = vmatprep.subr.mxu0 0.0
      %2924 = vmatpush1.msra.mxu0 0.0
      %2925 = vmatprep.subr.mxu0 0.0
      %2926 = vmatpush1.msra.mxu0 0.0
      %2927 = vmatprep.subr.mxu0 0.0
      %2928 = vmatpush1.msra.mxu0 0.0
      %2929 = vmatprep.mubr.f32.mxu0 0.0
      %2930 = vmatmul.mubr.f32.gmra.mrb[0].mxu0 %v2860
      %v2931 = vpop.f32.mrb[0].mxu0
      %v2932 = vadd.f32 0.0, %v2931
      %v2933 = vpop.f32.mrb[0].mxu0
      %2934 = vmatprep.mubr.f32.mxu0 0.0
      %2935 = vmatmul.mubr.f32.gmra.mrb[0].mxu0 %v2863
      %v2936 = vpop.f32.mrb[0].mxu0
      %v2937 = vadd.f32 0.0, %v2936
      %v2938 = vpop.f32.mrb[0].mxu0
      %2939 = vdwg.mxu0
      %2942 = vrot.lane.b32.xlu0 %v2932, 32
      %v2943 = vpop.permute.xlu0 %2942
      %2944 = vrot.lane.b32.xlu0 %v2937, 32
      %v2945 = vpop.permute.xlu0 %2944
      %2948 = vst.msk [vmem:[#allocation2 + $0x10] sm:$0xff] %vm892, %v2943
      %2949 = vst.msk [vmem:[#allocation2 + $0x30] sm:$0xff] %vm892, %v2945
      %2950 = vrot.lane.b32.xlu0 %v487, 64
      %v2951 = vpop.permute.xlu0 %2950
      %2953 = vxpose.xlu0.b32.start [1/16] %v2951, 128
      %2954 = vxpose.xlu0.b32.cont [2/16] 0.0, 128
      %2955 = vxpose.xlu0.b32.cont [3/16] 0.0, 128
      %2956 = vxpose.xlu0.b32.cont [4/16] 0.0, 128
      %2957 = vxpose.xlu0.b32.cont [5/16] 0.0, 128
      %2958 = vxpose.xlu0.b32.cont [6/16] 0.0, 128
      %2959 = vxpose.xlu0.b32.cont [7/16] 0.0, 128
      %2960 = vxpose.xlu0.b32.cont [8/16] 0.0, 128
      %2961 = vxpose.xlu0.b32.cont [9/16] 0.0, 128
      %2962 = vxpose.xlu0.b32.cont [10/16] 0.0, 128
      %2963 = vxpose.xlu0.b32.cont [11/16] 0.0, 128
      %2964 = vxpose.xlu0.b32.cont [12/16] 0.0, 128
      %2965 = vxpose.xlu0.b32.cont [13/16] 0.0, 128
      %2966 = vxpose.xlu0.b32.cont [14/16] 0.0, 128
      %2967 = vxpose.xlu0.b32.cont [15/16] 0.0, 128
      %2968 = vxpose.xlu0.b32.end [16/16] 0.0, 128
      %v2969 = vpop.trf.xlu0
      %v2970 = vpop.trf.xlu0
      %v2971 = vpop.trf.xlu0
      %v2972 = vpop.trf.xlu0
      %v2973 = vpop.trf.xlu0
      %v2974 = vpop.trf.xlu0
      %v2975 = vpop.trf.xlu0
      %v2976 = vpop.trf.xlu0
      %v2977 = vpop.trf.xlu0
      %v2978 = vpop.trf.xlu0
      %v2979 = vpop.trf.xlu0
      %v2980 = vpop.trf.xlu0
      %v2981 = vpop.trf.xlu0
      %v2982 = vpop.trf.xlu0
      %v2983 = vpop.trf.xlu0
      %v2984 = vpop.trf.xlu0
      %2985 = vrot.lane.b32.xlu0 %v507, 64
      %v2986 = vpop.permute.xlu0 %2985
      %v2989 = vsel %vm562, %v2969, 0
      %v2992 = vsel %vm562, %v2970, 0
      %2994 = vmatprep.subr.mxu0 0.0
      %2995 = vmatpush1.msra.mxu0 %v2986
      %2996 = vmatprep.subr.mxu0 0.0
      %2997 = vmatpush1.msra.mxu0 0.0
      %2998 = vmatprep.subr.mxu0 0.0
      %2999 = vmatpush1.msra.mxu0 0.0
      %3000 = vmatprep.subr.mxu0 0.0
      %3001 = vmatpush1.msra.mxu0 0.0
      %3002 = vmatprep.subr.mxu0 0.0
      %3003 = vmatpush1.msra.mxu0 0.0
      %3004 = vmatprep.subr.mxu0 0.0
      %3005 = vmatpush1.msra.mxu0 0.0
      %3006 = vmatprep.subr.mxu0 0.0
      %3007 = vmatpush1.msra.mxu0 0.0
      %3008 = vmatprep.subr.mxu0 0.0
      %3009 = vmatpush1.msra.mxu0 0.0
      %3010 = vmatprep.subr.mxu0 0.0
      %3011 = vmatpush1.msra.mxu0 0.0
      %3012 = vmatprep.subr.mxu0 0.0
      %3013 = vmatpush1.msra.mxu0 0.0
      %3014 = vmatprep.subr.mxu0 0.0
      %3015 = vmatpush1.msra.mxu0 0.0
      %3016 = vmatprep.subr.mxu0 0.0
      %3017 = vmatpush1.msra.mxu0 0.0
      %3018 = vmatprep.subr.mxu0 0.0
      %3019 = vmatpush1.msra.mxu0 0.0
      %3020 = vmatprep.subr.mxu0 0.0
      %3021 = vmatpush1.msra.mxu0 0.0
      %3022 = vmatprep.subr.mxu0 0.0
      %3023 = vmatpush1.msra.mxu0 0.0
      %3024 = vmatprep.subr.mxu0 0.0
      %3025 = vmatpush1.msra.mxu0 0.0
      %3026 = vmatprep.subr.mxu0 0.0
      %3027 = vmatpush1.msra.mxu0 0.0
      %3028 = vmatprep.subr.mxu0 0.0
      %3029 = vmatpush1.msra.mxu0 0.0
      %3030 = vmatprep.subr.mxu0 0.0
      %3031 = vmatpush1.msra.mxu0 0.0
      %3032 = vmatprep.subr.mxu0 0.0
      %3033 = vmatpush1.msra.mxu0 0.0
      %3034 = vmatprep.subr.mxu0 0.0
      %3035 = vmatpush1.msra.mxu0 0.0
      %3036 = vmatprep.subr.mxu0 0.0
      %3037 = vmatpush1.msra.mxu0 0.0
      %3038 = vmatprep.subr.mxu0 0.0
      %3039 = vmatpush1.msra.mxu0 0.0
      %3040 = vmatprep.subr.mxu0 0.0
      %3041 = vmatpush1.msra.mxu0 0.0
      %3042 = vmatprep.subr.mxu0 0.0
      %3043 = vmatpush1.msra.mxu0 0.0
      %3044 = vmatprep.subr.mxu0 0.0
      %3045 = vmatpush1.msra.mxu0 0.0
      %3046 = vmatprep.subr.mxu0 0.0
      %3047 = vmatpush1.msra.mxu0 0.0
      %3048 = vmatprep.subr.mxu0 0.0
      %3049 = vmatpush1.msra.mxu0 0.0
      %3050 = vmatprep.subr.mxu0 0.0
      %3051 = vmatpush1.msra.mxu0 0.0
      %3052 = vmatprep.subr.mxu0 0.0
      %3053 = vmatpush1.msra.mxu0 0.0
      %3054 = vmatprep.subr.mxu0 0.0
      %3055 = vmatpush1.msra.mxu0 0.0
      %3056 = vmatprep.subr.mxu0 0.0
      %3057 = vmatpush1.msra.mxu0 0.0
      %3058 = vmatprep.mubr.f32.mxu0 0.0
      %3059 = vmatmul.mubr.f32.gmra.mrb[0].mxu0 %v2989
      %v3060 = vpop.f32.mrb[0].mxu0
      %v3061 = vadd.f32 0.0, %v3060
      %v3062 = vpop.f32.mrb[0].mxu0
      %3063 = vmatprep.mubr.f32.mxu0 0.0
      %3064 = vmatmul.mubr.f32.gmra.mrb[0].mxu0 %v2992
      %v3065 = vpop.f32.mrb[0].mxu0
      %v3066 = vadd.f32 0.0, %v3065
      %v3067 = vpop.f32.mrb[0].mxu0
      %3068 = vdwg.mxu0
      %3071 = vrot.lane.b32.xlu0 %v3061, 48
      %v3072 = vpop.permute.xlu0 %3071
      %3073 = vrot.lane.b32.xlu0 %v3066, 48
      %v3074 = vpop.permute.xlu0 %3073
      %3077 = vst.msk [vmem:[#allocation2 + $0x10] sm:$0xff] %vm1016, %v3072
      %3078 = vst.msk [vmem:[#allocation2 + $0x30] sm:$0xff] %vm1016, %v3074
      %3079 = vrot.lane.b32.xlu0 %v472, 48
      %v3080 = vpop.permute.xlu0 %3079
      %3082 = vxpose.xlu0.b32.start [1/16] %v3080, 128
      %3083 = vxpose.xlu0.b32.cont [2/16] 0.0, 128
      %3084 = vxpose.xlu0.b32.cont [3/16] 0.0, 128
      %3085 = vxpose.xlu0.b32.cont [4/16] 0.0, 128
      %3086 = vxpose.xlu0.b32.cont [5/16] 0.0, 128
      %3087 = vxpose.xlu0.b32.cont [6/16] 0.0, 128
      %3088 = vxpose.xlu0.b32.cont [7/16] 0.0, 128
      %3089 = vxpose.xlu0.b32.cont [8/16] 0.0, 128
      %3090 = vxpose.xlu0.b32.cont [9/16] 0.0, 128
      %3091 = vxpose.xlu0.b32.cont [10/16] 0.0, 128
      %3092 = vxpose.xlu0.b32.cont [11/16] 0.0, 128
      %3093 = vxpose.xlu0.b32.cont [12/16] 0.0, 128
      %3094 = vxpose.xlu0.b32.cont [13/16] 0.0, 128
      %3095 = vxpose.xlu0.b32.cont [14/16] 0.0, 128
      %3096 = vxpose.xlu0.b32.cont [15/16] 0.0, 128
      %3097 = vxpose.xlu0.b32.end [16/16] 0.0, 128
      %v3098 = vpop.trf.xlu0
      %v3099 = vpop.trf.xlu0
      %v3100 = vpop.trf.xlu0
      %v3101 = vpop.trf.xlu0
      %v3102 = vpop.trf.xlu0
      %v3103 = vpop.trf.xlu0
      %v3104 = vpop.trf.xlu0
      %v3105 = vpop.trf.xlu0
      %v3106 = vpop.trf.xlu0
      %v3107 = vpop.trf.xlu0
      %v3108 = vpop.trf.xlu0
      %v3109 = vpop.trf.xlu0
      %v3110 = vpop.trf.xlu0
      %v3111 = vpop.trf.xlu0
      %v3112 = vpop.trf.xlu0
      %v3113 = vpop.trf.xlu0
      %3114 = vrot.lane.b32.xlu0 %v492, 48
      %v3115 = vpop.permute.xlu0 %3114
      %v3118 = vsel %vm562, %v3098, 0
      %v3121 = vsel %vm562, %v3099, 0
      %3123 = vmatprep.subr.mxu0 0.0
      %3124 = vmatpush1.msra.mxu0 %v3115
      %3125 = vmatprep.subr.mxu0 0.0
      %3126 = vmatpush1.msra.mxu0 0.0
      %3127 = vmatprep.subr.mxu0 0.0
      %3128 = vmatpush1.msra.mxu0 0.0
      %3129 = vmatprep.subr.mxu0 0.0
      %3130 = vmatpush1.msra.mxu0 0.0
      %3131 = vmatprep.subr.mxu0 0.0
      %3132 = vmatpush1.msra.mxu0 0.0
      %3133 = vmatprep.subr.mxu0 0.0
      %3134 = vmatpush1.msra.mxu0 0.0
      %3135 = vmatprep.subr.mxu0 0.0
      %3136 = vmatpush1.msra.mxu0 0.0
      %3137 = vmatprep.subr.mxu0 0.0
      %3138 = vmatpush1.msra.mxu0 0.0
      %3139 = vmatprep.subr.mxu0 0.0
      %3140 = vmatpush1.msra.mxu0 0.0
      %3141 = vmatprep.subr.mxu0 0.0
      %3142 = vmatpush1.msra.mxu0 0.0
      %3143 = vmatprep.subr.mxu0 0.0
      %3144 = vmatpush1.msra.mxu0 0.0
      %3145 = vmatprep.subr.mxu0 0.0
      %3146 = vmatpush1.msra.mxu0 0.0
      %3147 = vmatprep.subr.mxu0 0.0
      %3148 = vmatpush1.msra.mxu0 0.0
      %3149 = vmatprep.subr.mxu0 0.0
      %3150 = vmatpush1.msra.mxu0 0.0
      %3151 = vmatprep.subr.mxu0 0.0
      %3152 = vmatpush1.msra.mxu0 0.0
      %3153 = vmatprep.subr.mxu0 0.0
      %3154 = vmatpush1.msra.mxu0 0.0
      %3155 = vmatprep.subr.mxu0 0.0
      %3156 = vmatpush1.msra.mxu0 0.0
      %3157 = vmatprep.subr.mxu0 0.0
      %3158 = vmatpush1.msra.mxu0 0.0
      %3159 = vmatprep.subr.mxu0 0.0
      %3160 = vmatpush1.msra.mxu0 0.0
      %3161 = vmatprep.subr.mxu0 0.0
      %3162 = vmatpush1.msra.mxu0 0.0
      %3163 = vmatprep.subr.mxu0 0.0
      %3164 = vmatpush1.msra.mxu0 0.0
      %3165 = vmatprep.subr.mxu0 0.0
      %3166 = vmatpush1.msra.mxu0 0.0
      %3167 = vmatprep.subr.mxu0 0.0
      %3168 = vmatpush1.msra.mxu0 0.0
      %3169 = vmatprep.subr.mxu0 0.0
      %3170 = vmatpush1.msra.mxu0 0.0
      %3171 = vmatprep.subr.mxu0 0.0
      %3172 = vmatpush1.msra.mxu0 0.0
      %3173 = vmatprep.subr.mxu0 0.0
      %3174 = vmatpush1.msra.mxu0 0.0
      %3175 = vmatprep.subr.mxu0 0.0
      %3176 = vmatpush1.msra.mxu0 0.0
      %3177 = vmatprep.subr.mxu0 0.0
      %3178 = vmatpush1.msra.mxu0 0.0
      %3179 = vmatprep.subr.mxu0 0.0
      %3180 = vmatpush1.msra.mxu0 0.0
      %3181 = vmatprep.subr.mxu0 0.0
      %3182 = vmatpush1.msra.mxu0 0.0
      %3183 = vmatprep.subr.mxu0 0.0
      %3184 = vmatpush1.msra.mxu0 0.0
      %3185 = vmatprep.subr.mxu0 0.0
      %3186 = vmatpush1.msra.mxu0 0.0
      %3187 = vmatprep.mubr.f32.mxu0 0.0
      %3188 = vmatmul.mubr.f32.gmra.mrb[0].mxu0 %v3118
      %v3189 = vpop.f32.mrb[0].mxu0
      %v3190 = vadd.f32 0.0, %v3189
      %v3191 = vpop.f32.mrb[0].mxu0
      %3192 = vmatprep.mubr.f32.mxu0 0.0
      %3193 = vmatmul.mubr.f32.gmra.mrb[0].mxu0 %v3121
      %v3194 = vpop.f32.mrb[0].mxu0
      %v3195 = vadd.f32 0.0, %v3194
      %v3196 = vpop.f32.mrb[0].mxu0
      %3197 = vdwg.mxu0
      %3200 = vrot.lane.b32.xlu0 %v3190, 64
      %v3201 = vpop.permute.xlu0 %3200
      %3202 = vrot.lane.b32.xlu0 %v3195, 64
      %v3203 = vpop.permute.xlu0 %3202
      %3206 = vst.msk [vmem:[#allocation2 + $0x10] sm:$0xff] %vm1148, %v3201
      %3207 = vst.msk [vmem:[#allocation2 + $0x30] sm:$0xff] %vm1148, %v3203
      %3208 = vrot.lane.b32.xlu0 %v477, 48
      %v3209 = vpop.permute.xlu0 %3208
      %3211 = vxpose.xlu0.b32.start [1/16] %v3209, 128
      %3212 = vxpose.xlu0.b32.cont [2/16] 0.0, 128
      %3213 = vxpose.xlu0.b32.cont [3/16] 0.0, 128
      %3214 = vxpose.xlu0.b32.cont [4/16] 0.0, 128
      %3215 = vxpose.xlu0.b32.cont [5/16] 0.0, 128
      %3216 = vxpose.xlu0.b32.cont [6/16] 0.0, 128
      %3217 = vxpose.xlu0.b32.cont [7/16] 0.0, 128
      %3218 = vxpose.xlu0.b32.cont [8/16] 0.0, 128
      %3219 = vxpose.xlu0.b32.cont [9/16] 0.0, 128
      %3220 = vxpose.xlu0.b32.cont [10/16] 0.0, 128
      %3221 = vxpose.xlu0.b32.cont [11/16] 0.0, 128
      %3222 = vxpose.xlu0.b32.cont [12/16] 0.0, 128
      %3223 = vxpose.xlu0.b32.cont [13/16] 0.0, 128
      %3224 = vxpose.xlu0.b32.cont [14/16] 0.0, 128
      %3225 = vxpose.xlu0.b32.cont [15/16] 0.0, 128
      %3226 = vxpose.xlu0.b32.end [16/16] 0.0, 128
      %v3227 = vpop.trf.xlu0
      %v3228 = vpop.trf.xlu0
      %v3229 = vpop.trf.xlu0
      %v3230 = vpop.trf.xlu0
      %v3231 = vpop.trf.xlu0
      %v3232 = vpop.trf.xlu0
      %v3233 = vpop.trf.xlu0
      %v3234 = vpop.trf.xlu0
      %v3235 = vpop.trf.xlu0
      %v3236 = vpop.trf.xlu0
      %v3237 = vpop.trf.xlu0
      %v3238 = vpop.trf.xlu0
      %v3239 = vpop.trf.xlu0
      %v3240 = vpop.trf.xlu0
      %v3241 = vpop.trf.xlu0
      %v3242 = vpop.trf.xlu0
      %3243 = vrot.lane.b32.xlu0 %v497, 48
      %v3244 = vpop.permute.xlu0 %3243
      %v3247 = vsel %vm562, %v3227, 0
      %v3250 = vsel %vm562, %v3228, 0
      %3252 = vmatprep.subr.mxu0 0.0
      %3253 = vmatpush1.msra.mxu0 %v3244
      %3254 = vmatprep.subr.mxu0 0.0
      %3255 = vmatpush1.msra.mxu0 0.0
      %3256 = vmatprep.subr.mxu0 0.0
      %3257 = vmatpush1.msra.mxu0 0.0
      %3258 = vmatprep.subr.mxu0 0.0
      %3259 = vmatpush1.msra.mxu0 0.0
      %3260 = vmatprep.subr.mxu0 0.0
      %3261 = vmatpush1.msra.mxu0 0.0
      %3262 = vmatprep.subr.mxu0 0.0
      %3263 = vmatpush1.msra.mxu0 0.0
      %3264 = vmatprep.subr.mxu0 0.0
      %3265 = vmatpush1.msra.mxu0 0.0
      %3266 = vmatprep.subr.mxu0 0.0
      %3267 = vmatpush1.msra.mxu0 0.0
      %3268 = vmatprep.subr.mxu0 0.0
      %3269 = vmatpush1.msra.mxu0 0.0
      %3270 = vmatprep.subr.mxu0 0.0
      %3271 = vmatpush1.msra.mxu0 0.0
      %3272 = vmatprep.subr.mxu0 0.0
      %3273 = vmatpush1.msra.mxu0 0.0
      %3274 = vmatprep.subr.mxu0 0.0
      %3275 = vmatpush1.msra.mxu0 0.0
      %3276 = vmatprep.subr.mxu0 0.0
      %3277 = vmatpush1.msra.mxu0 0.0
      %3278 = vmatprep.subr.mxu0 0.0
      %3279 = vmatpush1.msra.mxu0 0.0
      %3280 = vmatprep.subr.mxu0 0.0
      %3281 = vmatpush1.msra.mxu0 0.0
      %3282 = vmatprep.subr.mxu0 0.0
      %3283 = vmatpush1.msra.mxu0 0.0
      %3284 = vmatprep.subr.mxu0 0.0
      %3285 = vmatpush1.msra.mxu0 0.0
      %3286 = vmatprep.subr.mxu0 0.0
      %3287 = vmatpush1.msra.mxu0 0.0
      %3288 = vmatprep.subr.mxu0 0.0
      %3289 = vmatpush1.msra.mxu0 0.0
      %3290 = vmatprep.subr.mxu0 0.0
      %3291 = vmatpush1.msra.mxu0 0.0
      %3292 = vmatprep.subr.mxu0 0.0
      %3293 = vmatpush1.msra.mxu0 0.0
      %3294 = vmatprep.subr.mxu0 0.0
      %3295 = vmatpush1.msra.mxu0 0.0
      %3296 = vmatprep.subr.mxu0 0.0
      %3297 = vmatpush1.msra.mxu0 0.0
      %3298 = vmatprep.subr.mxu0 0.0
      %3299 = vmatpush1.msra.mxu0 0.0
      %3300 = vmatprep.subr.mxu0 0.0
      %3301 = vmatpush1.msra.mxu0 0.0
      %3302 = vmatprep.subr.mxu0 0.0
      %3303 = vmatpush1.msra.mxu0 0.0
      %3304 = vmatprep.subr.mxu0 0.0
      %3305 = vmatpush1.msra.mxu0 0.0
      %3306 = vmatprep.subr.mxu0 0.0
      %3307 = vmatpush1.msra.mxu0 0.0
      %3308 = vmatprep.subr.mxu0 0.0
      %3309 = vmatpush1.msra.mxu0 0.0
      %3310 = vmatprep.subr.mxu0 0.0
      %3311 = vmatpush1.msra.mxu0 0.0
      %3312 = vmatprep.subr.mxu0 0.0
      %3313 = vmatpush1.msra.mxu0 0.0
      %3314 = vmatprep.subr.mxu0 0.0
      %3315 = vmatpush1.msra.mxu0 0.0
      %3316 = vmatprep.mubr.f32.mxu0 0.0
      %3317 = vmatmul.mubr.f32.gmra.mrb[0].mxu0 %v3247
      %v3318 = vpop.f32.mrb[0].mxu0
      %v3319 = vadd.f32 0.0, %v3318
      %v3320 = vpop.f32.mrb[0].mxu0
      %3321 = vmatprep.mubr.f32.mxu0 0.0
      %3322 = vmatmul.mubr.f32.gmra.mrb[0].mxu0 %v3250
      %v3323 = vpop.f32.mrb[0].mxu0
      %v3324 = vadd.f32 0.0, %v3323
      %v3325 = vpop.f32.mrb[0].mxu0
      %3326 = vdwg.mxu0
      %3329 = vrot.lane.b32.xlu0 %v3319, 80
      %v3330 = vpop.permute.xlu0 %3329
      %3331 = vrot.lane.b32.xlu0 %v3324, 80
      %v3332 = vpop.permute.xlu0 %3331
      %3335 = vst.msk [vmem:[#allocation2 + $0x10] sm:$0xff] %vm1280, %v3330
      %3336 = vst.msk [vmem:[#allocation2 + $0x30] sm:$0xff] %vm1280, %v3332
      %3337 = vrot.lane.b32.xlu0 %v482, 48
      %v3338 = vpop.permute.xlu0 %3337
      %3340 = vxpose.xlu0.b32.start [1/16] %v3338, 128
      %3341 = vxpose.xlu0.b32.cont [2/16] 0.0, 128
      %3342 = vxpose.xlu0.b32.cont [3/16] 0.0, 128
      %3343 = vxpose.xlu0.b32.cont [4/16] 0.0, 128
      %3344 = vxpose.xlu0.b32.cont [5/16] 0.0, 128
      %3345 = vxpose.xlu0.b32.cont [6/16] 0.0, 128
      %3346 = vxpose.xlu0.b32.cont [7/16] 0.0, 128
      %3347 = vxpose.xlu0.b32.cont [8/16] 0.0, 128
      %3348 = vxpose.xlu0.b32.cont [9/16] 0.0, 128
      %3349 = vxpose.xlu0.b32.cont [10/16] 0.0, 128
      %3350 = vxpose.xlu0.b32.cont [11/16] 0.0, 128
      %3351 = vxpose.xlu0.b32.cont [12/16] 0.0, 128
      %3352 = vxpose.xlu0.b32.cont [13/16] 0.0, 128
      %3353 = vxpose.xlu0.b32.cont [14/16] 0.0, 128
      %3354 = vxpose.xlu0.b32.cont [15/16] 0.0, 128
      %3355 = vxpose.xlu0.b32.end [16/16] 0.0, 128
      %v3356 = vpop.trf.xlu0
      %v3357 = vpop.trf.xlu0
      %v3358 = vpop.trf.xlu0
      %v3359 = vpop.trf.xlu0
      %v3360 = vpop.trf.xlu0
      %v3361 = vpop.trf.xlu0
      %v3362 = vpop.trf.xlu0
      %v3363 = vpop.trf.xlu0
      %v3364 = vpop.trf.xlu0
      %v3365 = vpop.trf.xlu0
      %v3366 = vpop.trf.xlu0
      %v3367 = vpop.trf.xlu0
      %v3368 = vpop.trf.xlu0
      %v3369 = vpop.trf.xlu0
      %v3370 = vpop.trf.xlu0
      %v3371 = vpop.trf.xlu0
      %3372 = vrot.lane.b32.xlu0 %v502, 48
      %v3373 = vpop.permute.xlu0 %3372
      %v3376 = vsel %vm562, %v3356, 0
      %v3379 = vsel %vm562, %v3357, 0
      %3381 = vmatprep.subr.mxu0 0.0
      %3382 = vmatpush1.msra.mxu0 %v3373
      %3383 = vmatprep.subr.mxu0 0.0
      %3384 = vmatpush1.msra.mxu0 0.0
      %3385 = vmatprep.subr.mxu0 0.0
      %3386 = vmatpush1.msra.mxu0 0.0
      %3387 = vmatprep.subr.mxu0 0.0
      %3388 = vmatpush1.msra.mxu0 0.0
      %3389 = vmatprep.subr.mxu0 0.0
      %3390 = vmatpush1.msra.mxu0 0.0
      %3391 = vmatprep.subr.mxu0 0.0
      %3392 = vmatpush1.msra.mxu0 0.0
      %3393 = vmatprep.subr.mxu0 0.0
      %3394 = vmatpush1.msra.mxu0 0.0
      %3395 = vmatprep.subr.mxu0 0.0
      %3396 = vmatpush1.msra.mxu0 0.0
      %3397 = vmatprep.subr.mxu0 0.0
      %3398 = vmatpush1.msra.mxu0 0.0
      %3399 = vmatprep.subr.mxu0 0.0
      %3400 = vmatpush1.msra.mxu0 0.0
      %3401 = vmatprep.subr.mxu0 0.0
      %3402 = vmatpush1.msra.mxu0 0.0
      %3403 = vmatprep.subr.mxu0 0.0
      %3404 = vmatpush1.msra.mxu0 0.0
      %3405 = vmatprep.subr.mxu0 0.0
      %3406 = vmatpush1.msra.mxu0 0.0
      %3407 = vmatprep.subr.mxu0 0.0
      %3408 = vmatpush1.msra.mxu0 0.0
      %3409 = vmatprep.subr.mxu0 0.0
      %3410 = vmatpush1.msra.mxu0 0.0
      %3411 = vmatprep.subr.mxu0 0.0
      %3412 = vmatpush1.msra.mxu0 0.0
      %3413 = vmatprep.subr.mxu0 0.0
      %3414 = vmatpush1.msra.mxu0 0.0
      %3415 = vmatprep.subr.mxu0 0.0
      %3416 = vmatpush1.msra.mxu0 0.0
      %3417 = vmatprep.subr.mxu0 0.0
      %3418 = vmatpush1.msra.mxu0 0.0
      %3419 = vmatprep.subr.mxu0 0.0
      %3420 = vmatpush1.msra.mxu0 0.0
      %3421 = vmatprep.subr.mxu0 0.0
      %3422 = vmatpush1.msra.mxu0 0.0
      %3423 = vmatprep.subr.mxu0 0.0
      %3424 = vmatpush1.msra.mxu0 0.0
      %3425 = vmatprep.subr.mxu0 0.0
      %3426 = vmatpush1.msra.mxu0 0.0
      %3427 = vmatprep.subr.mxu0 0.0
      %3428 = vmatpush1.msra.mxu0 0.0
      %3429 = vmatprep.subr.mxu0 0.0
      %3430 = vmatpush1.msra.mxu0 0.0
      %3431 = vmatprep.subr.mxu0 0.0
      %3432 = vmatpush1.msra.mxu0 0.0
      %3433 = vmatprep.subr.mxu0 0.0
      %3434 = vmatpush1.msra.mxu0 0.0
      %3435 = vmatprep.subr.mxu0 0.0
      %3436 = vmatpush1.msra.mxu0 0.0
      %3437 = vmatprep.subr.mxu0 0.0
      %3438 = vmatpush1.msra.mxu0 0.0
      %3439 = vmatprep.subr.mxu0 0.0
      %3440 = vmatpush1.msra.mxu0 0.0
      %3441 = vmatprep.subr.mxu0 0.0
      %3442 = vmatpush1.msra.mxu0 0.0
      %3443 = vmatprep.subr.mxu0 0.0
      %3444 = vmatpush1.msra.mxu0 0.0
      %3445 = vmatprep.mubr.f32.mxu0 0.0
      %3446 = vmatmul.mubr.f32.gmra.mrb[0].mxu0 %v3376
      %v3447 = vpop.f32.mrb[0].mxu0
      %v3448 = vadd.f32 0.0, %v3447
      %v3449 = vpop.f32.mrb[0].mxu0
      %3450 = vmatprep.mubr.f32.mxu0 0.0
      %3451 = vmatmul.mubr.f32.gmra.mrb[0].mxu0 %v3379
      %v3452 = vpop.f32.mrb[0].mxu0
      %v3453 = vadd.f32 0.0, %v3452
      %v3454 = vpop.f32.mrb[0].mxu0
      %3455 = vdwg.mxu0
      %3458 = vrot.lane.b32.xlu0 %v3448, 96
      %v3459 = vpop.permute.xlu0 %3458
      %3460 = vrot.lane.b32.xlu0 %v3453, 96
      %v3461 = vpop.permute.xlu0 %3460
      %3464 = vst.msk [vmem:[#allocation2 + $0x10] sm:$0xff] %vm1412, %v3459
      %3465 = vst.msk [vmem:[#allocation2 + $0x30] sm:$0xff] %vm1412, %v3461
      %3466 = vrot.lane.b32.xlu0 %v487, 48
      %v3467 = vpop.permute.xlu0 %3466
      %3469 = vxpose.xlu0.b32.start [1/16] %v3467, 128
      %3470 = vxpose.xlu0.b32.cont [2/16] 0.0, 128
      %3471 = vxpose.xlu0.b32.cont [3/16] 0.0, 128
      %3472 = vxpose.xlu0.b32.cont [4/16] 0.0, 128
      %3473 = vxpose.xlu0.b32.cont [5/16] 0.0, 128
      %3474 = vxpose.xlu0.b32.cont [6/16] 0.0, 128
      %3475 = vxpose.xlu0.b32.cont [7/16] 0.0, 128
      %3476 = vxpose.xlu0.b32.cont [8/16] 0.0, 128
      %3477 = vxpose.xlu0.b32.cont [9/16] 0.0, 128
      %3478 = vxpose.xlu0.b32.cont [10/16] 0.0, 128
      %3479 = vxpose.xlu0.b32.cont [11/16] 0.0, 128
      %3480 = vxpose.xlu0.b32.cont [12/16] 0.0, 128
      %3481 = vxpose.xlu0.b32.cont [13/16] 0.0, 128
      %3482 = vxpose.xlu0.b32.cont [14/16] 0.0, 128
      %3483 = vxpose.xlu0.b32.cont [15/16] 0.0, 128
      %3484 = vxpose.xlu0.b32.end [16/16] 0.0, 128
      %v3485 = vpop.trf.xlu0
      %v3486 = vpop.trf.xlu0
      %v3487 = vpop.trf.xlu0
      %v3488 = vpop.trf.xlu0
      %v3489 = vpop.trf.xlu0
      %v3490 = vpop.trf.xlu0
      %v3491 = vpop.trf.xlu0
      %v3492 = vpop.trf.xlu0
      %v3493 = vpop.trf.xlu0
      %v3494 = vpop.trf.xlu0
      %v3495 = vpop.trf.xlu0
      %v3496 = vpop.trf.xlu0
      %v3497 = vpop.trf.xlu0
      %v3498 = vpop.trf.xlu0
      %v3499 = vpop.trf.xlu0
      %v3500 = vpop.trf.xlu0
      %3501 = vrot.lane.b32.xlu0 %v507, 48
      %v3502 = vpop.permute.xlu0 %3501
      %v3505 = vsel %vm562, %v3485, 0
      %v3508 = vsel %vm562, %v3486, 0
      %3510 = vmatprep.subr.mxu0 0.0
      %3511 = vmatpush1.msra.mxu0 %v3502
      %3512 = vmatprep.subr.mxu0 0.0
      %3513 = vmatpush1.msra.mxu0 0.0
      %3514 = vmatprep.subr.mxu0 0.0
      %3515 = vmatpush1.msra.mxu0 0.0
      %3516 = vmatprep.subr.mxu0 0.0
      %3517 = vmatpush1.msra.mxu0 0.0
      %3518 = vmatprep.subr.mxu0 0.0
      %3519 = vmatpush1.msra.mxu0 0.0
      %3520 = vmatprep.subr.mxu0 0.0
      %3521 = vmatpush1.msra.mxu0 0.0
      %3522 = vmatprep.subr.mxu0 0.0
      %3523 = vmatpush1.msra.mxu0 0.0
      %3524 = vmatprep.subr.mxu0 0.0
      %3525 = vmatpush1.msra.mxu0 0.0
      %3526 = vmatprep.subr.mxu0 0.0
      %3527 = vmatpush1.msra.mxu0 0.0
      %3528 = vmatprep.subr.mxu0 0.0
      %3529 = vmatpush1.msra.mxu0 0.0
      %3530 = vmatprep.subr.mxu0 0.0
      %3531 = vmatpush1.msra.mxu0 0.0
      %3532 = vmatprep.subr.mxu0 0.0
      %3533 = vmatpush1.msra.mxu0 0.0
      %3534 = vmatprep.subr.mxu0 0.0
      %3535 = vmatpush1.msra.mxu0 0.0
      %3536 = vmatprep.subr.mxu0 0.0
      %3537 = vmatpush1.msra.mxu0 0.0
      %3538 = vmatprep.subr.mxu0 0.0
      %3539 = vmatpush1.msra.mxu0 0.0
      %3540 = vmatprep.subr.mxu0 0.0
      %3541 = vmatpush1.msra.mxu0 0.0
      %3542 = vmatprep.subr.mxu0 0.0
      %3543 = vmatpush1.msra.mxu0 0.0
      %3544 = vmatprep.subr.mxu0 0.0
      %3545 = vmatpush1.msra.mxu0 0.0
      %3546 = vmatprep.subr.mxu0 0.0
      %3547 = vmatpush1.msra.mxu0 0.0
      %3548 = vmatprep.subr.mxu0 0.0
      %3549 = vmatpush1.msra.mxu0 0.0
      %3550 = vmatprep.subr.mxu0 0.0
      %3551 = vmatpush1.msra.mxu0 0.0
      %3552 = vmatprep.subr.mxu0 0.0
      %3553 = vmatpush1.msra.mxu0 0.0
      %3554 = vmatprep.subr.mxu0 0.0
      %3555 = vmatpush1.msra.mxu0 0.0
      %3556 = vmatprep.subr.mxu0 0.0
      %3557 = vmatpush1.msra.mxu0 0.0
      %3558 = vmatprep.subr.mxu0 0.0
      %3559 = vmatpush1.msra.mxu0 0.0
      %3560 = vmatprep.subr.mxu0 0.0
      %3561 = vmatpush1.msra.mxu0 0.0
      %3562 = vmatprep.subr.mxu0 0.0
      %3563 = vmatpush1.msra.mxu0 0.0
      %3564 = vmatprep.subr.mxu0 0.0
      %3565 = vmatpush1.msra.mxu0 0.0
      %3566 = vmatprep.subr.mxu0 0.0
      %3567 = vmatpush1.msra.mxu0 0.0
      %3568 = vmatprep.subr.mxu0 0.0
      %3569 = vmatpush1.msra.mxu0 0.0
      %3570 = vmatprep.subr.mxu0 0.0
      %3571 = vmatpush1.msra.mxu0 0.0
      %3572 = vmatprep.subr.mxu0 0.0
      %3573 = vmatpush1.msra.mxu0 0.0
      %3574 = vmatprep.mubr.f32.mxu0 0.0
      %3575 = vmatmul.mubr.f32.gmra.mrb[0].mxu0 %v3505
      %v3576 = vpop.f32.mrb[0].mxu0
      %v3577 = vadd.f32 0.0, %v3576
      %v3578 = vpop.f32.mrb[0].mxu0
      %3579 = vmatprep.mubr.f32.mxu0 0.0
      %3580 = vmatmul.mubr.f32.gmra.mrb[0].mxu0 %v3508
      %v3581 = vpop.f32.mrb[0].mxu0
      %v3582 = vadd.f32 0.0, %v3581
      %v3583 = vpop.f32.mrb[0].mxu0
      %3584 = vdwg.mxu0
      %3587 = vrot.lane.b32.xlu0 %v3577, 112
      %v3588 = vpop.permute.xlu0 %3587
      %3589 = vrot.lane.b32.xlu0 %v3582, 112
      %v3590 = vpop.permute.xlu0 %3589
      %3593 = vst.msk [vmem:[#allocation2 + $0x10] sm:$0xff] %vm1544, %v3588
      %3594 = vst.msk [vmem:[#allocation2 + $0x30] sm:$0xff] %vm1544, %v3590
      %3595 = vrot.lane.b32.xlu0 %v472, 32
      %v3596 = vpop.permute.xlu0 %3595
      %3598 = vxpose.xlu0.b32.start [1/16] %v3596, 128
      %3599 = vxpose.xlu0.b32.cont [2/16] 0.0, 128
      %3600 = vxpose.xlu0.b32.cont [3/16] 0.0, 128
      %3601 = vxpose.xlu0.b32.cont [4/16] 0.0, 128
      %3602 = vxpose.xlu0.b32.cont [5/16] 0.0, 128
      %3603 = vxpose.xlu0.b32.cont [6/16] 0.0, 128
      %3604 = vxpose.xlu0.b32.cont [7/16] 0.0, 128
      %3605 = vxpose.xlu0.b32.cont [8/16] 0.0, 128
      %3606 = vxpose.xlu0.b32.cont [9/16] 0.0, 128
      %3607 = vxpose.xlu0.b32.cont [10/16] 0.0, 128
      %3608 = vxpose.xlu0.b32.cont [11/16] 0.0, 128
      %3609 = vxpose.xlu0.b32.cont [12/16] 0.0, 128
      %3610 = vxpose.xlu0.b32.cont [13/16] 0.0, 128
      %3611 = vxpose.xlu0.b32.cont [14/16] 0.0, 128
      %3612 = vxpose.xlu0.b32.cont [15/16] 0.0, 128
      %3613 = vxpose.xlu0.b32.end [16/16] 0.0, 128
      %v3614 = vpop.trf.xlu0
      %v3615 = vpop.trf.xlu0
      %v3616 = vpop.trf.xlu0
      %v3617 = vpop.trf.xlu0
      %v3618 = vpop.trf.xlu0
      %v3619 = vpop.trf.xlu0
      %v3620 = vpop.trf.xlu0
      %v3621 = vpop.trf.xlu0
      %v3622 = vpop.trf.xlu0
      %v3623 = vpop.trf.xlu0
      %v3624 = vpop.trf.xlu0
      %v3625 = vpop.trf.xlu0
      %v3626 = vpop.trf.xlu0
      %v3627 = vpop.trf.xlu0
      %v3628 = vpop.trf.xlu0
      %v3629 = vpop.trf.xlu0
      %3630 = vrot.lane.b32.xlu0 %v492, 32
      %v3631 = vpop.permute.xlu0 %3630
      %v3634 = vsel %vm562, %v3614, 0
      %v3637 = vsel %vm562, %v3615, 0
      %3639 = vmatprep.subr.mxu0 0.0
      %3640 = vmatpush1.msra.mxu0 %v3631
      %3641 = vmatprep.subr.mxu0 0.0
      %3642 = vmatpush1.msra.mxu0 0.0
      %3643 = vmatprep.subr.mxu0 0.0
      %3644 = vmatpush1.msra.mxu0 0.0
      %3645 = vmatprep.subr.mxu0 0.0
      %3646 = vmatpush1.msra.mxu0 0.0
      %3647 = vmatprep.subr.mxu0 0.0
      %3648 = vmatpush1.msra.mxu0 0.0
      %3649 = vmatprep.subr.mxu0 0.0
      %3650 = vmatpush1.msra.mxu0 0.0
      %3651 = vmatprep.subr.mxu0 0.0
      %3652 = vmatpush1.msra.mxu0 0.0
      %3653 = vmatprep.subr.mxu0 0.0
      %3654 = vmatpush1.msra.mxu0 0.0
      %3655 = vmatprep.subr.mxu0 0.0
      %3656 = vmatpush1.msra.mxu0 0.0
      %3657 = vmatprep.subr.mxu0 0.0
      %3658 = vmatpush1.msra.mxu0 0.0
      %3659 = vmatprep.subr.mxu0 0.0
      %3660 = vmatpush1.msra.mxu0 0.0
      %3661 = vmatprep.subr.mxu0 0.0
      %3662 = vmatpush1.msra.mxu0 0.0
      %3663 = vmatprep.subr.mxu0 0.0
      %3664 = vmatpush1.msra.mxu0 0.0
      %3665 = vmatprep.subr.mxu0 0.0
      %3666 = vmatpush1.msra.mxu0 0.0
      %3667 = vmatprep.subr.mxu0 0.0
      %3668 = vmatpush1.msra.mxu0 0.0
      %3669 = vmatprep.subr.mxu0 0.0
      %3670 = vmatpush1.msra.mxu0 0.0
      %3671 = vmatprep.subr.mxu0 0.0
      %3672 = vmatpush1.msra.mxu0 0.0
      %3673 = vmatprep.subr.mxu0 0.0
      %3674 = vmatpush1.msra.mxu0 0.0
      %3675 = vmatprep.subr.mxu0 0.0
      %3676 = vmatpush1.msra.mxu0 0.0
      %3677 = vmatprep.subr.mxu0 0.0
      %3678 = vmatpush1.msra.mxu0 0.0
      %3679 = vmatprep.subr.mxu0 0.0
      %3680 = vmatpush1.msra.mxu0 0.0
      %3681 = vmatprep.subr.mxu0 0.0
      %3682 = vmatpush1.msra.mxu0 0.0
      %3683 = vmatprep.subr.mxu0 0.0
      %3684 = vmatpush1.msra.mxu0 0.0
      %3685 = vmatprep.subr.mxu0 0.0
      %3686 = vmatpush1.msra.mxu0 0.0
      %3687 = vmatprep.subr.mxu0 0.0
      %3688 = vmatpush1.msra.mxu0 0.0
      %3689 = vmatprep.subr.mxu0 0.0
      %3690 = vmatpush1.msra.mxu0 0.0
      %3691 = vmatprep.subr.mxu0 0.0
      %3692 = vmatpush1.msra.mxu0 0.0
      %3693 = vmatprep.subr.mxu0 0.0
      %3694 = vmatpush1.msra.mxu0 0.0
      %3695 = vmatprep.subr.mxu0 0.0
      %3696 = vmatpush1.msra.mxu0 0.0
      %3697 = vmatprep.subr.mxu0 0.0
      %3698 = vmatpush1.msra.mxu0 0.0
      %3699 = vmatprep.subr.mxu0 0.0
      %3700 = vmatpush1.msra.mxu0 0.0
      %3701 = vmatprep.subr.mxu0 0.0
      %3702 = vmatpush1.msra.mxu0 0.0
      %3703 = vmatprep.mubr.f32.mxu0 0.0
      %3704 = vmatmul.mubr.f32.gmra.mrb[0].mxu0 %v3634
      %v3705 = vpop.f32.mrb[0].mxu0
      %v3706 = vadd.f32 0.0, %v3705
      %v3707 = vpop.f32.mrb[0].mxu0
      %3708 = vmatprep.mubr.f32.mxu0 0.0
      %3709 = vmatmul.mubr.f32.gmra.mrb[0].mxu0 %v3637
      %v3710 = vpop.f32.mrb[0].mxu0
      %v3711 = vadd.f32 0.0, %v3710
      %v3712 = vpop.f32.mrb[0].mxu0
      %3713 = vdwg.mxu0
      %3714 = vst.msk [vmem:[#allocation2 + $0x18] sm:$0xff] %vm644, %v3706
      %3715 = vst.msk [vmem:[#allocation2 + $0x38] sm:$0xff] %vm644, %v3711
      %3716 = vrot.lane.b32.xlu0 %v477, 32
      %v3717 = vpop.permute.xlu0 %3716
      %3719 = vxpose.xlu0.b32.start [1/16] %v3717, 128
      %3720 = vxpose.xlu0.b32.cont [2/16] 0.0, 128
      %3721 = vxpose.xlu0.b32.cont [3/16] 0.0, 128
      %3722 = vxpose.xlu0.b32.cont [4/16] 0.0, 128
      %3723 = vxpose.xlu0.b32.cont [5/16] 0.0, 128
      %3724 = vxpose.xlu0.b32.cont [6/16] 0.0, 128
      %3725 = vxpose.xlu0.b32.cont [7/16] 0.0, 128
      %3726 = vxpose.xlu0.b32.cont [8/16] 0.0, 128
      %3727 = vxpose.xlu0.b32.cont [9/16] 0.0, 128
      %3728 = vxpose.xlu0.b32.cont [10/16] 0.0, 128
      %3729 = vxpose.xlu0.b32.cont [11/16] 0.0, 128
      %3730 = vxpose.xlu0.b32.cont [12/16] 0.0, 128
      %3731 = vxpose.xlu0.b32.cont [13/16] 0.0, 128
      %3732 = vxpose.xlu0.b32.cont [14/16] 0.0, 128
      %3733 = vxpose.xlu0.b32.cont [15/16] 0.0, 128
      %3734 = vxpose.xlu0.b32.end [16/16] 0.0, 128
      %v3735 = vpop.trf.xlu0
      %v3736 = vpop.trf.xlu0
      %v3737 = vpop.trf.xlu0
      %v3738 = vpop.trf.xlu0
      %v3739 = vpop.trf.xlu0
      %v3740 = vpop.trf.xlu0
      %v3741 = vpop.trf.xlu0
      %v3742 = vpop.trf.xlu0
      %v3743 = vpop.trf.xlu0
      %v3744 = vpop.trf.xlu0
      %v3745 = vpop.trf.xlu0
      %v3746 = vpop.trf.xlu0
      %v3747 = vpop.trf.xlu0
      %v3748 = vpop.trf.xlu0
      %v3749 = vpop.trf.xlu0
      %v3750 = vpop.trf.xlu0
      %3751 = vrot.lane.b32.xlu0 %v497, 32
      %v3752 = vpop.permute.xlu0 %3751
      %v3755 = vsel %vm562, %v3735, 0
      %v3758 = vsel %vm562, %v3736, 0
      %3760 = vmatprep.subr.mxu0 0.0
      %3761 = vmatpush1.msra.mxu0 %v3752
      %3762 = vmatprep.subr.mxu0 0.0
      %3763 = vmatpush1.msra.mxu0 0.0
      %3764 = vmatprep.subr.mxu0 0.0
      %3765 = vmatpush1.msra.mxu0 0.0
      %3766 = vmatprep.subr.mxu0 0.0
      %3767 = vmatpush1.msra.mxu0 0.0
      %3768 = vmatprep.subr.mxu0 0.0
      %3769 = vmatpush1.msra.mxu0 0.0
      %3770 = vmatprep.subr.mxu0 0.0
      %3771 = vmatpush1.msra.mxu0 0.0
      %3772 = vmatprep.subr.mxu0 0.0
      %3773 = vmatpush1.msra.mxu0 0.0
      %3774 = vmatprep.subr.mxu0 0.0
      %3775 = vmatpush1.msra.mxu0 0.0
      %3776 = vmatprep.subr.mxu0 0.0
      %3777 = vmatpush1.msra.mxu0 0.0
      %3778 = vmatprep.subr.mxu0 0.0
      %3779 = vmatpush1.msra.mxu0 0.0
      %3780 = vmatprep.subr.mxu0 0.0
      %3781 = vmatpush1.msra.mxu0 0.0
      %3782 = vmatprep.subr.mxu0 0.0
      %3783 = vmatpush1.msra.mxu0 0.0
      %3784 = vmatprep.subr.mxu0 0.0
      %3785 = vmatpush1.msra.mxu0 0.0
      %3786 = vmatprep.subr.mxu0 0.0
      %3787 = vmatpush1.msra.mxu0 0.0
      %3788 = vmatprep.subr.mxu0 0.0
      %3789 = vmatpush1.msra.mxu0 0.0
      %3790 = vmatprep.subr.mxu0 0.0
      %3791 = vmatpush1.msra.mxu0 0.0
      %3792 = vmatprep.subr.mxu0 0.0
      %3793 = vmatpush1.msra.mxu0 0.0
      %3794 = vmatprep.subr.mxu0 0.0
      %3795 = vmatpush1.msra.mxu0 0.0
      %3796 = vmatprep.subr.mxu0 0.0
      %3797 = vmatpush1.msra.mxu0 0.0
      %3798 = vmatprep.subr.mxu0 0.0
      %3799 = vmatpush1.msra.mxu0 0.0
      %3800 = vmatprep.subr.mxu0 0.0
      %3801 = vmatpush1.msra.mxu0 0.0
      %3802 = vmatprep.subr.mxu0 0.0
      %3803 = vmatpush1.msra.mxu0 0.0
      %3804 = vmatprep.subr.mxu0 0.0
      %3805 = vmatpush1.msra.mxu0 0.0
      %3806 = vmatprep.subr.mxu0 0.0
      %3807 = vmatpush1.msra.mxu0 0.0
      %3808 = vmatprep.subr.mxu0 0.0
      %3809 = vmatpush1.msra.mxu0 0.0
      %3810 = vmatprep.subr.mxu0 0.0
      %3811 = vmatpush1.msra.mxu0 0.0
      %3812 = vmatprep.subr.mxu0 0.0
      %3813 = vmatpush1.msra.mxu0 0.0
      %3814 = vmatprep.subr.mxu0 0.0
      %3815 = vmatpush1.msra.mxu0 0.0
      %3816 = vmatprep.subr.mxu0 0.0
      %3817 = vmatpush1.msra.mxu0 0.0
      %3818 = vmatprep.subr.mxu0 0.0
      %3819 = vmatpush1.msra.mxu0 0.0
      %3820 = vmatprep.subr.mxu0 0.0
      %3821 = vmatpush1.msra.mxu0 0.0
      %3822 = vmatprep.subr.mxu0 0.0
      %3823 = vmatpush1.msra.mxu0 0.0
      %3824 = vmatprep.mubr.f32.mxu0 0.0
      %3825 = vmatmul.mubr.f32.gmra.mrb[0].mxu0 %v3755
      %v3826 = vpop.f32.mrb[0].mxu0
      %v3827 = vadd.f32 0.0, %v3826
      %v3828 = vpop.f32.mrb[0].mxu0
      %3829 = vmatprep.mubr.f32.mxu0 0.0
      %3830 = vmatmul.mubr.f32.gmra.mrb[0].mxu0 %v3758
      %v3831 = vpop.f32.mrb[0].mxu0
      %v3832 = vadd.f32 0.0, %v3831
      %v3833 = vpop.f32.mrb[0].mxu0
      %3834 = vdwg.mxu0
      %3837 = vrot.lane.b32.xlu0 %v3827, 16
      %v3838 = vpop.permute.xlu0 %3837
      %3839 = vrot.lane.b32.xlu0 %v3832, 16
      %v3840 = vpop.permute.xlu0 %3839
      %3843 = vst.msk [vmem:[#allocation2 + $0x18] sm:$0xff] %vm768, %v3838
      %3844 = vst.msk [vmem:[#allocation2 + $0x38] sm:$0xff] %vm768, %v3840
      %3845 = vrot.lane.b32.xlu0 %v482, 32
      %v3846 = vpop.permute.xlu0 %3845
      %3848 = vxpose.xlu0.b32.start [1/16] %v3846, 128
      %3849 = vxpose.xlu0.b32.cont [2/16] 0.0, 128
      %3850 = vxpose.xlu0.b32.cont [3/16] 0.0, 128
      %3851 = vxpose.xlu0.b32.cont [4/16] 0.0, 128
      %3852 = vxpose.xlu0.b32.cont [5/16] 0.0, 128
      %3853 = vxpose.xlu0.b32.cont [6/16] 0.0, 128
      %3854 = vxpose.xlu0.b32.cont [7/16] 0.0, 128
      %3855 = vxpose.xlu0.b32.cont [8/16] 0.0, 128
      %3856 = vxpose.xlu0.b32.cont [9/16] 0.0, 128
      %3857 = vxpose.xlu0.b32.cont [10/16] 0.0, 128
      %3858 = vxpose.xlu0.b32.cont [11/16] 0.0, 128
      %3859 = vxpose.xlu0.b32.cont [12/16] 0.0, 128
      %3860 = vxpose.xlu0.b32.cont [13/16] 0.0, 128
      %3861 = vxpose.xlu0.b32.cont [14/16] 0.0, 128
      %3862 = vxpose.xlu0.b32.cont [15/16] 0.0, 128
      %3863 = vxpose.xlu0.b32.end [16/16] 0.0, 128
      %v3864 = vpop.trf.xlu0
      %v3865 = vpop.trf.xlu0
      %v3866 = vpop.trf.xlu0
      %v3867 = vpop.trf.xlu0
      %v3868 = vpop.trf.xlu0
      %v3869 = vpop.trf.xlu0
      %v3870 = vpop.trf.xlu0
      %v3871 = vpop.trf.xlu0
      %v3872 = vpop.trf.xlu0
      %v3873 = vpop.trf.xlu0
      %v3874 = vpop.trf.xlu0
      %v3875 = vpop.trf.xlu0
      %v3876 = vpop.trf.xlu0
      %v3877 = vpop.trf.xlu0
      %v3878 = vpop.trf.xlu0
      %v3879 = vpop.trf.xlu0
      %3880 = vrot.lane.b32.xlu0 %v502, 32
      %v3881 = vpop.permute.xlu0 %3880
      %v3884 = vsel %vm562, %v3864, 0
      %v3887 = vsel %vm562, %v3865, 0
      %3889 = vmatprep.subr.mxu0 0.0
      %3890 = vmatpush1.msra.mxu0 %v3881
      %3891 = vmatprep.subr.mxu0 0.0
      %3892 = vmatpush1.msra.mxu0 0.0
      %3893 = vmatprep.subr.mxu0 0.0
      %3894 = vmatpush1.msra.mxu0 0.0
      %3895 = vmatprep.subr.mxu0 0.0
      %3896 = vmatpush1.msra.mxu0 0.0
      %3897 = vmatprep.subr.mxu0 0.0
      %3898 = vmatpush1.msra.mxu0 0.0
      %3899 = vmatprep.subr.mxu0 0.0
      %3900 = vmatpush1.msra.mxu0 0.0
      %3901 = vmatprep.subr.mxu0 0.0
      %3902 = vmatpush1.msra.mxu0 0.0
      %3903 = vmatprep.subr.mxu0 0.0
      %3904 = vmatpush1.msra.mxu0 0.0
      %3905 = vmatprep.subr.mxu0 0.0
      %3906 = vmatpush1.msra.mxu0 0.0
      %3907 = vmatprep.subr.mxu0 0.0
      %3908 = vmatpush1.msra.mxu0 0.0
      %3909 = vmatprep.subr.mxu0 0.0
      %3910 = vmatpush1.msra.mxu0 0.0
      %3911 = vmatprep.subr.mxu0 0.0
      %3912 = vmatpush1.msra.mxu0 0.0
      %3913 = vmatprep.subr.mxu0 0.0
      %3914 = vmatpush1.msra.mxu0 0.0
      %3915 = vmatprep.subr.mxu0 0.0
      %3916 = vmatpush1.msra.mxu0 0.0
      %3917 = vmatprep.subr.mxu0 0.0
      %3918 = vmatpush1.msra.mxu0 0.0
      %3919 = vmatprep.subr.mxu0 0.0
      %3920 = vmatpush1.msra.mxu0 0.0
      %3921 = vmatprep.subr.mxu0 0.0
      %3922 = vmatpush1.msra.mxu0 0.0
      %3923 = vmatprep.subr.mxu0 0.0
      %3924 = vmatpush1.msra.mxu0 0.0
      %3925 = vmatprep.subr.mxu0 0.0
      %3926 = vmatpush1.msra.mxu0 0.0
      %3927 = vmatprep.subr.mxu0 0.0
      %3928 = vmatpush1.msra.mxu0 0.0
      %3929 = vmatprep.subr.mxu0 0.0
      %3930 = vmatpush1.msra.mxu0 0.0
      %3931 = vmatprep.subr.mxu0 0.0
      %3932 = vmatpush1.msra.mxu0 0.0
      %3933 = vmatprep.subr.mxu0 0.0
      %3934 = vmatpush1.msra.mxu0 0.0
      %3935 = vmatprep.subr.mxu0 0.0
      %3936 = vmatpush1.msra.mxu0 0.0
      %3937 = vmatprep.subr.mxu0 0.0
      %3938 = vmatpush1.msra.mxu0 0.0
      %3939 = vmatprep.subr.mxu0 0.0
      %3940 = vmatpush1.msra.mxu0 0.0
      %3941 = vmatprep.subr.mxu0 0.0
      %3942 = vmatpush1.msra.mxu0 0.0
      %3943 = vmatprep.subr.mxu0 0.0
      %3944 = vmatpush1.msra.mxu0 0.0
      %3945 = vmatprep.subr.mxu0 0.0
      %3946 = vmatpush1.msra.mxu0 0.0
      %3947 = vmatprep.subr.mxu0 0.0
      %3948 = vmatpush1.msra.mxu0 0.0
      %3949 = vmatprep.subr.mxu0 0.0
      %3950 = vmatpush1.msra.mxu0 0.0
      %3951 = vmatprep.subr.mxu0 0.0
      %3952 = vmatpush1.msra.mxu0 0.0
      %3953 = vmatprep.mubr.f32.mxu0 0.0
      %3954 = vmatmul.mubr.f32.gmra.mrb[0].mxu0 %v3884
      %v3955 = vpop.f32.mrb[0].mxu0
      %v3956 = vadd.f32 0.0, %v3955
      %v3957 = vpop.f32.mrb[0].mxu0
      %3958 = vmatprep.mubr.f32.mxu0 0.0
      %3959 = vmatmul.mubr.f32.gmra.mrb[0].mxu0 %v3887
      %v3960 = vpop.f32.mrb[0].mxu0
      %v3961 = vadd.f32 0.0, %v3960
      %v3962 = vpop.f32.mrb[0].mxu0
      %3963 = vdwg.mxu0
      %3966 = vrot.lane.b32.xlu0 %v3956, 32
      %v3967 = vpop.permute.xlu0 %3966
      %3968 = vrot.lane.b32.xlu0 %v3961, 32
      %v3969 = vpop.permute.xlu0 %3968
      %3972 = vst.msk [vmem:[#allocation2 + $0x18] sm:$0xff] %vm892, %v3967
      %3973 = vst.msk [vmem:[#allocation2 + $0x38] sm:$0xff] %vm892, %v3969
      %3974 = vrot.lane.b32.xlu0 %v487, 32
      %v3975 = vpop.permute.xlu0 %3974
      %3977 = vxpose.xlu0.b32.start [1/16] %v3975, 128
      %3978 = vxpose.xlu0.b32.cont [2/16] 0.0, 128
      %3979 = vxpose.xlu0.b32.cont [3/16] 0.0, 128
      %3980 = vxpose.xlu0.b32.cont [4/16] 0.0, 128
      %3981 = vxpose.xlu0.b32.cont [5/16] 0.0, 128
      %3982 = vxpose.xlu0.b32.cont [6/16] 0.0, 128
      %3983 = vxpose.xlu0.b32.cont [7/16] 0.0, 128
      %3984 = vxpose.xlu0.b32.cont [8/16] 0.0, 128
      %3985 = vxpose.xlu0.b32.cont [9/16] 0.0, 128
      %3986 = vxpose.xlu0.b32.cont [10/16] 0.0, 128
      %3987 = vxpose.xlu0.b32.cont [11/16] 0.0, 128
      %3988 = vxpose.xlu0.b32.cont [12/16] 0.0, 128
      %3989 = vxpose.xlu0.b32.cont [13/16] 0.0, 128
      %3990 = vxpose.xlu0.b32.cont [14/16] 0.0, 128
      %3991 = vxpose.xlu0.b32.cont [15/16] 0.0, 128
      %3992 = vxpose.xlu0.b32.end [16/16] 0.0, 128
      %v3993 = vpop.trf.xlu0
      %v3994 = vpop.trf.xlu0
      %v3995 = vpop.trf.xlu0
      %v3996 = vpop.trf.xlu0
      %v3997 = vpop.trf.xlu0
      %v3998 = vpop.trf.xlu0
      %v3999 = vpop.trf.xlu0
      %v4000 = vpop.trf.xlu0
      %v4001 = vpop.trf.xlu0
      %v4002 = vpop.trf.xlu0
      %v4003 = vpop.trf.xlu0
      %v4004 = vpop.trf.xlu0
      %v4005 = vpop.trf.xlu0
      %v4006 = vpop.trf.xlu0
      %v4007 = vpop.trf.xlu0
      %v4008 = vpop.trf.xlu0
      %4009 = vrot.lane.b32.xlu0 %v507, 32
      %v4010 = vpop.permute.xlu0 %4009
      %v4013 = vsel %vm562, %v3993, 0
      %v4016 = vsel %vm562, %v3994, 0
      %4018 = vmatprep.subr.mxu0 0.0
      %4019 = vmatpush1.msra.mxu0 %v4010
      %4020 = vmatprep.subr.mxu0 0.0
      %4021 = vmatpush1.msra.mxu0 0.0
      %4022 = vmatprep.subr.mxu0 0.0
      %4023 = vmatpush1.msra.mxu0 0.0
      %4024 = vmatprep.subr.mxu0 0.0
      %4025 = vmatpush1.msra.mxu0 0.0
      %4026 = vmatprep.subr.mxu0 0.0
      %4027 = vmatpush1.msra.mxu0 0.0
      %4028 = vmatprep.subr.mxu0 0.0
      %4029 = vmatpush1.msra.mxu0 0.0
      %4030 = vmatprep.subr.mxu0 0.0
      %4031 = vmatpush1.msra.mxu0 0.0
      %4032 = vmatprep.subr.mxu0 0.0
      %4033 = vmatpush1.msra.mxu0 0.0
      %4034 = vmatprep.subr.mxu0 0.0
      %4035 = vmatpush1.msra.mxu0 0.0
      %4036 = vmatprep.subr.mxu0 0.0
      %4037 = vmatpush1.msra.mxu0 0.0
      %4038 = vmatprep.subr.mxu0 0.0
      %4039 = vmatpush1.msra.mxu0 0.0
      %4040 = vmatprep.subr.mxu0 0.0
      %4041 = vmatpush1.msra.mxu0 0.0
      %4042 = vmatprep.subr.mxu0 0.0
      %4043 = vmatpush1.msra.mxu0 0.0
      %4044 = vmatprep.subr.mxu0 0.0
      %4045 = vmatpush1.msra.mxu0 0.0
      %4046 = vmatprep.subr.mxu0 0.0
      %4047 = vmatpush1.msra.mxu0 0.0
      %4048 = vmatprep.subr.mxu0 0.0
      %4049 = vmatpush1.msra.mxu0 0.0
      %4050 = vmatprep.subr.mxu0 0.0
      %4051 = vmatpush1.msra.mxu0 0.0
      %4052 = vmatprep.subr.mxu0 0.0
      %4053 = vmatpush1.msra.mxu0 0.0
      %4054 = vmatprep.subr.mxu0 0.0
      %4055 = vmatpush1.msra.mxu0 0.0
      %4056 = vmatprep.subr.mxu0 0.0
      %4057 = vmatpush1.msra.mxu0 0.0
      %4058 = vmatprep.subr.mxu0 0.0
      %4059 = vmatpush1.msra.mxu0 0.0
      %4060 = vmatprep.subr.mxu0 0.0
      %4061 = vmatpush1.msra.mxu0 0.0
      %4062 = vmatprep.subr.mxu0 0.0
      %4063 = vmatpush1.msra.mxu0 0.0
      %4064 = vmatprep.subr.mxu0 0.0
      %4065 = vmatpush1.msra.mxu0 0.0
      %4066 = vmatprep.subr.mxu0 0.0
      %4067 = vmatpush1.msra.mxu0 0.0
      %4068 = vmatprep.subr.mxu0 0.0
      %4069 = vmatpush1.msra.mxu0 0.0
      %4070 = vmatprep.subr.mxu0 0.0
      %4071 = vmatpush1.msra.mxu0 0.0
      %4072 = vmatprep.subr.mxu0 0.0
      %4073 = vmatpush1.msra.mxu0 0.0
      %4074 = vmatprep.subr.mxu0 0.0
      %4075 = vmatpush1.msra.mxu0 0.0
      %4076 = vmatprep.subr.mxu0 0.0
      %4077 = vmatpush1.msra.mxu0 0.0
      %4078 = vmatprep.subr.mxu0 0.0
      %4079 = vmatpush1.msra.mxu0 0.0
      %4080 = vmatprep.subr.mxu0 0.0
      %4081 = vmatpush1.msra.mxu0 0.0
      %4082 = vmatprep.mubr.f32.mxu0 0.0
      %4083 = vmatmul.mubr.f32.gmra.mrb[0].mxu0 %v4013
      %v4084 = vpop.f32.mrb[0].mxu0
      %v4085 = vadd.f32 0.0, %v4084
      %v4086 = vpop.f32.mrb[0].mxu0
      %4087 = vmatprep.mubr.f32.mxu0 0.0
      %4088 = vmatmul.mubr.f32.gmra.mrb[0].mxu0 %v4016
      %v4089 = vpop.f32.mrb[0].mxu0
      %v4090 = vadd.f32 0.0, %v4089
      %v4091 = vpop.f32.mrb[0].mxu0
      %4092 = vdwg.mxu0
      %4095 = vrot.lane.b32.xlu0 %v4085, 48
      %v4096 = vpop.permute.xlu0 %4095
      %4097 = vrot.lane.b32.xlu0 %v4090, 48
      %v4098 = vpop.permute.xlu0 %4097
      %4101 = vst.msk [vmem:[#allocation2 + $0x18] sm:$0xff] %vm1016, %v4096
      %4102 = vst.msk [vmem:[#allocation2 + $0x38] sm:$0xff] %vm1016, %v4098
      %4103 = vrot.lane.b32.xlu0 %v472, 16
      %v4104 = vpop.permute.xlu0 %4103
      %4106 = vxpose.xlu0.b32.start [1/16] %v4104, 128
      %4107 = vxpose.xlu0.b32.cont [2/16] 0.0, 128
      %4108 = vxpose.xlu0.b32.cont [3/16] 0.0, 128
      %4109 = vxpose.xlu0.b32.cont [4/16] 0.0, 128
      %4110 = vxpose.xlu0.b32.cont [5/16] 0.0, 128
      %4111 = vxpose.xlu0.b32.cont [6/16] 0.0, 128
      %4112 = vxpose.xlu0.b32.cont [7/16] 0.0, 128
      %4113 = vxpose.xlu0.b32.cont [8/16] 0.0, 128
      %4114 = vxpose.xlu0.b32.cont [9/16] 0.0, 128
      %4115 = vxpose.xlu0.b32.cont [10/16] 0.0, 128
      %4116 = vxpose.xlu0.b32.cont [11/16] 0.0, 128
      %4117 = vxpose.xlu0.b32.cont [12/16] 0.0, 128
      %4118 = vxpose.xlu0.b32.cont [13/16] 0.0, 128
      %4119 = vxpose.xlu0.b32.cont [14/16] 0.0, 128
      %4120 = vxpose.xlu0.b32.cont [15/16] 0.0, 128
      %4121 = vxpose.xlu0.b32.end [16/16] 0.0, 128
      %v4122 = vpop.trf.xlu0
      %v4123 = vpop.trf.xlu0
      %v4124 = vpop.trf.xlu0
      %v4125 = vpop.trf.xlu0
      %v4126 = vpop.trf.xlu0
      %v4127 = vpop.trf.xlu0
      %v4128 = vpop.trf.xlu0
      %v4129 = vpop.trf.xlu0
      %v4130 = vpop.trf.xlu0
      %v4131 = vpop.trf.xlu0
      %v4132 = vpop.trf.xlu0
      %v4133 = vpop.trf.xlu0
      %v4134 = vpop.trf.xlu0
      %v4135 = vpop.trf.xlu0
      %v4136 = vpop.trf.xlu0
      %v4137 = vpop.trf.xlu0
      %4138 = vrot.lane.b32.xlu0 %v492, 16
      %v4139 = vpop.permute.xlu0 %4138
      %v4142 = vsel %vm562, %v4122, 0
      %v4145 = vsel %vm562, %v4123, 0
      %4147 = vmatprep.subr.mxu0 0.0
      %4148 = vmatpush1.msra.mxu0 %v4139
      %4149 = vmatprep.subr.mxu0 0.0
      %4150 = vmatpush1.msra.mxu0 0.0
      %4151 = vmatprep.subr.mxu0 0.0
      %4152 = vmatpush1.msra.mxu0 0.0
      %4153 = vmatprep.subr.mxu0 0.0
      %4154 = vmatpush1.msra.mxu0 0.0
      %4155 = vmatprep.subr.mxu0 0.0
      %4156 = vmatpush1.msra.mxu0 0.0
      %4157 = vmatprep.subr.mxu0 0.0
      %4158 = vmatpush1.msra.mxu0 0.0
      %4159 = vmatprep.subr.mxu0 0.0
      %4160 = vmatpush1.msra.mxu0 0.0
      %4161 = vmatprep.subr.mxu0 0.0
      %4162 = vmatpush1.msra.mxu0 0.0
      %4163 = vmatprep.subr.mxu0 0.0
      %4164 = vmatpush1.msra.mxu0 0.0
      %4165 = vmatprep.subr.mxu0 0.0
      %4166 = vmatpush1.msra.mxu0 0.0
      %4167 = vmatprep.subr.mxu0 0.0
      %4168 = vmatpush1.msra.mxu0 0.0
      %4169 = vmatprep.subr.mxu0 0.0
      %4170 = vmatpush1.msra.mxu0 0.0
      %4171 = vmatprep.subr.mxu0 0.0
      %4172 = vmatpush1.msra.mxu0 0.0
      %4173 = vmatprep.subr.mxu0 0.0
      %4174 = vmatpush1.msra.mxu0 0.0
      %4175 = vmatprep.subr.mxu0 0.0
      %4176 = vmatpush1.msra.mxu0 0.0
      %4177 = vmatprep.subr.mxu0 0.0
      %4178 = vmatpush1.msra.mxu0 0.0
      %4179 = vmatprep.subr.mxu0 0.0
      %4180 = vmatpush1.msra.mxu0 0.0
      %4181 = vmatprep.subr.mxu0 0.0
      %4182 = vmatpush1.msra.mxu0 0.0
      %4183 = vmatprep.subr.mxu0 0.0
      %4184 = vmatpush1.msra.mxu0 0.0
      %4185 = vmatprep.subr.mxu0 0.0
      %4186 = vmatpush1.msra.mxu0 0.0
      %4187 = vmatprep.subr.mxu0 0.0
      %4188 = vmatpush1.msra.mxu0 0.0
      %4189 = vmatprep.subr.mxu0 0.0
      %4190 = vmatpush1.msra.mxu0 0.0
      %4191 = vmatprep.subr.mxu0 0.0
      %4192 = vmatpush1.msra.mxu0 0.0
      %4193 = vmatprep.subr.mxu0 0.0
      %4194 = vmatpush1.msra.mxu0 0.0
      %4195 = vmatprep.subr.mxu0 0.0
      %4196 = vmatpush1.msra.mxu0 0.0
      %4197 = vmatprep.subr.mxu0 0.0
      %4198 = vmatpush1.msra.mxu0 0.0
      %4199 = vmatprep.subr.mxu0 0.0
      %4200 = vmatpush1.msra.mxu0 0.0
      %4201 = vmatprep.subr.mxu0 0.0
      %4202 = vmatpush1.msra.mxu0 0.0
      %4203 = vmatprep.subr.mxu0 0.0
      %4204 = vmatpush1.msra.mxu0 0.0
      %4205 = vmatprep.subr.mxu0 0.0
      %4206 = vmatpush1.msra.mxu0 0.0
      %4207 = vmatprep.subr.mxu0 0.0
      %4208 = vmatpush1.msra.mxu0 0.0
      %4209 = vmatprep.subr.mxu0 0.0
      %4210 = vmatpush1.msra.mxu0 0.0
      %4211 = vmatprep.mubr.f32.mxu0 0.0
      %4212 = vmatmul.mubr.f32.gmra.mrb[0].mxu0 %v4142
      %v4213 = vpop.f32.mrb[0].mxu0
      %v4214 = vadd.f32 0.0, %v4213
      %v4215 = vpop.f32.mrb[0].mxu0
      %4216 = vmatprep.mubr.f32.mxu0 0.0
      %4217 = vmatmul.mubr.f32.gmra.mrb[0].mxu0 %v4145
      %v4218 = vpop.f32.mrb[0].mxu0
      %v4219 = vadd.f32 0.0, %v4218
      %v4220 = vpop.f32.mrb[0].mxu0
      %4221 = vdwg.mxu0
      %4224 = vrot.lane.b32.xlu0 %v4214, 64
      %v4225 = vpop.permute.xlu0 %4224
      %4226 = vrot.lane.b32.xlu0 %v4219, 64
      %v4227 = vpop.permute.xlu0 %4226
      %4230 = vst.msk [vmem:[#allocation2 + $0x18] sm:$0xff] %vm1148, %v4225
      %4231 = vst.msk [vmem:[#allocation2 + $0x38] sm:$0xff] %vm1148, %v4227
      %4232 = vrot.lane.b32.xlu0 %v477, 16
      %v4233 = vpop.permute.xlu0 %4232
      %4235 = vxpose.xlu0.b32.start [1/16] %v4233, 128
      %4236 = vxpose.xlu0.b32.cont [2/16] 0.0, 128
      %4237 = vxpose.xlu0.b32.cont [3/16] 0.0, 128
      %4238 = vxpose.xlu0.b32.cont [4/16] 0.0, 128
      %4239 = vxpose.xlu0.b32.cont [5/16] 0.0, 128
      %4240 = vxpose.xlu0.b32.cont [6/16] 0.0, 128
      %4241 = vxpose.xlu0.b32.cont [7/16] 0.0, 128
      %4242 = vxpose.xlu0.b32.cont [8/16] 0.0, 128
      %4243 = vxpose.xlu0.b32.cont [9/16] 0.0, 128
      %4244 = vxpose.xlu0.b32.cont [10/16] 0.0, 128
      %4245 = vxpose.xlu0.b32.cont [11/16] 0.0, 128
      %4246 = vxpose.xlu0.b32.cont [12/16] 0.0, 128
      %4247 = vxpose.xlu0.b32.cont [13/16] 0.0, 128
      %4248 = vxpose.xlu0.b32.cont [14/16] 0.0, 128
      %4249 = vxpose.xlu0.b32.cont [15/16] 0.0, 128
      %4250 = vxpose.xlu0.b32.end [16/16] 0.0, 128
      %v4251 = vpop.trf.xlu0
      %v4252 = vpop.trf.xlu0
      %v4253 = vpop.trf.xlu0
      %v4254 = vpop.trf.xlu0
      %v4255 = vpop.trf.xlu0
      %v4256 = vpop.trf.xlu0
      %v4257 = vpop.trf.xlu0
      %v4258 = vpop.trf.xlu0
      %v4259 = vpop.trf.xlu0
      %v4260 = vpop.trf.xlu0
      %v4261 = vpop.trf.xlu0
      %v4262 = vpop.trf.xlu0
      %v4263 = vpop.trf.xlu0
      %v4264 = vpop.trf.xlu0
      %v4265 = vpop.trf.xlu0
      %v4266 = vpop.trf.xlu0
      %4267 = vrot.lane.b32.xlu0 %v497, 16
      %v4268 = vpop.permute.xlu0 %4267
      %v4271 = vsel %vm562, %v4251, 0
      %v4274 = vsel %vm562, %v4252, 0
      %4276 = vmatprep.subr.mxu0 0.0
      %4277 = vmatpush1.msra.mxu0 %v4268
      %4278 = vmatprep.subr.mxu0 0.0
      %4279 = vmatpush1.msra.mxu0 0.0
      %4280 = vmatprep.subr.mxu0 0.0
      %4281 = vmatpush1.msra.mxu0 0.0
      %4282 = vmatprep.subr.mxu0 0.0
      %4283 = vmatpush1.msra.mxu0 0.0
      %4284 = vmatprep.subr.mxu0 0.0
      %4285 = vmatpush1.msra.mxu0 0.0
      %4286 = vmatprep.subr.mxu0 0.0
      %4287 = vmatpush1.msra.mxu0 0.0
      %4288 = vmatprep.subr.mxu0 0.0
      %4289 = vmatpush1.msra.mxu0 0.0
      %4290 = vmatprep.subr.mxu0 0.0
      %4291 = vmatpush1.msra.mxu0 0.0
      %4292 = vmatprep.subr.mxu0 0.0
      %4293 = vmatpush1.msra.mxu0 0.0
      %4294 = vmatprep.subr.mxu0 0.0
      %4295 = vmatpush1.msra.mxu0 0.0
      %4296 = vmatprep.subr.mxu0 0.0
      %4297 = vmatpush1.msra.mxu0 0.0
      %4298 = vmatprep.subr.mxu0 0.0
      %4299 = vmatpush1.msra.mxu0 0.0
      %4300 = vmatprep.subr.mxu0 0.0
      %4301 = vmatpush1.msra.mxu0 0.0
      %4302 = vmatprep.subr.mxu0 0.0
      %4303 = vmatpush1.msra.mxu0 0.0
      %4304 = vmatprep.subr.mxu0 0.0
      %4305 = vmatpush1.msra.mxu0 0.0
      %4306 = vmatprep.subr.mxu0 0.0
      %4307 = vmatpush1.msra.mxu0 0.0
      %4308 = vmatprep.subr.mxu0 0.0
      %4309 = vmatpush1.msra.mxu0 0.0
      %4310 = vmatprep.subr.mxu0 0.0
      %4311 = vmatpush1.msra.mxu0 0.0
      %4312 = vmatprep.subr.mxu0 0.0
      %4313 = vmatpush1.msra.mxu0 0.0
      %4314 = vmatprep.subr.mxu0 0.0
      %4315 = vmatpush1.msra.mxu0 0.0
      %4316 = vmatprep.subr.mxu0 0.0
      %4317 = vmatpush1.msra.mxu0 0.0
      %4318 = vmatprep.subr.mxu0 0.0
      %4319 = vmatpush1.msra.mxu0 0.0
      %4320 = vmatprep.subr.mxu0 0.0
      %4321 = vmatpush1.msra.mxu0 0.0
      %4322 = vmatprep.subr.mxu0 0.0
      %4323 = vmatpush1.msra.mxu0 0.0
      %4324 = vmatprep.subr.mxu0 0.0
      %4325 = vmatpush1.msra.mxu0 0.0
      %4326 = vmatprep.subr.mxu0 0.0
      %4327 = vmatpush1.msra.mxu0 0.0
      %4328 = vmatprep.subr.mxu0 0.0
      %4329 = vmatpush1.msra.mxu0 0.0
      %4330 = vmatprep.subr.mxu0 0.0
      %4331 = vmatpush1.msra.mxu0 0.0
      %4332 = vmatprep.subr.mxu0 0.0
      %4333 = vmatpush1.msra.mxu0 0.0
      %4334 = vmatprep.subr.mxu0 0.0
      %4335 = vmatpush1.msra.mxu0 0.0
      %4336 = vmatprep.subr.mxu0 0.0
      %4337 = vmatpush1.msra.mxu0 0.0
      %4338 = vmatprep.subr.mxu0 0.0
      %4339 = vmatpush1.msra.mxu0 0.0
      %4340 = vmatprep.mubr.f32.mxu0 0.0
      %4341 = vmatmul.mubr.f32.gmra.mrb[0].mxu0 %v4271
      %v4342 = vpop.f32.mrb[0].mxu0
      %v4343 = vadd.f32 0.0, %v4342
      %v4344 = vpop.f32.mrb[0].mxu0
      %4345 = vmatprep.mubr.f32.mxu0 0.0
      %4346 = vmatmul.mubr.f32.gmra.mrb[0].mxu0 %v4274
      %v4347 = vpop.f32.mrb[0].mxu0
      %v4348 = vadd.f32 0.0, %v4347
      %v4349 = vpop.f32.mrb[0].mxu0
      %4350 = vdwg.mxu0
      %4353 = vrot.lane.b32.xlu0 %v4343, 80
      %v4354 = vpop.permute.xlu0 %4353
      %4355 = vrot.lane.b32.xlu0 %v4348, 80
      %v4356 = vpop.permute.xlu0 %4355
      %4359 = vst.msk [vmem:[#allocation2 + $0x18] sm:$0xff] %vm1280, %v4354
      %4360 = vst.msk [vmem:[#allocation2 + $0x38] sm:$0xff] %vm1280, %v4356
      %4361 = vrot.lane.b32.xlu0 %v482, 16
      %v4362 = vpop.permute.xlu0 %4361
      %4364 = vxpose.xlu0.b32.start [1/16] %v4362, 128
      %4365 = vxpose.xlu0.b32.cont [2/16] 0.0, 128
      %4366 = vxpose.xlu0.b32.cont [3/16] 0.0, 128
      %4367 = vxpose.xlu0.b32.cont [4/16] 0.0, 128
      %4368 = vxpose.xlu0.b32.cont [5/16] 0.0, 128
      %4369 = vxpose.xlu0.b32.cont [6/16] 0.0, 128
      %4370 = vxpose.xlu0.b32.cont [7/16] 0.0, 128
      %4371 = vxpose.xlu0.b32.cont [8/16] 0.0, 128
      %4372 = vxpose.xlu0.b32.cont [9/16] 0.0, 128
      %4373 = vxpose.xlu0.b32.cont [10/16] 0.0, 128
      %4374 = vxpose.xlu0.b32.cont [11/16] 0.0, 128
      %4375 = vxpose.xlu0.b32.cont [12/16] 0.0, 128
      %4376 = vxpose.xlu0.b32.cont [13/16] 0.0, 128
      %4377 = vxpose.xlu0.b32.cont [14/16] 0.0, 128
      %4378 = vxpose.xlu0.b32.cont [15/16] 0.0, 128
      %4379 = vxpose.xlu0.b32.end [16/16] 0.0, 128
      %v4380 = vpop.trf.xlu0
      %v4381 = vpop.trf.xlu0
      %v4382 = vpop.trf.xlu0
      %v4383 = vpop.trf.xlu0
      %v4384 = vpop.trf.xlu0
      %v4385 = vpop.trf.xlu0
      %v4386 = vpop.trf.xlu0
      %v4387 = vpop.trf.xlu0
      %v4388 = vpop.trf.xlu0
      %v4389 = vpop.trf.xlu0
      %v4390 = vpop.trf.xlu0
      %v4391 = vpop.trf.xlu0
      %v4392 = vpop.trf.xlu0
      %v4393 = vpop.trf.xlu0
      %v4394 = vpop.trf.xlu0
      %v4395 = vpop.trf.xlu0
      %4396 = vrot.lane.b32.xlu0 %v502, 16
      %v4397 = vpop.permute.xlu0 %4396
      %v4400 = vsel %vm562, %v4380, 0
      %v4403 = vsel %vm562, %v4381, 0
      %4405 = vmatprep.subr.mxu0 0.0
      %4406 = vmatpush1.msra.mxu0 %v4397
      %4407 = vmatprep.subr.mxu0 0.0
      %4408 = vmatpush1.msra.mxu0 0.0
      %4409 = vmatprep.subr.mxu0 0.0
      %4410 = vmatpush1.msra.mxu0 0.0
      %4411 = vmatprep.subr.mxu0 0.0
      %4412 = vmatpush1.msra.mxu0 0.0
      %4413 = vmatprep.subr.mxu0 0.0
      %4414 = vmatpush1.msra.mxu0 0.0
      %4415 = vmatprep.subr.mxu0 0.0
      %4416 = vmatpush1.msra.mxu0 0.0
      %4417 = vmatprep.subr.mxu0 0.0
      %4418 = vmatpush1.msra.mxu0 0.0
      %4419 = vmatprep.subr.mxu0 0.0
      %4420 = vmatpush1.msra.mxu0 0.0
      %4421 = vmatprep.subr.mxu0 0.0
      %4422 = vmatpush1.msra.mxu0 0.0
      %4423 = vmatprep.subr.mxu0 0.0
      %4424 = vmatpush1.msra.mxu0 0.0
      %4425 = vmatprep.subr.mxu0 0.0
      %4426 = vmatpush1.msra.mxu0 0.0
      %4427 = vmatprep.subr.mxu0 0.0
      %4428 = vmatpush1.msra.mxu0 0.0
      %4429 = vmatprep.subr.mxu0 0.0
      %4430 = vmatpush1.msra.mxu0 0.0
      %4431 = vmatprep.subr.mxu0 0.0
      %4432 = vmatpush1.msra.mxu0 0.0
      %4433 = vmatprep.subr.mxu0 0.0
      %4434 = vmatpush1.msra.mxu0 0.0
      %4435 = vmatprep.subr.mxu0 0.0
      %4436 = vmatpush1.msra.mxu0 0.0
      %4437 = vmatprep.subr.mxu0 0.0
      %4438 = vmatpush1.msra.mxu0 0.0
      %4439 = vmatprep.subr.mxu0 0.0
      %4440 = vmatpush1.msra.mxu0 0.0
      %4441 = vmatprep.subr.mxu0 0.0
      %4442 = vmatpush1.msra.mxu0 0.0
      %4443 = vmatprep.subr.mxu0 0.0
      %4444 = vmatpush1.msra.mxu0 0.0
      %4445 = vmatprep.subr.mxu0 0.0
      %4446 = vmatpush1.msra.mxu0 0.0
      %4447 = vmatprep.subr.mxu0 0.0
      %4448 = vmatpush1.msra.mxu0 0.0
      %4449 = vmatprep.subr.mxu0 0.0
      %4450 = vmatpush1.msra.mxu0 0.0
      %4451 = vmatprep.subr.mxu0 0.0
      %4452 = vmatpush1.msra.mxu0 0.0
      %4453 = vmatprep.subr.mxu0 0.0
      %4454 = vmatpush1.msra.mxu0 0.0
      %4455 = vmatprep.subr.mxu0 0.0
      %4456 = vmatpush1.msra.mxu0 0.0
      %4457 = vmatprep.subr.mxu0 0.0
      %4458 = vmatpush1.msra.mxu0 0.0
      %4459 = vmatprep.subr.mxu0 0.0
      %4460 = vmatpush1.msra.mxu0 0.0
      %4461 = vmatprep.subr.mxu0 0.0
      %4462 = vmatpush1.msra.mxu0 0.0
      %4463 = vmatprep.subr.mxu0 0.0
      %4464 = vmatpush1.msra.mxu0 0.0
      %4465 = vmatprep.subr.mxu0 0.0
      %4466 = vmatpush1.msra.mxu0 0.0
      %4467 = vmatprep.subr.mxu0 0.0
      %4468 = vmatpush1.msra.mxu0 0.0
      %4469 = vmatprep.mubr.f32.mxu0 0.0
      %4470 = vmatmul.mubr.f32.gmra.mrb[0].mxu0 %v4400
      %v4471 = vpop.f32.mrb[0].mxu0
      %v4472 = vadd.f32 0.0, %v4471
      %v4473 = vpop.f32.mrb[0].mxu0
      %4474 = vmatprep.mubr.f32.mxu0 0.0
      %4475 = vmatmul.mubr.f32.gmra.mrb[0].mxu0 %v4403
      %v4476 = vpop.f32.mrb[0].mxu0
      %v4477 = vadd.f32 0.0, %v4476
      %v4478 = vpop.f32.mrb[0].mxu0
      %4479 = vdwg.mxu0
      %4482 = vrot.lane.b32.xlu0 %v4472, 96
      %v4483 = vpop.permute.xlu0 %4482
      %4484 = vrot.lane.b32.xlu0 %v4477, 96
      %v4485 = vpop.permute.xlu0 %4484
      %4488 = vst.msk [vmem:[#allocation2 + $0x18] sm:$0xff] %vm1412, %v4483
      %4489 = vst.msk [vmem:[#allocation2 + $0x38] sm:$0xff] %vm1412, %v4485
      %4490 = vrot.lane.b32.xlu0 %v487, 16
      %v4491 = vpop.permute.xlu0 %4490
      %4493 = vxpose.xlu0.b32.start [1/16] %v4491, 128
      %4494 = vxpose.xlu0.b32.cont [2/16] 0.0, 128
      %4495 = vxpose.xlu0.b32.cont [3/16] 0.0, 128
      %4496 = vxpose.xlu0.b32.cont [4/16] 0.0, 128
      %4497 = vxpose.xlu0.b32.cont [5/16] 0.0, 128
      %4498 = vxpose.xlu0.b32.cont [6/16] 0.0, 128
      %4499 = vxpose.xlu0.b32.cont [7/16] 0.0, 128
      %4500 = vxpose.xlu0.b32.cont [8/16] 0.0, 128
      %4501 = vxpose.xlu0.b32.cont [9/16] 0.0, 128
      %4502 = vxpose.xlu0.b32.cont [10/16] 0.0, 128
      %4503 = vxpose.xlu0.b32.cont [11/16] 0.0, 128
      %4504 = vxpose.xlu0.b32.cont [12/16] 0.0, 128
      %4505 = vxpose.xlu0.b32.cont [13/16] 0.0, 128
      %4506 = vxpose.xlu0.b32.cont [14/16] 0.0, 128
      %4507 = vxpose.xlu0.b32.cont [15/16] 0.0, 128
      %4508 = vxpose.xlu0.b32.end [16/16] 0.0, 128
      %v4509 = vpop.trf.xlu0
      %v4510 = vpop.trf.xlu0
      %v4511 = vpop.trf.xlu0
      %v4512 = vpop.trf.xlu0
      %v4513 = vpop.trf.xlu0
      %v4514 = vpop.trf.xlu0
      %v4515 = vpop.trf.xlu0
      %v4516 = vpop.trf.xlu0
      %v4517 = vpop.trf.xlu0
      %v4518 = vpop.trf.xlu0
      %v4519 = vpop.trf.xlu0
      %v4520 = vpop.trf.xlu0
      %v4521 = vpop.trf.xlu0
      %v4522 = vpop.trf.xlu0
      %v4523 = vpop.trf.xlu0
      %v4524 = vpop.trf.xlu0
      %4525 = vrot.lane.b32.xlu0 %v507, 16
      %v4526 = vpop.permute.xlu0 %4525
      %v4529 = vsel %vm562, %v4509, 0
      %v4532 = vsel %vm562, %v4510, 0
      %4534 = vmatprep.subr.mxu0 0.0
      %4535 = vmatpush1.msra.mxu0 %v4526
      %4536 = vmatprep.subr.mxu0 0.0
      %4537 = vmatpush1.msra.mxu0 0.0
      %4538 = vmatprep.subr.mxu0 0.0
      %4539 = vmatpush1.msra.mxu0 0.0
      %4540 = vmatprep.subr.mxu0 0.0
      %4541 = vmatpush1.msra.mxu0 0.0
      %4542 = vmatprep.subr.mxu0 0.0
      %4543 = vmatpush1.msra.mxu0 0.0
      %4544 = vmatprep.subr.mxu0 0.0
      %4545 = vmatpush1.msra.mxu0 0.0
      %4546 = vmatprep.subr.mxu0 0.0
      %4547 = vmatpush1.msra.mxu0 0.0
      %4548 = vmatprep.subr.mxu0 0.0
      %4549 = vmatpush1.msra.mxu0 0.0
      %4550 = vmatprep.subr.mxu0 0.0
      %4551 = vmatpush1.msra.mxu0 0.0
      %4552 = vmatprep.subr.mxu0 0.0
      %4553 = vmatpush1.msra.mxu0 0.0
      %4554 = vmatprep.subr.mxu0 0.0
      %4555 = vmatpush1.msra.mxu0 0.0
      %4556 = vmatprep.subr.mxu0 0.0
      %4557 = vmatpush1.msra.mxu0 0.0
      %4558 = vmatprep.subr.mxu0 0.0
      %4559 = vmatpush1.msra.mxu0 0.0
      %4560 = vmatprep.subr.mxu0 0.0
      %4561 = vmatpush1.msra.mxu0 0.0
      %4562 = vmatprep.subr.mxu0 0.0
      %4563 = vmatpush1.msra.mxu0 0.0
      %4564 = vmatprep.subr.mxu0 0.0
      %4565 = vmatpush1.msra.mxu0 0.0
      %4566 = vmatprep.subr.mxu0 0.0
      %4567 = vmatpush1.msra.mxu0 0.0
      %4568 = vmatprep.subr.mxu0 0.0
      %4569 = vmatpush1.msra.mxu0 0.0
      %4570 = vmatprep.subr.mxu0 0.0
      %4571 = vmatpush1.msra.mxu0 0.0
      %4572 = vmatprep.subr.mxu0 0.0
      %4573 = vmatpush1.msra.mxu0 0.0
      %4574 = vmatprep.subr.mxu0 0.0
      %4575 = vmatpush1.msra.mxu0 0.0
      %4576 = vmatprep.subr.mxu0 0.0
      %4577 = vmatpush1.msra.mxu0 0.0
      %4578 = vmatprep.subr.mxu0 0.0
      %4579 = vmatpush1.msra.mxu0 0.0
      %4580 = vmatprep.subr.mxu0 0.0
      %4581 = vmatpush1.msra.mxu0 0.0
      %4582 = vmatprep.subr.mxu0 0.0
      %4583 = vmatpush1.msra.mxu0 0.0
      %4584 = vmatprep.subr.mxu0 0.0
      %4585 = vmatpush1.msra.mxu0 0.0
      %4586 = vmatprep.subr.mxu0 0.0
      %4587 = vmatpush1.msra.mxu0 0.0
      %4588 = vmatprep.subr.mxu0 0.0
      %4589 = vmatpush1.msra.mxu0 0.0
      %4590 = vmatprep.subr.mxu0 0.0
      %4591 = vmatpush1.msra.mxu0 0.0
      %4592 = vmatprep.subr.mxu0 0.0
      %4593 = vmatpush1.msra.mxu0 0.0
      %4594 = vmatprep.subr.mxu0 0.0
      %4595 = vmatpush1.msra.mxu0 0.0
      %4596 = vmatprep.subr.mxu0 0.0
      %4597 = vmatpush1.msra.mxu0 0.0
      %4598 = vmatprep.mubr.f32.mxu0 0.0
      %4599 = vmatmul.mubr.f32.gmra.mrb[0].mxu0 %v4529
      %v4600 = vpop.f32.mrb[0].mxu0
      %v4601 = vadd.f32 0.0, %v4600
      %v4602 = vpop.f32.mrb[0].mxu0
      %4603 = vmatprep.mubr.f32.mxu0 0.0
      %4604 = vmatmul.mubr.f32.gmra.mrb[0].mxu0 %v4532
      %v4605 = vpop.f32.mrb[0].mxu0
      %v4606 = vadd.f32 0.0, %v4605
      %v4607 = vpop.f32.mrb[0].mxu0
      %4608 = vdwg.mxu0
      %4611 = vrot.lane.b32.xlu0 %v4601, 112
      %v4612 = vpop.permute.xlu0 %4611
      %4613 = vrot.lane.b32.xlu0 %v4606, 112
      %v4614 = vpop.permute.xlu0 %4613
      %4617 = vst.msk [vmem:[#allocation2 + $0x18] sm:$0xff] %vm1544, %v4612
      %4618 = vst.msk [vmem:[#allocation2 + $0x38] sm:$0xff] %vm1544, %v4614
      %v4619 = vld [vmem:[#allocation2] sm:$0xff]
      %v4620 = vld [vmem:[#allocation2 + $0x8] sm:$0xff]
      %v4621 = vld [vmem:[#allocation2 + $0x10] sm:$0xff]
      %v4622 = vld [vmem:[#allocation2 + $0x18] sm:$0xff]
      %v4623 = vld [vmem:[#allocation2 + $0x20] sm:$0xff]
      %v4624 = vld [vmem:[#allocation2 + $0x28] sm:$0xff]
      %v4625 = vld [vmem:[#allocation2 + $0x30] sm:$0xff]
      %v4626 = vld [vmem:[#allocation2 + $0x38] sm:$0xff]
      %v4627 = vld [vmem:[%s266] sm:$0xff]
      %v4628 = vld [vmem:[%s266 + $0x8] sm:$0xff]
      %v4629 = vld [vmem:[%s266 + $0x10] sm:$0xff]
      %v4630 = vld [vmem:[%s266 + $0x18] sm:$0xff]
      %v4631 = vld [vmem:[%s266 + $0x20] sm:$0xff]
      %v4632 = vld [vmem:[%s266 + $0x28] sm:$0xff]
      %v4633 = vld [vmem:[%s266 + $0x30] sm:$0xff]
      %v4634 = vld [vmem:[%s266 + $0x38] sm:$0xff]
      %v4635 = vadd.f32 %v4619, %v4627
      %v4636 = vadd.f32 %v4620, %v4628
      %v4637 = vadd.f32 %v4621, %v4629
      %v4638 = vadd.f32 %v4622, %v4630
      %v4639 = vadd.f32 %v4623, %v4631
      %v4640 = vadd.f32 %v4624, %v4632
      %v4641 = vadd.f32 %v4625, %v4633
      %v4642 = vadd.f32 %v4626, %v4634
      %v4643 = vmax.f32 %v4635, %v4639
      %v4644 = vrot.slane %v4643, 4
      %v4645 = vmax.f32 %v4643, %v4644
      %v4646 = vrot.slane %v4645, 2
      %v4647 = vmax.f32 %v4645, %v4646
      %v4648 = vrot.slane %v4647, 1
      %v4649 = vmax.f32 %v4647, %v4648
      %v4650 = vmax.f32 %v4636, %v4640
      %v4651 = vrot.slane %v4650, 4
      %v4652 = vmax.f32 %v4650, %v4651
      %v4653 = vrot.slane %v4652, 2
      %v4654 = vmax.f32 %v4652, %v4653
      %v4655 = vrot.slane %v4654, 1
      %v4656 = vmax.f32 %v4654, %v4655
      %v4657 = vmax.f32 %v4637, %v4641
      %v4658 = vrot.slane %v4657, 4
      %v4659 = vmax.f32 %v4657, %v4658
      %v4660 = vrot.slane %v4659, 2
      %v4661 = vmax.f32 %v4659, %v4660
      %v4662 = vrot.slane %v4661, 1
      %v4663 = vmax.f32 %v4661, %v4662
      %v4664 = vmax.f32 %v4638, %v4642
      %v4665 = vrot.slane %v4664, 4
      %v4666 = vmax.f32 %v4664, %v4665
      %v4667 = vrot.slane %v4666, 2
      %v4668 = vmax.f32 %v4666, %v4667
      %v4669 = vrot.slane %v4668, 1
      %v4670 = vmax.f32 %v4668, %v4669
      %v4671 = vsub.f32 %v4635, %v4649
      %v4672 = vsub.f32 %v4636, %v4656
      %v4673 = vsub.f32 %v4637, %v4663
      %v4674 = vsub.f32 %v4638, %v4670
      %v4675 = vsub.f32 %v4639, %v4649
      %v4676 = vsub.f32 %v4640, %v4656
      %v4677 = vsub.f32 %v4641, %v4663
      %v4678 = vsub.f32 %v4642, %v4670
      %v4679 = vmul.f32 %v4671, 1.442695
      %v4680 = vpow.pop %v4679
      %v4681 = vmul.f32 %v4672, 1.442695
      %v4682 = vpow.pop %v4681
      %v4683 = vmul.f32 %v4673, 1.442695
      %v4684 = vpow.pop %v4683
      %v4685 = vmul.f32 %v4674, 1.442695
      %v4686 = vpow.pop %v4685
      %v4687 = vmul.f32 %v4675, 1.442695
      %v4688 = vpow.pop %v4687
      %v4689 = vmul.f32 %v4676, 1.442695
      %v4690 = vpow.pop %v4689
      %v4691 = vmul.f32 %v4677, 1.442695
      %v4692 = vpow.pop %v4691
      %v4693 = vmul.f32 %v4678, 1.442695
      %v4694 = vpow.pop %v4693
      %v4695 = vadd.f32 %v4680, %v4688
      %v4696 = vrot.slane %v4695, 4
      %v4697 = vadd.f32 %v4695, %v4696
      %v4698 = vrot.slane %v4697, 2
      %v4699 = vadd.f32 %v4697, %v4698
      %v4700 = vrot.slane %v4699, 1
      %v4701 = vadd.f32 %v4699, %v4700
      %v4702 = vadd.f32 %v4682, %v4690
      %v4703 = vrot.slane %v4702, 4
      %v4704 = vadd.f32 %v4702, %v4703
      %v4705 = vrot.slane %v4704, 2
      %v4706 = vadd.f32 %v4704, %v4705
      %v4707 = vrot.slane %v4706, 1
      %v4708 = vadd.f32 %v4706, %v4707
      %v4709 = vadd.f32 %v4684, %v4692
      %v4710 = vrot.slane %v4709, 4
      %v4711 = vadd.f32 %v4709, %v4710
      %v4712 = vrot.slane %v4711, 2
      %v4713 = vadd.f32 %v4711, %v4712
      %v4714 = vrot.slane %v4713, 1
      %v4715 = vadd.f32 %v4713, %v4714
      %v4716 = vadd.f32 %v4686, %v4694
      %v4717 = vrot.slane %v4716, 4
      %v4718 = vadd.f32 %v4716, %v4717
      %v4719 = vrot.slane %v4718, 2
      %v4720 = vadd.f32 %v4718, %v4719
      %v4721 = vrot.slane %v4720, 1
      %v4722 = vadd.f32 %v4720, %v4721
      %v4723 = vrcp.pop %v4701
      %v4724 = vrcp.pop %v4708
      %v4725 = vrcp.pop %v4715
      %v4726 = vrcp.pop %v4722
      %v4727 = vmul.f32 %v4680, %v4723
      %v4728 = vmul.f32 %v4682, %v4724
      %v4729 = vmul.f32 %v4684, %v4725
      %v4730 = vmul.f32 %v4686, %v4726
      %v4731 = vmul.f32 %v4688, %v4723
      %v4732 = vmul.f32 %v4690, %v4724
      %v4733 = vmul.f32 %v4692, %v4725
      %v4734 = vmul.f32 %v4694, %v4726
      %v4736 = vsel %vm644, %v512, 0
      %v4739 = vsel %vm644, %v4727, 0
      %v4742 = vsel %vm644, %v4731, 0
      %4744 = vmatprep.subr.mxu0 0.0
      %4745 = vmatpush1.xpose.msra.mxu0 %v4739
      %4746 = vmatprep.subr.mxu0 0.0
      %4747 = vmatpush1.xpose.msra.mxu0 %v4742
      %4748 = vmatprep.subr.mxu0 0.0
      %4749 = vmatpush1.xpose.msra.mxu0 0.0
      %4750 = vmatprep.subr.mxu0 0.0
      %4751 = vmatpush1.xpose.msra.mxu0 0.0
      %4752 = vmatprep.subr.mxu0 0.0
      %4753 = vmatpush1.xpose.msra.mxu0 0.0
      %4754 = vmatprep.subr.mxu0 0.0
      %4755 = vmatpush1.xpose.msra.mxu0 0.0
      %4756 = vmatprep.subr.mxu0 0.0
      %4757 = vmatpush1.xpose.msra.mxu0 0.0
      %4758 = vmatprep.subr.mxu0 0.0
      %4759 = vmatpush1.xpose.msra.mxu0 0.0
      %4760 = vmatprep.subr.mxu0 0.0
      %4761 = vmatpush1.xpose.msra.mxu0 0.0
      %4762 = vmatprep.subr.mxu0 0.0
      %4763 = vmatpush1.xpose.msra.mxu0 0.0
      %4764 = vmatprep.subr.mxu0 0.0
      %4765 = vmatpush1.xpose.msra.mxu0 0.0
      %4766 = vmatprep.subr.mxu0 0.0
      %4767 = vmatpush1.xpose.msra.mxu0 0.0
      %4768 = vmatprep.subr.mxu0 0.0
      %4769 = vmatpush1.xpose.msra.mxu0 0.0
      %4770 = vmatprep.subr.mxu0 0.0
      %4771 = vmatpush1.xpose.msra.mxu0 0.0
      %4772 = vmatprep.subr.mxu0 0.0
      %4773 = vmatpush1.xpose.msra.mxu0 0.0
      %4774 = vmatprep.subr.mxu0 0.0
      %4775 = vmatpush1.xpose.msra.mxu0 0.0
      %4776 = vmatprep.subr.mxu0 0.0
      %4777 = vmatpush1.xpose.msra.mxu0 0.0
      %4778 = vmatprep.subr.mxu0 0.0
      %4779 = vmatpush1.xpose.msra.mxu0 0.0
      %4780 = vmatprep.subr.mxu0 0.0
      %4781 = vmatpush1.xpose.msra.mxu0 0.0
      %4782 = vmatprep.subr.mxu0 0.0
      %4783 = vmatpush1.xpose.msra.mxu0 0.0
      %4784 = vmatprep.subr.mxu0 0.0
      %4785 = vmatpush1.xpose.msra.mxu0 0.0
      %4786 = vmatprep.subr.mxu0 0.0
      %4787 = vmatpush1.xpose.msra.mxu0 0.0
      %4788 = vmatprep.subr.mxu0 0.0
      %4789 = vmatpush1.xpose.msra.mxu0 0.0
      %4790 = vmatprep.subr.mxu0 0.0
      %4791 = vmatpush1.xpose.msra.mxu0 0.0
      %4792 = vmatprep.subr.mxu0 0.0
      %4793 = vmatpush1.xpose.msra.mxu0 0.0
      %4794 = vmatprep.subr.mxu0 0.0
      %4795 = vmatpush1.xpose.msra.mxu0 0.0
      %4796 = vmatprep.subr.mxu0 0.0
      %4797 = vmatpush1.xpose.msra.mxu0 0.0
      %4798 = vmatprep.subr.mxu0 0.0
      %4799 = vmatpush1.xpose.msra.mxu0 0.0
      %4800 = vmatprep.subr.mxu0 0.0
      %4801 = vmatpush1.xpose.msra.mxu0 0.0
      %4802 = vmatprep.subr.mxu0 0.0
      %4803 = vmatpush1.xpose.msra.mxu0 0.0
      %4804 = vmatprep.subr.mxu0 0.0
      %4805 = vmatpush1.xpose.msra.mxu0 0.0
      %4806 = vmatprep.subr.mxu0 0.0
      %4807 = vmatpush1.xpose.msra.mxu0 0.0
      %4808 = vmatprep.mubr.f32.mxu0 0.0
      %4809 = vmatmul.mubr.f32.gmra.mrb[0].mxu0 %v4736
      %v4810 = vpop.f32.mrb[0].mxu0
      %v4811 = vadd.f32 0.0, %v4810
      %v4812 = vpop.f32.mrb[0].mxu0
      %4813 = vdwg.mxu0
      %4814 = vst.msk [vmem:[#allocation3] sm:$0xff] %vm644, %v4811
      %4815 = vrot.lane.b32.xlu0 %v4727, 112
      %v4816 = vpop.permute.xlu0 %4815
      %4817 = vrot.lane.b32.xlu0 %v4731, 112
      %v4818 = vpop.permute.xlu0 %4817
      %v4820 = vsel %vm644, %v517, 0
      %v4822 = vsel %vm644, %v4816, 0
      %v4824 = vsel %vm644, %v4818, 0
      %4826 = vmatprep.subr.mxu0 0.0
      %4827 = vmatpush1.xpose.msra.mxu0 %v4822
      %4828 = vmatprep.subr.mxu0 0.0
      %4829 = vmatpush1.xpose.msra.mxu0 %v4824
      %4830 = vmatprep.subr.mxu0 0.0
      %4831 = vmatpush1.xpose.msra.mxu0 0.0
      %4832 = vmatprep.subr.mxu0 0.0
      %4833 = vmatpush1.xpose.msra.mxu0 0.0
      %4834 = vmatprep.subr.mxu0 0.0
      %4835 = vmatpush1.xpose.msra.mxu0 0.0
      %4836 = vmatprep.subr.mxu0 0.0
      %4837 = vmatpush1.xpose.msra.mxu0 0.0
      %4838 = vmatprep.subr.mxu0 0.0
      %4839 = vmatpush1.xpose.msra.mxu0 0.0
      %4840 = vmatprep.subr.mxu0 0.0
      %4841 = vmatpush1.xpose.msra.mxu0 0.0
      %4842 = vmatprep.subr.mxu0 0.0
      %4843 = vmatpush1.xpose.msra.mxu0 0.0
      %4844 = vmatprep.subr.mxu0 0.0
      %4845 = vmatpush1.xpose.msra.mxu0 0.0
      %4846 = vmatprep.subr.mxu0 0.0
      %4847 = vmatpush1.xpose.msra.mxu0 0.0
      %4848 = vmatprep.subr.mxu0 0.0
      %4849 = vmatpush1.xpose.msra.mxu0 0.0
      %4850 = vmatprep.subr.mxu0 0.0
      %4851 = vmatpush1.xpose.msra.mxu0 0.0
      %4852 = vmatprep.subr.mxu0 0.0
      %4853 = vmatpush1.xpose.msra.mxu0 0.0
      %4854 = vmatprep.subr.mxu0 0.0
      %4855 = vmatpush1.xpose.msra.mxu0 0.0
      %4856 = vmatprep.subr.mxu0 0.0
      %4857 = vmatpush1.xpose.msra.mxu0 0.0
      %4858 = vmatprep.subr.mxu0 0.0
      %4859 = vmatpush1.xpose.msra.mxu0 0.0
      %4860 = vmatprep.subr.mxu0 0.0
      %4861 = vmatpush1.xpose.msra.mxu0 0.0
      %4862 = vmatprep.subr.mxu0 0.0
      %4863 = vmatpush1.xpose.msra.mxu0 0.0
      %4864 = vmatprep.subr.mxu0 0.0
      %4865 = vmatpush1.xpose.msra.mxu0 0.0
      %4866 = vmatprep.subr.mxu0 0.0
      %4867 = vmatpush1.xpose.msra.mxu0 0.0
      %4868 = vmatprep.subr.mxu0 0.0
      %4869 = vmatpush1.xpose.msra.mxu0 0.0
      %4870 = vmatprep.subr.mxu0 0.0
      %4871 = vmatpush1.xpose.msra.mxu0 0.0
      %4872 = vmatprep.subr.mxu0 0.0
      %4873 = vmatpush1.xpose.msra.mxu0 0.0
      %4874 = vmatprep.subr.mxu0 0.0
      %4875 = vmatpush1.xpose.msra.mxu0 0.0
      %4876 = vmatprep.subr.mxu0 0.0
      %4877 = vmatpush1.xpose.msra.mxu0 0.0
      %4878 = vmatprep.subr.mxu0 0.0
      %4879 = vmatpush1.xpose.msra.mxu0 0.0
      %4880 = vmatprep.subr.mxu0 0.0
      %4881 = vmatpush1.xpose.msra.mxu0 0.0
      %4882 = vmatprep.subr.mxu0 0.0
      %4883 = vmatpush1.xpose.msra.mxu0 0.0
      %4884 = vmatprep.subr.mxu0 0.0
      %4885 = vmatpush1.xpose.msra.mxu0 0.0
      %4886 = vmatprep.subr.mxu0 0.0
      %4887 = vmatpush1.xpose.msra.mxu0 0.0
      %4888 = vmatprep.subr.mxu0 0.0
      %4889 = vmatpush1.xpose.msra.mxu0 0.0
      %4890 = vmatprep.mubr.f32.mxu0 0.0
      %4891 = vmatmul.mubr.f32.gmra.mrb[0].mxu0 %v4820
      %v4892 = vpop.f32.mrb[0].mxu0
      %v4893 = vadd.f32 0.0, %v4892
      %v4894 = vpop.f32.mrb[0].mxu0
      %4895 = vdwg.mxu0
      %4896 = vst.msk [vmem:[#allocation3 + $0x8] sm:$0xff] %vm644, %v4893
      %4897 = vrot.lane.b32.xlu0 %v4727, 96
      %v4898 = vpop.permute.xlu0 %4897
      %4899 = vrot.lane.b32.xlu0 %v4731, 96
      %v4900 = vpop.permute.xlu0 %4899
      %v4902 = vsel %vm644, %v522, 0
      %v4904 = vsel %vm644, %v4898, 0
      %v4906 = vsel %vm644, %v4900, 0
      %4908 = vmatprep.subr.mxu0 0.0
      %4909 = vmatpush1.xpose.msra.mxu0 %v4904
      %4910 = vmatprep.subr.mxu0 0.0
      %4911 = vmatpush1.xpose.msra.mxu0 %v4906
      %4912 = vmatprep.subr.mxu0 0.0
      %4913 = vmatpush1.xpose.msra.mxu0 0.0
      %4914 = vmatprep.subr.mxu0 0.0
      %4915 = vmatpush1.xpose.msra.mxu0 0.0
      %4916 = vmatprep.subr.mxu0 0.0
      %4917 = vmatpush1.xpose.msra.mxu0 0.0
      %4918 = vmatprep.subr.mxu0 0.0
      %4919 = vmatpush1.xpose.msra.mxu0 0.0
      %4920 = vmatprep.subr.mxu0 0.0
      %4921 = vmatpush1.xpose.msra.mxu0 0.0
      %4922 = vmatprep.subr.mxu0 0.0
      %4923 = vmatpush1.xpose.msra.mxu0 0.0
      %4924 = vmatprep.subr.mxu0 0.0
      %4925 = vmatpush1.xpose.msra.mxu0 0.0
      %4926 = vmatprep.subr.mxu0 0.0
      %4927 = vmatpush1.xpose.msra.mxu0 0.0
      %4928 = vmatprep.subr.mxu0 0.0
      %4929 = vmatpush1.xpose.msra.mxu0 0.0
      %4930 = vmatprep.subr.mxu0 0.0
      %4931 = vmatpush1.xpose.msra.mxu0 0.0
      %4932 = vmatprep.subr.mxu0 0.0
      %4933 = vmatpush1.xpose.msra.mxu0 0.0
      %4934 = vmatprep.subr.mxu0 0.0
      %4935 = vmatpush1.xpose.msra.mxu0 0.0
      %4936 = vmatprep.subr.mxu0 0.0
      %4937 = vmatpush1.xpose.msra.mxu0 0.0
      %4938 = vmatprep.subr.mxu0 0.0
      %4939 = vmatpush1.xpose.msra.mxu0 0.0
      %4940 = vmatprep.subr.mxu0 0.0
      %4941 = vmatpush1.xpose.msra.mxu0 0.0
      %4942 = vmatprep.subr.mxu0 0.0
      %4943 = vmatpush1.xpose.msra.mxu0 0.0
      %4944 = vmatprep.subr.mxu0 0.0
      %4945 = vmatpush1.xpose.msra.mxu0 0.0
      %4946 = vmatprep.subr.mxu0 0.0
      %4947 = vmatpush1.xpose.msra.mxu0 0.0
      %4948 = vmatprep.subr.mxu0 0.0
      %4949 = vmatpush1.xpose.msra.mxu0 0.0
      %4950 = vmatprep.subr.mxu0 0.0
      %4951 = vmatpush1.xpose.msra.mxu0 0.0
      %4952 = vmatprep.subr.mxu0 0.0
      %4953 = vmatpush1.xpose.msra.mxu0 0.0
      %4954 = vmatprep.subr.mxu0 0.0
      %4955 = vmatpush1.xpose.msra.mxu0 0.0
      %4956 = vmatprep.subr.mxu0 0.0
      %4957 = vmatpush1.xpose.msra.mxu0 0.0
      %4958 = vmatprep.subr.mxu0 0.0
      %4959 = vmatpush1.xpose.msra.mxu0 0.0
      %4960 = vmatprep.subr.mxu0 0.0
      %4961 = vmatpush1.xpose.msra.mxu0 0.0
      %4962 = vmatprep.subr.mxu0 0.0
      %4963 = vmatpush1.xpose.msra.mxu0 0.0
      %4964 = vmatprep.subr.mxu0 0.0
      %4965 = vmatpush1.xpose.msra.mxu0 0.0
      %4966 = vmatprep.subr.mxu0 0.0
      %4967 = vmatpush1.xpose.msra.mxu0 0.0
      %4968 = vmatprep.subr.mxu0 0.0
      %4969 = vmatpush1.xpose.msra.mxu0 0.0
      %4970 = vmatprep.subr.mxu0 0.0
      %4971 = vmatpush1.xpose.msra.mxu0 0.0
      %4972 = vmatprep.mubr.f32.mxu0 0.0
      %4973 = vmatmul.mubr.f32.gmra.mrb[0].mxu0 %v4902
      %v4974 = vpop.f32.mrb[0].mxu0
      %v4975 = vadd.f32 0.0, %v4974
      %v4976 = vpop.f32.mrb[0].mxu0
      %4977 = vdwg.mxu0
      %4978 = vst.msk [vmem:[#allocation3 + $0x10] sm:$0xff] %vm644, %v4975
      %4979 = vrot.lane.b32.xlu0 %v4727, 80
      %v4980 = vpop.permute.xlu0 %4979
      %4981 = vrot.lane.b32.xlu0 %v4731, 80
      %v4982 = vpop.permute.xlu0 %4981
      %v4984 = vsel %vm644, %v527, 0
      %v4986 = vsel %vm644, %v4980, 0
      %v4988 = vsel %vm644, %v4982, 0
      %4990 = vmatprep.subr.mxu0 0.0
      %4991 = vmatpush1.xpose.msra.mxu0 %v4986
      %4992 = vmatprep.subr.mxu0 0.0
      %4993 = vmatpush1.xpose.msra.mxu0 %v4988
      %4994 = vmatprep.subr.mxu0 0.0
      %4995 = vmatpush1.xpose.msra.mxu0 0.0
      %4996 = vmatprep.subr.mxu0 0.0
      %4997 = vmatpush1.xpose.msra.mxu0 0.0
      %4998 = vmatprep.subr.mxu0 0.0
      %4999 = vmatpush1.xpose.msra.mxu0 0.0
      %5000 = vmatprep.subr.mxu0 0.0
      %5001 = vmatpush1.xpose.msra.mxu0 0.0
      %5002 = vmatprep.subr.mxu0 0.0
      %5003 = vmatpush1.xpose.msra.mxu0 0.0
      %5004 = vmatprep.subr.mxu0 0.0
      %5005 = vmatpush1.xpose.msra.mxu0 0.0
      %5006 = vmatprep.subr.mxu0 0.0
      %5007 = vmatpush1.xpose.msra.mxu0 0.0
      %5008 = vmatprep.subr.mxu0 0.0
      %5009 = vmatpush1.xpose.msra.mxu0 0.0
      %5010 = vmatprep.subr.mxu0 0.0
      %5011 = vmatpush1.xpose.msra.mxu0 0.0
      %5012 = vmatprep.subr.mxu0 0.0
      %5013 = vmatpush1.xpose.msra.mxu0 0.0
      %5014 = vmatprep.subr.mxu0 0.0
      %5015 = vmatpush1.xpose.msra.mxu0 0.0
      %5016 = vmatprep.subr.mxu0 0.0
      %5017 = vmatpush1.xpose.msra.mxu0 0.0
      %5018 = vmatprep.subr.mxu0 0.0
      %5019 = vmatpush1.xpose.msra.mxu0 0.0
      %5020 = vmatprep.subr.mxu0 0.0
      %5021 = vmatpush1.xpose.msra.mxu0 0.0
      %5022 = vmatprep.subr.mxu0 0.0
      %5023 = vmatpush1.xpose.msra.mxu0 0.0
      %5024 = vmatprep.subr.mxu0 0.0
      %5025 = vmatpush1.xpose.msra.mxu0 0.0
      %5026 = vmatprep.subr.mxu0 0.0
      %5027 = vmatpush1.xpose.msra.mxu0 0.0
      %5028 = vmatprep.subr.mxu0 0.0
      %5029 = vmatpush1.xpose.msra.mxu0 0.0
      %5030 = vmatprep.subr.mxu0 0.0
      %5031 = vmatpush1.xpose.msra.mxu0 0.0
      %5032 = vmatprep.subr.mxu0 0.0
      %5033 = vmatpush1.xpose.msra.mxu0 0.0
      %5034 = vmatprep.subr.mxu0 0.0
      %5035 = vmatpush1.xpose.msra.mxu0 0.0
      %5036 = vmatprep.subr.mxu0 0.0
      %5037 = vmatpush1.xpose.msra.mxu0 0.0
      %5038 = vmatprep.subr.mxu0 0.0
      %5039 = vmatpush1.xpose.msra.mxu0 0.0
      %5040 = vmatprep.subr.mxu0 0.0
      %5041 = vmatpush1.xpose.msra.mxu0 0.0
      %5042 = vmatprep.subr.mxu0 0.0
      %5043 = vmatpush1.xpose.msra.mxu0 0.0
      %5044 = vmatprep.subr.mxu0 0.0
      %5045 = vmatpush1.xpose.msra.mxu0 0.0
      %5046 = vmatprep.subr.mxu0 0.0
      %5047 = vmatpush1.xpose.msra.mxu0 0.0
      %5048 = vmatprep.subr.mxu0 0.0
      %5049 = vmatpush1.xpose.msra.mxu0 0.0
      %5050 = vmatprep.subr.mxu0 0.0
      %5051 = vmatpush1.xpose.msra.mxu0 0.0
      %5052 = vmatprep.subr.mxu0 0.0
      %5053 = vmatpush1.xpose.msra.mxu0 0.0
      %5054 = vmatprep.mubr.f32.mxu0 0.0
      %5055 = vmatmul.mubr.f32.gmra.mrb[0].mxu0 %v4984
      %v5056 = vpop.f32.mrb[0].mxu0
      %v5057 = vadd.f32 0.0, %v5056
      %v5058 = vpop.f32.mrb[0].mxu0
      %5059 = vdwg.mxu0
      %5060 = vst.msk [vmem:[#allocation3 + $0x18] sm:$0xff] %vm644, %v5057
      %5061 = vrot.lane.b32.xlu0 %v512, 112
      %v5062 = vpop.permute.xlu0 %5061
      %5063 = vrot.lane.b32.xlu0 %v4727, 64
      %v5064 = vpop.permute.xlu0 %5063
      %5065 = vrot.lane.b32.xlu0 %v4731, 64
      %v5066 = vpop.permute.xlu0 %5065
      %v5067 = vsel %vm644, %v5062, 0
      %v5069 = vsel %vm644, %v5064, 0
      %v5071 = vsel %vm644, %v5066, 0
      %5073 = vmatprep.subr.mxu0 0.0
      %5074 = vmatpush1.xpose.msra.mxu0 %v5069
      %5075 = vmatprep.subr.mxu0 0.0
      %5076 = vmatpush1.xpose.msra.mxu0 %v5071
      %5077 = vmatprep.subr.mxu0 0.0
      %5078 = vmatpush1.xpose.msra.mxu0 0.0
      %5079 = vmatprep.subr.mxu0 0.0
      %5080 = vmatpush1.xpose.msra.mxu0 0.0
      %5081 = vmatprep.subr.mxu0 0.0
      %5082 = vmatpush1.xpose.msra.mxu0 0.0
      %5083 = vmatprep.subr.mxu0 0.0
      %5084 = vmatpush1.xpose.msra.mxu0 0.0
      %5085 = vmatprep.subr.mxu0 0.0
      %5086 = vmatpush1.xpose.msra.mxu0 0.0
      %5087 = vmatprep.subr.mxu0 0.0
      %5088 = vmatpush1.xpose.msra.mxu0 0.0
      %5089 = vmatprep.subr.mxu0 0.0
      %5090 = vmatpush1.xpose.msra.mxu0 0.0
      %5091 = vmatprep.subr.mxu0 0.0
      %5092 = vmatpush1.xpose.msra.mxu0 0.0
      %5093 = vmatprep.subr.mxu0 0.0
      %5094 = vmatpush1.xpose.msra.mxu0 0.0
      %5095 = vmatprep.subr.mxu0 0.0
      %5096 = vmatpush1.xpose.msra.mxu0 0.0
      %5097 = vmatprep.subr.mxu0 0.0
      %5098 = vmatpush1.xpose.msra.mxu0 0.0
      %5099 = vmatprep.subr.mxu0 0.0
      %5100 = vmatpush1.xpose.msra.mxu0 0.0
      %5101 = vmatprep.subr.mxu0 0.0
      %5102 = vmatpush1.xpose.msra.mxu0 0.0
      %5103 = vmatprep.subr.mxu0 0.0
      %5104 = vmatpush1.xpose.msra.mxu0 0.0
      %5105 = vmatprep.subr.mxu0 0.0
      %5106 = vmatpush1.xpose.msra.mxu0 0.0
      %5107 = vmatprep.subr.mxu0 0.0
      %5108 = vmatpush1.xpose.msra.mxu0 0.0
      %5109 = vmatprep.subr.mxu0 0.0
      %5110 = vmatpush1.xpose.msra.mxu0 0.0
      %5111 = vmatprep.subr.mxu0 0.0
      %5112 = vmatpush1.xpose.msra.mxu0 0.0
      %5113 = vmatprep.subr.mxu0 0.0
      %5114 = vmatpush1.xpose.msra.mxu0 0.0
      %5115 = vmatprep.subr.mxu0 0.0
      %5116 = vmatpush1.xpose.msra.mxu0 0.0
      %5117 = vmatprep.subr.mxu0 0.0
      %5118 = vmatpush1.xpose.msra.mxu0 0.0
      %5119 = vmatprep.subr.mxu0 0.0
      %5120 = vmatpush1.xpose.msra.mxu0 0.0
      %5121 = vmatprep.subr.mxu0 0.0
      %5122 = vmatpush1.xpose.msra.mxu0 0.0
      %5123 = vmatprep.subr.mxu0 0.0
      %5124 = vmatpush1.xpose.msra.mxu0 0.0
      %5125 = vmatprep.subr.mxu0 0.0
      %5126 = vmatpush1.xpose.msra.mxu0 0.0
      %5127 = vmatprep.subr.mxu0 0.0
      %5128 = vmatpush1.xpose.msra.mxu0 0.0
      %5129 = vmatprep.subr.mxu0 0.0
      %5130 = vmatpush1.xpose.msra.mxu0 0.0
      %5131 = vmatprep.subr.mxu0 0.0
      %5132 = vmatpush1.xpose.msra.mxu0 0.0
      %5133 = vmatprep.subr.mxu0 0.0
      %5134 = vmatpush1.xpose.msra.mxu0 0.0
      %5135 = vmatprep.subr.mxu0 0.0
      %5136 = vmatpush1.xpose.msra.mxu0 0.0
      %5137 = vmatprep.mubr.f32.mxu0 0.0
      %5138 = vmatmul.mubr.f32.gmra.mrb[0].mxu0 %v5067
      %v5139 = vpop.f32.mrb[0].mxu0
      %v5140 = vadd.f32 0.0, %v5139
      %v5141 = vpop.f32.mrb[0].mxu0
      %5142 = vdwg.mxu0
      %5144 = vrot.lane.b32.xlu0 %v5140, 16
      %v5145 = vpop.permute.xlu0 %5144
      %5147 = vst.msk [vmem:[#allocation3] sm:$0xff] %vm768, %v5145
      %5148 = vrot.lane.b32.xlu0 %v517, 112
      %v5149 = vpop.permute.xlu0 %5148
      %5150 = vrot.lane.b32.xlu0 %v4727, 48
      %v5151 = vpop.permute.xlu0 %5150
      %5152 = vrot.lane.b32.xlu0 %v4731, 48
      %v5153 = vpop.permute.xlu0 %5152
      %v5154 = vsel %vm644, %v5149, 0
      %v5156 = vsel %vm644, %v5151, 0
      %v5158 = vsel %vm644, %v5153, 0
      %5160 = vmatprep.subr.mxu0 0.0
      %5161 = vmatpush1.xpose.msra.mxu0 %v5156
      %5162 = vmatprep.subr.mxu0 0.0
      %5163 = vmatpush1.xpose.msra.mxu0 %v5158
      %5164 = vmatprep.subr.mxu0 0.0
      %5165 = vmatpush1.xpose.msra.mxu0 0.0
      %5166 = vmatprep.subr.mxu0 0.0
      %5167 = vmatpush1.xpose.msra.mxu0 0.0
      %5168 = vmatprep.subr.mxu0 0.0
      %5169 = vmatpush1.xpose.msra.mxu0 0.0
      %5170 = vmatprep.subr.mxu0 0.0
      %5171 = vmatpush1.xpose.msra.mxu0 0.0
      %5172 = vmatprep.subr.mxu0 0.0
      %5173 = vmatpush1.xpose.msra.mxu0 0.0
      %5174 = vmatprep.subr.mxu0 0.0
      %5175 = vmatpush1.xpose.msra.mxu0 0.0
      %5176 = vmatprep.subr.mxu0 0.0
      %5177 = vmatpush1.xpose.msra.mxu0 0.0
      %5178 = vmatprep.subr.mxu0 0.0
      %5179 = vmatpush1.xpose.msra.mxu0 0.0
      %5180 = vmatprep.subr.mxu0 0.0
      %5181 = vmatpush1.xpose.msra.mxu0 0.0
      %5182 = vmatprep.subr.mxu0 0.0
      %5183 = vmatpush1.xpose.msra.mxu0 0.0
      %5184 = vmatprep.subr.mxu0 0.0
      %5185 = vmatpush1.xpose.msra.mxu0 0.0
      %5186 = vmatprep.subr.mxu0 0.0
      %5187 = vmatpush1.xpose.msra.mxu0 0.0
      %5188 = vmatprep.subr.mxu0 0.0
      %5189 = vmatpush1.xpose.msra.mxu0 0.0
      %5190 = vmatprep.subr.mxu0 0.0
      %5191 = vmatpush1.xpose.msra.mxu0 0.0
      %5192 = vmatprep.subr.mxu0 0.0
      %5193 = vmatpush1.xpose.msra.mxu0 0.0
      %5194 = vmatprep.subr.mxu0 0.0
      %5195 = vmatpush1.xpose.msra.mxu0 0.0
      %5196 = vmatprep.subr.mxu0 0.0
      %5197 = vmatpush1.xpose.msra.mxu0 0.0
      %5198 = vmatprep.subr.mxu0 0.0
      %5199 = vmatpush1.xpose.msra.mxu0 0.0
      %5200 = vmatprep.subr.mxu0 0.0
      %5201 = vmatpush1.xpose.msra.mxu0 0.0
      %5202 = vmatprep.subr.mxu0 0.0
      %5203 = vmatpush1.xpose.msra.mxu0 0.0
      %5204 = vmatprep.subr.mxu0 0.0
      %5205 = vmatpush1.xpose.msra.mxu0 0.0
      %5206 = vmatprep.subr.mxu0 0.0
      %5207 = vmatpush1.xpose.msra.mxu0 0.0
      %5208 = vmatprep.subr.mxu0 0.0
      %5209 = vmatpush1.xpose.msra.mxu0 0.0
      %5210 = vmatprep.subr.mxu0 0.0
      %5211 = vmatpush1.xpose.msra.mxu0 0.0
      %5212 = vmatprep.subr.mxu0 0.0
      %5213 = vmatpush1.xpose.msra.mxu0 0.0
      %5214 = vmatprep.subr.mxu0 0.0
      %5215 = vmatpush1.xpose.msra.mxu0 0.0
      %5216 = vmatprep.subr.mxu0 0.0
      %5217 = vmatpush1.xpose.msra.mxu0 0.0
      %5218 = vmatprep.subr.mxu0 0.0
      %5219 = vmatpush1.xpose.msra.mxu0 0.0
      %5220 = vmatprep.subr.mxu0 0.0
      %5221 = vmatpush1.xpose.msra.mxu0 0.0
      %5222 = vmatprep.subr.mxu0 0.0
      %5223 = vmatpush1.xpose.msra.mxu0 0.0
      %5224 = vmatprep.mubr.f32.mxu0 0.0
      %5225 = vmatmul.mubr.f32.gmra.mrb[0].mxu0 %v5154
      %v5226 = vpop.f32.mrb[0].mxu0
      %v5227 = vadd.f32 0.0, %v5226
      %v5228 = vpop.f32.mrb[0].mxu0
      %5229 = vdwg.mxu0
      %5231 = vrot.lane.b32.xlu0 %v5227, 16
      %v5232 = vpop.permute.xlu0 %5231
      %5234 = vst.msk [vmem:[#allocation3 + $0x8] sm:$0xff] %vm768, %v5232
      %5235 = vrot.lane.b32.xlu0 %v522, 112
      %v5236 = vpop.permute.xlu0 %5235
      %5237 = vrot.lane.b32.xlu0 %v4727, 32
      %v5238 = vpop.permute.xlu0 %5237
      %5239 = vrot.lane.b32.xlu0 %v4731, 32
      %v5240 = vpop.permute.xlu0 %5239
      %v5241 = vsel %vm644, %v5236, 0
      %v5243 = vsel %vm644, %v5238, 0
      %v5245 = vsel %vm644, %v5240, 0
      %5247 = vmatprep.subr.mxu0 0.0
      %5248 = vmatpush1.xpose.msra.mxu0 %v5243
      %5249 = vmatprep.subr.mxu0 0.0
      %5250 = vmatpush1.xpose.msra.mxu0 %v5245
      %5251 = vmatprep.subr.mxu0 0.0
      %5252 = vmatpush1.xpose.msra.mxu0 0.0
      %5253 = vmatprep.subr.mxu0 0.0
      %5254 = vmatpush1.xpose.msra.mxu0 0.0
      %5255 = vmatprep.subr.mxu0 0.0
      %5256 = vmatpush1.xpose.msra.mxu0 0.0
      %5257 = vmatprep.subr.mxu0 0.0
      %5258 = vmatpush1.xpose.msra.mxu0 0.0
      %5259 = vmatprep.subr.mxu0 0.0
      %5260 = vmatpush1.xpose.msra.mxu0 0.0
      %5261 = vmatprep.subr.mxu0 0.0
      %5262 = vmatpush1.xpose.msra.mxu0 0.0
      %5263 = vmatprep.subr.mxu0 0.0
      %5264 = vmatpush1.xpose.msra.mxu0 0.0
      %5265 = vmatprep.subr.mxu0 0.0
      %5266 = vmatpush1.xpose.msra.mxu0 0.0
      %5267 = vmatprep.subr.mxu0 0.0
      %5268 = vmatpush1.xpose.msra.mxu0 0.0
      %5269 = vmatprep.subr.mxu0 0.0
      %5270 = vmatpush1.xpose.msra.mxu0 0.0
      %5271 = vmatprep.subr.mxu0 0.0
      %5272 = vmatpush1.xpose.msra.mxu0 0.0
      %5273 = vmatprep.subr.mxu0 0.0
      %5274 = vmatpush1.xpose.msra.mxu0 0.0
      %5275 = vmatprep.subr.mxu0 0.0
      %5276 = vmatpush1.xpose.msra.mxu0 0.0
      %5277 = vmatprep.subr.mxu0 0.0
      %5278 = vmatpush1.xpose.msra.mxu0 0.0
      %5279 = vmatprep.subr.mxu0 0.0
      %5280 = vmatpush1.xpose.msra.mxu0 0.0
      %5281 = vmatprep.subr.mxu0 0.0
      %5282 = vmatpush1.xpose.msra.mxu0 0.0
      %5283 = vmatprep.subr.mxu0 0.0
      %5284 = vmatpush1.xpose.msra.mxu0 0.0
      %5285 = vmatprep.subr.mxu0 0.0
      %5286 = vmatpush1.xpose.msra.mxu0 0.0
      %5287 = vmatprep.subr.mxu0 0.0
      %5288 = vmatpush1.xpose.msra.mxu0 0.0
      %5289 = vmatprep.subr.mxu0 0.0
      %5290 = vmatpush1.xpose.msra.mxu0 0.0
      %5291 = vmatprep.subr.mxu0 0.0
      %5292 = vmatpush1.xpose.msra.mxu0 0.0
      %5293 = vmatprep.subr.mxu0 0.0
      %5294 = vmatpush1.xpose.msra.mxu0 0.0
      %5295 = vmatprep.subr.mxu0 0.0
      %5296 = vmatpush1.xpose.msra.mxu0 0.0
      %5297 = vmatprep.subr.mxu0 0.0
      %5298 = vmatpush1.xpose.msra.mxu0 0.0
      %5299 = vmatprep.subr.mxu0 0.0
      %5300 = vmatpush1.xpose.msra.mxu0 0.0
      %5301 = vmatprep.subr.mxu0 0.0
      %5302 = vmatpush1.xpose.msra.mxu0 0.0
      %5303 = vmatprep.subr.mxu0 0.0
      %5304 = vmatpush1.xpose.msra.mxu0 0.0
      %5305 = vmatprep.subr.mxu0 0.0
      %5306 = vmatpush1.xpose.msra.mxu0 0.0
      %5307 = vmatprep.subr.mxu0 0.0
      %5308 = vmatpush1.xpose.msra.mxu0 0.0
      %5309 = vmatprep.subr.mxu0 0.0
      %5310 = vmatpush1.xpose.msra.mxu0 0.0
      %5311 = vmatprep.mubr.f32.mxu0 0.0
      %5312 = vmatmul.mubr.f32.gmra.mrb[0].mxu0 %v5241
      %v5313 = vpop.f32.mrb[0].mxu0
      %v5314 = vadd.f32 0.0, %v5313
      %v5315 = vpop.f32.mrb[0].mxu0
      %5316 = vdwg.mxu0
      %5318 = vrot.lane.b32.xlu0 %v5314, 16
      %v5319 = vpop.permute.xlu0 %5318
      %5321 = vst.msk [vmem:[#allocation3 + $0x10] sm:$0xff] %vm768, %v5319
      %5322 = vrot.lane.b32.xlu0 %v527, 112
      %v5323 = vpop.permute.xlu0 %5322
      %5324 = vrot.lane.b32.xlu0 %v4727, 16
      %v5325 = vpop.permute.xlu0 %5324
      %5326 = vrot.lane.b32.xlu0 %v4731, 16
      %v5327 = vpop.permute.xlu0 %5326
      %v5328 = vsel %vm644, %v5323, 0
      %v5330 = vsel %vm644, %v5325, 0
      %v5332 = vsel %vm644, %v5327, 0
      %5334 = vmatprep.subr.mxu0 0.0
      %5335 = vmatpush1.xpose.msra.mxu0 %v5330
      %5336 = vmatprep.subr.mxu0 0.0
      %5337 = vmatpush1.xpose.msra.mxu0 %v5332
      %5338 = vmatprep.subr.mxu0 0.0
      %5339 = vmatpush1.xpose.msra.mxu0 0.0
      %5340 = vmatprep.subr.mxu0 0.0
      %5341 = vmatpush1.xpose.msra.mxu0 0.0
      %5342 = vmatprep.subr.mxu0 0.0
      %5343 = vmatpush1.xpose.msra.mxu0 0.0
      %5344 = vmatprep.subr.mxu0 0.0
      %5345 = vmatpush1.xpose.msra.mxu0 0.0
      %5346 = vmatprep.subr.mxu0 0.0
      %5347 = vmatpush1.xpose.msra.mxu0 0.0
      %5348 = vmatprep.subr.mxu0 0.0
      %5349 = vmatpush1.xpose.msra.mxu0 0.0
      %5350 = vmatprep.subr.mxu0 0.0
      %5351 = vmatpush1.xpose.msra.mxu0 0.0
      %5352 = vmatprep.subr.mxu0 0.0
      %5353 = vmatpush1.xpose.msra.mxu0 0.0
      %5354 = vmatprep.subr.mxu0 0.0
      %5355 = vmatpush1.xpose.msra.mxu0 0.0
      %5356 = vmatprep.subr.mxu0 0.0
      %5357 = vmatpush1.xpose.msra.mxu0 0.0
      %5358 = vmatprep.subr.mxu0 0.0
      %5359 = vmatpush1.xpose.msra.mxu0 0.0
      %5360 = vmatprep.subr.mxu0 0.0
      %5361 = vmatpush1.xpose.msra.mxu0 0.0
      %5362 = vmatprep.subr.mxu0 0.0
      %5363 = vmatpush1.xpose.msra.mxu0 0.0
      %5364 = vmatprep.subr.mxu0 0.0
      %5365 = vmatpush1.xpose.msra.mxu0 0.0
      %5366 = vmatprep.subr.mxu0 0.0
      %5367 = vmatpush1.xpose.msra.mxu0 0.0
      %5368 = vmatprep.subr.mxu0 0.0
      %5369 = vmatpush1.xpose.msra.mxu0 0.0
      %5370 = vmatprep.subr.mxu0 0.0
      %5371 = vmatpush1.xpose.msra.mxu0 0.0
      %5372 = vmatprep.subr.mxu0 0.0
      %5373 = vmatpush1.xpose.msra.mxu0 0.0
      %5374 = vmatprep.subr.mxu0 0.0
      %5375 = vmatpush1.xpose.msra.mxu0 0.0
      %5376 = vmatprep.subr.mxu0 0.0
      %5377 = vmatpush1.xpose.msra.mxu0 0.0
      %5378 = vmatprep.subr.mxu0 0.0
      %5379 = vmatpush1.xpose.msra.mxu0 0.0
      %5380 = vmatprep.subr.mxu0 0.0
      %5381 = vmatpush1.xpose.msra.mxu0 0.0
      %5382 = vmatprep.subr.mxu0 0.0
      %5383 = vmatpush1.xpose.msra.mxu0 0.0
      %5384 = vmatprep.subr.mxu0 0.0
      %5385 = vmatpush1.xpose.msra.mxu0 0.0
      %5386 = vmatprep.subr.mxu0 0.0
      %5387 = vmatpush1.xpose.msra.mxu0 0.0
      %5388 = vmatprep.subr.mxu0 0.0
      %5389 = vmatpush1.xpose.msra.mxu0 0.0
      %5390 = vmatprep.subr.mxu0 0.0
      %5391 = vmatpush1.xpose.msra.mxu0 0.0
      %5392 = vmatprep.subr.mxu0 0.0
      %5393 = vmatpush1.xpose.msra.mxu0 0.0
      %5394 = vmatprep.subr.mxu0 0.0
      %5395 = vmatpush1.xpose.msra.mxu0 0.0
      %5396 = vmatprep.subr.mxu0 0.0
      %5397 = vmatpush1.xpose.msra.mxu0 0.0
      %5398 = vmatprep.mubr.f32.mxu0 0.0
      %5399 = vmatmul.mubr.f32.gmra.mrb[0].mxu0 %v5328
      %v5400 = vpop.f32.mrb[0].mxu0
      %v5401 = vadd.f32 0.0, %v5400
      %v5402 = vpop.f32.mrb[0].mxu0
      %5403 = vdwg.mxu0
      %5405 = vrot.lane.b32.xlu0 %v5401, 16
      %v5406 = vpop.permute.xlu0 %5405
      %5408 = vst.msk [vmem:[#allocation3 + $0x18] sm:$0xff] %vm768, %v5406
      %5409 = vrot.lane.b32.xlu0 %v512, 96
      %v5410 = vpop.permute.xlu0 %5409
      %v5411 = vsel %vm644, %v5410, 0
      %v5414 = vsel %vm644, %v4728, 0
      %v5417 = vsel %vm644, %v4732, 0
      %5419 = vmatprep.subr.mxu0 0.0
      %5420 = vmatpush1.xpose.msra.mxu0 %v5414
      %5421 = vmatprep.subr.mxu0 0.0
      %5422 = vmatpush1.xpose.msra.mxu0 %v5417
      %5423 = vmatprep.subr.mxu0 0.0
      %5424 = vmatpush1.xpose.msra.mxu0 0.0
      %5425 = vmatprep.subr.mxu0 0.0
      %5426 = vmatpush1.xpose.msra.mxu0 0.0
      %5427 = vmatprep.subr.mxu0 0.0
      %5428 = vmatpush1.xpose.msra.mxu0 0.0
      %5429 = vmatprep.subr.mxu0 0.0
      %5430 = vmatpush1.xpose.msra.mxu0 0.0
      %5431 = vmatprep.subr.mxu0 0.0
      %5432 = vmatpush1.xpose.msra.mxu0 0.0
      %5433 = vmatprep.subr.mxu0 0.0
      %5434 = vmatpush1.xpose.msra.mxu0 0.0
      %5435 = vmatprep.subr.mxu0 0.0
      %5436 = vmatpush1.xpose.msra.mxu0 0.0
      %5437 = vmatprep.subr.mxu0 0.0
      %5438 = vmatpush1.xpose.msra.mxu0 0.0
      %5439 = vmatprep.subr.mxu0 0.0
      %5440 = vmatpush1.xpose.msra.mxu0 0.0
      %5441 = vmatprep.subr.mxu0 0.0
      %5442 = vmatpush1.xpose.msra.mxu0 0.0
      %5443 = vmatprep.subr.mxu0 0.0
      %5444 = vmatpush1.xpose.msra.mxu0 0.0
      %5445 = vmatprep.subr.mxu0 0.0
      %5446 = vmatpush1.xpose.msra.mxu0 0.0
      %5447 = vmatprep.subr.mxu0 0.0
      %5448 = vmatpush1.xpose.msra.mxu0 0.0
      %5449 = vmatprep.subr.mxu0 0.0
      %5450 = vmatpush1.xpose.msra.mxu0 0.0
      %5451 = vmatprep.subr.mxu0 0.0
      %5452 = vmatpush1.xpose.msra.mxu0 0.0
      %5453 = vmatprep.subr.mxu0 0.0
      %5454 = vmatpush1.xpose.msra.mxu0 0.0
      %5455 = vmatprep.subr.mxu0 0.0
      %5456 = vmatpush1.xpose.msra.mxu0 0.0
      %5457 = vmatprep.subr.mxu0 0.0
      %5458 = vmatpush1.xpose.msra.mxu0 0.0
      %5459 = vmatprep.subr.mxu0 0.0
      %5460 = vmatpush1.xpose.msra.mxu0 0.0
      %5461 = vmatprep.subr.mxu0 0.0
      %5462 = vmatpush1.xpose.msra.mxu0 0.0
      %5463 = vmatprep.subr.mxu0 0.0
      %5464 = vmatpush1.xpose.msra.mxu0 0.0
      %5465 = vmatprep.subr.mxu0 0.0
      %5466 = vmatpush1.xpose.msra.mxu0 0.0
      %5467 = vmatprep.subr.mxu0 0.0
      %5468 = vmatpush1.xpose.msra.mxu0 0.0
      %5469 = vmatprep.subr.mxu0 0.0
      %5470 = vmatpush1.xpose.msra.mxu0 0.0
      %5471 = vmatprep.subr.mxu0 0.0
      %5472 = vmatpush1.xpose.msra.mxu0 0.0
      %5473 = vmatprep.subr.mxu0 0.0
      %5474 = vmatpush1.xpose.msra.mxu0 0.0
      %5475 = vmatprep.subr.mxu0 0.0
      %5476 = vmatpush1.xpose.msra.mxu0 0.0
      %5477 = vmatprep.subr.mxu0 0.0
      %5478 = vmatpush1.xpose.msra.mxu0 0.0
      %5479 = vmatprep.subr.mxu0 0.0
      %5480 = vmatpush1.xpose.msra.mxu0 0.0
      %5481 = vmatprep.subr.mxu0 0.0
      %5482 = vmatpush1.xpose.msra.mxu0 0.0
      %5483 = vmatprep.mubr.f32.mxu0 0.0
      %5484 = vmatmul.mubr.f32.gmra.mrb[0].mxu0 %v5411
      %v5485 = vpop.f32.mrb[0].mxu0
      %v5486 = vadd.f32 0.0, %v5485
      %v5487 = vpop.f32.mrb[0].mxu0
      %5488 = vdwg.mxu0
      %5490 = vrot.lane.b32.xlu0 %v5486, 32
      %v5491 = vpop.permute.xlu0 %5490
      %5493 = vst.msk [vmem:[#allocation3] sm:$0xff] %vm892, %v5491
      %5494 = vrot.lane.b32.xlu0 %v517, 96
      %v5495 = vpop.permute.xlu0 %5494
      %5496 = vrot.lane.b32.xlu0 %v4728, 112
      %v5497 = vpop.permute.xlu0 %5496
      %5498 = vrot.lane.b32.xlu0 %v4732, 112
      %v5499 = vpop.permute.xlu0 %5498
      %v5500 = vsel %vm644, %v5495, 0
      %v5502 = vsel %vm644, %v5497, 0
      %v5504 = vsel %vm644, %v5499, 0
      %5506 = vmatprep.subr.mxu0 0.0
      %5507 = vmatpush1.xpose.msra.mxu0 %v5502
      %5508 = vmatprep.subr.mxu0 0.0
      %5509 = vmatpush1.xpose.msra.mxu0 %v5504
      %5510 = vmatprep.subr.mxu0 0.0
      %5511 = vmatpush1.xpose.msra.mxu0 0.0
      %5512 = vmatprep.subr.mxu0 0.0
      %5513 = vmatpush1.xpose.msra.mxu0 0.0
      %5514 = vmatprep.subr.mxu0 0.0
      %5515 = vmatpush1.xpose.msra.mxu0 0.0
      %5516 = vmatprep.subr.mxu0 0.0
      %5517 = vmatpush1.xpose.msra.mxu0 0.0
      %5518 = vmatprep.subr.mxu0 0.0
      %5519 = vmatpush1.xpose.msra.mxu0 0.0
      %5520 = vmatprep.subr.mxu0 0.0
      %5521 = vmatpush1.xpose.msra.mxu0 0.0
      %5522 = vmatprep.subr.mxu0 0.0
      %5523 = vmatpush1.xpose.msra.mxu0 0.0
      %5524 = vmatprep.subr.mxu0 0.0
      %5525 = vmatpush1.xpose.msra.mxu0 0.0
      %5526 = vmatprep.subr.mxu0 0.0
      %5527 = vmatpush1.xpose.msra.mxu0 0.0
      %5528 = vmatprep.subr.mxu0 0.0
      %5529 = vmatpush1.xpose.msra.mxu0 0.0
      %5530 = vmatprep.subr.mxu0 0.0
      %5531 = vmatpush1.xpose.msra.mxu0 0.0
      %5532 = vmatprep.subr.mxu0 0.0
      %5533 = vmatpush1.xpose.msra.mxu0 0.0
      %5534 = vmatprep.subr.mxu0 0.0
      %5535 = vmatpush1.xpose.msra.mxu0 0.0
      %5536 = vmatprep.subr.mxu0 0.0
      %5537 = vmatpush1.xpose.msra.mxu0 0.0
      %5538 = vmatprep.subr.mxu0 0.0
      %5539 = vmatpush1.xpose.msra.mxu0 0.0
      %5540 = vmatprep.subr.mxu0 0.0
      %5541 = vmatpush1.xpose.msra.mxu0 0.0
      %5542 = vmatprep.subr.mxu0 0.0
      %5543 = vmatpush1.xpose.msra.mxu0 0.0
      %5544 = vmatprep.subr.mxu0 0.0
      %5545 = vmatpush1.xpose.msra.mxu0 0.0
      %5546 = vmatprep.subr.mxu0 0.0
      %5547 = vmatpush1.xpose.msra.mxu0 0.0
      %5548 = vmatprep.subr.mxu0 0.0
      %5549 = vmatpush1.xpose.msra.mxu0 0.0
      %5550 = vmatprep.subr.mxu0 0.0
      %5551 = vmatpush1.xpose.msra.mxu0 0.0
      %5552 = vmatprep.subr.mxu0 0.0
      %5553 = vmatpush1.xpose.msra.mxu0 0.0
      %5554 = vmatprep.subr.mxu0 0.0
      %5555 = vmatpush1.xpose.msra.mxu0 0.0
      %5556 = vmatprep.subr.mxu0 0.0
      %5557 = vmatpush1.xpose.msra.mxu0 0.0
      %5558 = vmatprep.subr.mxu0 0.0
      %5559 = vmatpush1.xpose.msra.mxu0 0.0
      %5560 = vmatprep.subr.mxu0 0.0
      %5561 = vmatpush1.xpose.msra.mxu0 0.0
      %5562 = vmatprep.subr.mxu0 0.0
      %5563 = vmatpush1.xpose.msra.mxu0 0.0
      %5564 = vmatprep.subr.mxu0 0.0
      %5565 = vmatpush1.xpose.msra.mxu0 0.0
      %5566 = vmatprep.subr.mxu0 0.0
      %5567 = vmatpush1.xpose.msra.mxu0 0.0
      %5568 = vmatprep.subr.mxu0 0.0
      %5569 = vmatpush1.xpose.msra.mxu0 0.0
      %5570 = vmatprep.mubr.f32.mxu0 0.0
      %5571 = vmatmul.mubr.f32.gmra.mrb[0].mxu0 %v5500
      %v5572 = vpop.f32.mrb[0].mxu0
      %v5573 = vadd.f32 0.0, %v5572
      %v5574 = vpop.f32.mrb[0].mxu0
      %5575 = vdwg.mxu0
      %5577 = vrot.lane.b32.xlu0 %v5573, 32
      %v5578 = vpop.permute.xlu0 %5577
      %5580 = vst.msk [vmem:[#allocation3 + $0x8] sm:$0xff] %vm892, %v5578
      %5581 = vrot.lane.b32.xlu0 %v522, 96
      %v5582 = vpop.permute.xlu0 %5581
      %5583 = vrot.lane.b32.xlu0 %v4728, 96
      %v5584 = vpop.permute.xlu0 %5583
      %5585 = vrot.lane.b32.xlu0 %v4732, 96
      %v5586 = vpop.permute.xlu0 %5585
      %v5587 = vsel %vm644, %v5582, 0
      %v5589 = vsel %vm644, %v5584, 0
      %v5591 = vsel %vm644, %v5586, 0
      %5593 = vmatprep.subr.mxu0 0.0
      %5594 = vmatpush1.xpose.msra.mxu0 %v5589
      %5595 = vmatprep.subr.mxu0 0.0
      %5596 = vmatpush1.xpose.msra.mxu0 %v5591
      %5597 = vmatprep.subr.mxu0 0.0
      %5598 = vmatpush1.xpose.msra.mxu0 0.0
      %5599 = vmatprep.subr.mxu0 0.0
      %5600 = vmatpush1.xpose.msra.mxu0 0.0
      %5601 = vmatprep.subr.mxu0 0.0
      %5602 = vmatpush1.xpose.msra.mxu0 0.0
      %5603 = vmatprep.subr.mxu0 0.0
      %5604 = vmatpush1.xpose.msra.mxu0 0.0
      %5605 = vmatprep.subr.mxu0 0.0
      %5606 = vmatpush1.xpose.msra.mxu0 0.0
      %5607 = vmatprep.subr.mxu0 0.0
      %5608 = vmatpush1.xpose.msra.mxu0 0.0
      %5609 = vmatprep.subr.mxu0 0.0
      %5610 = vmatpush1.xpose.msra.mxu0 0.0
      %5611 = vmatprep.subr.mxu0 0.0
      %5612 = vmatpush1.xpose.msra.mxu0 0.0
      %5613 = vmatprep.subr.mxu0 0.0
      %5614 = vmatpush1.xpose.msra.mxu0 0.0
      %5615 = vmatprep.subr.mxu0 0.0
      %5616 = vmatpush1.xpose.msra.mxu0 0.0
      %5617 = vmatprep.subr.mxu0 0.0
      %5618 = vmatpush1.xpose.msra.mxu0 0.0
      %5619 = vmatprep.subr.mxu0 0.0
      %5620 = vmatpush1.xpose.msra.mxu0 0.0
      %5621 = vmatprep.subr.mxu0 0.0
      %5622 = vmatpush1.xpose.msra.mxu0 0.0
      %5623 = vmatprep.subr.mxu0 0.0
      %5624 = vmatpush1.xpose.msra.mxu0 0.0
      %5625 = vmatprep.subr.mxu0 0.0
      %5626 = vmatpush1.xpose.msra.mxu0 0.0
      %5627 = vmatprep.subr.mxu0 0.0
      %5628 = vmatpush1.xpose.msra.mxu0 0.0
      %5629 = vmatprep.subr.mxu0 0.0
      %5630 = vmatpush1.xpose.msra.mxu0 0.0
      %5631 = vmatprep.subr.mxu0 0.0
      %5632 = vmatpush1.xpose.msra.mxu0 0.0
      %5633 = vmatprep.subr.mxu0 0.0
      %5634 = vmatpush1.xpose.msra.mxu0 0.0
      %5635 = vmatprep.subr.mxu0 0.0
      %5636 = vmatpush1.xpose.msra.mxu0 0.0
      %5637 = vmatprep.subr.mxu0 0.0
      %5638 = vmatpush1.xpose.msra.mxu0 0.0
      %5639 = vmatprep.subr.mxu0 0.0
      %5640 = vmatpush1.xpose.msra.mxu0 0.0
      %5641 = vmatprep.subr.mxu0 0.0
      %5642 = vmatpush1.xpose.msra.mxu0 0.0
      %5643 = vmatprep.subr.mxu0 0.0
      %5644 = vmatpush1.xpose.msra.mxu0 0.0
      %5645 = vmatprep.subr.mxu0 0.0
      %5646 = vmatpush1.xpose.msra.mxu0 0.0
      %5647 = vmatprep.subr.mxu0 0.0
      %5648 = vmatpush1.xpose.msra.mxu0 0.0
      %5649 = vmatprep.subr.mxu0 0.0
      %5650 = vmatpush1.xpose.msra.mxu0 0.0
      %5651 = vmatprep.subr.mxu0 0.0
      %5652 = vmatpush1.xpose.msra.mxu0 0.0
      %5653 = vmatprep.subr.mxu0 0.0
      %5654 = vmatpush1.xpose.msra.mxu0 0.0
      %5655 = vmatprep.subr.mxu0 0.0
      %5656 = vmatpush1.xpose.msra.mxu0 0.0
      %5657 = vmatprep.mubr.f32.mxu0 0.0
      %5658 = vmatmul.mubr.f32.gmra.mrb[0].mxu0 %v5587
      %v5659 = vpop.f32.mrb[0].mxu0
      %v5660 = vadd.f32 0.0, %v5659
      %v5661 = vpop.f32.mrb[0].mxu0
      %5662 = vdwg.mxu0
      %5664 = vrot.lane.b32.xlu0 %v5660, 32
      %v5665 = vpop.permute.xlu0 %5664
      %5667 = vst.msk [vmem:[#allocation3 + $0x10] sm:$0xff] %vm892, %v5665
      %5668 = vrot.lane.b32.xlu0 %v527, 96
      %v5669 = vpop.permute.xlu0 %5668
      %5670 = vrot.lane.b32.xlu0 %v4728, 80
      %v5671 = vpop.permute.xlu0 %5670
      %5672 = vrot.lane.b32.xlu0 %v4732, 80
      %v5673 = vpop.permute.xlu0 %5672
      %v5674 = vsel %vm644, %v5669, 0
      %v5676 = vsel %vm644, %v5671, 0
      %v5678 = vsel %vm644, %v5673, 0
      %5680 = vmatprep.subr.mxu0 0.0
      %5681 = vmatpush1.xpose.msra.mxu0 %v5676
      %5682 = vmatprep.subr.mxu0 0.0
      %5683 = vmatpush1.xpose.msra.mxu0 %v5678
      %5684 = vmatprep.subr.mxu0 0.0
      %5685 = vmatpush1.xpose.msra.mxu0 0.0
      %5686 = vmatprep.subr.mxu0 0.0
      %5687 = vmatpush1.xpose.msra.mxu0 0.0
      %5688 = vmatprep.subr.mxu0 0.0
      %5689 = vmatpush1.xpose.msra.mxu0 0.0
      %5690 = vmatprep.subr.mxu0 0.0
      %5691 = vmatpush1.xpose.msra.mxu0 0.0
      %5692 = vmatprep.subr.mxu0 0.0
      %5693 = vmatpush1.xpose.msra.mxu0 0.0
      %5694 = vmatprep.subr.mxu0 0.0
      %5695 = vmatpush1.xpose.msra.mxu0 0.0
      %5696 = vmatprep.subr.mxu0 0.0
      %5697 = vmatpush1.xpose.msra.mxu0 0.0
      %5698 = vmatprep.subr.mxu0 0.0
      %5699 = vmatpush1.xpose.msra.mxu0 0.0
      %5700 = vmatprep.subr.mxu0 0.0
      %5701 = vmatpush1.xpose.msra.mxu0 0.0
      %5702 = vmatprep.subr.mxu0 0.0
      %5703 = vmatpush1.xpose.msra.mxu0 0.0
      %5704 = vmatprep.subr.mxu0 0.0
      %5705 = vmatpush1.xpose.msra.mxu0 0.0
      %5706 = vmatprep.subr.mxu0 0.0
      %5707 = vmatpush1.xpose.msra.mxu0 0.0
      %5708 = vmatprep.subr.mxu0 0.0
      %5709 = vmatpush1.xpose.msra.mxu0 0.0
      %5710 = vmatprep.subr.mxu0 0.0
      %5711 = vmatpush1.xpose.msra.mxu0 0.0
      %5712 = vmatprep.subr.mxu0 0.0
      %5713 = vmatpush1.xpose.msra.mxu0 0.0
      %5714 = vmatprep.subr.mxu0 0.0
      %5715 = vmatpush1.xpose.msra.mxu0 0.0
      %5716 = vmatprep.subr.mxu0 0.0
      %5717 = vmatpush1.xpose.msra.mxu0 0.0
      %5718 = vmatprep.subr.mxu0 0.0
      %5719 = vmatpush1.xpose.msra.mxu0 0.0
      %5720 = vmatprep.subr.mxu0 0.0
      %5721 = vmatpush1.xpose.msra.mxu0 0.0
      %5722 = vmatprep.subr.mxu0 0.0
      %5723 = vmatpush1.xpose.msra.mxu0 0.0
      %5724 = vmatprep.subr.mxu0 0.0
      %5725 = vmatpush1.xpose.msra.mxu0 0.0
      %5726 = vmatprep.subr.mxu0 0.0
      %5727 = vmatpush1.xpose.msra.mxu0 0.0
      %5728 = vmatprep.subr.mxu0 0.0
      %5729 = vmatpush1.xpose.msra.mxu0 0.0
      %5730 = vmatprep.subr.mxu0 0.0
      %5731 = vmatpush1.xpose.msra.mxu0 0.0
      %5732 = vmatprep.subr.mxu0 0.0
      %5733 = vmatpush1.xpose.msra.mxu0 0.0
      %5734 = vmatprep.subr.mxu0 0.0
      %5735 = vmatpush1.xpose.msra.mxu0 0.0
      %5736 = vmatprep.subr.mxu0 0.0
      %5737 = vmatpush1.xpose.msra.mxu0 0.0
      %5738 = vmatprep.subr.mxu0 0.0
      %5739 = vmatpush1.xpose.msra.mxu0 0.0
      %5740 = vmatprep.subr.mxu0 0.0
      %5741 = vmatpush1.xpose.msra.mxu0 0.0
      %5742 = vmatprep.subr.mxu0 0.0
      %5743 = vmatpush1.xpose.msra.mxu0 0.0
      %5744 = vmatprep.mubr.f32.mxu0 0.0
      %5745 = vmatmul.mubr.f32.gmra.mrb[0].mxu0 %v5674
      %v5746 = vpop.f32.mrb[0].mxu0
      %v5747 = vadd.f32 0.0, %v5746
      %v5748 = vpop.f32.mrb[0].mxu0
      %5749 = vdwg.mxu0
      %5751 = vrot.lane.b32.xlu0 %v5747, 32
      %v5752 = vpop.permute.xlu0 %5751
      %5754 = vst.msk [vmem:[#allocation3 + $0x18] sm:$0xff] %vm892, %v5752
      %5755 = vrot.lane.b32.xlu0 %v512, 80
      %v5756 = vpop.permute.xlu0 %5755
      %5757 = vrot.lane.b32.xlu0 %v4728, 64
      %v5758 = vpop.permute.xlu0 %5757
      %5759 = vrot.lane.b32.xlu0 %v4732, 64
      %v5760 = vpop.permute.xlu0 %5759
      %v5761 = vsel %vm644, %v5756, 0
      %v5763 = vsel %vm644, %v5758, 0
      %v5765 = vsel %vm644, %v5760, 0
      %5767 = vmatprep.subr.mxu0 0.0
      %5768 = vmatpush1.xpose.msra.mxu0 %v5763
      %5769 = vmatprep.subr.mxu0 0.0
      %5770 = vmatpush1.xpose.msra.mxu0 %v5765
      %5771 = vmatprep.subr.mxu0 0.0
      %5772 = vmatpush1.xpose.msra.mxu0 0.0
      %5773 = vmatprep.subr.mxu0 0.0
      %5774 = vmatpush1.xpose.msra.mxu0 0.0
      %5775 = vmatprep.subr.mxu0 0.0
      %5776 = vmatpush1.xpose.msra.mxu0 0.0
      %5777 = vmatprep.subr.mxu0 0.0
      %5778 = vmatpush1.xpose.msra.mxu0 0.0
      %5779 = vmatprep.subr.mxu0 0.0
      %5780 = vmatpush1.xpose.msra.mxu0 0.0
      %5781 = vmatprep.subr.mxu0 0.0
      %5782 = vmatpush1.xpose.msra.mxu0 0.0
      %5783 = vmatprep.subr.mxu0 0.0
      %5784 = vmatpush1.xpose.msra.mxu0 0.0
      %5785 = vmatprep.subr.mxu0 0.0
      %5786 = vmatpush1.xpose.msra.mxu0 0.0
      %5787 = vmatprep.subr.mxu0 0.0
      %5788 = vmatpush1.xpose.msra.mxu0 0.0
      %5789 = vmatprep.subr.mxu0 0.0
      %5790 = vmatpush1.xpose.msra.mxu0 0.0
      %5791 = vmatprep.subr.mxu0 0.0
      %5792 = vmatpush1.xpose.msra.mxu0 0.0
      %5793 = vmatprep.subr.mxu0 0.0
      %5794 = vmatpush1.xpose.msra.mxu0 0.0
      %5795 = vmatprep.subr.mxu0 0.0
      %5796 = vmatpush1.xpose.msra.mxu0 0.0
      %5797 = vmatprep.subr.mxu0 0.0
      %5798 = vmatpush1.xpose.msra.mxu0 0.0
      %5799 = vmatprep.subr.mxu0 0.0
      %5800 = vmatpush1.xpose.msra.mxu0 0.0
      %5801 = vmatprep.subr.mxu0 0.0
      %5802 = vmatpush1.xpose.msra.mxu0 0.0
      %5803 = vmatprep.subr.mxu0 0.0
      %5804 = vmatpush1.xpose.msra.mxu0 0.0
      %5805 = vmatprep.subr.mxu0 0.0
      %5806 = vmatpush1.xpose.msra.mxu0 0.0
      %5807 = vmatprep.subr.mxu0 0.0
      %5808 = vmatpush1.xpose.msra.mxu0 0.0
      %5809 = vmatprep.subr.mxu0 0.0
      %5810 = vmatpush1.xpose.msra.mxu0 0.0
      %5811 = vmatprep.subr.mxu0 0.0
      %5812 = vmatpush1.xpose.msra.mxu0 0.0
      %5813 = vmatprep.subr.mxu0 0.0
      %5814 = vmatpush1.xpose.msra.mxu0 0.0
      %5815 = vmatprep.subr.mxu0 0.0
      %5816 = vmatpush1.xpose.msra.mxu0 0.0
      %5817 = vmatprep.subr.mxu0 0.0
      %5818 = vmatpush1.xpose.msra.mxu0 0.0
      %5819 = vmatprep.subr.mxu0 0.0
      %5820 = vmatpush1.xpose.msra.mxu0 0.0
      %5821 = vmatprep.subr.mxu0 0.0
      %5822 = vmatpush1.xpose.msra.mxu0 0.0
      %5823 = vmatprep.subr.mxu0 0.0
      %5824 = vmatpush1.xpose.msra.mxu0 0.0
      %5825 = vmatprep.subr.mxu0 0.0
      %5826 = vmatpush1.xpose.msra.mxu0 0.0
      %5827 = vmatprep.subr.mxu0 0.0
      %5828 = vmatpush1.xpose.msra.mxu0 0.0
      %5829 = vmatprep.subr.mxu0 0.0
      %5830 = vmatpush1.xpose.msra.mxu0 0.0
      %5831 = vmatprep.mubr.f32.mxu0 0.0
      %5832 = vmatmul.mubr.f32.gmra.mrb[0].mxu0 %v5761
      %v5833 = vpop.f32.mrb[0].mxu0
      %v5834 = vadd.f32 0.0, %v5833
      %v5835 = vpop.f32.mrb[0].mxu0
      %5836 = vdwg.mxu0
      %5838 = vrot.lane.b32.xlu0 %v5834, 48
      %v5839 = vpop.permute.xlu0 %5838
      %5841 = vst.msk [vmem:[#allocation3] sm:$0xff] %vm1016, %v5839
      %5842 = vrot.lane.b32.xlu0 %v517, 80
      %v5843 = vpop.permute.xlu0 %5842
      %5844 = vrot.lane.b32.xlu0 %v4728, 48
      %v5845 = vpop.permute.xlu0 %5844
      %5846 = vrot.lane.b32.xlu0 %v4732, 48
      %v5847 = vpop.permute.xlu0 %5846
      %v5848 = vsel %vm644, %v5843, 0
      %v5850 = vsel %vm644, %v5845, 0
      %v5852 = vsel %vm644, %v5847, 0
      %5854 = vmatprep.subr.mxu0 0.0
      %5855 = vmatpush1.xpose.msra.mxu0 %v5850
      %5856 = vmatprep.subr.mxu0 0.0
      %5857 = vmatpush1.xpose.msra.mxu0 %v5852
      %5858 = vmatprep.subr.mxu0 0.0
      %5859 = vmatpush1.xpose.msra.mxu0 0.0
      %5860 = vmatprep.subr.mxu0 0.0
      %5861 = vmatpush1.xpose.msra.mxu0 0.0
      %5862 = vmatprep.subr.mxu0 0.0
      %5863 = vmatpush1.xpose.msra.mxu0 0.0
      %5864 = vmatprep.subr.mxu0 0.0
      %5865 = vmatpush1.xpose.msra.mxu0 0.0
      %5866 = vmatprep.subr.mxu0 0.0
      %5867 = vmatpush1.xpose.msra.mxu0 0.0
      %5868 = vmatprep.subr.mxu0 0.0
      %5869 = vmatpush1.xpose.msra.mxu0 0.0
      %5870 = vmatprep.subr.mxu0 0.0
      %5871 = vmatpush1.xpose.msra.mxu0 0.0
      %5872 = vmatprep.subr.mxu0 0.0
      %5873 = vmatpush1.xpose.msra.mxu0 0.0
      %5874 = vmatprep.subr.mxu0 0.0
      %5875 = vmatpush1.xpose.msra.mxu0 0.0
      %5876 = vmatprep.subr.mxu0 0.0
      %5877 = vmatpush1.xpose.msra.mxu0 0.0
      %5878 = vmatprep.subr.mxu0 0.0
      %5879 = vmatpush1.xpose.msra.mxu0 0.0
      %5880 = vmatprep.subr.mxu0 0.0
      %5881 = vmatpush1.xpose.msra.mxu0 0.0
      %5882 = vmatprep.subr.mxu0 0.0
      %5883 = vmatpush1.xpose.msra.mxu0 0.0
      %5884 = vmatprep.subr.mxu0 0.0
      %5885 = vmatpush1.xpose.msra.mxu0 0.0
      %5886 = vmatprep.subr.mxu0 0.0
      %5887 = vmatpush1.xpose.msra.mxu0 0.0
      %5888 = vmatprep.subr.mxu0 0.0
      %5889 = vmatpush1.xpose.msra.mxu0 0.0
      %5890 = vmatprep.subr.mxu0 0.0
      %5891 = vmatpush1.xpose.msra.mxu0 0.0
      %5892 = vmatprep.subr.mxu0 0.0
      %5893 = vmatpush1.xpose.msra.mxu0 0.0
      %5894 = vmatprep.subr.mxu0 0.0
      %5895 = vmatpush1.xpose.msra.mxu0 0.0
      %5896 = vmatprep.subr.mxu0 0.0
      %5897 = vmatpush1.xpose.msra.mxu0 0.0
      %5898 = vmatprep.subr.mxu0 0.0
      %5899 = vmatpush1.xpose.msra.mxu0 0.0
      %5900 = vmatprep.subr.mxu0 0.0
      %5901 = vmatpush1.xpose.msra.mxu0 0.0
      %5902 = vmatprep.subr.mxu0 0.0
      %5903 = vmatpush1.xpose.msra.mxu0 0.0
      %5904 = vmatprep.subr.mxu0 0.0
      %5905 = vmatpush1.xpose.msra.mxu0 0.0
      %5906 = vmatprep.subr.mxu0 0.0
      %5907 = vmatpush1.xpose.msra.mxu0 0.0
      %5908 = vmatprep.subr.mxu0 0.0
      %5909 = vmatpush1.xpose.msra.mxu0 0.0
      %5910 = vmatprep.subr.mxu0 0.0
      %5911 = vmatpush1.xpose.msra.mxu0 0.0
      %5912 = vmatprep.subr.mxu0 0.0
      %5913 = vmatpush1.xpose.msra.mxu0 0.0
      %5914 = vmatprep.subr.mxu0 0.0
      %5915 = vmatpush1.xpose.msra.mxu0 0.0
      %5916 = vmatprep.subr.mxu0 0.0
      %5917 = vmatpush1.xpose.msra.mxu0 0.0
      %5918 = vmatprep.mubr.f32.mxu0 0.0
      %5919 = vmatmul.mubr.f32.gmra.mrb[0].mxu0 %v5848
      %v5920 = vpop.f32.mrb[0].mxu0
      %v5921 = vadd.f32 0.0, %v5920
      %v5922 = vpop.f32.mrb[0].mxu0
      %5923 = vdwg.mxu0
      %5925 = vrot.lane.b32.xlu0 %v5921, 48
      %v5926 = vpop.permute.xlu0 %5925
      %5928 = vst.msk [vmem:[#allocation3 + $0x8] sm:$0xff] %vm1016, %v5926
      %5929 = vrot.lane.b32.xlu0 %v522, 80
      %v5930 = vpop.permute.xlu0 %5929
      %5931 = vrot.lane.b32.xlu0 %v4728, 32
      %v5932 = vpop.permute.xlu0 %5931
      %5933 = vrot.lane.b32.xlu0 %v4732, 32
      %v5934 = vpop.permute.xlu0 %5933
      %v5935 = vsel %vm644, %v5930, 0
      %v5937 = vsel %vm644, %v5932, 0
      %v5939 = vsel %vm644, %v5934, 0
      %5941 = vmatprep.subr.mxu0 0.0
      %5942 = vmatpush1.xpose.msra.mxu0 %v5937
      %5943 = vmatprep.subr.mxu0 0.0
      %5944 = vmatpush1.xpose.msra.mxu0 %v5939
      %5945 = vmatprep.subr.mxu0 0.0
      %5946 = vmatpush1.xpose.msra.mxu0 0.0
      %5947 = vmatprep.subr.mxu0 0.0
      %5948 = vmatpush1.xpose.msra.mxu0 0.0
      %5949 = vmatprep.subr.mxu0 0.0
      %5950 = vmatpush1.xpose.msra.mxu0 0.0
      %5951 = vmatprep.subr.mxu0 0.0
      %5952 = vmatpush1.xpose.msra.mxu0 0.0
      %5953 = vmatprep.subr.mxu0 0.0
      %5954 = vmatpush1.xpose.msra.mxu0 0.0
      %5955 = vmatprep.subr.mxu0 0.0
      %5956 = vmatpush1.xpose.msra.mxu0 0.0
      %5957 = vmatprep.subr.mxu0 0.0
      %5958 = vmatpush1.xpose.msra.mxu0 0.0
      %5959 = vmatprep.subr.mxu0 0.0
      %5960 = vmatpush1.xpose.msra.mxu0 0.0
      %5961 = vmatprep.subr.mxu0 0.0
      %5962 = vmatpush1.xpose.msra.mxu0 0.0
      %5963 = vmatprep.subr.mxu0 0.0
      %5964 = vmatpush1.xpose.msra.mxu0 0.0
      %5965 = vmatprep.subr.mxu0 0.0
      %5966 = vmatpush1.xpose.msra.mxu0 0.0
      %5967 = vmatprep.subr.mxu0 0.0
      %5968 = vmatpush1.xpose.msra.mxu0 0.0
      %5969 = vmatprep.subr.mxu0 0.0
      %5970 = vmatpush1.xpose.msra.mxu0 0.0
      %5971 = vmatprep.subr.mxu0 0.0
      %5972 = vmatpush1.xpose.msra.mxu0 0.0
      %5973 = vmatprep.subr.mxu0 0.0
      %5974 = vmatpush1.xpose.msra.mxu0 0.0
      %5975 = vmatprep.subr.mxu0 0.0
      %5976 = vmatpush1.xpose.msra.mxu0 0.0
      %5977 = vmatprep.subr.mxu0 0.0
      %5978 = vmatpush1.xpose.msra.mxu0 0.0
      %5979 = vmatprep.subr.mxu0 0.0
      %5980 = vmatpush1.xpose.msra.mxu0 0.0
      %5981 = vmatprep.subr.mxu0 0.0
      %5982 = vmatpush1.xpose.msra.mxu0 0.0
      %5983 = vmatprep.subr.mxu0 0.0
      %5984 = vmatpush1.xpose.msra.mxu0 0.0
      %5985 = vmatprep.subr.mxu0 0.0
      %5986 = vmatpush1.xpose.msra.mxu0 0.0
      %5987 = vmatprep.subr.mxu0 0.0
      %5988 = vmatpush1.xpose.msra.mxu0 0.0
      %5989 = vmatprep.subr.mxu0 0.0
      %5990 = vmatpush1.xpose.msra.mxu0 0.0
      %5991 = vmatprep.subr.mxu0 0.0
      %5992 = vmatpush1.xpose.msra.mxu0 0.0
      %5993 = vmatprep.subr.mxu0 0.0
      %5994 = vmatpush1.xpose.msra.mxu0 0.0
      %5995 = vmatprep.subr.mxu0 0.0
      %5996 = vmatpush1.xpose.msra.mxu0 0.0
      %5997 = vmatprep.subr.mxu0 0.0
      %5998 = vmatpush1.xpose.msra.mxu0 0.0
      %5999 = vmatprep.subr.mxu0 0.0
      %6000 = vmatpush1.xpose.msra.mxu0 0.0
      %6001 = vmatprep.subr.mxu0 0.0
      %6002 = vmatpush1.xpose.msra.mxu0 0.0
      %6003 = vmatprep.subr.mxu0 0.0
      %6004 = vmatpush1.xpose.msra.mxu0 0.0
      %6005 = vmatprep.mubr.f32.mxu0 0.0
      %6006 = vmatmul.mubr.f32.gmra.mrb[0].mxu0 %v5935
      %v6007 = vpop.f32.mrb[0].mxu0
      %v6008 = vadd.f32 0.0, %v6007
      %v6009 = vpop.f32.mrb[0].mxu0
      %6010 = vdwg.mxu0
      %6012 = vrot.lane.b32.xlu0 %v6008, 48
      %v6013 = vpop.permute.xlu0 %6012
      %6015 = vst.msk [vmem:[#allocation3 + $0x10] sm:$0xff] %vm1016, %v6013
      %6016 = vrot.lane.b32.xlu0 %v527, 80
      %v6017 = vpop.permute.xlu0 %6016
      %6018 = vrot.lane.b32.xlu0 %v4728, 16
      %v6019 = vpop.permute.xlu0 %6018
      %6020 = vrot.lane.b32.xlu0 %v4732, 16
      %v6021 = vpop.permute.xlu0 %6020
      %v6022 = vsel %vm644, %v6017, 0
      %v6024 = vsel %vm644, %v6019, 0
      %v6026 = vsel %vm644, %v6021, 0
      %6028 = vmatprep.subr.mxu0 0.0
      %6029 = vmatpush1.xpose.msra.mxu0 %v6024
      %6030 = vmatprep.subr.mxu0 0.0
      %6031 = vmatpush1.xpose.msra.mxu0 %v6026
      %6032 = vmatprep.subr.mxu0 0.0
      %6033 = vmatpush1.xpose.msra.mxu0 0.0
      %6034 = vmatprep.subr.mxu0 0.0
      %6035 = vmatpush1.xpose.msra.mxu0 0.0
      %6036 = vmatprep.subr.mxu0 0.0
      %6037 = vmatpush1.xpose.msra.mxu0 0.0
      %6038 = vmatprep.subr.mxu0 0.0
      %6039 = vmatpush1.xpose.msra.mxu0 0.0
      %6040 = vmatprep.subr.mxu0 0.0
      %6041 = vmatpush1.xpose.msra.mxu0 0.0
      %6042 = vmatprep.subr.mxu0 0.0
      %6043 = vmatpush1.xpose.msra.mxu0 0.0
      %6044 = vmatprep.subr.mxu0 0.0
      %6045 = vmatpush1.xpose.msra.mxu0 0.0
      %6046 = vmatprep.subr.mxu0 0.0
      %6047 = vmatpush1.xpose.msra.mxu0 0.0
      %6048 = vmatprep.subr.mxu0 0.0
      %6049 = vmatpush1.xpose.msra.mxu0 0.0
      %6050 = vmatprep.subr.mxu0 0.0
      %6051 = vmatpush1.xpose.msra.mxu0 0.0
      %6052 = vmatprep.subr.mxu0 0.0
      %6053 = vmatpush1.xpose.msra.mxu0 0.0
      %6054 = vmatprep.subr.mxu0 0.0
      %6055 = vmatpush1.xpose.msra.mxu0 0.0
      %6056 = vmatprep.subr.mxu0 0.0
      %6057 = vmatpush1.xpose.msra.mxu0 0.0
      %6058 = vmatprep.subr.mxu0 0.0
      %6059 = vmatpush1.xpose.msra.mxu0 0.0
      %6060 = vmatprep.subr.mxu0 0.0
      %6061 = vmatpush1.xpose.msra.mxu0 0.0
      %6062 = vmatprep.subr.mxu0 0.0
      %6063 = vmatpush1.xpose.msra.mxu0 0.0
      %6064 = vmatprep.subr.mxu0 0.0
      %6065 = vmatpush1.xpose.msra.mxu0 0.0
      %6066 = vmatprep.subr.mxu0 0.0
      %6067 = vmatpush1.xpose.msra.mxu0 0.0
      %6068 = vmatprep.subr.mxu0 0.0
      %6069 = vmatpush1.xpose.msra.mxu0 0.0
      %6070 = vmatprep.subr.mxu0 0.0
      %6071 = vmatpush1.xpose.msra.mxu0 0.0
      %6072 = vmatprep.subr.mxu0 0.0
      %6073 = vmatpush1.xpose.msra.mxu0 0.0
      %6074 = vmatprep.subr.mxu0 0.0
      %6075 = vmatpush1.xpose.msra.mxu0 0.0
      %6076 = vmatprep.subr.mxu0 0.0
      %6077 = vmatpush1.xpose.msra.mxu0 0.0
      %6078 = vmatprep.subr.mxu0 0.0
      %6079 = vmatpush1.xpose.msra.mxu0 0.0
      %6080 = vmatprep.subr.mxu0 0.0
      %6081 = vmatpush1.xpose.msra.mxu0 0.0
      %6082 = vmatprep.subr.mxu0 0.0
      %6083 = vmatpush1.xpose.msra.mxu0 0.0
      %6084 = vmatprep.subr.mxu0 0.0
      %6085 = vmatpush1.xpose.msra.mxu0 0.0
      %6086 = vmatprep.subr.mxu0 0.0
      %6087 = vmatpush1.xpose.msra.mxu0 0.0
      %6088 = vmatprep.subr.mxu0 0.0
      %6089 = vmatpush1.xpose.msra.mxu0 0.0
      %6090 = vmatprep.subr.mxu0 0.0
      %6091 = vmatpush1.xpose.msra.mxu0 0.0
      %6092 = vmatprep.mubr.f32.mxu0 0.0
      %6093 = vmatmul.mubr.f32.gmra.mrb[0].mxu0 %v6022
      %v6094 = vpop.f32.mrb[0].mxu0
      %v6095 = vadd.f32 0.0, %v6094
      %v6096 = vpop.f32.mrb[0].mxu0
      %6097 = vdwg.mxu0
      %6099 = vrot.lane.b32.xlu0 %v6095, 48
      %v6100 = vpop.permute.xlu0 %6099
      %6102 = vst.msk [vmem:[#allocation3 + $0x18] sm:$0xff] %vm1016, %v6100
      %6103 = vrot.lane.b32.xlu0 %v512, 64
      %v6104 = vpop.permute.xlu0 %6103
      %v6105 = vsel %vm644, %v6104, 0
      %v6108 = vsel %vm644, %v4729, 0
      %v6111 = vsel %vm644, %v4733, 0
      %6113 = vmatprep.subr.mxu0 0.0
      %6114 = vmatpush1.xpose.msra.mxu0 %v6108
      %6115 = vmatprep.subr.mxu0 0.0
      %6116 = vmatpush1.xpose.msra.mxu0 %v6111
      %6117 = vmatprep.subr.mxu0 0.0
      %6118 = vmatpush1.xpose.msra.mxu0 0.0
      %6119 = vmatprep.subr.mxu0 0.0
      %6120 = vmatpush1.xpose.msra.mxu0 0.0
      %6121 = vmatprep.subr.mxu0 0.0
      %6122 = vmatpush1.xpose.msra.mxu0 0.0
      %6123 = vmatprep.subr.mxu0 0.0
      %6124 = vmatpush1.xpose.msra.mxu0 0.0
      %6125 = vmatprep.subr.mxu0 0.0
      %6126 = vmatpush1.xpose.msra.mxu0 0.0
      %6127 = vmatprep.subr.mxu0 0.0
      %6128 = vmatpush1.xpose.msra.mxu0 0.0
      %6129 = vmatprep.subr.mxu0 0.0
      %6130 = vmatpush1.xpose.msra.mxu0 0.0
      %6131 = vmatprep.subr.mxu0 0.0
      %6132 = vmatpush1.xpose.msra.mxu0 0.0
      %6133 = vmatprep.subr.mxu0 0.0
      %6134 = vmatpush1.xpose.msra.mxu0 0.0
      %6135 = vmatprep.subr.mxu0 0.0
      %6136 = vmatpush1.xpose.msra.mxu0 0.0
      %6137 = vmatprep.subr.mxu0 0.0
      %6138 = vmatpush1.xpose.msra.mxu0 0.0
      %6139 = vmatprep.subr.mxu0 0.0
      %6140 = vmatpush1.xpose.msra.mxu0 0.0
      %6141 = vmatprep.subr.mxu0 0.0
      %6142 = vmatpush1.xpose.msra.mxu0 0.0
      %6143 = vmatprep.subr.mxu0 0.0
      %6144 = vmatpush1.xpose.msra.mxu0 0.0
      %6145 = vmatprep.subr.mxu0 0.0
      %6146 = vmatpush1.xpose.msra.mxu0 0.0
      %6147 = vmatprep.subr.mxu0 0.0
      %6148 = vmatpush1.xpose.msra.mxu0 0.0
      %6149 = vmatprep.subr.mxu0 0.0
      %6150 = vmatpush1.xpose.msra.mxu0 0.0
      %6151 = vmatprep.subr.mxu0 0.0
      %6152 = vmatpush1.xpose.msra.mxu0 0.0
      %6153 = vmatprep.subr.mxu0 0.0
      %6154 = vmatpush1.xpose.msra.mxu0 0.0
      %6155 = vmatprep.subr.mxu0 0.0
      %6156 = vmatpush1.xpose.msra.mxu0 0.0
      %6157 = vmatprep.subr.mxu0 0.0
      %6158 = vmatpush1.xpose.msra.mxu0 0.0
      %6159 = vmatprep.subr.mxu0 0.0
      %6160 = vmatpush1.xpose.msra.mxu0 0.0
      %6161 = vmatprep.subr.mxu0 0.0
      %6162 = vmatpush1.xpose.msra.mxu0 0.0
      %6163 = vmatprep.subr.mxu0 0.0
      %6164 = vmatpush1.xpose.msra.mxu0 0.0
      %6165 = vmatprep.subr.mxu0 0.0
      %6166 = vmatpush1.xpose.msra.mxu0 0.0
      %6167 = vmatprep.subr.mxu0 0.0
      %6168 = vmatpush1.xpose.msra.mxu0 0.0
      %6169 = vmatprep.subr.mxu0 0.0
      %6170 = vmatpush1.xpose.msra.mxu0 0.0
      %6171 = vmatprep.subr.mxu0 0.0
      %6172 = vmatpush1.xpose.msra.mxu0 0.0
      %6173 = vmatprep.subr.mxu0 0.0
      %6174 = vmatpush1.xpose.msra.mxu0 0.0
      %6175 = vmatprep.subr.mxu0 0.0
      %6176 = vmatpush1.xpose.msra.mxu0 0.0
      %6177 = vmatprep.mubr.f32.mxu0 0.0
      %6178 = vmatmul.mubr.f32.gmra.mrb[0].mxu0 %v6105
      %v6179 = vpop.f32.mrb[0].mxu0
      %v6180 = vadd.f32 0.0, %v6179
      %v6181 = vpop.f32.mrb[0].mxu0
      %6182 = vdwg.mxu0
      %6184 = vrot.lane.b32.xlu0 %v6180, 64
      %v6185 = vpop.permute.xlu0 %6184
      %6187 = vst.msk [vmem:[#allocation3] sm:$0xff] %vm1148, %v6185
      %6188 = vrot.lane.b32.xlu0 %v517, 64
      %v6189 = vpop.permute.xlu0 %6188
      %6190 = vrot.lane.b32.xlu0 %v4729, 112
      %v6191 = vpop.permute.xlu0 %6190
      %6192 = vrot.lane.b32.xlu0 %v4733, 112
      %v6193 = vpop.permute.xlu0 %6192
      %v6194 = vsel %vm644, %v6189, 0
      %v6196 = vsel %vm644, %v6191, 0
      %v6198 = vsel %vm644, %v6193, 0
      %6200 = vmatprep.subr.mxu0 0.0
      %6201 = vmatpush1.xpose.msra.mxu0 %v6196
      %6202 = vmatprep.subr.mxu0 0.0
      %6203 = vmatpush1.xpose.msra.mxu0 %v6198
      %6204 = vmatprep.subr.mxu0 0.0
      %6205 = vmatpush1.xpose.msra.mxu0 0.0
      %6206 = vmatprep.subr.mxu0 0.0
      %6207 = vmatpush1.xpose.msra.mxu0 0.0
      %6208 = vmatprep.subr.mxu0 0.0
      %6209 = vmatpush1.xpose.msra.mxu0 0.0
      %6210 = vmatprep.subr.mxu0 0.0
      %6211 = vmatpush1.xpose.msra.mxu0 0.0
      %6212 = vmatprep.subr.mxu0 0.0
      %6213 = vmatpush1.xpose.msra.mxu0 0.0
      %6214 = vmatprep.subr.mxu0 0.0
      %6215 = vmatpush1.xpose.msra.mxu0 0.0
      %6216 = vmatprep.subr.mxu0 0.0
      %6217 = vmatpush1.xpose.msra.mxu0 0.0
      %6218 = vmatprep.subr.mxu0 0.0
      %6219 = vmatpush1.xpose.msra.mxu0 0.0
      %6220 = vmatprep.subr.mxu0 0.0
      %6221 = vmatpush1.xpose.msra.mxu0 0.0
      %6222 = vmatprep.subr.mxu0 0.0
      %6223 = vmatpush1.xpose.msra.mxu0 0.0
      %6224 = vmatprep.subr.mxu0 0.0
      %6225 = vmatpush1.xpose.msra.mxu0 0.0
      %6226 = vmatprep.subr.mxu0 0.0
      %6227 = vmatpush1.xpose.msra.mxu0 0.0
      %6228 = vmatprep.subr.mxu0 0.0
      %6229 = vmatpush1.xpose.msra.mxu0 0.0
      %6230 = vmatprep.subr.mxu0 0.0
      %6231 = vmatpush1.xpose.msra.mxu0 0.0
      %6232 = vmatprep.subr.mxu0 0.0
      %6233 = vmatpush1.xpose.msra.mxu0 0.0
      %6234 = vmatprep.subr.mxu0 0.0
      %6235 = vmatpush1.xpose.msra.mxu0 0.0
      %6236 = vmatprep.subr.mxu0 0.0
      %6237 = vmatpush1.xpose.msra.mxu0 0.0
      %6238 = vmatprep.subr.mxu0 0.0
      %6239 = vmatpush1.xpose.msra.mxu0 0.0
      %6240 = vmatprep.subr.mxu0 0.0
      %6241 = vmatpush1.xpose.msra.mxu0 0.0
      %6242 = vmatprep.subr.mxu0 0.0
      %6243 = vmatpush1.xpose.msra.mxu0 0.0
      %6244 = vmatprep.subr.mxu0 0.0
      %6245 = vmatpush1.xpose.msra.mxu0 0.0
      %6246 = vmatprep.subr.mxu0 0.0
      %6247 = vmatpush1.xpose.msra.mxu0 0.0
      %6248 = vmatprep.subr.mxu0 0.0
      %6249 = vmatpush1.xpose.msra.mxu0 0.0
      %6250 = vmatprep.subr.mxu0 0.0
      %6251 = vmatpush1.xpose.msra.mxu0 0.0
      %6252 = vmatprep.subr.mxu0 0.0
      %6253 = vmatpush1.xpose.msra.mxu0 0.0
      %6254 = vmatprep.subr.mxu0 0.0
      %6255 = vmatpush1.xpose.msra.mxu0 0.0
      %6256 = vmatprep.subr.mxu0 0.0
      %6257 = vmatpush1.xpose.msra.mxu0 0.0
      %6258 = vmatprep.subr.mxu0 0.0
      %6259 = vmatpush1.xpose.msra.mxu0 0.0
      %6260 = vmatprep.subr.mxu0 0.0
      %6261 = vmatpush1.xpose.msra.mxu0 0.0
      %6262 = vmatprep.subr.mxu0 0.0
      %6263 = vmatpush1.xpose.msra.mxu0 0.0
      %6264 = vmatprep.mubr.f32.mxu0 0.0
      %6265 = vmatmul.mubr.f32.gmra.mrb[0].mxu0 %v6194
      %v6266 = vpop.f32.mrb[0].mxu0
      %v6267 = vadd.f32 0.0, %v6266
      %v6268 = vpop.f32.mrb[0].mxu0
      %6269 = vdwg.mxu0
      %6271 = vrot.lane.b32.xlu0 %v6267, 64
      %v6272 = vpop.permute.xlu0 %6271
      %6274 = vst.msk [vmem:[#allocation3 + $0x8] sm:$0xff] %vm1148, %v6272
      %6275 = vrot.lane.b32.xlu0 %v522, 64
      %v6276 = vpop.permute.xlu0 %6275
      %6277 = vrot.lane.b32.xlu0 %v4729, 96
      %v6278 = vpop.permute.xlu0 %6277
      %6279 = vrot.lane.b32.xlu0 %v4733, 96
      %v6280 = vpop.permute.xlu0 %6279
      %v6281 = vsel %vm644, %v6276, 0
      %v6283 = vsel %vm644, %v6278, 0
      %v6285 = vsel %vm644, %v6280, 0
      %6287 = vmatprep.subr.mxu0 0.0
      %6288 = vmatpush1.xpose.msra.mxu0 %v6283
      %6289 = vmatprep.subr.mxu0 0.0
      %6290 = vmatpush1.xpose.msra.mxu0 %v6285
      %6291 = vmatprep.subr.mxu0 0.0
      %6292 = vmatpush1.xpose.msra.mxu0 0.0
      %6293 = vmatprep.subr.mxu0 0.0
      %6294 = vmatpush1.xpose.msra.mxu0 0.0
      %6295 = vmatprep.subr.mxu0 0.0
      %6296 = vmatpush1.xpose.msra.mxu0 0.0
      %6297 = vmatprep.subr.mxu0 0.0
      %6298 = vmatpush1.xpose.msra.mxu0 0.0
      %6299 = vmatprep.subr.mxu0 0.0
      %6300 = vmatpush1.xpose.msra.mxu0 0.0
      %6301 = vmatprep.subr.mxu0 0.0
      %6302 = vmatpush1.xpose.msra.mxu0 0.0
      %6303 = vmatprep.subr.mxu0 0.0
      %6304 = vmatpush1.xpose.msra.mxu0 0.0
      %6305 = vmatprep.subr.mxu0 0.0
      %6306 = vmatpush1.xpose.msra.mxu0 0.0
      %6307 = vmatprep.subr.mxu0 0.0
      %6308 = vmatpush1.xpose.msra.mxu0 0.0
      %6309 = vmatprep.subr.mxu0 0.0
      %6310 = vmatpush1.xpose.msra.mxu0 0.0
      %6311 = vmatprep.subr.mxu0 0.0
      %6312 = vmatpush1.xpose.msra.mxu0 0.0
      %6313 = vmatprep.subr.mxu0 0.0
      %6314 = vmatpush1.xpose.msra.mxu0 0.0
      %6315 = vmatprep.subr.mxu0 0.0
      %6316 = vmatpush1.xpose.msra.mxu0 0.0
      %6317 = vmatprep.subr.mxu0 0.0
      %6318 = vmatpush1.xpose.msra.mxu0 0.0
      %6319 = vmatprep.subr.mxu0 0.0
      %6320 = vmatpush1.xpose.msra.mxu0 0.0
      %6321 = vmatprep.subr.mxu0 0.0
      %6322 = vmatpush1.xpose.msra.mxu0 0.0
      %6323 = vmatprep.subr.mxu0 0.0
      %6324 = vmatpush1.xpose.msra.mxu0 0.0
      %6325 = vmatprep.subr.mxu0 0.0
      %6326 = vmatpush1.xpose.msra.mxu0 0.0
      %6327 = vmatprep.subr.mxu0 0.0
      %6328 = vmatpush1.xpose.msra.mxu0 0.0
      %6329 = vmatprep.subr.mxu0 0.0
      %6330 = vmatpush1.xpose.msra.mxu0 0.0
      %6331 = vmatprep.subr.mxu0 0.0
      %6332 = vmatpush1.xpose.msra.mxu0 0.0
      %6333 = vmatprep.subr.mxu0 0.0
      %6334 = vmatpush1.xpose.msra.mxu0 0.0
      %6335 = vmatprep.subr.mxu0 0.0
      %6336 = vmatpush1.xpose.msra.mxu0 0.0
      %6337 = vmatprep.subr.mxu0 0.0
      %6338 = vmatpush1.xpose.msra.mxu0 0.0
      %6339 = vmatprep.subr.mxu0 0.0
      %6340 = vmatpush1.xpose.msra.mxu0 0.0
      %6341 = vmatprep.subr.mxu0 0.0
      %6342 = vmatpush1.xpose.msra.mxu0 0.0
      %6343 = vmatprep.subr.mxu0 0.0
      %6344 = vmatpush1.xpose.msra.mxu0 0.0
      %6345 = vmatprep.subr.mxu0 0.0
      %6346 = vmatpush1.xpose.msra.mxu0 0.0
      %6347 = vmatprep.subr.mxu0 0.0
      %6348 = vmatpush1.xpose.msra.mxu0 0.0
      %6349 = vmatprep.subr.mxu0 0.0
      %6350 = vmatpush1.xpose.msra.mxu0 0.0
      %6351 = vmatprep.mubr.f32.mxu0 0.0
      %6352 = vmatmul.mubr.f32.gmra.mrb[0].mxu0 %v6281
      %v6353 = vpop.f32.mrb[0].mxu0
      %v6354 = vadd.f32 0.0, %v6353
      %v6355 = vpop.f32.mrb[0].mxu0
      %6356 = vdwg.mxu0
      %6358 = vrot.lane.b32.xlu0 %v6354, 64
      %v6359 = vpop.permute.xlu0 %6358
      %6361 = vst.msk [vmem:[#allocation3 + $0x10] sm:$0xff] %vm1148, %v6359
      %6362 = vrot.lane.b32.xlu0 %v527, 64
      %v6363 = vpop.permute.xlu0 %6362
      %6364 = vrot.lane.b32.xlu0 %v4729, 80
      %v6365 = vpop.permute.xlu0 %6364
      %6366 = vrot.lane.b32.xlu0 %v4733, 80
      %v6367 = vpop.permute.xlu0 %6366
      %v6368 = vsel %vm644, %v6363, 0
      %v6370 = vsel %vm644, %v6365, 0
      %v6372 = vsel %vm644, %v6367, 0
      %6374 = vmatprep.subr.mxu0 0.0
      %6375 = vmatpush1.xpose.msra.mxu0 %v6370
      %6376 = vmatprep.subr.mxu0 0.0
      %6377 = vmatpush1.xpose.msra.mxu0 %v6372
      %6378 = vmatprep.subr.mxu0 0.0
      %6379 = vmatpush1.xpose.msra.mxu0 0.0
      %6380 = vmatprep.subr.mxu0 0.0
      %6381 = vmatpush1.xpose.msra.mxu0 0.0
      %6382 = vmatprep.subr.mxu0 0.0
      %6383 = vmatpush1.xpose.msra.mxu0 0.0
      %6384 = vmatprep.subr.mxu0 0.0
      %6385 = vmatpush1.xpose.msra.mxu0 0.0
      %6386 = vmatprep.subr.mxu0 0.0
      %6387 = vmatpush1.xpose.msra.mxu0 0.0
      %6388 = vmatprep.subr.mxu0 0.0
      %6389 = vmatpush1.xpose.msra.mxu0 0.0
      %6390 = vmatprep.subr.mxu0 0.0
      %6391 = vmatpush1.xpose.msra.mxu0 0.0
      %6392 = vmatprep.subr.mxu0 0.0
      %6393 = vmatpush1.xpose.msra.mxu0 0.0
      %6394 = vmatprep.subr.mxu0 0.0
      %6395 = vmatpush1.xpose.msra.mxu0 0.0
      %6396 = vmatprep.subr.mxu0 0.0
      %6397 = vmatpush1.xpose.msra.mxu0 0.0
      %6398 = vmatprep.subr.mxu0 0.0
      %6399 = vmatpush1.xpose.msra.mxu0 0.0
      %6400 = vmatprep.subr.mxu0 0.0
      %6401 = vmatpush1.xpose.msra.mxu0 0.0
      %6402 = vmatprep.subr.mxu0 0.0
      %6403 = vmatpush1.xpose.msra.mxu0 0.0
      %6404 = vmatprep.subr.mxu0 0.0
      %6405 = vmatpush1.xpose.msra.mxu0 0.0
      %6406 = vmatprep.subr.mxu0 0.0
      %6407 = vmatpush1.xpose.msra.mxu0 0.0
      %6408 = vmatprep.subr.mxu0 0.0
      %6409 = vmatpush1.xpose.msra.mxu0 0.0
      %6410 = vmatprep.subr.mxu0 0.0
      %6411 = vmatpush1.xpose.msra.mxu0 0.0
      %6412 = vmatprep.subr.mxu0 0.0
      %6413 = vmatpush1.xpose.msra.mxu0 0.0
      %6414 = vmatprep.subr.mxu0 0.0
      %6415 = vmatpush1.xpose.msra.mxu0 0.0
      %6416 = vmatprep.subr.mxu0 0.0
      %6417 = vmatpush1.xpose.msra.mxu0 0.0
      %6418 = vmatprep.subr.mxu0 0.0
      %6419 = vmatpush1.xpose.msra.mxu0 0.0
      %6420 = vmatprep.subr.mxu0 0.0
      %6421 = vmatpush1.xpose.msra.mxu0 0.0
      %6422 = vmatprep.subr.mxu0 0.0
      %6423 = vmatpush1.xpose.msra.mxu0 0.0
      %6424 = vmatprep.subr.mxu0 0.0
      %6425 = vmatpush1.xpose.msra.mxu0 0.0
      %6426 = vmatprep.subr.mxu0 0.0
      %6427 = vmatpush1.xpose.msra.mxu0 0.0
      %6428 = vmatprep.subr.mxu0 0.0
      %6429 = vmatpush1.xpose.msra.mxu0 0.0
      %6430 = vmatprep.subr.mxu0 0.0
      %6431 = vmatpush1.xpose.msra.mxu0 0.0
      %6432 = vmatprep.subr.mxu0 0.0
      %6433 = vmatpush1.xpose.msra.mxu0 0.0
      %6434 = vmatprep.subr.mxu0 0.0
      %6435 = vmatpush1.xpose.msra.mxu0 0.0
      %6436 = vmatprep.subr.mxu0 0.0
      %6437 = vmatpush1.xpose.msra.mxu0 0.0
      %6438 = vmatprep.mubr.f32.mxu0 0.0
      %6439 = vmatmul.mubr.f32.gmra.mrb[0].mxu0 %v6368
      %v6440 = vpop.f32.mrb[0].mxu0
      %v6441 = vadd.f32 0.0, %v6440
      %v6442 = vpop.f32.mrb[0].mxu0
      %6443 = vdwg.mxu0
      %6445 = vrot.lane.b32.xlu0 %v6441, 64
      %v6446 = vpop.permute.xlu0 %6445
      %6448 = vst.msk [vmem:[#allocation3 + $0x18] sm:$0xff] %vm1148, %v6446
      %6449 = vrot.lane.b32.xlu0 %v512, 48
      %v6450 = vpop.permute.xlu0 %6449
      %6451 = vrot.lane.b32.xlu0 %v4729, 64
      %v6452 = vpop.permute.xlu0 %6451
      %6453 = vrot.lane.b32.xlu0 %v4733, 64
      %v6454 = vpop.permute.xlu0 %6453
      %v6455 = vsel %vm644, %v6450, 0
      %v6457 = vsel %vm644, %v6452, 0
      %v6459 = vsel %vm644, %v6454, 0
      %6461 = vmatprep.subr.mxu0 0.0
      %6462 = vmatpush1.xpose.msra.mxu0 %v6457
      %6463 = vmatprep.subr.mxu0 0.0
      %6464 = vmatpush1.xpose.msra.mxu0 %v6459
      %6465 = vmatprep.subr.mxu0 0.0
      %6466 = vmatpush1.xpose.msra.mxu0 0.0
      %6467 = vmatprep.subr.mxu0 0.0
      %6468 = vmatpush1.xpose.msra.mxu0 0.0
      %6469 = vmatprep.subr.mxu0 0.0
      %6470 = vmatpush1.xpose.msra.mxu0 0.0
      %6471 = vmatprep.subr.mxu0 0.0
      %6472 = vmatpush1.xpose.msra.mxu0 0.0
      %6473 = vmatprep.subr.mxu0 0.0
      %6474 = vmatpush1.xpose.msra.mxu0 0.0
      %6475 = vmatprep.subr.mxu0 0.0
      %6476 = vmatpush1.xpose.msra.mxu0 0.0
      %6477 = vmatprep.subr.mxu0 0.0
      %6478 = vmatpush1.xpose.msra.mxu0 0.0
      %6479 = vmatprep.subr.mxu0 0.0
      %6480 = vmatpush1.xpose.msra.mxu0 0.0
      %6481 = vmatprep.subr.mxu0 0.0
      %6482 = vmatpush1.xpose.msra.mxu0 0.0
      %6483 = vmatprep.subr.mxu0 0.0
      %6484 = vmatpush1.xpose.msra.mxu0 0.0
      %6485 = vmatprep.subr.mxu0 0.0
      %6486 = vmatpush1.xpose.msra.mxu0 0.0
      %6487 = vmatprep.subr.mxu0 0.0
      %6488 = vmatpush1.xpose.msra.mxu0 0.0
      %6489 = vmatprep.subr.mxu0 0.0
      %6490 = vmatpush1.xpose.msra.mxu0 0.0
      %6491 = vmatprep.subr.mxu0 0.0
      %6492 = vmatpush1.xpose.msra.mxu0 0.0
      %6493 = vmatprep.subr.mxu0 0.0
      %6494 = vmatpush1.xpose.msra.mxu0 0.0
      %6495 = vmatprep.subr.mxu0 0.0
      %6496 = vmatpush1.xpose.msra.mxu0 0.0
      %6497 = vmatprep.subr.mxu0 0.0
      %6498 = vmatpush1.xpose.msra.mxu0 0.0
      %6499 = vmatprep.subr.mxu0 0.0
      %6500 = vmatpush1.xpose.msra.mxu0 0.0
      %6501 = vmatprep.subr.mxu0 0.0
      %6502 = vmatpush1.xpose.msra.mxu0 0.0
      %6503 = vmatprep.subr.mxu0 0.0
      %6504 = vmatpush1.xpose.msra.mxu0 0.0
      %6505 = vmatprep.subr.mxu0 0.0
      %6506 = vmatpush1.xpose.msra.mxu0 0.0
      %6507 = vmatprep.subr.mxu0 0.0
      %6508 = vmatpush1.xpose.msra.mxu0 0.0
      %6509 = vmatprep.subr.mxu0 0.0
      %6510 = vmatpush1.xpose.msra.mxu0 0.0
      %6511 = vmatprep.subr.mxu0 0.0
      %6512 = vmatpush1.xpose.msra.mxu0 0.0
      %6513 = vmatprep.subr.mxu0 0.0
      %6514 = vmatpush1.xpose.msra.mxu0 0.0
      %6515 = vmatprep.subr.mxu0 0.0
      %6516 = vmatpush1.xpose.msra.mxu0 0.0
      %6517 = vmatprep.subr.mxu0 0.0
      %6518 = vmatpush1.xpose.msra.mxu0 0.0
      %6519 = vmatprep.subr.mxu0 0.0
      %6520 = vmatpush1.xpose.msra.mxu0 0.0
      %6521 = vmatprep.subr.mxu0 0.0
      %6522 = vmatpush1.xpose.msra.mxu0 0.0
      %6523 = vmatprep.subr.mxu0 0.0
      %6524 = vmatpush1.xpose.msra.mxu0 0.0
      %6525 = vmatprep.mubr.f32.mxu0 0.0
      %6526 = vmatmul.mubr.f32.gmra.mrb[0].mxu0 %v6455
      %v6527 = vpop.f32.mrb[0].mxu0
      %v6528 = vadd.f32 0.0, %v6527
      %v6529 = vpop.f32.mrb[0].mxu0
      %6530 = vdwg.mxu0
      %6532 = vrot.lane.b32.xlu0 %v6528, 80
      %v6533 = vpop.permute.xlu0 %6532
      %6535 = vst.msk [vmem:[#allocation3] sm:$0xff] %vm1280, %v6533
      %6536 = vrot.lane.b32.xlu0 %v517, 48
      %v6537 = vpop.permute.xlu0 %6536
      %6538 = vrot.lane.b32.xlu0 %v4729, 48
      %v6539 = vpop.permute.xlu0 %6538
      %6540 = vrot.lane.b32.xlu0 %v4733, 48
      %v6541 = vpop.permute.xlu0 %6540
      %v6542 = vsel %vm644, %v6537, 0
      %v6544 = vsel %vm644, %v6539, 0
      %v6546 = vsel %vm644, %v6541, 0
      %6548 = vmatprep.subr.mxu0 0.0
      %6549 = vmatpush1.xpose.msra.mxu0 %v6544
      %6550 = vmatprep.subr.mxu0 0.0
      %6551 = vmatpush1.xpose.msra.mxu0 %v6546
      %6552 = vmatprep.subr.mxu0 0.0
      %6553 = vmatpush1.xpose.msra.mxu0 0.0
      %6554 = vmatprep.subr.mxu0 0.0
      %6555 = vmatpush1.xpose.msra.mxu0 0.0
      %6556 = vmatprep.subr.mxu0 0.0
      %6557 = vmatpush1.xpose.msra.mxu0 0.0
      %6558 = vmatprep.subr.mxu0 0.0
      %6559 = vmatpush1.xpose.msra.mxu0 0.0
      %6560 = vmatprep.subr.mxu0 0.0
      %6561 = vmatpush1.xpose.msra.mxu0 0.0
      %6562 = vmatprep.subr.mxu0 0.0
      %6563 = vmatpush1.xpose.msra.mxu0 0.0
      %6564 = vmatprep.subr.mxu0 0.0
      %6565 = vmatpush1.xpose.msra.mxu0 0.0
      %6566 = vmatprep.subr.mxu0 0.0
      %6567 = vmatpush1.xpose.msra.mxu0 0.0
      %6568 = vmatprep.subr.mxu0 0.0
      %6569 = vmatpush1.xpose.msra.mxu0 0.0
      %6570 = vmatprep.subr.mxu0 0.0
      %6571 = vmatpush1.xpose.msra.mxu0 0.0
      %6572 = vmatprep.subr.mxu0 0.0
      %6573 = vmatpush1.xpose.msra.mxu0 0.0
      %6574 = vmatprep.subr.mxu0 0.0
      %6575 = vmatpush1.xpose.msra.mxu0 0.0
      %6576 = vmatprep.subr.mxu0 0.0
      %6577 = vmatpush1.xpose.msra.mxu0 0.0
      %6578 = vmatprep.subr.mxu0 0.0
      %6579 = vmatpush1.xpose.msra.mxu0 0.0
      %6580 = vmatprep.subr.mxu0 0.0
      %6581 = vmatpush1.xpose.msra.mxu0 0.0
      %6582 = vmatprep.subr.mxu0 0.0
      %6583 = vmatpush1.xpose.msra.mxu0 0.0
      %6584 = vmatprep.subr.mxu0 0.0
      %6585 = vmatpush1.xpose.msra.mxu0 0.0
      %6586 = vmatprep.subr.mxu0 0.0
      %6587 = vmatpush1.xpose.msra.mxu0 0.0
      %6588 = vmatprep.subr.mxu0 0.0
      %6589 = vmatpush1.xpose.msra.mxu0 0.0
      %6590 = vmatprep.subr.mxu0 0.0
      %6591 = vmatpush1.xpose.msra.mxu0 0.0
      %6592 = vmatprep.subr.mxu0 0.0
      %6593 = vmatpush1.xpose.msra.mxu0 0.0
      %6594 = vmatprep.subr.mxu0 0.0
      %6595 = vmatpush1.xpose.msra.mxu0 0.0
      %6596 = vmatprep.subr.mxu0 0.0
      %6597 = vmatpush1.xpose.msra.mxu0 0.0
      %6598 = vmatprep.subr.mxu0 0.0
      %6599 = vmatpush1.xpose.msra.mxu0 0.0
      %6600 = vmatprep.subr.mxu0 0.0
      %6601 = vmatpush1.xpose.msra.mxu0 0.0
      %6602 = vmatprep.subr.mxu0 0.0
      %6603 = vmatpush1.xpose.msra.mxu0 0.0
      %6604 = vmatprep.subr.mxu0 0.0
      %6605 = vmatpush1.xpose.msra.mxu0 0.0
      %6606 = vmatprep.subr.mxu0 0.0
      %6607 = vmatpush1.xpose.msra.mxu0 0.0
      %6608 = vmatprep.subr.mxu0 0.0
      %6609 = vmatpush1.xpose.msra.mxu0 0.0
      %6610 = vmatprep.subr.mxu0 0.0
      %6611 = vmatpush1.xpose.msra.mxu0 0.0
      %6612 = vmatprep.mubr.f32.mxu0 0.0
      %6613 = vmatmul.mubr.f32.gmra.mrb[0].mxu0 %v6542
      %v6614 = vpop.f32.mrb[0].mxu0
      %v6615 = vadd.f32 0.0, %v6614
      %v6616 = vpop.f32.mrb[0].mxu0
      %6617 = vdwg.mxu0
      %6619 = vrot.lane.b32.xlu0 %v6615, 80
      %v6620 = vpop.permute.xlu0 %6619
      %6622 = vst.msk [vmem:[#allocation3 + $0x8] sm:$0xff] %vm1280, %v6620
      %6623 = vrot.lane.b32.xlu0 %v522, 48
      %v6624 = vpop.permute.xlu0 %6623
      %6625 = vrot.lane.b32.xlu0 %v4729, 32
      %v6626 = vpop.permute.xlu0 %6625
      %6627 = vrot.lane.b32.xlu0 %v4733, 32
      %v6628 = vpop.permute.xlu0 %6627
      %v6629 = vsel %vm644, %v6624, 0
      %v6631 = vsel %vm644, %v6626, 0
      %v6633 = vsel %vm644, %v6628, 0
      %6635 = vmatprep.subr.mxu0 0.0
      %6636 = vmatpush1.xpose.msra.mxu0 %v6631
      %6637 = vmatprep.subr.mxu0 0.0
      %6638 = vmatpush1.xpose.msra.mxu0 %v6633
      %6639 = vmatprep.subr.mxu0 0.0
      %6640 = vmatpush1.xpose.msra.mxu0 0.0
      %6641 = vmatprep.subr.mxu0 0.0
      %6642 = vmatpush1.xpose.msra.mxu0 0.0
      %6643 = vmatprep.subr.mxu0 0.0
      %6644 = vmatpush1.xpose.msra.mxu0 0.0
      %6645 = vmatprep.subr.mxu0 0.0
      %6646 = vmatpush1.xpose.msra.mxu0 0.0
      %6647 = vmatprep.subr.mxu0 0.0
      %6648 = vmatpush1.xpose.msra.mxu0 0.0
      %6649 = vmatprep.subr.mxu0 0.0
      %6650 = vmatpush1.xpose.msra.mxu0 0.0
      %6651 = vmatprep.subr.mxu0 0.0
      %6652 = vmatpush1.xpose.msra.mxu0 0.0
      %6653 = vmatprep.subr.mxu0 0.0
      %6654 = vmatpush1.xpose.msra.mxu0 0.0
      %6655 = vmatprep.subr.mxu0 0.0
      %6656 = vmatpush1.xpose.msra.mxu0 0.0
      %6657 = vmatprep.subr.mxu0 0.0
      %6658 = vmatpush1.xpose.msra.mxu0 0.0
      %6659 = vmatprep.subr.mxu0 0.0
      %6660 = vmatpush1.xpose.msra.mxu0 0.0
      %6661 = vmatprep.subr.mxu0 0.0
      %6662 = vmatpush1.xpose.msra.mxu0 0.0
      %6663 = vmatprep.subr.mxu0 0.0
      %6664 = vmatpush1.xpose.msra.mxu0 0.0
      %6665 = vmatprep.subr.mxu0 0.0
      %6666 = vmatpush1.xpose.msra.mxu0 0.0
      %6667 = vmatprep.subr.mxu0 0.0
      %6668 = vmatpush1.xpose.msra.mxu0 0.0
      %6669 = vmatprep.subr.mxu0 0.0
      %6670 = vmatpush1.xpose.msra.mxu0 0.0
      %6671 = vmatprep.subr.mxu0 0.0
      %6672 = vmatpush1.xpose.msra.mxu0 0.0
      %6673 = vmatprep.subr.mxu0 0.0
      %6674 = vmatpush1.xpose.msra.mxu0 0.0
      %6675 = vmatprep.subr.mxu0 0.0
      %6676 = vmatpush1.xpose.msra.mxu0 0.0
      %6677 = vmatprep.subr.mxu0 0.0
      %6678 = vmatpush1.xpose.msra.mxu0 0.0
      %6679 = vmatprep.subr.mxu0 0.0
      %6680 = vmatpush1.xpose.msra.mxu0 0.0
      %6681 = vmatprep.subr.mxu0 0.0
      %6682 = vmatpush1.xpose.msra.mxu0 0.0
      %6683 = vmatprep.subr.mxu0 0.0
      %6684 = vmatpush1.xpose.msra.mxu0 0.0
      %6685 = vmatprep.subr.mxu0 0.0
      %6686 = vmatpush1.xpose.msra.mxu0 0.0
      %6687 = vmatprep.subr.mxu0 0.0
      %6688 = vmatpush1.xpose.msra.mxu0 0.0
      %6689 = vmatprep.subr.mxu0 0.0
      %6690 = vmatpush1.xpose.msra.mxu0 0.0
      %6691 = vmatprep.subr.mxu0 0.0
      %6692 = vmatpush1.xpose.msra.mxu0 0.0
      %6693 = vmatprep.subr.mxu0 0.0
      %6694 = vmatpush1.xpose.msra.mxu0 0.0
      %6695 = vmatprep.subr.mxu0 0.0
      %6696 = vmatpush1.xpose.msra.mxu0 0.0
      %6697 = vmatprep.subr.mxu0 0.0
      %6698 = vmatpush1.xpose.msra.mxu0 0.0
      %6699 = vmatprep.mubr.f32.mxu0 0.0
      %6700 = vmatmul.mubr.f32.gmra.mrb[0].mxu0 %v6629
      %v6701 = vpop.f32.mrb[0].mxu0
      %v6702 = vadd.f32 0.0, %v6701
      %v6703 = vpop.f32.mrb[0].mxu0
      %6704 = vdwg.mxu0
      %6706 = vrot.lane.b32.xlu0 %v6702, 80
      %v6707 = vpop.permute.xlu0 %6706
      %6709 = vst.msk [vmem:[#allocation3 + $0x10] sm:$0xff] %vm1280, %v6707
      %6710 = vrot.lane.b32.xlu0 %v527, 48
      %v6711 = vpop.permute.xlu0 %6710
      %6712 = vrot.lane.b32.xlu0 %v4729, 16
      %v6713 = vpop.permute.xlu0 %6712
      %6714 = vrot.lane.b32.xlu0 %v4733, 16
      %v6715 = vpop.permute.xlu0 %6714
      %v6716 = vsel %vm644, %v6711, 0
      %v6718 = vsel %vm644, %v6713, 0
      %v6720 = vsel %vm644, %v6715, 0
      %6722 = vmatprep.subr.mxu0 0.0
      %6723 = vmatpush1.xpose.msra.mxu0 %v6718
      %6724 = vmatprep.subr.mxu0 0.0
      %6725 = vmatpush1.xpose.msra.mxu0 %v6720
      %6726 = vmatprep.subr.mxu0 0.0
      %6727 = vmatpush1.xpose.msra.mxu0 0.0
      %6728 = vmatprep.subr.mxu0 0.0
      %6729 = vmatpush1.xpose.msra.mxu0 0.0
      %6730 = vmatprep.subr.mxu0 0.0
      %6731 = vmatpush1.xpose.msra.mxu0 0.0
      %6732 = vmatprep.subr.mxu0 0.0
      %6733 = vmatpush1.xpose.msra.mxu0 0.0
      %6734 = vmatprep.subr.mxu0 0.0
      %6735 = vmatpush1.xpose.msra.mxu0 0.0
      %6736 = vmatprep.subr.mxu0 0.0
      %6737 = vmatpush1.xpose.msra.mxu0 0.0
      %6738 = vmatprep.subr.mxu0 0.0
      %6739 = vmatpush1.xpose.msra.mxu0 0.0
      %6740 = vmatprep.subr.mxu0 0.0
      %6741 = vmatpush1.xpose.msra.mxu0 0.0
      %6742 = vmatprep.subr.mxu0 0.0
      %6743 = vmatpush1.xpose.msra.mxu0 0.0
      %6744 = vmatprep.subr.mxu0 0.0
      %6745 = vmatpush1.xpose.msra.mxu0 0.0
      %6746 = vmatprep.subr.mxu0 0.0
      %6747 = vmatpush1.xpose.msra.mxu0 0.0
      %6748 = vmatprep.subr.mxu0 0.0
      %6749 = vmatpush1.xpose.msra.mxu0 0.0
      %6750 = vmatprep.subr.mxu0 0.0
      %6751 = vmatpush1.xpose.msra.mxu0 0.0
      %6752 = vmatprep.subr.mxu0 0.0
      %6753 = vmatpush1.xpose.msra.mxu0 0.0
      %6754 = vmatprep.subr.mxu0 0.0
      %6755 = vmatpush1.xpose.msra.mxu0 0.0
      %6756 = vmatprep.subr.mxu0 0.0
      %6757 = vmatpush1.xpose.msra.mxu0 0.0
      %6758 = vmatprep.subr.mxu0 0.0
      %6759 = vmatpush1.xpose.msra.mxu0 0.0
      %6760 = vmatprep.subr.mxu0 0.0
      %6761 = vmatpush1.xpose.msra.mxu0 0.0
      %6762 = vmatprep.subr.mxu0 0.0
      %6763 = vmatpush1.xpose.msra.mxu0 0.0
      %6764 = vmatprep.subr.mxu0 0.0
      %6765 = vmatpush1.xpose.msra.mxu0 0.0
      %6766 = vmatprep.subr.mxu0 0.0
      %6767 = vmatpush1.xpose.msra.mxu0 0.0
      %6768 = vmatprep.subr.mxu0 0.0
      %6769 = vmatpush1.xpose.msra.mxu0 0.0
      %6770 = vmatprep.subr.mxu0 0.0
      %6771 = vmatpush1.xpose.msra.mxu0 0.0
      %6772 = vmatprep.subr.mxu0 0.0
      %6773 = vmatpush1.xpose.msra.mxu0 0.0
      %6774 = vmatprep.subr.mxu0 0.0
      %6775 = vmatpush1.xpose.msra.mxu0 0.0
      %6776 = vmatprep.subr.mxu0 0.0
      %6777 = vmatpush1.xpose.msra.mxu0 0.0
      %6778 = vmatprep.subr.mxu0 0.0
      %6779 = vmatpush1.xpose.msra.mxu0 0.0
      %6780 = vmatprep.subr.mxu0 0.0
      %6781 = vmatpush1.xpose.msra.mxu0 0.0
      %6782 = vmatprep.subr.mxu0 0.0
      %6783 = vmatpush1.xpose.msra.mxu0 0.0
      %6784 = vmatprep.subr.mxu0 0.0
      %6785 = vmatpush1.xpose.msra.mxu0 0.0
      %6786 = vmatprep.mubr.f32.mxu0 0.0
      %6787 = vmatmul.mubr.f32.gmra.mrb[0].mxu0 %v6716
      %v6788 = vpop.f32.mrb[0].mxu0
      %v6789 = vadd.f32 0.0, %v6788
      %v6790 = vpop.f32.mrb[0].mxu0
      %6791 = vdwg.mxu0
      %6793 = vrot.lane.b32.xlu0 %v6789, 80
      %v6794 = vpop.permute.xlu0 %6793
      %6796 = vst.msk [vmem:[#allocation3 + $0x18] sm:$0xff] %vm1280, %v6794
      %6797 = vrot.lane.b32.xlu0 %v512, 32
      %v6798 = vpop.permute.xlu0 %6797
      %v6799 = vsel %vm644, %v6798, 0
      %v6802 = vsel %vm644, %v4730, 0
      %v6805 = vsel %vm644, %v4734, 0
      %6807 = vmatprep.subr.mxu0 0.0
      %6808 = vmatpush1.xpose.msra.mxu0 %v6802
      %6809 = vmatprep.subr.mxu0 0.0
      %6810 = vmatpush1.xpose.msra.mxu0 %v6805
      %6811 = vmatprep.subr.mxu0 0.0
      %6812 = vmatpush1.xpose.msra.mxu0 0.0
      %6813 = vmatprep.subr.mxu0 0.0
      %6814 = vmatpush1.xpose.msra.mxu0 0.0
      %6815 = vmatprep.subr.mxu0 0.0
      %6816 = vmatpush1.xpose.msra.mxu0 0.0
      %6817 = vmatprep.subr.mxu0 0.0
      %6818 = vmatpush1.xpose.msra.mxu0 0.0
      %6819 = vmatprep.subr.mxu0 0.0
      %6820 = vmatpush1.xpose.msra.mxu0 0.0
      %6821 = vmatprep.subr.mxu0 0.0
      %6822 = vmatpush1.xpose.msra.mxu0 0.0
      %6823 = vmatprep.subr.mxu0 0.0
      %6824 = vmatpush1.xpose.msra.mxu0 0.0
      %6825 = vmatprep.subr.mxu0 0.0
      %6826 = vmatpush1.xpose.msra.mxu0 0.0
      %6827 = vmatprep.subr.mxu0 0.0
      %6828 = vmatpush1.xpose.msra.mxu0 0.0
      %6829 = vmatprep.subr.mxu0 0.0
      %6830 = vmatpush1.xpose.msra.mxu0 0.0
      %6831 = vmatprep.subr.mxu0 0.0
      %6832 = vmatpush1.xpose.msra.mxu0 0.0
      %6833 = vmatprep.subr.mxu0 0.0
      %6834 = vmatpush1.xpose.msra.mxu0 0.0
      %6835 = vmatprep.subr.mxu0 0.0
      %6836 = vmatpush1.xpose.msra.mxu0 0.0
      %6837 = vmatprep.subr.mxu0 0.0
      %6838 = vmatpush1.xpose.msra.mxu0 0.0
      %6839 = vmatprep.subr.mxu0 0.0
      %6840 = vmatpush1.xpose.msra.mxu0 0.0
      %6841 = vmatprep.subr.mxu0 0.0
      %6842 = vmatpush1.xpose.msra.mxu0 0.0
      %6843 = vmatprep.subr.mxu0 0.0
      %6844 = vmatpush1.xpose.msra.mxu0 0.0
      %6845 = vmatprep.subr.mxu0 0.0
      %6846 = vmatpush1.xpose.msra.mxu0 0.0
      %6847 = vmatprep.subr.mxu0 0.0
      %6848 = vmatpush1.xpose.msra.mxu0 0.0
      %6849 = vmatprep.subr.mxu0 0.0
      %6850 = vmatpush1.xpose.msra.mxu0 0.0
      %6851 = vmatprep.subr.mxu0 0.0
      %6852 = vmatpush1.xpose.msra.mxu0 0.0
      %6853 = vmatprep.subr.mxu0 0.0
      %6854 = vmatpush1.xpose.msra.mxu0 0.0
      %6855 = vmatprep.subr.mxu0 0.0
      %6856 = vmatpush1.xpose.msra.mxu0 0.0
      %6857 = vmatprep.subr.mxu0 0.0
      %6858 = vmatpush1.xpose.msra.mxu0 0.0
      %6859 = vmatprep.subr.mxu0 0.0
      %6860 = vmatpush1.xpose.msra.mxu0 0.0
      %6861 = vmatprep.subr.mxu0 0.0
      %6862 = vmatpush1.xpose.msra.mxu0 0.0
      %6863 = vmatprep.subr.mxu0 0.0
      %6864 = vmatpush1.xpose.msra.mxu0 0.0
      %6865 = vmatprep.subr.mxu0 0.0
      %6866 = vmatpush1.xpose.msra.mxu0 0.0
      %6867 = vmatprep.subr.mxu0 0.0
      %6868 = vmatpush1.xpose.msra.mxu0 0.0
      %6869 = vmatprep.subr.mxu0 0.0
      %6870 = vmatpush1.xpose.msra.mxu0 0.0
      %6871 = vmatprep.mubr.f32.mxu0 0.0
      %6872 = vmatmul.mubr.f32.gmra.mrb[0].mxu0 %v6799
      %v6873 = vpop.f32.mrb[0].mxu0
      %v6874 = vadd.f32 0.0, %v6873
      %v6875 = vpop.f32.mrb[0].mxu0
      %6876 = vdwg.mxu0
      %6878 = vrot.lane.b32.xlu0 %v6874, 96
      %v6879 = vpop.permute.xlu0 %6878
      %6881 = vst.msk [vmem:[#allocation3] sm:$0xff] %vm1412, %v6879
      %6882 = vrot.lane.b32.xlu0 %v517, 32
      %v6883 = vpop.permute.xlu0 %6882
      %6884 = vrot.lane.b32.xlu0 %v4730, 112
      %v6885 = vpop.permute.xlu0 %6884
      %6886 = vrot.lane.b32.xlu0 %v4734, 112
      %v6887 = vpop.permute.xlu0 %6886
      %v6888 = vsel %vm644, %v6883, 0
      %v6890 = vsel %vm644, %v6885, 0
      %v6892 = vsel %vm644, %v6887, 0
      %6894 = vmatprep.subr.mxu0 0.0
      %6895 = vmatpush1.xpose.msra.mxu0 %v6890
      %6896 = vmatprep.subr.mxu0 0.0
      %6897 = vmatpush1.xpose.msra.mxu0 %v6892
      %6898 = vmatprep.subr.mxu0 0.0
      %6899 = vmatpush1.xpose.msra.mxu0 0.0
      %6900 = vmatprep.subr.mxu0 0.0
      %6901 = vmatpush1.xpose.msra.mxu0 0.0
      %6902 = vmatprep.subr.mxu0 0.0
      %6903 = vmatpush1.xpose.msra.mxu0 0.0
      %6904 = vmatprep.subr.mxu0 0.0
      %6905 = vmatpush1.xpose.msra.mxu0 0.0
      %6906 = vmatprep.subr.mxu0 0.0
      %6907 = vmatpush1.xpose.msra.mxu0 0.0
      %6908 = vmatprep.subr.mxu0 0.0
      %6909 = vmatpush1.xpose.msra.mxu0 0.0
      %6910 = vmatprep.subr.mxu0 0.0
      %6911 = vmatpush1.xpose.msra.mxu0 0.0
      %6912 = vmatprep.subr.mxu0 0.0
      %6913 = vmatpush1.xpose.msra.mxu0 0.0
      %6914 = vmatprep.subr.mxu0 0.0
      %6915 = vmatpush1.xpose.msra.mxu0 0.0
      %6916 = vmatprep.subr.mxu0 0.0
      %6917 = vmatpush1.xpose.msra.mxu0 0.0
      %6918 = vmatprep.subr.mxu0 0.0
      %6919 = vmatpush1.xpose.msra.mxu0 0.0
      %6920 = vmatprep.subr.mxu0 0.0
      %6921 = vmatpush1.xpose.msra.mxu0 0.0
      %6922 = vmatprep.subr.mxu0 0.0
      %6923 = vmatpush1.xpose.msra.mxu0 0.0
      %6924 = vmatprep.subr.mxu0 0.0
      %6925 = vmatpush1.xpose.msra.mxu0 0.0
      %6926 = vmatprep.subr.mxu0 0.0
      %6927 = vmatpush1.xpose.msra.mxu0 0.0
      %6928 = vmatprep.subr.mxu0 0.0
      %6929 = vmatpush1.xpose.msra.mxu0 0.0
      %6930 = vmatprep.subr.mxu0 0.0
      %6931 = vmatpush1.xpose.msra.mxu0 0.0
      %6932 = vmatprep.subr.mxu0 0.0
      %6933 = vmatpush1.xpose.msra.mxu0 0.0
      %6934 = vmatprep.subr.mxu0 0.0
      %6935 = vmatpush1.xpose.msra.mxu0 0.0
      %6936 = vmatprep.subr.mxu0 0.0
      %6937 = vmatpush1.xpose.msra.mxu0 0.0
      %6938 = vmatprep.subr.mxu0 0.0
      %6939 = vmatpush1.xpose.msra.mxu0 0.0
      %6940 = vmatprep.subr.mxu0 0.0
      %6941 = vmatpush1.xpose.msra.mxu0 0.0
      %6942 = vmatprep.subr.mxu0 0.0
      %6943 = vmatpush1.xpose.msra.mxu0 0.0
      %6944 = vmatprep.subr.mxu0 0.0
      %6945 = vmatpush1.xpose.msra.mxu0 0.0
      %6946 = vmatprep.subr.mxu0 0.0
      %6947 = vmatpush1.xpose.msra.mxu0 0.0
      %6948 = vmatprep.subr.mxu0 0.0
      %6949 = vmatpush1.xpose.msra.mxu0 0.0
      %6950 = vmatprep.subr.mxu0 0.0
      %6951 = vmatpush1.xpose.msra.mxu0 0.0
      %6952 = vmatprep.subr.mxu0 0.0
      %6953 = vmatpush1.xpose.msra.mxu0 0.0
      %6954 = vmatprep.subr.mxu0 0.0
      %6955 = vmatpush1.xpose.msra.mxu0 0.0
      %6956 = vmatprep.subr.mxu0 0.0
      %6957 = vmatpush1.xpose.msra.mxu0 0.0
      %6958 = vmatprep.mubr.f32.mxu0 0.0
      %6959 = vmatmul.mubr.f32.gmra.mrb[0].mxu0 %v6888
      %v6960 = vpop.f32.mrb[0].mxu0
      %v6961 = vadd.f32 0.0, %v6960
      %v6962 = vpop.f32.mrb[0].mxu0
      %6963 = vdwg.mxu0
      %6965 = vrot.lane.b32.xlu0 %v6961, 96
      %v6966 = vpop.permute.xlu0 %6965
      %6968 = vst.msk [vmem:[#allocation3 + $0x8] sm:$0xff] %vm1412, %v6966
      %6969 = vrot.lane.b32.xlu0 %v522, 32
      %v6970 = vpop.permute.xlu0 %6969
      %6971 = vrot.lane.b32.xlu0 %v4730, 96
      %v6972 = vpop.permute.xlu0 %6971
      %6973 = vrot.lane.b32.xlu0 %v4734, 96
      %v6974 = vpop.permute.xlu0 %6973
      %v6975 = vsel %vm644, %v6970, 0
      %v6977 = vsel %vm644, %v6972, 0
      %v6979 = vsel %vm644, %v6974, 0
      %6981 = vmatprep.subr.mxu0 0.0
      %6982 = vmatpush1.xpose.msra.mxu0 %v6977
      %6983 = vmatprep.subr.mxu0 0.0
      %6984 = vmatpush1.xpose.msra.mxu0 %v6979
      %6985 = vmatprep.subr.mxu0 0.0
      %6986 = vmatpush1.xpose.msra.mxu0 0.0
      %6987 = vmatprep.subr.mxu0 0.0
      %6988 = vmatpush1.xpose.msra.mxu0 0.0
      %6989 = vmatprep.subr.mxu0 0.0
      %6990 = vmatpush1.xpose.msra.mxu0 0.0
      %6991 = vmatprep.subr.mxu0 0.0
      %6992 = vmatpush1.xpose.msra.mxu0 0.0
      %6993 = vmatprep.subr.mxu0 0.0
      %6994 = vmatpush1.xpose.msra.mxu0 0.0
      %6995 = vmatprep.subr.mxu0 0.0
      %6996 = vmatpush1.xpose.msra.mxu0 0.0
      %6997 = vmatprep.subr.mxu0 0.0
      %6998 = vmatpush1.xpose.msra.mxu0 0.0
      %6999 = vmatprep.subr.mxu0 0.0
      %7000 = vmatpush1.xpose.msra.mxu0 0.0
      %7001 = vmatprep.subr.mxu0 0.0
      %7002 = vmatpush1.xpose.msra.mxu0 0.0
      %7003 = vmatprep.subr.mxu0 0.0
      %7004 = vmatpush1.xpose.msra.mxu0 0.0
      %7005 = vmatprep.subr.mxu0 0.0
      %7006 = vmatpush1.xpose.msra.mxu0 0.0
      %7007 = vmatprep.subr.mxu0 0.0
      %7008 = vmatpush1.xpose.msra.mxu0 0.0
      %7009 = vmatprep.subr.mxu0 0.0
      %7010 = vmatpush1.xpose.msra.mxu0 0.0
      %7011 = vmatprep.subr.mxu0 0.0
      %7012 = vmatpush1.xpose.msra.mxu0 0.0
      %7013 = vmatprep.subr.mxu0 0.0
      %7014 = vmatpush1.xpose.msra.mxu0 0.0
      %7015 = vmatprep.subr.mxu0 0.0
      %7016 = vmatpush1.xpose.msra.mxu0 0.0
      %7017 = vmatprep.subr.mxu0 0.0
      %7018 = vmatpush1.xpose.msra.mxu0 0.0
      %7019 = vmatprep.subr.mxu0 0.0
      %7020 = vmatpush1.xpose.msra.mxu0 0.0
      %7021 = vmatprep.subr.mxu0 0.0
      %7022 = vmatpush1.xpose.msra.mxu0 0.0
      %7023 = vmatprep.subr.mxu0 0.0
      %7024 = vmatpush1.xpose.msra.mxu0 0.0
      %7025 = vmatprep.subr.mxu0 0.0
      %7026 = vmatpush1.xpose.msra.mxu0 0.0
      %7027 = vmatprep.subr.mxu0 0.0
      %7028 = vmatpush1.xpose.msra.mxu0 0.0
      %7029 = vmatprep.subr.mxu0 0.0
      %7030 = vmatpush1.xpose.msra.mxu0 0.0
      %7031 = vmatprep.subr.mxu0 0.0
      %7032 = vmatpush1.xpose.msra.mxu0 0.0
      %7033 = vmatprep.subr.mxu0 0.0
      %7034 = vmatpush1.xpose.msra.mxu0 0.0
      %7035 = vmatprep.subr.mxu0 0.0
      %7036 = vmatpush1.xpose.msra.mxu0 0.0
      %7037 = vmatprep.subr.mxu0 0.0
      %7038 = vmatpush1.xpose.msra.mxu0 0.0
      %7039 = vmatprep.subr.mxu0 0.0
      %7040 = vmatpush1.xpose.msra.mxu0 0.0
      %7041 = vmatprep.subr.mxu0 0.0
      %7042 = vmatpush1.xpose.msra.mxu0 0.0
      %7043 = vmatprep.subr.mxu0 0.0
      %7044 = vmatpush1.xpose.msra.mxu0 0.0
      %7045 = vmatprep.mubr.f32.mxu0 0.0
      %7046 = vmatmul.mubr.f32.gmra.mrb[0].mxu0 %v6975
      %v7047 = vpop.f32.mrb[0].mxu0
      %v7048 = vadd.f32 0.0, %v7047
      %v7049 = vpop.f32.mrb[0].mxu0
      %7050 = vdwg.mxu0
      %7052 = vrot.lane.b32.xlu0 %v7048, 96
      %v7053 = vpop.permute.xlu0 %7052
      %7055 = vst.msk [vmem:[#allocation3 + $0x10] sm:$0xff] %vm1412, %v7053
      %7056 = vrot.lane.b32.xlu0 %v527, 32
      %v7057 = vpop.permute.xlu0 %7056
      %7058 = vrot.lane.b32.xlu0 %v4730, 80
      %v7059 = vpop.permute.xlu0 %7058
      %7060 = vrot.lane.b32.xlu0 %v4734, 80
      %v7061 = vpop.permute.xlu0 %7060
      %v7062 = vsel %vm644, %v7057, 0
      %v7064 = vsel %vm644, %v7059, 0
      %v7066 = vsel %vm644, %v7061, 0
      %7068 = vmatprep.subr.mxu0 0.0
      %7069 = vmatpush1.xpose.msra.mxu0 %v7064
      %7070 = vmatprep.subr.mxu0 0.0
      %7071 = vmatpush1.xpose.msra.mxu0 %v7066
      %7072 = vmatprep.subr.mxu0 0.0
      %7073 = vmatpush1.xpose.msra.mxu0 0.0
      %7074 = vmatprep.subr.mxu0 0.0
      %7075 = vmatpush1.xpose.msra.mxu0 0.0
      %7076 = vmatprep.subr.mxu0 0.0
      %7077 = vmatpush1.xpose.msra.mxu0 0.0
      %7078 = vmatprep.subr.mxu0 0.0
      %7079 = vmatpush1.xpose.msra.mxu0 0.0
      %7080 = vmatprep.subr.mxu0 0.0
      %7081 = vmatpush1.xpose.msra.mxu0 0.0
      %7082 = vmatprep.subr.mxu0 0.0
      %7083 = vmatpush1.xpose.msra.mxu0 0.0
      %7084 = vmatprep.subr.mxu0 0.0
      %7085 = vmatpush1.xpose.msra.mxu0 0.0
      %7086 = vmatprep.subr.mxu0 0.0
      %7087 = vmatpush1.xpose.msra.mxu0 0.0
      %7088 = vmatprep.subr.mxu0 0.0
      %7089 = vmatpush1.xpose.msra.mxu0 0.0
      %7090 = vmatprep.subr.mxu0 0.0
      %7091 = vmatpush1.xpose.msra.mxu0 0.0
      %7092 = vmatprep.subr.mxu0 0.0
      %7093 = vmatpush1.xpose.msra.mxu0 0.0
      %7094 = vmatprep.subr.mxu0 0.0
      %7095 = vmatpush1.xpose.msra.mxu0 0.0
      %7096 = vmatprep.subr.mxu0 0.0
      %7097 = vmatpush1.xpose.msra.mxu0 0.0
      %7098 = vmatprep.subr.mxu0 0.0
      %7099 = vmatpush1.xpose.msra.mxu0 0.0
      %7100 = vmatprep.subr.mxu0 0.0
      %7101 = vmatpush1.xpose.msra.mxu0 0.0
      %7102 = vmatprep.subr.mxu0 0.0
      %7103 = vmatpush1.xpose.msra.mxu0 0.0
      %7104 = vmatprep.subr.mxu0 0.0
      %7105 = vmatpush1.xpose.msra.mxu0 0.0
      %7106 = vmatprep.subr.mxu0 0.0
      %7107 = vmatpush1.xpose.msra.mxu0 0.0
      %7108 = vmatprep.subr.mxu0 0.0
      %7109 = vmatpush1.xpose.msra.mxu0 0.0
      %7110 = vmatprep.subr.mxu0 0.0
      %7111 = vmatpush1.xpose.msra.mxu0 0.0
      %7112 = vmatprep.subr.mxu0 0.0
      %7113 = vmatpush1.xpose.msra.mxu0 0.0
      %7114 = vmatprep.subr.mxu0 0.0
      %7115 = vmatpush1.xpose.msra.mxu0 0.0
      %7116 = vmatprep.subr.mxu0 0.0
      %7117 = vmatpush1.xpose.msra.mxu0 0.0
      %7118 = vmatprep.subr.mxu0 0.0
      %7119 = vmatpush1.xpose.msra.mxu0 0.0
      %7120 = vmatprep.subr.mxu0 0.0
      %7121 = vmatpush1.xpose.msra.mxu0 0.0
      %7122 = vmatprep.subr.mxu0 0.0
      %7123 = vmatpush1.xpose.msra.mxu0 0.0
      %7124 = vmatprep.subr.mxu0 0.0
      %7125 = vmatpush1.xpose.msra.mxu0 0.0
      %7126 = vmatprep.subr.mxu0 0.0
      %7127 = vmatpush1.xpose.msra.mxu0 0.0
      %7128 = vmatprep.subr.mxu0 0.0
      %7129 = vmatpush1.xpose.msra.mxu0 0.0
      %7130 = vmatprep.subr.mxu0 0.0
      %7131 = vmatpush1.xpose.msra.mxu0 0.0
      %7132 = vmatprep.mubr.f32.mxu0 0.0
      %7133 = vmatmul.mubr.f32.gmra.mrb[0].mxu0 %v7062
      %v7134 = vpop.f32.mrb[0].mxu0
      %v7135 = vadd.f32 0.0, %v7134
      %v7136 = vpop.f32.mrb[0].mxu0
      %7137 = vdwg.mxu0
      %7139 = vrot.lane.b32.xlu0 %v7135, 96
      %v7140 = vpop.permute.xlu0 %7139
      %7142 = vst.msk [vmem:[#allocation3 + $0x18] sm:$0xff] %vm1412, %v7140
      %7143 = vrot.lane.b32.xlu0 %v512, 16
      %v7144 = vpop.permute.xlu0 %7143
      %7145 = vrot.lane.b32.xlu0 %v4730, 64
      %v7146 = vpop.permute.xlu0 %7145
      %7147 = vrot.lane.b32.xlu0 %v4734, 64
      %v7148 = vpop.permute.xlu0 %7147
      %v7149 = vsel %vm644, %v7144, 0
      %v7151 = vsel %vm644, %v7146, 0
      %v7153 = vsel %vm644, %v7148, 0
      %7155 = vmatprep.subr.mxu0 0.0
      %7156 = vmatpush1.xpose.msra.mxu0 %v7151
      %7157 = vmatprep.subr.mxu0 0.0
      %7158 = vmatpush1.xpose.msra.mxu0 %v7153
      %7159 = vmatprep.subr.mxu0 0.0
      %7160 = vmatpush1.xpose.msra.mxu0 0.0
      %7161 = vmatprep.subr.mxu0 0.0
      %7162 = vmatpush1.xpose.msra.mxu0 0.0
      %7163 = vmatprep.subr.mxu0 0.0
      %7164 = vmatpush1.xpose.msra.mxu0 0.0
      %7165 = vmatprep.subr.mxu0 0.0
      %7166 = vmatpush1.xpose.msra.mxu0 0.0
      %7167 = vmatprep.subr.mxu0 0.0
      %7168 = vmatpush1.xpose.msra.mxu0 0.0
      %7169 = vmatprep.subr.mxu0 0.0
      %7170 = vmatpush1.xpose.msra.mxu0 0.0
      %7171 = vmatprep.subr.mxu0 0.0
      %7172 = vmatpush1.xpose.msra.mxu0 0.0
      %7173 = vmatprep.subr.mxu0 0.0
      %7174 = vmatpush1.xpose.msra.mxu0 0.0
      %7175 = vmatprep.subr.mxu0 0.0
      %7176 = vmatpush1.xpose.msra.mxu0 0.0
      %7177 = vmatprep.subr.mxu0 0.0
      %7178 = vmatpush1.xpose.msra.mxu0 0.0
      %7179 = vmatprep.subr.mxu0 0.0
      %7180 = vmatpush1.xpose.msra.mxu0 0.0
      %7181 = vmatprep.subr.mxu0 0.0
      %7182 = vmatpush1.xpose.msra.mxu0 0.0
      %7183 = vmatprep.subr.mxu0 0.0
      %7184 = vmatpush1.xpose.msra.mxu0 0.0
      %7185 = vmatprep.subr.mxu0 0.0
      %7186 = vmatpush1.xpose.msra.mxu0 0.0
      %7187 = vmatprep.subr.mxu0 0.0
      %7188 = vmatpush1.xpose.msra.mxu0 0.0
      %7189 = vmatprep.subr.mxu0 0.0
      %7190 = vmatpush1.xpose.msra.mxu0 0.0
      %7191 = vmatprep.subr.mxu0 0.0
      %7192 = vmatpush1.xpose.msra.mxu0 0.0
      %7193 = vmatprep.subr.mxu0 0.0
      %7194 = vmatpush1.xpose.msra.mxu0 0.0
      %7195 = vmatprep.subr.mxu0 0.0
      %7196 = vmatpush1.xpose.msra.mxu0 0.0
      %7197 = vmatprep.subr.mxu0 0.0
      %7198 = vmatpush1.xpose.msra.mxu0 0.0
      %7199 = vmatprep.subr.mxu0 0.0
      %7200 = vmatpush1.xpose.msra.mxu0 0.0
      %7201 = vmatprep.subr.mxu0 0.0
      %7202 = vmatpush1.xpose.msra.mxu0 0.0
      %7203 = vmatprep.subr.mxu0 0.0
      %7204 = vmatpush1.xpose.msra.mxu0 0.0
      %7205 = vmatprep.subr.mxu0 0.0
      %7206 = vmatpush1.xpose.msra.mxu0 0.0
      %7207 = vmatprep.subr.mxu0 0.0
      %7208 = vmatpush1.xpose.msra.mxu0 0.0
      %7209 = vmatprep.subr.mxu0 0.0
      %7210 = vmatpush1.xpose.msra.mxu0 0.0
      %7211 = vmatprep.subr.mxu0 0.0
      %7212 = vmatpush1.xpose.msra.mxu0 0.0
      %7213 = vmatprep.subr.mxu0 0.0
      %7214 = vmatpush1.xpose.msra.mxu0 0.0
      %7215 = vmatprep.subr.mxu0 0.0
      %7216 = vmatpush1.xpose.msra.mxu0 0.0
      %7217 = vmatprep.subr.mxu0 0.0
      %7218 = vmatpush1.xpose.msra.mxu0 0.0
      %7219 = vmatprep.mubr.f32.mxu0 0.0
      %7220 = vmatmul.mubr.f32.gmra.mrb[0].mxu0 %v7149
      %v7221 = vpop.f32.mrb[0].mxu0
      %v7222 = vadd.f32 0.0, %v7221
      %v7223 = vpop.f32.mrb[0].mxu0
      %7224 = vdwg.mxu0
      %7226 = vrot.lane.b32.xlu0 %v7222, 112
      %v7227 = vpop.permute.xlu0 %7226
      %7229 = vst.msk [vmem:[#allocation3] sm:$0xff] %vm1544, %v7227
      %7230 = vrot.lane.b32.xlu0 %v517, 16
      %v7231 = vpop.permute.xlu0 %7230
      %7232 = vrot.lane.b32.xlu0 %v4730, 48
      %v7233 = vpop.permute.xlu0 %7232
      %7234 = vrot.lane.b32.xlu0 %v4734, 48
      %v7235 = vpop.permute.xlu0 %7234
      %v7236 = vsel %vm644, %v7231, 0
      %v7238 = vsel %vm644, %v7233, 0
      %v7240 = vsel %vm644, %v7235, 0
      %7242 = vmatprep.subr.mxu0 0.0
      %7243 = vmatpush1.xpose.msra.mxu0 %v7238
      %7244 = vmatprep.subr.mxu0 0.0
      %7245 = vmatpush1.xpose.msra.mxu0 %v7240
      %7246 = vmatprep.subr.mxu0 0.0
      %7247 = vmatpush1.xpose.msra.mxu0 0.0
      %7248 = vmatprep.subr.mxu0 0.0
      %7249 = vmatpush1.xpose.msra.mxu0 0.0
      %7250 = vmatprep.subr.mxu0 0.0
      %7251 = vmatpush1.xpose.msra.mxu0 0.0
      %7252 = vmatprep.subr.mxu0 0.0
      %7253 = vmatpush1.xpose.msra.mxu0 0.0
      %7254 = vmatprep.subr.mxu0 0.0
      %7255 = vmatpush1.xpose.msra.mxu0 0.0
      %7256 = vmatprep.subr.mxu0 0.0
      %7257 = vmatpush1.xpose.msra.mxu0 0.0
      %7258 = vmatprep.subr.mxu0 0.0
      %7259 = vmatpush1.xpose.msra.mxu0 0.0
      %7260 = vmatprep.subr.mxu0 0.0
      %7261 = vmatpush1.xpose.msra.mxu0 0.0
      %7262 = vmatprep.subr.mxu0 0.0
      %7263 = vmatpush1.xpose.msra.mxu0 0.0
      %7264 = vmatprep.subr.mxu0 0.0
      %7265 = vmatpush1.xpose.msra.mxu0 0.0
      %7266 = vmatprep.subr.mxu0 0.0
      %7267 = vmatpush1.xpose.msra.mxu0 0.0
      %7268 = vmatprep.subr.mxu0 0.0
      %7269 = vmatpush1.xpose.msra.mxu0 0.0
      %7270 = vmatprep.subr.mxu0 0.0
      %7271 = vmatpush1.xpose.msra.mxu0 0.0
      %7272 = vmatprep.subr.mxu0 0.0
      %7273 = vmatpush1.xpose.msra.mxu0 0.0
      %7274 = vmatprep.subr.mxu0 0.0
      %7275 = vmatpush1.xpose.msra.mxu0 0.0
      %7276 = vmatprep.subr.mxu0 0.0
      %7277 = vmatpush1.xpose.msra.mxu0 0.0
      %7278 = vmatprep.subr.mxu0 0.0
      %7279 = vmatpush1.xpose.msra.mxu0 0.0
      %7280 = vmatprep.subr.mxu0 0.0
      %7281 = vmatpush1.xpose.msra.mxu0 0.0
      %7282 = vmatprep.subr.mxu0 0.0
      %7283 = vmatpush1.xpose.msra.mxu0 0.0
      %7284 = vmatprep.subr.mxu0 0.0
      %7285 = vmatpush1.xpose.msra.mxu0 0.0
      %7286 = vmatprep.subr.mxu0 0.0
      %7287 = vmatpush1.xpose.msra.mxu0 0.0
      %7288 = vmatprep.subr.mxu0 0.0
      %7289 = vmatpush1.xpose.msra.mxu0 0.0
      %7290 = vmatprep.subr.mxu0 0.0
      %7291 = vmatpush1.xpose.msra.mxu0 0.0
      %7292 = vmatprep.subr.mxu0 0.0
      %7293 = vmatpush1.xpose.msra.mxu0 0.0
      %7294 = vmatprep.subr.mxu0 0.0
      %7295 = vmatpush1.xpose.msra.mxu0 0.0
      %7296 = vmatprep.subr.mxu0 0.0
      %7297 = vmatpush1.xpose.msra.mxu0 0.0
      %7298 = vmatprep.subr.mxu0 0.0
      %7299 = vmatpush1.xpose.msra.mxu0 0.0
      %7300 = vmatprep.subr.mxu0 0.0
      %7301 = vmatpush1.xpose.msra.mxu0 0.0
      %7302 = vmatprep.subr.mxu0 0.0
      %7303 = vmatpush1.xpose.msra.mxu0 0.0
      %7304 = vmatprep.subr.mxu0 0.0
      %7305 = vmatpush1.xpose.msra.mxu0 0.0
      %7306 = vmatprep.mubr.f32.mxu0 0.0
      %7307 = vmatmul.mubr.f32.gmra.mrb[0].mxu0 %v7236
      %v7308 = vpop.f32.mrb[0].mxu0
      %v7309 = vadd.f32 0.0, %v7308
      %v7310 = vpop.f32.mrb[0].mxu0
      %7311 = vdwg.mxu0
      %7313 = vrot.lane.b32.xlu0 %v7309, 112
      %v7314 = vpop.permute.xlu0 %7313
      %7316 = vst.msk [vmem:[#allocation3 + $0x8] sm:$0xff] %vm1544, %v7314
      %7317 = vrot.lane.b32.xlu0 %v522, 16
      %v7318 = vpop.permute.xlu0 %7317
      %7319 = vrot.lane.b32.xlu0 %v4730, 32
      %v7320 = vpop.permute.xlu0 %7319
      %7321 = vrot.lane.b32.xlu0 %v4734, 32
      %v7322 = vpop.permute.xlu0 %7321
      %v7323 = vsel %vm644, %v7318, 0
      %v7325 = vsel %vm644, %v7320, 0
      %v7327 = vsel %vm644, %v7322, 0
      %7329 = vmatprep.subr.mxu0 0.0
      %7330 = vmatpush1.xpose.msra.mxu0 %v7325
      %7331 = vmatprep.subr.mxu0 0.0
      %7332 = vmatpush1.xpose.msra.mxu0 %v7327
      %7333 = vmatprep.subr.mxu0 0.0
      %7334 = vmatpush1.xpose.msra.mxu0 0.0
      %7335 = vmatprep.subr.mxu0 0.0
      %7336 = vmatpush1.xpose.msra.mxu0 0.0
      %7337 = vmatprep.subr.mxu0 0.0
      %7338 = vmatpush1.xpose.msra.mxu0 0.0
      %7339 = vmatprep.subr.mxu0 0.0
      %7340 = vmatpush1.xpose.msra.mxu0 0.0
      %7341 = vmatprep.subr.mxu0 0.0
      %7342 = vmatpush1.xpose.msra.mxu0 0.0
      %7343 = vmatprep.subr.mxu0 0.0
      %7344 = vmatpush1.xpose.msra.mxu0 0.0
      %7345 = vmatprep.subr.mxu0 0.0
      %7346 = vmatpush1.xpose.msra.mxu0 0.0
      %7347 = vmatprep.subr.mxu0 0.0
      %7348 = vmatpush1.xpose.msra.mxu0 0.0
      %7349 = vmatprep.subr.mxu0 0.0
      %7350 = vmatpush1.xpose.msra.mxu0 0.0
      %7351 = vmatprep.subr.mxu0 0.0
      %7352 = vmatpush1.xpose.msra.mxu0 0.0
      %7353 = vmatprep.subr.mxu0 0.0
      %7354 = vmatpush1.xpose.msra.mxu0 0.0
      %7355 = vmatprep.subr.mxu0 0.0
      %7356 = vmatpush1.xpose.msra.mxu0 0.0
      %7357 = vmatprep.subr.mxu0 0.0
      %7358 = vmatpush1.xpose.msra.mxu0 0.0
      %7359 = vmatprep.subr.mxu0 0.0
      %7360 = vmatpush1.xpose.msra.mxu0 0.0
      %7361 = vmatprep.subr.mxu0 0.0
      %7362 = vmatpush1.xpose.msra.mxu0 0.0
      %7363 = vmatprep.subr.mxu0 0.0
      %7364 = vmatpush1.xpose.msra.mxu0 0.0
      %7365 = vmatprep.subr.mxu0 0.0
      %7366 = vmatpush1.xpose.msra.mxu0 0.0
      %7367 = vmatprep.subr.mxu0 0.0
      %7368 = vmatpush1.xpose.msra.mxu0 0.0
      %7369 = vmatprep.subr.mxu0 0.0
      %7370 = vmatpush1.xpose.msra.mxu0 0.0
      %7371 = vmatprep.subr.mxu0 0.0
      %7372 = vmatpush1.xpose.msra.mxu0 0.0
      %7373 = vmatprep.subr.mxu0 0.0
      %7374 = vmatpush1.xpose.msra.mxu0 0.0
      %7375 = vmatprep.subr.mxu0 0.0
      %7376 = vmatpush1.xpose.msra.mxu0 0.0
      %7377 = vmatprep.subr.mxu0 0.0
      %7378 = vmatpush1.xpose.msra.mxu0 0.0
      %7379 = vmatprep.subr.mxu0 0.0
      %7380 = vmatpush1.xpose.msra.mxu0 0.0
      %7381 = vmatprep.subr.mxu0 0.0
      %7382 = vmatpush1.xpose.msra.mxu0 0.0
      %7383 = vmatprep.subr.mxu0 0.0
      %7384 = vmatpush1.xpose.msra.mxu0 0.0
      %7385 = vmatprep.subr.mxu0 0.0
      %7386 = vmatpush1.xpose.msra.mxu0 0.0
      %7387 = vmatprep.subr.mxu0 0.0
      %7388 = vmatpush1.xpose.msra.mxu0 0.0
      %7389 = vmatprep.subr.mxu0 0.0
      %7390 = vmatpush1.xpose.msra.mxu0 0.0
      %7391 = vmatprep.subr.mxu0 0.0
      %7392 = vmatpush1.xpose.msra.mxu0 0.0
      %7393 = vmatprep.mubr.f32.mxu0 0.0
      %7394 = vmatmul.mubr.f32.gmra.mrb[0].mxu0 %v7323
      %v7395 = vpop.f32.mrb[0].mxu0
      %v7396 = vadd.f32 0.0, %v7395
      %v7397 = vpop.f32.mrb[0].mxu0
      %7398 = vdwg.mxu0
      %7400 = vrot.lane.b32.xlu0 %v7396, 112
      %v7401 = vpop.permute.xlu0 %7400
      %7403 = vst.msk [vmem:[#allocation3 + $0x10] sm:$0xff] %vm1544, %v7401
      %7404 = vrot.lane.b32.xlu0 %v527, 16
      %v7405 = vpop.permute.xlu0 %7404
      %7406 = vrot.lane.b32.xlu0 %v4730, 16
      %v7407 = vpop.permute.xlu0 %7406
      %7408 = vrot.lane.b32.xlu0 %v4734, 16
      %v7409 = vpop.permute.xlu0 %7408
      %v7410 = vsel %vm644, %v7405, 0
      %v7412 = vsel %vm644, %v7407, 0
      %v7414 = vsel %vm644, %v7409, 0
      %7416 = vmatprep.subr.mxu0 0.0
      %7417 = vmatpush1.xpose.msra.mxu0 %v7412
      %7418 = vmatprep.subr.mxu0 0.0
      %7419 = vmatpush1.xpose.msra.mxu0 %v7414
      %7420 = vmatprep.subr.mxu0 0.0
      %7421 = vmatpush1.xpose.msra.mxu0 0.0
      %7422 = vmatprep.subr.mxu0 0.0
      %7423 = vmatpush1.xpose.msra.mxu0 0.0
      %7424 = vmatprep.subr.mxu0 0.0
      %7425 = vmatpush1.xpose.msra.mxu0 0.0
      %7426 = vmatprep.subr.mxu0 0.0
      %7427 = vmatpush1.xpose.msra.mxu0 0.0
      %7428 = vmatprep.subr.mxu0 0.0
      %7429 = vmatpush1.xpose.msra.mxu0 0.0
      %7430 = vmatprep.subr.mxu0 0.0
      %7431 = vmatpush1.xpose.msra.mxu0 0.0
      %7432 = vmatprep.subr.mxu0 0.0
      %7433 = vmatpush1.xpose.msra.mxu0 0.0
      %7434 = vmatprep.subr.mxu0 0.0
      %7435 = vmatpush1.xpose.msra.mxu0 0.0
      %7436 = vmatprep.subr.mxu0 0.0
      %7437 = vmatpush1.xpose.msra.mxu0 0.0
      %7438 = vmatprep.subr.mxu0 0.0
      %7439 = vmatpush1.xpose.msra.mxu0 0.0
      %7440 = vmatprep.subr.mxu0 0.0
      %7441 = vmatpush1.xpose.msra.mxu0 0.0
      %7442 = vmatprep.subr.mxu0 0.0
      %7443 = vmatpush1.xpose.msra.mxu0 0.0
      %7444 = vmatprep.subr.mxu0 0.0
      %7445 = vmatpush1.xpose.msra.mxu0 0.0
      %7446 = vmatprep.subr.mxu0 0.0
      %7447 = vmatpush1.xpose.msra.mxu0 0.0
      %7448 = vmatprep.subr.mxu0 0.0
      %7449 = vmatpush1.xpose.msra.mxu0 0.0
      %7450 = vmatprep.subr.mxu0 0.0
      %7451 = vmatpush1.xpose.msra.mxu0 0.0
      %7452 = vmatprep.subr.mxu0 0.0
      %7453 = vmatpush1.xpose.msra.mxu0 0.0
      %7454 = vmatprep.subr.mxu0 0.0
      %7455 = vmatpush1.xpose.msra.mxu0 0.0
      %7456 = vmatprep.subr.mxu0 0.0
      %7457 = vmatpush1.xpose.msra.mxu0 0.0
      %7458 = vmatprep.subr.mxu0 0.0
      %7459 = vmatpush1.xpose.msra.mxu0 0.0
      %7460 = vmatprep.subr.mxu0 0.0
      %7461 = vmatpush1.xpose.msra.mxu0 0.0
      %7462 = vmatprep.subr.mxu0 0.0
      %7463 = vmatpush1.xpose.msra.mxu0 0.0
      %7464 = vmatprep.subr.mxu0 0.0
      %7465 = vmatpush1.xpose.msra.mxu0 0.0
      %7466 = vmatprep.subr.mxu0 0.0
      %7467 = vmatpush1.xpose.msra.mxu0 0.0
      %7468 = vmatprep.subr.mxu0 0.0
      %7469 = vmatpush1.xpose.msra.mxu0 0.0
      %7470 = vmatprep.subr.mxu0 0.0
      %7471 = vmatpush1.xpose.msra.mxu0 0.0
      %7472 = vmatprep.subr.mxu0 0.0
      %7473 = vmatpush1.xpose.msra.mxu0 0.0
      %7474 = vmatprep.subr.mxu0 0.0
      %7475 = vmatpush1.xpose.msra.mxu0 0.0
      %7476 = vmatprep.subr.mxu0 0.0
      %7477 = vmatpush1.xpose.msra.mxu0 0.0
      %7478 = vmatprep.subr.mxu0 0.0
      %7479 = vmatpush1.xpose.msra.mxu0 0.0
      %7480 = vmatprep.mubr.f32.mxu0 0.0
      %7481 = vmatmul.mubr.f32.gmra.mrb[0].mxu0 %v7410
      %v7482 = vpop.f32.mrb[0].mxu0
      %v7483 = vadd.f32 0.0, %v7482
      %v7484 = vpop.f32.mrb[0].mxu0
      %7485 = vdwg.mxu0
      %7487 = vrot.lane.b32.xlu0 %v7483, 112
      %v7488 = vpop.permute.xlu0 %7487
      %7490 = vst.msk [vmem:[#allocation3 + $0x18] sm:$0xff] %vm1544, %v7488
      %v7491 = vld [vmem:[%s4] sm:$0xff]
      %v7492 = vld [vmem:[%s4 + $0x8] sm:$0xff]
      %v7493 = vld [vmem:[%s4 + $0x10] sm:$0xff]
      %v7494 = vld [vmem:[%s4 + $0x18] sm:$0xff]
      %v7495 = vld [vmem:[#allocation3] sm:$0xff]
      %v7496 = vld [vmem:[#allocation3 + $0x8] sm:$0xff]
      %v7497 = vld [vmem:[#allocation3 + $0x10] sm:$0xff]
      %v7498 = vld [vmem:[#allocation3 + $0x18] sm:$0xff]
      %v7499 = vld [vmem:[%s5] sm:$0xff]
      %v7500 = vld [vmem:[%s5 + $0x8] sm:$0xff]
      %v7501 = vld [vmem:[%s5 + $0x10] sm:$0xff]
      %v7502 = vld [vmem:[%s5 + $0x18] sm:$0xff]
      %7504 = vset.pattern.permute.xlu0 0
      %7505 = vperm.xlu0 %7504, %v7499
      %v7506 = vpop.permute.xlu0 %7505
      %7509 = vset.pattern.permute.xlu0 0
      %7510 = vperm.xlu0 %7509, %v7500
      %v7511 = vpop.permute.xlu0 %7510
      %7514 = vset.pattern.permute.xlu0 0
      %7515 = vperm.xlu0 %7514, %v7501
      %v7516 = vpop.permute.xlu0 %7515
      %7519 = vset.pattern.permute.xlu0 0
      %7520 = vperm.xlu0 %7519, %v7502
      %v7521 = vpop.permute.xlu0 %7520
      %vm7523 = vcmask 261120
      %v7525 = vsel %vm7523, %v7491, 0
      %v7528 = vsel %vm7523, %v7492, 0
      %v7531 = vsel %vm7523, %v7493, 0
      %v7534 = vsel %vm7523, %v7494, 0
      %7536 = vmatprep.subr.mxu0 0.0
      %7537 = vmatpush1.msra.mxu0 %v7495
      %7538 = vmatprep.subr.mxu0 0.0
      %7539 = vmatpush1.msra.mxu0 %v7496
      %7540 = vmatprep.subr.mxu0 0.0
      %7541 = vmatpush1.msra.mxu0 %v7497
      %7542 = vmatprep.subr.mxu0 0.0
      %7543 = vmatpush1.msra.mxu0 %v7498
      %7544 = vmatprep.subr.mxu0 0.0
      %7545 = vmatpush1.msra.mxu0 0.0
      %7546 = vmatprep.subr.mxu0 0.0
      %7547 = vmatpush1.msra.mxu0 0.0
      %7548 = vmatprep.subr.mxu0 0.0
      %7549 = vmatpush1.msra.mxu0 0.0
      %7550 = vmatprep.subr.mxu0 0.0
      %7551 = vmatpush1.msra.mxu0 0.0
      %7552 = vmatprep.subr.mxu0 0.0
      %7553 = vmatpush1.msra.mxu0 0.0
      %7554 = vmatprep.subr.mxu0 0.0
      %7555 = vmatpush1.msra.mxu0 0.0
      %7556 = vmatprep.subr.mxu0 0.0
      %7557 = vmatpush1.msra.mxu0 0.0
      %7558 = vmatprep.subr.mxu0 0.0
      %7559 = vmatpush1.msra.mxu0 0.0
      %7560 = vmatprep.subr.mxu0 0.0
      %7561 = vmatpush1.msra.mxu0 0.0
      %7562 = vmatprep.subr.mxu0 0.0
      %7563 = vmatpush1.msra.mxu0 0.0
      %7564 = vmatprep.subr.mxu0 0.0
      %7565 = vmatpush1.msra.mxu0 0.0
      %7566 = vmatprep.subr.mxu0 0.0
      %7567 = vmatpush1.msra.mxu0 0.0
      %7568 = vmatprep.subr.mxu0 0.0
      %7569 = vmatpush1.msra.mxu0 0.0
      %7570 = vmatprep.subr.mxu0 0.0
      %7571 = vmatpush1.msra.mxu0 0.0
      %7572 = vmatprep.subr.mxu0 0.0
      %7573 = vmatpush1.msra.mxu0 0.0
      %7574 = vmatprep.subr.mxu0 0.0
      %7575 = vmatpush1.msra.mxu0 0.0
      %7576 = vmatprep.subr.mxu0 0.0
      %7577 = vmatpush1.msra.mxu0 0.0
      %7578 = vmatprep.subr.mxu0 0.0
      %7579 = vmatpush1.msra.mxu0 0.0
      %7580 = vmatprep.subr.mxu0 0.0
      %7581 = vmatpush1.msra.mxu0 0.0
      %7582 = vmatprep.subr.mxu0 0.0
      %7583 = vmatpush1.msra.mxu0 0.0
      %7584 = vmatprep.subr.mxu0 0.0
      %7585 = vmatpush1.msra.mxu0 0.0
      %7586 = vmatprep.subr.mxu0 0.0
      %7587 = vmatpush1.msra.mxu0 0.0
      %7588 = vmatprep.subr.mxu0 0.0
      %7589 = vmatpush1.msra.mxu0 0.0
      %7590 = vmatprep.subr.mxu0 0.0
      %7591 = vmatpush1.msra.mxu0 0.0
      %7592 = vmatprep.subr.mxu0 0.0
      %7593 = vmatpush1.msra.mxu0 0.0
      %7594 = vmatprep.subr.mxu0 0.0
      %7595 = vmatpush1.msra.mxu0 0.0
      %7596 = vmatprep.subr.mxu0 0.0
      %7597 = vmatpush1.msra.mxu0 0.0
      %7598 = vmatprep.subr.mxu0 0.0
      %7599 = vmatpush1.msra.mxu0 0.0
      %7600 = vmatprep.mubr.f32.mxu0 0.0
      %7601 = vmatmul.mubr.f32.gmra.mrb[0].mxu0 %v7525
      %v7602 = vpop.f32.mrb[0].mxu0
      %v7603 = vadd.f32 %v7506, %v7602
      %v7604 = vpop.f32.mrb[0].mxu0
      %7605 = vmatprep.mubr.f32.mxu0 0.0
      %7606 = vmatmul.mubr.f32.gmra.mrb[0].mxu0 %v7528
      %v7607 = vpop.f32.mrb[0].mxu0
      %v7608 = vadd.f32 %v7511, %v7607
      %v7609 = vpop.f32.mrb[0].mxu0
      %7610 = vmatprep.mubr.f32.mxu0 0.0
      %7611 = vmatmul.mubr.f32.gmra.mrb[0].mxu0 %v7531
      %v7612 = vpop.f32.mrb[0].mxu0
      %v7613 = vadd.f32 %v7516, %v7612
      %v7614 = vpop.f32.mrb[0].mxu0
      %7615 = vmatprep.mubr.f32.mxu0 0.0
      %7616 = vmatmul.mubr.f32.gmra.mrb[0].mxu0 %v7534
      %v7617 = vpop.f32.mrb[0].mxu0
      %v7618 = vadd.f32 %v7521, %v7617
      %v7619 = vpop.f32.mrb[0].mxu0
      %7620 = vdwg.mxu0
      %7621 = vst [vmem:[%s271] sm:$0xff] %v7603
      %7622 = vst [vmem:[%s271 + $0x8] sm:$0xff] %v7608
      %7623 = vst [vmem:[%s271 + $0x10] sm:$0xff] %v7613
      %7624 = vst [vmem:[%s271 + $0x18] sm:$0xff] %v7618
      %p7625 = scmp.lt.s32.totalorder %s17, 1
      %s7626 = scalar_select %p7625, %s17, 1
      %s7627 = smul.addr %s7626, 4
      %s7628 = smul.addr %s7627, 8
      %s7629 = scalar_lea.vmem %s6, %s7628
      // Predicated region
      $region45: #{multi_head_attention.1} parent=43 // pred_check
        %p7630 = pneg %p171
      $region46: #{multi_head_attention.1} parent=43 // pred_check_branch
        %7632 = sbr.rel (%p7630) target = $region48
      $region47: #{multi_head_attention.1} parent=43 // pred_region
        _
      $region48: #{multi_head_attention.1} parent=43 // pred_fallthru
        _
    $region44: #{multi_head_attention.1} parent=5 // pred_fallthru
      _
    %p7633 = scmp.le.s32.totalorder 2, %s12
    // Predicated region
    $region49: #{multi_head_attention.1} parent=5 // pred_check
      %p7634 = pneg %p7633
    $region50: #{multi_head_attention.1} parent=5 // pred_check_branch
      %7636 = sbr.rel (%p7634) target = $region52
    $region51: #{multi_head_attention.1} parent=5 // pred_region
      %s7637 = ssub.s32 %s12, 2
      // Predicated region
      $region53: #{multi_head_attention.1} parent=51 // pred_check
        %p7638 = pneg %p177
      $region54: #{multi_head_attention.1} parent=51 // pred_check_branch
        %7640 = sbr.rel (%p7638) target = $region56
      $region55: #{multi_head_attention.1} parent=51 // pred_region
        %p7641 = scmp.lt.s32.totalorder %s18, 1
        %s7642 = scalar_select %p7641, %s18, 1
        %s7643 = smul.addr %s7642, 4
        %s7644 = smul.addr %s7643, 8
        %s7645 = scalar_lea.vmem %s6, %s7644
      $region56: #{multi_head_attention.1} parent=51 // pred_fallthru
        _
    $region52: #{multi_head_attention.1} parent=5 // pred_fallthru
      _
  $region6: #{multi_head_attention.1} parent=0 // loop_footer
    %s16 = sadd.s32 1, %s12
  $region7: #{multi_head_attention.1} parent=0 // loop_footer_branch
    %11 = sbr.rel target = $region3
  $region8: #{multi_head_attention.1} parent=0 // loop_exit
    _

</llo_original>
